<compile_context>
chip_gen: v6e
topology: v6e:2x2x1
jax: 0.10.0
libtpu: 0.0.40
codegen_flags: <defaults>
</compile_context>

<pallas_src>
import jax
import jax.numpy as jnp
from jax.experimental import pallas as pl
from jax.experimental.pallas import tpu as pltpu

_LANE = 128
_EPS = 1e-5


def _round_up(x, m):
    return ((x + m - 1) // m) * m


def _make_basic_block_kernel(N, H, W, Cp, Pp, stride, has_shortcut,
                             compute_dtype, eps=_EPS):
    Ho = (H - 1) // stride + 1
    Wo = (W - 1) // stride + 1
    M = N * Ho * Wo

    def pad_hw(x4):
        # zero halo of 1 around H and W, built with two concatenations (no scratch,
        # no full-buffer zeroing, no unaligned interior store)
        n, hh, ww, c = x4.shape
        zw = jnp.zeros((n, hh, 1, c), x4.dtype)
        x4 = jnp.concatenate([zw, x4, zw], axis=2)
        zh = jnp.zeros((n, 1, ww + 2, c), x4.dtype)
        return jnp.concatenate([zh, x4, zh], axis=1)

    def conv3x3(xpad4, w2d, s, Hout, Wout):
        # xpad4: (N, Hin+2, Win+2, C) float32, spatially padded
        # w2d  : (9*C, Cout) compute_dtype, rows ordered (ky, kx, ci)
        # Single fused im2col matmul: K = 9*C (lane-dense, >= 1152) instead of 9 tiny dots.
        n, _, _, C = xpad4.shape
        cols = []
        for dy in range(3):
            for dx in range(3):
                cols.append(jax.lax.slice(
                    xpad4,
                    (0, dy, dx, 0),
                    (n, dy + s * (Hout - 1) + 1, dx + s * (Wout - 1) + 1, C),
                    (1, s, s, 1)))
        patch = jnp.concatenate(cols, axis=-1)                     # (n, Hout, Wout, 9*C)
        patch = patch.reshape(n * Hout * Wout, 9 * C).astype(compute_dtype)
        return jnp.dot(patch, w2d, preferred_element_type=jnp.float32)

    def bn_fold(y2d, gamma, beta, relu):
        # single-pass training-mode BN: biased stats over rows (N*Ho*Wo),
        # folded per-channel scale/shift applied as one FMA
        inv_m = 1.0 / y2d.shape[0]
        mean = jnp.sum(y2d, axis=0, keepdims=True) * inv_m
        ex2 = jnp.sum(y2d * y2d, axis=0, keepdims=True) * inv_m
        var = ex2 - mean * mean
        scale = gamma * jax.lax.rsqrt(var + eps)
        shift = beta - mean * scale
        out = y2d * scale + shift
        return jnp.maximum(out, 0.0) if relu else out

    def kernel(*refs):
        if has_shortcut:
            (x_ref, w1_ref, g1_ref, b1_ref, w2_ref, g2_ref, b2_ref,
             ws_ref, gs_ref, bs_ref, out_ref) = refs
        else:
            (x_ref, w1_ref, g1_ref, b1_ref, w2_ref, g2_ref, b2_ref,
             out_ref) = refs

        x = x_ref[...].astype(jnp.float32)              # (N, H, W, Cp)
        xpad = pad_hw(x)

        # conv1 -> bn1 -> relu
        y1 = conv3x3(xpad, w1_ref[...], stride, Ho, Wo)             # (M, Pp) f32
        y1 = bn_fold(y1, g1_ref[...], b1_ref[...], relu=True)

        # conv2 -> bn2
        h1 = pad_hw(y1.reshape(N, Ho, Wo, Pp))
        y2 = conv3x3(h1, w2_ref[...], 1, Ho, Wo)
        y2 = bn_fold(y2, g2_ref[...], b2_ref[...], relu=False)

        # shortcut branch
        if has_shortcut:
            sc = conv3x3(xpad, ws_ref[...], stride, Ho, Wo)
            sc = bn_fold(sc, gs_ref[...], bs_ref[...], relu=False)
        else:
            # identity: Cin == P (same padded width) and stride == 1; read x directly
            sc = x.reshape(M, Pp)

        out_ref[...] = jnp.maximum(y2 + sc, 0.0).reshape(N, Ho, Wo, Pp)

    return kernel, Ho, Wo


def basic_block_forward(x_nchw, params, stride=1, compute_dtype=jnp.bfloat16):
    """x_nchw: (N, Cin, H, W) float32, PyTorch layout. Returns NCHW float32 output."""
    N, Cin, H, W = x_nchw.shape
    P = params["w1"].shape[0]
    has_shortcut = (stride != 1) or (Cin != P)

    Cp = _round_up(Cin, _LANE)
    Pp = _round_up(P, _LANE)
    if not has_shortcut:
        assert Cp == Pp  # identity shortcut => Cin == P => same padded lane width

    kernel, Ho, Wo = _make_basic_block_kernel(
        N, H, W, Cp, Pp, stride, has_shortcut, compute_dtype)

    # NCHW -> NHWC, zero-pad channels to a full 128-lane width, cast to compute dtype.
    x_nhwc = jnp.transpose(x_nchw, (0, 2, 3, 1)).astype(jnp.float32)
    x_in = jnp.pad(x_nhwc, ((0, 0), (0, 0), (0, 0), (0, Cp - Cin))).astype(compute_dtype)

    def taps(w_oihw, ci_pad, co_pad):
        # (Cout, Cin, 3, 3) -> (9*ci_pad, co_pad), rows ordered (ky, kx, ci)
        co, ci = w_oihw.shape[0], w_oihw.shape[1]
        w = jnp.transpose(w_oihw.astype(jnp.float32), (2, 3, 1, 0))   # (3,3,ci,co)
        w = jnp.pad(w, ((0, 0), (0, 0), (0, ci_pad - ci), (0, co_pad - co)))
        return w.reshape(9 * ci_pad, co_pad).astype(compute_dtype)

    def vec(v, co_pad):
        return jnp.pad(v.astype(jnp.float32), (0, co_pad - v.shape[0]))[None, :]

    ins = [x_in,
           taps(params["w1"], Cp, Pp), vec(params["g1"], Pp), vec(params["b1"], Pp),
           taps(params["w2"], Pp, Pp), vec(params["g2"], Pp), vec(params["b2"], Pp)]
    if has_shortcut:
        ins += [taps(params["ws"], Cp, Pp), vec(params["gs"], Pp), vec(params["bs"], Pp)]

    M = N * Ho * Wo
    n_bn = 3 if has_shortcut else 2
    flops = (2 * M * 9 * Cp * Pp + 2 * M * 9 * Pp * Pp
             + (2 * M * 9 * Cp * Pp if has_shortcut else 0))
    bytes_accessed = sum(int(a.size) * a.dtype.itemsize for a in ins) + M * Pp * 4

    vmem = pl.BlockSpec(memory_space=pltpu.MemorySpace.VMEM)
    out_nhwc = pl.pallas_call(
        kernel,
        out_shape=jax.ShapeDtypeStruct((N, Ho, Wo, Pp), jnp.float32),
        in_specs=[vmem] * len(ins),
        out_specs=vmem,
        compiler_params=pltpu.CompilerParams(vmem_limit_bytes=48 * 1024 * 1024),
        cost_estimate=pl.CostEstimate(flops=flops,
                                      transcendentals=n_bn * Pp,
                                      bytes_accessed=bytes_accessed),
    )(*ins)

    out = out_nhwc[:, :, :, :P]                        # drop channel padding
    return jnp.transpose(out, (0, 3, 1, 2))


def basic_block_ref(x, params, stride=1, eps=_EPS, cast_dtype=None):
    """Pure-JAX NCHW reference (PyTorch training-mode forward).

    cast_dtype=None      -> exact f32 reference (module semantics)
    cast_dtype=bfloat16  -> quantization-matched reference (inputs/weights rounded to bf16
                            at the same points as the kernel; bf16 products are exact in f32)
    """
    def c(a):
        return a if cast_dtype is None else a.astype(cast_dtype).astype(jnp.float32)

    def conv(x, w, s):
        return jax.lax.conv_general_dilated(
            c(x), c(w), (s, s), ((1, 1), (1, 1)),
            dimension_numbers=('NCHW', 'OIHW', 'NCHW'))

    def bn(y, g, b):
        mean = jnp.mean(y, axis=(0, 2, 3), keepdims=True)
        var = jnp.mean((y - mean) ** 2, axis=(0, 2, 3), keepdims=True)
        return ((y - mean) * jax.lax.rsqrt(var + eps) * g.reshape(1, -1, 1, 1)
                + b.reshape(1, -1, 1, 1))

    P = params["w1"].shape[0]
    Cin = x.shape[1]
    out = jax.nn.relu(bn(conv(x, params["w1"], stride), params["g1"], params["b1"]))
    out = bn(conv(out, params["w2"], 1), params["g2"], params["b2"])
    if stride != 1 or Cin != P:
        sc = bn(conv(x, params["ws"], stride), params["gs"], params["bs"])
    else:
        sc = c(x)
    return jax.nn.relu(out + sc)


def _make_params(key, in_planes, planes):
    ks = jax.random.split(key, 9)
    return {
        "w1": 0.1 * jax.random.normal(ks[0], (planes, in_planes, 3, 3), jnp.float32),
        "g1": 1.0 + 0.1 * jax.random.normal(ks[1], (planes,), jnp.float32),
        "b1": 0.1 * jax.random.normal(ks[2], (planes,), jnp.float32),
        "w2": 0.1 * jax.random.normal(ks[3], (planes, planes, 3, 3), jnp.float32),
        "g2": 1.0 + 0.1 * jax.random.normal(ks[4], (planes,), jnp.float32),
        "b2": 0.1 * jax.random.normal(ks[5], (planes,), jnp.float32),
        "ws": 0.1 * jax.random.normal(ks[6], (planes, in_planes, 3, 3), jnp.float32),
        "gs": 1.0 + 0.1 * jax.random.normal(ks[7], (planes,), jnp.float32),
        "bs": 0.1 * jax.random.normal(ks[8], (planes,), jnp.float32),
    }


if __name__ == "__main__":
    key = jax.random.PRNGKey(0)
    k_p1, k_p2, k_x1, k_x2 = jax.random.split(key, 4)

    # Case 1: conv shortcut (in_planes != planes), stride 1 — bf16 data, f32 accumulation.
    N, Cin, H, W, planes, stride = 2, 4, 16, 16, 8, 1
    params1 = _make_params(k_p1, Cin, planes)
    x1 = jax.random.normal(k_x1, (N, Cin, H, W), jnp.float32)

    out_bf16 = jax.block_until_ready(
        basic_block_forward(x1, params1, stride, compute_dtype=jnp.bfloat16))
    ref_bf16 = jax.block_until_ready(
        basic_block_ref(x1, params1, stride, cast_dtype=jnp.bfloat16))
    assert out_bf16.shape == (N, planes, H, W), out_bf16.shape
    assert jnp.allclose(out_bf16, ref_bf16, atol=5e-3, rtol=5e-3), \
        float(jnp.max(jnp.abs(out_bf16 - ref_bf16)))

    # Same case with float32 compute: tight parity with the exact f32 reference.
    out_f32 = jax.block_until_ready(
        basic_block_forward(x1, params1, stride, compute_dtype=jnp.float32))
    ref_f32 = jax.block_until_ready(basic_block_ref(x1, params1, stride))
    assert jnp.allclose(out_f32, ref_f32, atol=5e-4, rtol=5e-4), \
        float(jnp.max(jnp.abs(out_f32 - ref_f32)))

    # Case 2: identity shortcut (in_planes == planes, stride 1), bf16 path.
    Cin2 = planes
    params2 = _make_params(k_p2, Cin2, planes)
    x2 = jax.random.normal(k_x2, (N, Cin2, H, W), jnp.float32)
    out2 = jax.block_until_ready(
        basic_block_forward(x2, params2, 1, compute_dtype=jnp.bfloat16))
    ref2 = jax.block_until_ready(
        basic_block_ref(x2, params2, 1, cast_dtype=jnp.bfloat16))
    assert out2.shape == (N, planes, H, W), out2.shape
    assert jnp.allclose(out2, ref2, atol=5e-3, rtol=5e-3), \
        float(jnp.max(jnp.abs(out2 - ref2)))

    print("KERNEL_OK")
</pallas_src>

<mosaic_0001>
module attributes {stable_mosaic.version = 11 : i64} {
  func.func @kernel(%arg0: memref<2x16x16x128xbf16, #tpu.memory_space<vmem>>, %arg1: memref<1152x128xbf16, #tpu.memory_space<vmem>>, %arg2: memref<1x128xf32, #tpu.memory_space<vmem>>, %arg3: memref<1x128xf32, #tpu.memory_space<vmem>>, %arg4: memref<1152x128xbf16, #tpu.memory_space<vmem>>, %arg5: memref<1x128xf32, #tpu.memory_space<vmem>>, %arg6: memref<1x128xf32, #tpu.memory_space<vmem>>, %arg7: memref<1152x128xbf16, #tpu.memory_space<vmem>>, %arg8: memref<1x128xf32, #tpu.memory_space<vmem>>, %arg9: memref<1x128xf32, #tpu.memory_space<vmem>>, %arg10: memref<2x16x16x128xf32, #tpu.memory_space<vmem>>) attributes {dimension_semantics = [], scalar_prefetch = 0 : i64, scratch_operands = 0 : i64, tpu.core_type = #tpu.core_type<tc>} {
    %c0 = arith.constant 0 : index
    %c0_0 = arith.constant 0 : index
    %c0_1 = arith.constant 0 : index
    %c0_2 = arith.constant 0 : index
    %0 = vector.load %arg0[%c0, %c0_0, %c0_1, %c0_2] : memref<2x16x16x128xbf16, #tpu.memory_space<vmem>>, vector<2x16x16x128xbf16>
    %1 = arith.extf %0 : vector<2x16x16x128xbf16> to vector<2x16x16x128xf32>
    %cst = arith.constant 0.000000e+00 : f32
    %2 = vector.broadcast %cst : f32 to vector<2x16x1x128xf32>
    %3 = tpu.concatenate %2, %1, %2 in 2 : vector<2x16x1x128xf32>, vector<2x16x16x128xf32>, vector<2x16x1x128xf32> -> vector<2x16x18x128xf32>
    %cst_3 = arith.constant 0.000000e+00 : f32
    %4 = vector.broadcast %cst_3 : f32 to vector<2x1x18x128xf32>
    %5 = tpu.concatenate %4, %3, %4 in 1 : vector<2x1x18x128xf32>, vector<2x16x18x128xf32>, vector<2x1x18x128xf32> -> vector<2x18x18x128xf32>
    %c0_4 = arith.constant 0 : index
    %c0_5 = arith.constant 0 : index
    %6 = vector.load %arg1[%c0_4, %c0_5] : memref<1152x128xbf16, #tpu.memory_space<vmem>>, vector<1152x128xbf16>
    %7 = vector.extract_strided_slice %5 {offsets = [0, 0, 0, 0], sizes = [2, 16, 16, 128], strides = [1, 1, 1, 1]} : vector<2x18x18x128xf32> to vector<2x16x16x128xf32>
    %8 = vector.extract_strided_slice %5 {offsets = [0, 0, 1, 0], sizes = [2, 16, 16, 128], strides = [1, 1, 1, 1]} : vector<2x18x18x128xf32> to vector<2x16x16x128xf32>
    %9 = vector.extract_strided_slice %5 {offsets = [0, 0, 2, 0], sizes = [2, 16, 16, 128], strides = [1, 1, 1, 1]} : vector<2x18x18x128xf32> to vector<2x16x16x128xf32>
    %10 = vector.extract_strided_slice %5 {offsets = [0, 1, 0, 0], sizes = [2, 16, 16, 128], strides = [1, 1, 1, 1]} : vector<2x18x18x128xf32> to vector<2x16x16x128xf32>
    %11 = vector.extract_strided_slice %5 {offsets = [0, 1, 1, 0], sizes = [2, 16, 16, 128], strides = [1, 1, 1, 1]} : vector<2x18x18x128xf32> to vector<2x16x16x128xf32>
    %12 = vector.extract_strided_slice %5 {offsets = [0, 1, 2, 0], sizes = [2, 16, 16, 128], strides = [1, 1, 1, 1]} : vector<2x18x18x128xf32> to vector<2x16x16x128xf32>
    %13 = vector.extract_strided_slice %5 {offsets = [0, 2, 0, 0], sizes = [2, 16, 16, 128], strides = [1, 1, 1, 1]} : vector<2x18x18x128xf32> to vector<2x16x16x128xf32>
    %14 = vector.extract_strided_slice %5 {offsets = [0, 2, 1, 0], sizes = [2, 16, 16, 128], strides = [1, 1, 1, 1]} : vector<2x18x18x128xf32> to vector<2x16x16x128xf32>
    %15 = vector.extract_strided_slice %5 {offsets = [0, 2, 2, 0], sizes = [2, 16, 16, 128], strides = [1, 1, 1, 1]} : vector<2x18x18x128xf32> to vector<2x16x16x128xf32>
    %16 = tpu.concatenate %7, %8, %9, %10, %11, %12, %13, %14, %15 in 3 : vector<2x16x16x128xf32>, vector<2x16x16x128xf32>, vector<2x16x16x128xf32>, vector<2x16x16x128xf32>, vector<2x16x16x128xf32>, vector<2x16x16x128xf32>, vector<2x16x16x128xf32>, vector<2x16x16x128xf32>, vector<2x16x16x128xf32> -> vector<2x16x16x1152xf32>
    %17 = vector.shape_cast %16 : vector<2x16x16x1152xf32> to vector<512x1152xf32>
    %18 = arith.truncf %17 : vector<512x1152xf32> to vector<512x1152xbf16>
    %cst_6 = arith.constant dense<0.000000e+00> : vector<512x128xf32>
    %19 = tpu.matmul %18, %6, %cst_6 {dimension_numbers = #tpu.dot_dimension_numbers<[1], [0], [0], [1], [0, 0, 1, 1], [], []>} : vector<512x1152xbf16>, vector<1152x128xbf16>, vector<512x128xf32> -> vector<512x128xf32>
    %c0_7 = arith.constant 0 : index
    %c0_8 = arith.constant 0 : index
    %20 = vector.load %arg2[%c0_7, %c0_8] : memref<1x128xf32, #tpu.memory_space<vmem>>, vector<1x128xf32>
    %c0_9 = arith.constant 0 : index
    %c0_10 = arith.constant 0 : index
    %21 = vector.load %arg3[%c0_9, %c0_10] : memref<1x128xf32, #tpu.memory_space<vmem>>, vector<1x128xf32>
    %cst_11 = arith.constant dense<0.000000e+00> : vector<128xf32>
    %22 = vector.multi_reduction <add>, %19, %cst_11 [0] : vector<512x128xf32> to vector<128xf32>
    %23 = vector.shape_cast %22 : vector<128xf32> to vector<1x128xf32>
    %cst_12 = arith.constant 0.001953125 : f32
    %24 = vector.broadcast %cst_12 : f32 to vector<1x128xf32>
    %25 = arith.mulf %23, %24 : vector<1x128xf32>
    %26 = arith.mulf %19, %19 : vector<512x128xf32>
    %cst_13 = arith.constant dense<0.000000e+00> : vector<128xf32>
    %27 = vector.multi_reduction <add>, %26, %cst_13 [0] : vector<512x128xf32> to vector<128xf32>
    %28 = vector.shape_cast %27 : vector<128xf32> to vector<1x128xf32>
    %cst_14 = arith.constant 0.001953125 : f32
    %29 = vector.broadcast %cst_14 : f32 to vector<1x128xf32>
    %30 = arith.mulf %28, %29 : vector<1x128xf32>
    %31 = arith.mulf %25, %25 : vector<1x128xf32>
    %32 = arith.subf %30, %31 : vector<1x128xf32>
    %cst_15 = arith.constant 9.99999974E-6 : f32
    %33 = vector.broadcast %cst_15 : f32 to vector<1x128xf32>
    %34 = arith.addf %32, %33 : vector<1x128xf32>
    %35 = math.rsqrt %34 : vector<1x128xf32>
    %36 = arith.mulf %20, %35 : vector<1x128xf32>
    %37 = arith.mulf %25, %36 : vector<1x128xf32>
    %38 = arith.subf %21, %37 : vector<1x128xf32>
    %39 = vector.broadcast %36 : vector<1x128xf32> to vector<512x128xf32>
    %40 = arith.mulf %19, %39 : vector<512x128xf32>
    %41 = vector.broadcast %38 : vector<1x128xf32> to vector<512x128xf32>
    %42 = arith.addf %40, %41 : vector<512x128xf32>
    %cst_16 = arith.constant 0.000000e+00 : f32
    %43 = vector.broadcast %cst_16 : f32 to vector<512x128xf32>
    %44 = arith.maximumf %42, %43 : vector<512x128xf32>
    %45 = vector.shape_cast %44 : vector<512x128xf32> to vector<2x16x16x128xf32>
    %cst_17 = arith.constant 0.000000e+00 : f32
    %46 = vector.broadcast %cst_17 : f32 to vector<2x16x1x128xf32>
    %47 = tpu.concatenate %46, %45, %46 in 2 : vector<2x16x1x128xf32>, vector<2x16x16x128xf32>, vector<2x16x1x128xf32> -> vector<2x16x18x128xf32>
    %cst_18 = arith.constant 0.000000e+00 : f32
    %48 = vector.broadcast %cst_18 : f32 to vector<2x1x18x128xf32>
    %49 = tpu.concatenate %48, %47, %48 in 1 : vector<2x1x18x128xf32>, vector<2x16x18x128xf32>, vector<2x1x18x128xf32> -> vector<2x18x18x128xf32>
    %c0_19 = arith.constant 0 : index
    %c0_20 = arith.constant 0 : index
    %50 = vector.load %arg4[%c0_19, %c0_20] : memref<1152x128xbf16, #tpu.memory_space<vmem>>, vector<1152x128xbf16>
    %51 = vector.extract_strided_slice %49 {offsets = [0, 0, 0, 0], sizes = [2, 16, 16, 128], strides = [1, 1, 1, 1]} : vector<2x18x18x128xf32> to vector<2x16x16x128xf32>
    %52 = vector.extract_strided_slice %49 {offsets = [0, 0, 1, 0], sizes = [2, 16, 16, 128], strides = [1, 1, 1, 1]} : vector<2x18x18x128xf32> to vector<2x16x16x128xf32>
    %53 = vector.extract_strided_slice %49 {offsets = [0, 0, 2, 0], sizes = [2, 16, 16, 128], strides = [1, 1, 1, 1]} : vector<2x18x18x128xf32> to vector<2x16x16x128xf32>
    %54 = vector.extract_strided_slice %49 {offsets = [0, 1, 0, 0], sizes = [2, 16, 16, 128], strides = [1, 1, 1, 1]} : vector<2x18x18x128xf32> to vector<2x16x16x128xf32>
    %55 = vector.extract_strided_slice %49 {offsets = [0, 1, 1, 0], sizes = [2, 16, 16, 128], strides = [1, 1, 1, 1]} : vector<2x18x18x128xf32> to vector<2x16x16x128xf32>
    %56 = vector.extract_strided_slice %49 {offsets = [0, 1, 2, 0], sizes = [2, 16, 16, 128], strides = [1, 1, 1, 1]} : vector<2x18x18x128xf32> to vector<2x16x16x128xf32>
    %57 = vector.extract_strided_slice %49 {offsets = [0, 2, 0, 0], sizes = [2, 16, 16, 128], strides = [1, 1, 1, 1]} : vector<2x18x18x128xf32> to vector<2x16x16x128xf32>
    %58 = vector.extract_strided_slice %49 {offsets = [0, 2, 1, 0], sizes = [2, 16, 16, 128], strides = [1, 1, 1, 1]} : vector<2x18x18x128xf32> to vector<2x16x16x128xf32>
    %59 = vector.extract_strided_slice %49 {offsets = [0, 2, 2, 0], sizes = [2, 16, 16, 128], strides = [1, 1, 1, 1]} : vector<2x18x18x128xf32> to vector<2x16x16x128xf32>
    %60 = tpu.concatenate %51, %52, %53, %54, %55, %56, %57, %58, %59 in 3 : vector<2x16x16x128xf32>, vector<2x16x16x128xf32>, vector<2x16x16x128xf32>, vector<2x16x16x128xf32>, vector<2x16x16x128xf32>, vector<2x16x16x128xf32>, vector<2x16x16x128xf32>, vector<2x16x16x128xf32>, vector<2x16x16x128xf32> -> vector<2x16x16x1152xf32>
    %61 = vector.shape_cast %60 : vector<2x16x16x1152xf32> to vector<512x1152xf32>
    %62 = arith.truncf %61 : vector<512x1152xf32> to vector<512x1152xbf16>
    %cst_21 = arith.constant dense<0.000000e+00> : vector<512x128xf32>
    %63 = tpu.matmul %62, %50, %cst_21 {dimension_numbers = #tpu.dot_dimension_numbers<[1], [0], [0], [1], [0, 0, 1, 1], [], []>} : vector<512x1152xbf16>, vector<1152x128xbf16>, vector<512x128xf32> -> vector<512x128xf32>
    %c0_22 = arith.constant 0 : index
    %c0_23 = arith.constant 0 : index
    %64 = vector.load %arg5[%c0_22, %c0_23] : memref<1x128xf32, #tpu.memory_space<vmem>>, vector<1x128xf32>
    %c0_24 = arith.constant 0 : index
    %c0_25 = arith.constant 0 : index
    %65 = vector.load %arg6[%c0_24, %c0_25] : memref<1x128xf32, #tpu.memory_space<vmem>>, vector<1x128xf32>
    %cst_26 = arith.constant dense<0.000000e+00> : vector<128xf32>
    %66 = vector.multi_reduction <add>, %63, %cst_26 [0] : vector<512x128xf32> to vector<128xf32>
    %67 = vector.shape_cast %66 : vector<128xf32> to vector<1x128xf32>
    %cst_27 = arith.constant 0.001953125 : f32
    %68 = vector.broadcast %cst_27 : f32 to vector<1x128xf32>
    %69 = arith.mulf %67, %68 : vector<1x128xf32>
    %70 = arith.mulf %63, %63 : vector<512x128xf32>
    %cst_28 = arith.constant dense<0.000000e+00> : vector<128xf32>
    %71 = vector.multi_reduction <add>, %70, %cst_28 [0] : vector<512x128xf32> to vector<128xf32>
    %72 = vector.shape_cast %71 : vector<128xf32> to vector<1x128xf32>
    %cst_29 = arith.constant 0.001953125 : f32
    %73 = vector.broadcast %cst_29 : f32 to vector<1x128xf32>
    %74 = arith.mulf %72, %73 : vector<1x128xf32>
    %75 = arith.mulf %69, %69 : vector<1x128xf32>
    %76 = arith.subf %74, %75 : vector<1x128xf32>
    %cst_30 = arith.constant 9.99999974E-6 : f32
    %77 = vector.broadcast %cst_30 : f32 to vector<1x128xf32>
    %78 = arith.addf %76, %77 : vector<1x128xf32>
    %79 = math.rsqrt %78 : vector<1x128xf32>
    %80 = arith.mulf %64, %79 : vector<1x128xf32>
    %81 = arith.mulf %69, %80 : vector<1x128xf32>
    %82 = arith.subf %65, %81 : vector<1x128xf32>
    %83 = vector.broadcast %80 : vector<1x128xf32> to vector<512x128xf32>
    %84 = arith.mulf %63, %83 : vector<512x128xf32>
    %85 = vector.broadcast %82 : vector<1x128xf32> to vector<512x128xf32>
    %86 = arith.addf %84, %85 : vector<512x128xf32>
    %c0_31 = arith.constant 0 : index
    %c0_32 = arith.constant 0 : index
    %87 = vector.load %arg7[%c0_31, %c0_32] : memref<1152x128xbf16, #tpu.memory_space<vmem>>, vector<1152x128xbf16>
    %88 = vector.extract_strided_slice %5 {offsets = [0, 0, 0, 0], sizes = [2, 16, 16, 128], strides = [1, 1, 1, 1]} : vector<2x18x18x128xf32> to vector<2x16x16x128xf32>
    %89 = vector.extract_strided_slice %5 {offsets = [0, 0, 1, 0], sizes = [2, 16, 16, 128], strides = [1, 1, 1, 1]} : vector<2x18x18x128xf32> to vector<2x16x16x128xf32>
    %90 = vector.extract_strided_slice %5 {offsets = [0, 0, 2, 0], sizes = [2, 16, 16, 128], strides = [1, 1, 1, 1]} : vector<2x18x18x128xf32> to vector<2x16x16x128xf32>
    %91 = vector.extract_strided_slice %5 {offsets = [0, 1, 0, 0], sizes = [2, 16, 16, 128], strides = [1, 1, 1, 1]} : vector<2x18x18x128xf32> to vector<2x16x16x128xf32>
    %92 = vector.extract_strided_slice %5 {offsets = [0, 1, 1, 0], sizes = [2, 16, 16, 128], strides = [1, 1, 1, 1]} : vector<2x18x18x128xf32> to vector<2x16x16x128xf32>
    %93 = vector.extract_strided_slice %5 {offsets = [0, 1, 2, 0], sizes = [2, 16, 16, 128], strides = [1, 1, 1, 1]} : vector<2x18x18x128xf32> to vector<2x16x16x128xf32>
    %94 = vector.extract_strided_slice %5 {offsets = [0, 2, 0, 0], sizes = [2, 16, 16, 128], strides = [1, 1, 1, 1]} : vector<2x18x18x128xf32> to vector<2x16x16x128xf32>
    %95 = vector.extract_strided_slice %5 {offsets = [0, 2, 1, 0], sizes = [2, 16, 16, 128], strides = [1, 1, 1, 1]} : vector<2x18x18x128xf32> to vector<2x16x16x128xf32>
    %96 = vector.extract_strided_slice %5 {offsets = [0, 2, 2, 0], sizes = [2, 16, 16, 128], strides = [1, 1, 1, 1]} : vector<2x18x18x128xf32> to vector<2x16x16x128xf32>
    %97 = tpu.concatenate %88, %89, %90, %91, %92, %93, %94, %95, %96 in 3 : vector<2x16x16x128xf32>, vector<2x16x16x128xf32>, vector<2x16x16x128xf32>, vector<2x16x16x128xf32>, vector<2x16x16x128xf32>, vector<2x16x16x128xf32>, vector<2x16x16x128xf32>, vector<2x16x16x128xf32>, vector<2x16x16x128xf32> -> vector<2x16x16x1152xf32>
    %98 = vector.shape_cast %97 : vector<2x16x16x1152xf32> to vector<512x1152xf32>
    %99 = arith.truncf %98 : vector<512x1152xf32> to vector<512x1152xbf16>
    %cst_33 = arith.constant dense<0.000000e+00> : vector<512x128xf32>
    %100 = tpu.matmul %99, %87, %cst_33 {dimension_numbers = #tpu.dot_dimension_numbers<[1], [0], [0], [1], [0, 0, 1, 1], [], []>} : vector<512x1152xbf16>, vector<1152x128xbf16>, vector<512x128xf32> -> vector<512x128xf32>
    %c0_34 = arith.constant 0 : index
    %c0_35 = arith.constant 0 : index
    %101 = vector.load %arg8[%c0_34, %c0_35] : memref<1x128xf32, #tpu.memory_space<vmem>>, vector<1x128xf32>
    %c0_36 = arith.constant 0 : index
    %c0_37 = arith.constant 0 : index
    %102 = vector.load %arg9[%c0_36, %c0_37] : memref<1x128xf32, #tpu.memory_space<vmem>>, vector<1x128xf32>
    %cst_38 = arith.constant dense<0.000000e+00> : vector<128xf32>
    %103 = vector.multi_reduction <add>, %100, %cst_38 [0] : vector<512x128xf32> to vector<128xf32>
    %104 = vector.shape_cast %103 : vector<128xf32> to vector<1x128xf32>
    %cst_39 = arith.constant 0.001953125 : f32
    %105 = vector.broadcast %cst_39 : f32 to vector<1x128xf32>
    %106 = arith.mulf %104, %105 : vector<1x128xf32>
    %107 = arith.mulf %100, %100 : vector<512x128xf32>
    %cst_40 = arith.constant dense<0.000000e+00> : vector<128xf32>
    %108 = vector.multi_reduction <add>, %107, %cst_40 [0] : vector<512x128xf32> to vector<128xf32>
    %109 = vector.shape_cast %108 : vector<128xf32> to vector<1x128xf32>
    %cst_41 = arith.constant 0.001953125 : f32
    %110 = vector.broadcast %cst_41 : f32 to vector<1x128xf32>
    %111 = arith.mulf %109, %110 : vector<1x128xf32>
    %112 = arith.mulf %106, %106 : vector<1x128xf32>
    %113 = arith.subf %111, %112 : vector<1x128xf32>
    %cst_42 = arith.constant 9.99999974E-6 : f32
    %114 = vector.broadcast %cst_42 : f32 to vector<1x128xf32>
    %115 = arith.addf %113, %114 : vector<1x128xf32>
    %116 = math.rsqrt %115 : vector<1x128xf32>
    %117 = arith.mulf %101, %116 : vector<1x128xf32>
    %118 = arith.mulf %106, %117 : vector<1x128xf32>
    %119 = arith.subf %102, %118 : vector<1x128xf32>
    %120 = vector.broadcast %117 : vector<1x128xf32> to vector<512x128xf32>
    %121 = arith.mulf %100, %120 : vector<512x128xf32>
    %122 = vector.broadcast %119 : vector<1x128xf32> to vector<512x128xf32>
    %123 = arith.addf %121, %122 : vector<512x128xf32>
    %124 = arith.addf %86, %123 : vector<512x128xf32>
    %cst_43 = arith.constant 0.000000e+00 : f32
    %125 = vector.broadcast %cst_43 : f32 to vector<512x128xf32>
    %126 = arith.maximumf %124, %125 : vector<512x128xf32>
    %127 = vector.shape_cast %126 : vector<512x128xf32> to vector<2x16x16x128xf32>
    %c0_44 = arith.constant 0 : index
    %c0_45 = arith.constant 0 : index
    %c0_46 = arith.constant 0 : index
    %c0_47 = arith.constant 0 : index
    %128 = vector.load %arg10[%c0_44, %c0_45, %c0_46, %c0_47] : memref<2x16x16x128xf32, #tpu.memory_space<vmem>>, vector<2x16x16x128xf32>
    tpu.vector_store %arg10[%c0_44, %c0_45, %c0_46, %c0_47], %127 {strides = array<i32>} : memref<2x16x16x128xf32, #tpu.memory_space<vmem>>, vector<2x16x16x128xf32>,
    return
  }
}

</mosaic_0001>

<llo_original>
// kernel: tpu_custom_call.1
$region0: #{tpu_custom_call.1}
  #allocation0 [shape = 'u32[]', space=smem, size = 0x4, offset = 0x4, fixed_abs, tag = 'smem constant byte address 0x4 - core index']
  #allocation1 [shape = 'u32[144,128]{1,0:T(1,128)}', space=vmem, size = 0x12000, scoped, tag = 'internal scratch']
  %s0 = inlined_call_operand.hbm [shape: bf16[2,16,16,128], index: 0, kind: input, shape index: {}]
  %s1 = inlined_call_operand.hbm [shape: bf16[1152,128], index: 1, kind: input, shape index: {}]
  %s2 = inlined_call_operand.vmem [shape: f32[1,128], index: 2, kind: input, shape index: {}]
  %s3 = inlined_call_operand.vmem [shape: f32[1,128], index: 3, kind: input, shape index: {}]
  %s4 = inlined_call_operand.hbm [shape: bf16[1152,128], index: 4, kind: input, shape index: {}]
  %s5 = inlined_call_operand.vmem [shape: f32[1,128], index: 5, kind: input, shape index: {}]
  %s6 = inlined_call_operand.vmem [shape: f32[1,128], index: 6, kind: input, shape index: {}]
  %s7 = inlined_call_operand.hbm [shape: bf16[1152,128], index: 7, kind: input, shape index: {}]
  %s8 = inlined_call_operand.vmem [shape: f32[1,128], index: 8, kind: input, shape index: {}]
  %s9 = inlined_call_operand.vmem [shape: f32[1,128], index: 9, kind: input, shape index: {}]
  %s10 = inlined_call_operand.hbm [shape: f32[2,16,16,128], index: 10, kind: output, shape index: {}]
  %s11 = sld [smem:[#allocation0]]
  $region66: #{tpu_custom_call.1} parent=0
    _
  %s13 = ssub.s32 1, %s11
  %s14 = scalar_select 0, %s13, %s11
  $region1: #{tpu_custom_call.1} parent=0
    #allocation2 [shape = 'u8[131072]{0}', space=vmem, size = 0x20000, scoped, tag = 'input window, operand 0, single buffered']
    #allocation3 [shape = 's32[1]{0}', space=sflag, size = 0x4, scoped, tag = 'scoped memory for tpu_custom_call.1']
    #allocation4 [shape = 's32[1]{0}', space=sflag, size = 0x4, scoped, tag = 'scoped memory for tpu_custom_call.1']
    #allocation5 [shape = 'u8[294912]{0}', space=vmem, size = 0x48000, scoped, tag = 'input window, operand 1, single buffered']
    #allocation6 [shape = 's32[1]{0}', space=sflag, size = 0x4, scoped, tag = 'scoped memory for tpu_custom_call.1']
    #allocation7 [shape = 'u8[294912]{0}', space=vmem, size = 0x48000, scoped, tag = 'input window, operand 4, single buffered']
    #allocation8 [shape = 'u8[294912]{0}', space=vmem, size = 0x48000, scoped, tag = 'input window, operand 7, single buffered']
    #allocation9 [shape = 's32[1]{0}', space=sflag, size = 0x4, scoped, tag = 'scoped memory for tpu_custom_call.1']
    #allocation10 [shape = 'u8[262144]{0}', space=vmem, size = 0x40000, scoped, tag = 'output window, operand 0, single buffered']
    %15 = vsyncpa [#allocation3], 0
    %16 = vsyncpa [#allocation6], 0
    %17 = vsyncpa [#allocation9], 0
    %18 = vsyncpa [#allocation4], 0
    // Predicated region
    $region2: #{tpu_custom_call.1} parent=1 // pred_check
      _
    $region3: #{tpu_custom_call.1} parent=1 // pred_check_branch
      %20 = sbr.rel (0) target = $region5
    $region4: #{tpu_custom_call.1} parent=1 // pred_region
      %s22 = ssub.s32 4096, 4096
      %23 = vsyncadd [#allocation3], %s22
      %s24 = sshll.u32 [#allocation2], 4
      %s25 = int_to_ptr.vmem [resolvable:$true] %s24
      %30 = dma.hbm_to_vmem [thread:$0]  %s0, 4096, %s25, [#allocation3], 64, 64, 4
    $region5: #{tpu_custom_call.1} parent=1 // pred_fallthru
      _
    // Predicated region
    $region6: #{tpu_custom_call.1} parent=1 // pred_check
      _
    $region7: #{tpu_custom_call.1} parent=1 // pred_check_branch
      %32 = sbr.rel (0) target = $region9
    $region8: #{tpu_custom_call.1} parent=1 // pred_region
      %s34 = ssub.s32 9216, 9216
      %35 = vsyncadd [#allocation6], %s34
      %s36 = sshll.u32 [#allocation5], 4
      %s37 = int_to_ptr.vmem [resolvable:$true] %s36
      %42 = dma.hbm_to_vmem [thread:$0]  %s1, 9216, %s37, [#allocation6], 64, 64, 4
    $region9: #{tpu_custom_call.1} parent=1 // pred_fallthru
      _
    // Predicated region
    $region10: #{tpu_custom_call.1} parent=1 // pred_check
      _
    $region11: #{tpu_custom_call.1} parent=1 // pred_check_branch
      %44 = sbr.rel (0) target = $region13
    $region12: #{tpu_custom_call.1} parent=1 // pred_region
      _
    $region13: #{tpu_custom_call.1} parent=1 // pred_fallthru
      _
    // Predicated region
    $region14: #{tpu_custom_call.1} parent=1 // pred_check
      _
    $region15: #{tpu_custom_call.1} parent=1 // pred_check_branch
      %46 = sbr.rel (0) target = $region17
    $region16: #{tpu_custom_call.1} parent=1 // pred_region
      _
    $region17: #{tpu_custom_call.1} parent=1 // pred_fallthru
      _
    // Predicated region
    $region18: #{tpu_custom_call.1} parent=1 // pred_check
      _
    $region19: #{tpu_custom_call.1} parent=1 // pred_check_branch
      %48 = sbr.rel (0) target = $region21
    $region20: #{tpu_custom_call.1} parent=1 // pred_region
      %s50 = ssub.s32 9216, 9216
      %51 = vsyncadd [#allocation6], %s50
      %s52 = sshll.u32 [#allocation7], 4
      %s53 = int_to_ptr.vmem [resolvable:$true] %s52
      %58 = dma.hbm_to_vmem [thread:$0]  %s4, 9216, %s53, [#allocation6], 64, 64, 4
    $region21: #{tpu_custom_call.1} parent=1 // pred_fallthru
      _
    // Predicated region
    $region22: #{tpu_custom_call.1} parent=1 // pred_check
      _
    $region23: #{tpu_custom_call.1} parent=1 // pred_check_branch
      %60 = sbr.rel (0) target = $region25
    $region24: #{tpu_custom_call.1} parent=1 // pred_region
      _
    $region25: #{tpu_custom_call.1} parent=1 // pred_fallthru
      _
    // Predicated region
    $region26: #{tpu_custom_call.1} parent=1 // pred_check
      _
    $region27: #{tpu_custom_call.1} parent=1 // pred_check_branch
      %62 = sbr.rel (0) target = $region29
    $region28: #{tpu_custom_call.1} parent=1 // pred_region
      _
    $region29: #{tpu_custom_call.1} parent=1 // pred_fallthru
      _
    // Predicated region
    $region30: #{tpu_custom_call.1} parent=1 // pred_check
      _
    $region31: #{tpu_custom_call.1} parent=1 // pred_check_branch
      %64 = sbr.rel (0) target = $region33
    $region32: #{tpu_custom_call.1} parent=1 // pred_region
      %s66 = ssub.s32 9216, 9216
      %67 = vsyncadd [#allocation9], %s66
      %s68 = sshll.u32 [#allocation8], 4
      %s69 = int_to_ptr.vmem [resolvable:$true] %s68
      %74 = dma.hbm_to_vmem [thread:$0]  %s7, 9216, %s69, [#allocation9], 64, 64, 4
    $region33: #{tpu_custom_call.1} parent=1 // pred_fallthru
      _
    // Predicated region
    $region34: #{tpu_custom_call.1} parent=1 // pred_check
      _
    $region35: #{tpu_custom_call.1} parent=1 // pred_check_branch
      %76 = sbr.rel (0) target = $region37
    $region36: #{tpu_custom_call.1} parent=1 // pred_region
      _
    $region37: #{tpu_custom_call.1} parent=1 // pred_fallthru
      _
    // Predicated region
    $region38: #{tpu_custom_call.1} parent=1 // pred_check
      _
    $region39: #{tpu_custom_call.1} parent=1 // pred_check_branch
      %78 = sbr.rel (0) target = $region41
    $region40: #{tpu_custom_call.1} parent=1 // pred_region
      _
    $region41: #{tpu_custom_call.1} parent=1 // pred_fallthru
      _
    // Predicated region
    $region42: #{tpu_custom_call.1} parent=1 // pred_check
      _
    $region43: #{tpu_custom_call.1} parent=1 // pred_check_branch
      %80 = sbr.rel (0) target = $region45
    $region44: #{tpu_custom_call.1} parent=1 // pred_region
      %81 = dma.done [#allocation3], 4096
    $region45: #{tpu_custom_call.1} parent=1 // pred_fallthru
      _
    // Predicated region
    $region46: #{tpu_custom_call.1} parent=1 // pred_check
      _
    $region47: #{tpu_custom_call.1} parent=1 // pred_check_branch
      %83 = sbr.rel (0) target = $region49
    $region48: #{tpu_custom_call.1} parent=1 // pred_region
      %84 = dma.done [#allocation6], 9216
    $region49: #{tpu_custom_call.1} parent=1 // pred_fallthru
      _
    // Predicated region
    $region50: #{tpu_custom_call.1} parent=1 // pred_check
      _
    $region51: #{tpu_custom_call.1} parent=1 // pred_check_branch
      %86 = sbr.rel (0) target = $region53
    $region52: #{tpu_custom_call.1} parent=1 // pred_region
      %87 = dma.done [#allocation6], 9216
    $region53: #{tpu_custom_call.1} parent=1 // pred_fallthru
      _
    // Predicated region
    $region54: #{tpu_custom_call.1} parent=1 // pred_check
      _
    $region55: #{tpu_custom_call.1} parent=1 // pred_check_branch
      %89 = sbr.rel (0) target = $region57
    $region56: #{tpu_custom_call.1} parent=1 // pred_region
      %90 = dma.done [#allocation9], 9216
    $region57: #{tpu_custom_call.1} parent=1 // pred_fallthru
      _
    %v92 = vld [vmem:[#allocation2] sm:$0xf]
    %v93 = vld [vmem:[#allocation2 + $0x4] sm:$0xf]
    %v94 = vld [vmem:[#allocation2 + $0x8] sm:$0xf]
    %v95 = vld [vmem:[#allocation2 + $0xc] sm:$0xf]
    %v96 = vld [vmem:[#allocation2 + $0x10] sm:$0xf]
    %v97 = vld [vmem:[#allocation2 + $0x14] sm:$0xf]
    %v98 = vld [vmem:[#allocation2 + $0x18] sm:$0xf]
    %v99 = vld [vmem:[#allocation2 + $0x1c] sm:$0xf]
    %v100 = vld [vmem:[#allocation2 + $0x20] sm:$0xf]
    %v101 = vld [vmem:[#allocation2 + $0x24] sm:$0xf]
    %v102 = vld [vmem:[#allocation2 + $0x28] sm:$0xf]
    %v103 = vld [vmem:[#allocation2 + $0x2c] sm:$0xf]
    %v104 = vld [vmem:[#allocation2 + $0x30] sm:$0xf]
    %v105 = vld [vmem:[#allocation2 + $0x34] sm:$0xf]
    %v106 = vld [vmem:[#allocation2 + $0x38] sm:$0xf]
    %v107 = vld [vmem:[#allocation2 + $0x3c] sm:$0xf]
    %v108 = vld [vmem:[#allocation2 + $0x40] sm:$0xf]
    %v109 = vld [vmem:[#allocation2 + $0x44] sm:$0xf]
    %v110 = vld [vmem:[#allocation2 + $0x48] sm:$0xf]
    %v111 = vld [vmem:[#allocation2 + $0x4c] sm:$0xf]
    %v112 = vld [vmem:[#allocation2 + $0x50] sm:$0xf]
    %v113 = vld [vmem:[#allocation2 + $0x54] sm:$0xf]
    %v114 = vld [vmem:[#allocation2 + $0x58] sm:$0xf]
    %v115 = vld [vmem:[#allocation2 + $0x5c] sm:$0xf]
    %v116 = vld [vmem:[#allocation2 + $0x60] sm:$0xf]
    %v117 = vld [vmem:[#allocation2 + $0x64] sm:$0xf]
    %v118 = vld [vmem:[#allocation2 + $0x68] sm:$0xf]
    %v119 = vld [vmem:[#allocation2 + $0x6c] sm:$0xf]
    %v120 = vld [vmem:[#allocation2 + $0x70] sm:$0xf]
    %v121 = vld [vmem:[#allocation2 + $0x74] sm:$0xf]
    %v122 = vld [vmem:[#allocation2 + $0x78] sm:$0xf]
    %v123 = vld [vmem:[#allocation2 + $0x7c] sm:$0xf]
    %v124 = vld [vmem:[#allocation2 + $0x80] sm:$0xf]
    %v125 = vld [vmem:[#allocation2 + $0x84] sm:$0xf]
    %v126 = vld [vmem:[#allocation2 + $0x88] sm:$0xf]
    %v127 = vld [vmem:[#allocation2 + $0x8c] sm:$0xf]
    %v128 = vld [vmem:[#allocation2 + $0x90] sm:$0xf]
    %v129 = vld [vmem:[#allocation2 + $0x94] sm:$0xf]
    %v130 = vld [vmem:[#allocation2 + $0x98] sm:$0xf]
    %v131 = vld [vmem:[#allocation2 + $0x9c] sm:$0xf]
    %v132 = vld [vmem:[#allocation2 + $0xa0] sm:$0xf]
    %v133 = vld [vmem:[#allocation2 + $0xa4] sm:$0xf]
    %v134 = vld [vmem:[#allocation2 + $0xa8] sm:$0xf]
    %v135 = vld [vmem:[#allocation2 + $0xac] sm:$0xf]
    %v136 = vld [vmem:[#allocation2 + $0xb0] sm:$0xf]
    %v137 = vld [vmem:[#allocation2 + $0xb4] sm:$0xf]
    %v138 = vld [vmem:[#allocation2 + $0xb8] sm:$0xf]
    %v139 = vld [vmem:[#allocation2 + $0xbc] sm:$0xf]
    %v140 = vld [vmem:[#allocation2 + $0xc0] sm:$0xf]
    %v141 = vld [vmem:[#allocation2 + $0xc4] sm:$0xf]
    %v142 = vld [vmem:[#allocation2 + $0xc8] sm:$0xf]
    %v143 = vld [vmem:[#allocation2 + $0xcc] sm:$0xf]
    %v144 = vld [vmem:[#allocation2 + $0xd0] sm:$0xf]
    %v145 = vld [vmem:[#allocation2 + $0xd4] sm:$0xf]
    %v146 = vld [vmem:[#allocation2 + $0xd8] sm:$0xf]
    %v147 = vld [vmem:[#allocation2 + $0xdc] sm:$0xf]
    %v148 = vld [vmem:[#allocation2 + $0xe0] sm:$0xf]
    %v149 = vld [vmem:[#allocation2 + $0xe4] sm:$0xf]
    %v150 = vld [vmem:[#allocation2 + $0xe8] sm:$0xf]
    %v151 = vld [vmem:[#allocation2 + $0xec] sm:$0xf]
    %v152 = vld [vmem:[#allocation2 + $0xf0] sm:$0xf]
    %v153 = vld [vmem:[#allocation2 + $0xf4] sm:$0xf]
    %v154 = vld [vmem:[#allocation2 + $0xf8] sm:$0xf]
    %v155 = vld [vmem:[#allocation2 + $0xfc] sm:$0xf]
    %v156 = vunpack.c.l.bf16 %v92
    %v157 = vunpack.c.l.bf16 %v93
    %v158 = vunpack.c.l.bf16 %v94
    %v159 = vunpack.c.l.bf16 %v95
    %v160 = vunpack.c.l.bf16 %v96
    %v161 = vunpack.c.l.bf16 %v97
    %v162 = vunpack.c.l.bf16 %v98
    %v163 = vunpack.c.l.bf16 %v99
    %v164 = vunpack.c.l.bf16 %v100
    %v165 = vunpack.c.l.bf16 %v101
    %v166 = vunpack.c.l.bf16 %v102
    %v167 = vunpack.c.l.bf16 %v103
    %v168 = vunpack.c.l.bf16 %v104
    %v169 = vunpack.c.l.bf16 %v105
    %v170 = vunpack.c.l.bf16 %v106
    %v171 = vunpack.c.l.bf16 %v107
    %v172 = vunpack.c.l.bf16 %v108
    %v173 = vunpack.c.l.bf16 %v109
    %v174 = vunpack.c.l.bf16 %v110
    %v175 = vunpack.c.l.bf16 %v111
    %v176 = vunpack.c.l.bf16 %v112
    %v177 = vunpack.c.l.bf16 %v113
    %v178 = vunpack.c.l.bf16 %v114
    %v179 = vunpack.c.l.bf16 %v115
    %v180 = vunpack.c.l.bf16 %v116
    %v181 = vunpack.c.l.bf16 %v117
    %v182 = vunpack.c.l.bf16 %v118
    %v183 = vunpack.c.l.bf16 %v119
    %v184 = vunpack.c.l.bf16 %v120
    %v185 = vunpack.c.l.bf16 %v121
    %v186 = vunpack.c.l.bf16 %v122
    %v187 = vunpack.c.l.bf16 %v123
    %v188 = vunpack.c.l.bf16 %v124
    %v189 = vunpack.c.l.bf16 %v125
    %v190 = vunpack.c.l.bf16 %v126
    %v191 = vunpack.c.l.bf16 %v127
    %v192 = vunpack.c.l.bf16 %v128
    %v193 = vunpack.c.l.bf16 %v129
    %v194 = vunpack.c.l.bf16 %v130
    %v195 = vunpack.c.l.bf16 %v131
    %v196 = vunpack.c.l.bf16 %v132
    %v197 = vunpack.c.l.bf16 %v133
    %v198 = vunpack.c.l.bf16 %v134
    %v199 = vunpack.c.l.bf16 %v135
    %v200 = vunpack.c.l.bf16 %v136
    %v201 = vunpack.c.l.bf16 %v137
    %v202 = vunpack.c.l.bf16 %v138
    %v203 = vunpack.c.l.bf16 %v139
    %v204 = vunpack.c.l.bf16 %v140
    %v205 = vunpack.c.l.bf16 %v141
    %v206 = vunpack.c.l.bf16 %v142
    %v207 = vunpack.c.l.bf16 %v143
    %v208 = vunpack.c.l.bf16 %v144
    %v209 = vunpack.c.l.bf16 %v145
    %v210 = vunpack.c.l.bf16 %v146
    %v211 = vunpack.c.l.bf16 %v147
    %v212 = vunpack.c.l.bf16 %v148
    %v213 = vunpack.c.l.bf16 %v149
    %v214 = vunpack.c.l.bf16 %v150
    %v215 = vunpack.c.l.bf16 %v151
    %v216 = vunpack.c.l.bf16 %v152
    %v217 = vunpack.c.l.bf16 %v153
    %v218 = vunpack.c.l.bf16 %v154
    %v219 = vunpack.c.l.bf16 %v155
    %vm284 = vcmask 1040384
    %v285 = vrot.slane %v156, 7
    %v286 = vrot.slane %v157, 7
    %v287 = vsel %vm284, %v285, %v286
    %v288 = vrot.slane %v158, 7
    %v289 = vrot.slane %v159, 7
    %v290 = vsel %vm284, %v288, %v289
    %v291 = vrot.slane %v160, 7
    %v292 = vrot.slane %v161, 7
    %v293 = vsel %vm284, %v291, %v292
    %v294 = vrot.slane %v162, 7
    %v295 = vrot.slane %v163, 7
    %v296 = vsel %vm284, %v294, %v295
    %v297 = vrot.slane %v164, 7
    %v298 = vrot.slane %v165, 7
    %v299 = vsel %vm284, %v297, %v298
    %v300 = vrot.slane %v166, 7
    %v301 = vrot.slane %v167, 7
    %v302 = vsel %vm284, %v300, %v301
    %v303 = vrot.slane %v168, 7
    %v304 = vrot.slane %v169, 7
    %v305 = vsel %vm284, %v303, %v304
    %v306 = vrot.slane %v170, 7
    %v307 = vrot.slane %v171, 7
    %v308 = vsel %vm284, %v306, %v307
    %v309 = vrot.slane %v172, 7
    %v310 = vrot.slane %v173, 7
    %v311 = vsel %vm284, %v309, %v310
    %v312 = vrot.slane %v174, 7
    %v313 = vrot.slane %v175, 7
    %v314 = vsel %vm284, %v312, %v313
    %v315 = vrot.slane %v176, 7
    %v316 = vrot.slane %v177, 7
    %v317 = vsel %vm284, %v315, %v316
    %v318 = vrot.slane %v178, 7
    %v319 = vrot.slane %v179, 7
    %v320 = vsel %vm284, %v318, %v319
    %v321 = vrot.slane %v180, 7
    %v322 = vrot.slane %v181, 7
    %v323 = vsel %vm284, %v321, %v322
    %v324 = vrot.slane %v182, 7
    %v325 = vrot.slane %v183, 7
    %v326 = vsel %vm284, %v324, %v325
    %v327 = vrot.slane %v184, 7
    %v328 = vrot.slane %v185, 7
    %v329 = vsel %vm284, %v327, %v328
    %v330 = vrot.slane %v186, 7
    %v331 = vrot.slane %v187, 7
    %v332 = vsel %vm284, %v330, %v331
    %v333 = vrot.slane %v188, 7
    %v334 = vrot.slane %v189, 7
    %v335 = vsel %vm284, %v333, %v334
    %v336 = vrot.slane %v190, 7
    %v337 = vrot.slane %v191, 7
    %v338 = vsel %vm284, %v336, %v337
    %v339 = vrot.slane %v192, 7
    %v340 = vrot.slane %v193, 7
    %v341 = vsel %vm284, %v339, %v340
    %v342 = vrot.slane %v194, 7
    %v343 = vrot.slane %v195, 7
    %v344 = vsel %vm284, %v342, %v343
    %v345 = vrot.slane %v196, 7
    %v346 = vrot.slane %v197, 7
    %v347 = vsel %vm284, %v345, %v346
    %v348 = vrot.slane %v198, 7
    %v349 = vrot.slane %v199, 7
    %v350 = vsel %vm284, %v348, %v349
    %v351 = vrot.slane %v200, 7
    %v352 = vrot.slane %v201, 7
    %v353 = vsel %vm284, %v351, %v352
    %v354 = vrot.slane %v202, 7
    %v355 = vrot.slane %v203, 7
    %v356 = vsel %vm284, %v354, %v355
    %v357 = vrot.slane %v204, 7
    %v358 = vrot.slane %v205, 7
    %v359 = vsel %vm284, %v357, %v358
    %v360 = vrot.slane %v206, 7
    %v361 = vrot.slane %v207, 7
    %v362 = vsel %vm284, %v360, %v361
    %v363 = vrot.slane %v208, 7
    %v364 = vrot.slane %v209, 7
    %v365 = vsel %vm284, %v363, %v364
    %v366 = vrot.slane %v210, 7
    %v367 = vrot.slane %v211, 7
    %v368 = vsel %vm284, %v366, %v367
    %v369 = vrot.slane %v212, 7
    %v370 = vrot.slane %v213, 7
    %v371 = vsel %vm284, %v369, %v370
    %v372 = vrot.slane %v214, 7
    %v373 = vrot.slane %v215, 7
    %v374 = vsel %vm284, %v372, %v373
    %v375 = vrot.slane %v216, 7
    %v376 = vrot.slane %v217, 7
    %v377 = vsel %vm284, %v375, %v376
    %v378 = vrot.slane %v218, 7
    %v379 = vrot.slane %v219, 7
    %v380 = vsel %vm284, %v378, %v379
    %v477 = vsel %vm284, 0.0, %v285
    %v478 = vsel %vm284, 0.0, %v288
    %v479 = vsel %vm284, 0.0, %v291
    %v480 = vsel %vm284, 0.0, %v294
    %v481 = vsel %vm284, 0.0, %v297
    %v482 = vsel %vm284, 0.0, %v300
    %v483 = vsel %vm284, 0.0, %v303
    %v484 = vsel %vm284, 0.0, %v306
    %v485 = vsel %vm284, 0.0, %v309
    %v486 = vsel %vm284, 0.0, %v312
    %v487 = vsel %vm284, 0.0, %v315
    %v488 = vsel %vm284, 0.0, %v318
    %v489 = vsel %vm284, 0.0, %v321
    %v490 = vsel %vm284, 0.0, %v324
    %v491 = vsel %vm284, 0.0, %v327
    %v492 = vsel %vm284, 0.0, %v330
    %v493 = vsel %vm284, 0.0, %v333
    %v494 = vsel %vm284, 0.0, %v336
    %v495 = vsel %vm284, 0.0, %v339
    %v496 = vsel %vm284, 0.0, %v342
    %v497 = vsel %vm284, 0.0, %v345
    %v498 = vsel %vm284, 0.0, %v348
    %v499 = vsel %vm284, 0.0, %v351
    %v500 = vsel %vm284, 0.0, %v354
    %v501 = vsel %vm284, 0.0, %v357
    %v502 = vsel %vm284, 0.0, %v360
    %v503 = vsel %vm284, 0.0, %v363
    %v504 = vsel %vm284, 0.0, %v366
    %v505 = vsel %vm284, 0.0, %v369
    %v506 = vsel %vm284, 0.0, %v372
    %v507 = vsel %vm284, 0.0, %v375
    %v508 = vsel %vm284, 0.0, %v378
    %v509 = vsel %vm284, %v286, 0.0
    %v510 = vsel %vm284, %v289, 0.0
    %v511 = vsel %vm284, %v292, 0.0
    %v512 = vsel %vm284, %v295, 0.0
    %v513 = vsel %vm284, %v298, 0.0
    %v514 = vsel %vm284, %v301, 0.0
    %v515 = vsel %vm284, %v304, 0.0
    %v516 = vsel %vm284, %v307, 0.0
    %v517 = vsel %vm284, %v310, 0.0
    %v518 = vsel %vm284, %v313, 0.0
    %v519 = vsel %vm284, %v316, 0.0
    %v520 = vsel %vm284, %v319, 0.0
    %v521 = vsel %vm284, %v322, 0.0
    %v522 = vsel %vm284, %v325, 0.0
    %v523 = vsel %vm284, %v328, 0.0
    %v524 = vsel %vm284, %v331, 0.0
    %v525 = vsel %vm284, %v334, 0.0
    %v526 = vsel %vm284, %v337, 0.0
    %v527 = vsel %vm284, %v340, 0.0
    %v528 = vsel %vm284, %v343, 0.0
    %v529 = vsel %vm284, %v346, 0.0
    %v530 = vsel %vm284, %v349, 0.0
    %v531 = vsel %vm284, %v352, 0.0
    %v532 = vsel %vm284, %v355, 0.0
    %v533 = vsel %vm284, %v358, 0.0
    %v534 = vsel %vm284, %v361, 0.0
    %v535 = vsel %vm284, %v364, 0.0
    %v536 = vsel %vm284, %v367, 0.0
    %v537 = vsel %vm284, %v370, 0.0
    %v538 = vsel %vm284, %v373, 0.0
    %v539 = vsel %vm284, %v376, 0.0
    %v540 = vsel %vm284, %v379, 0.0
    %v541 = vld [vmem:[#allocation5] sm:$0xf]
    %v542 = vld [vmem:[#allocation5 + $0x4] sm:$0xf]
    %v543 = vld [vmem:[#allocation5 + $0x8] sm:$0xf]
    %v544 = vld [vmem:[#allocation5 + $0xc] sm:$0xf]
    %v545 = vld [vmem:[#allocation5 + $0x10] sm:$0xf]
    %v546 = vld [vmem:[#allocation5 + $0x14] sm:$0xf]
    %v547 = vld [vmem:[#allocation5 + $0x18] sm:$0xf]
    %v548 = vld [vmem:[#allocation5 + $0x1c] sm:$0xf]
    %v549 = vld [vmem:[#allocation5 + $0x20] sm:$0xf]
    %v550 = vld [vmem:[#allocation5 + $0x24] sm:$0xf]
    %v551 = vld [vmem:[#allocation5 + $0x28] sm:$0xf]
    %v552 = vld [vmem:[#allocation5 + $0x2c] sm:$0xf]
    %v553 = vld [vmem:[#allocation5 + $0x30] sm:$0xf]
    %v554 = vld [vmem:[#allocation5 + $0x34] sm:$0xf]
    %v555 = vld [vmem:[#allocation5 + $0x38] sm:$0xf]
    %v556 = vld [vmem:[#allocation5 + $0x3c] sm:$0xf]
    %v557 = vld [vmem:[#allocation5 + $0x40] sm:$0xf]
    %v558 = vld [vmem:[#allocation5 + $0x44] sm:$0xf]
    %v559 = vld [vmem:[#allocation5 + $0x48] sm:$0xf]
    %v560 = vld [vmem:[#allocation5 + $0x4c] sm:$0xf]
    %v561 = vld [vmem:[#allocation5 + $0x50] sm:$0xf]
    %v562 = vld [vmem:[#allocation5 + $0x54] sm:$0xf]
    %v563 = vld [vmem:[#allocation5 + $0x58] sm:$0xf]
    %v564 = vld [vmem:[#allocation5 + $0x5c] sm:$0xf]
    %v565 = vld [vmem:[#allocation5 + $0x60] sm:$0xf]
    %v566 = vld [vmem:[#allocation5 + $0x64] sm:$0xf]
    %v567 = vld [vmem:[#allocation5 + $0x68] sm:$0xf]
    %v568 = vld [vmem:[#allocation5 + $0x6c] sm:$0xf]
    %v569 = vld [vmem:[#allocation5 + $0x70] sm:$0xf]
    %v570 = vld [vmem:[#allocation5 + $0x74] sm:$0xf]
    %v571 = vld [vmem:[#allocation5 + $0x78] sm:$0xf]
    %v572 = vld [vmem:[#allocation5 + $0x7c] sm:$0xf]
    %v573 = vld [vmem:[#allocation5 + $0x80] sm:$0xf]
    %v574 = vld [vmem:[#allocation5 + $0x84] sm:$0xf]
    %v575 = vld [vmem:[#allocation5 + $0x88] sm:$0xf]
    %v576 = vld [vmem:[#allocation5 + $0x8c] sm:$0xf]
    %v577 = vld [vmem:[#allocation5 + $0x90] sm:$0xf]
    %v578 = vld [vmem:[#allocation5 + $0x94] sm:$0xf]
    %v579 = vld [vmem:[#allocation5 + $0x98] sm:$0xf]
    %v580 = vld [vmem:[#allocation5 + $0x9c] sm:$0xf]
    %v581 = vld [vmem:[#allocation5 + $0xa0] sm:$0xf]
    %v582 = vld [vmem:[#allocation5 + $0xa4] sm:$0xf]
    %v583 = vld [vmem:[#allocation5 + $0xa8] sm:$0xf]
    %v584 = vld [vmem:[#allocation5 + $0xac] sm:$0xf]
    %v585 = vld [vmem:[#allocation5 + $0xb0] sm:$0xf]
    %v586 = vld [vmem:[#allocation5 + $0xb4] sm:$0xf]
    %v587 = vld [vmem:[#allocation5 + $0xb8] sm:$0xf]
    %v588 = vld [vmem:[#allocation5 + $0xbc] sm:$0xf]
    %v589 = vld [vmem:[#allocation5 + $0xc0] sm:$0xf]
    %v590 = vld [vmem:[#allocation5 + $0xc4] sm:$0xf]
    %v591 = vld [vmem:[#allocation5 + $0xc8] sm:$0xf]
    %v592 = vld [vmem:[#allocation5 + $0xcc] sm:$0xf]
    %v593 = vld [vmem:[#allocation5 + $0xd0] sm:$0xf]
    %v594 = vld [vmem:[#allocation5 + $0xd4] sm:$0xf]
    %v595 = vld [vmem:[#allocation5 + $0xd8] sm:$0xf]
    %v596 = vld [vmem:[#allocation5 + $0xdc] sm:$0xf]
    %v597 = vld [vmem:[#allocation5 + $0xe0] sm:$0xf]
    %v598 = vld [vmem:[#allocation5 + $0xe4] sm:$0xf]
    %v599 = vld [vmem:[#allocation5 + $0xe8] sm:$0xf]
    %v600 = vld [vmem:[#allocation5 + $0xec] sm:$0xf]
    %v601 = vld [vmem:[#allocation5 + $0xf0] sm:$0xf]
    %v602 = vld [vmem:[#allocation5 + $0xf4] sm:$0xf]
    %v603 = vld [vmem:[#allocation5 + $0xf8] sm:$0xf]
    %v604 = vld [vmem:[#allocation5 + $0xfc] sm:$0xf]
    %v605 = vld [vmem:[#allocation5 + $0x100] sm:$0xf]
    %v606 = vld [vmem:[#allocation5 + $0x104] sm:$0xf]
    %v607 = vld [vmem:[#allocation5 + $0x108] sm:$0xf]
    %v608 = vld [vmem:[#allocation5 + $0x10c] sm:$0xf]
    %v609 = vld [vmem:[#allocation5 + $0x110] sm:$0xf]
    %v610 = vld [vmem:[#allocation5 + $0x114] sm:$0xf]
    %v611 = vld [vmem:[#allocation5 + $0x118] sm:$0xf]
    %v612 = vld [vmem:[#allocation5 + $0x11c] sm:$0xf]
    %v613 = vld [vmem:[#allocation5 + $0x120] sm:$0xf]
    %v614 = vld [vmem:[#allocation5 + $0x124] sm:$0xf]
    %v615 = vld [vmem:[#allocation5 + $0x128] sm:$0xf]
    %v616 = vld [vmem:[#allocation5 + $0x12c] sm:$0xf]
    %v617 = vld [vmem:[#allocation5 + $0x130] sm:$0xf]
    %v618 = vld [vmem:[#allocation5 + $0x134] sm:$0xf]
    %v619 = vld [vmem:[#allocation5 + $0x138] sm:$0xf]
    %v620 = vld [vmem:[#allocation5 + $0x13c] sm:$0xf]
    %v621 = vld [vmem:[#allocation5 + $0x140] sm:$0xf]
    %v622 = vld [vmem:[#allocation5 + $0x144] sm:$0xf]
    %v623 = vld [vmem:[#allocation5 + $0x148] sm:$0xf]
    %v624 = vld [vmem:[#allocation5 + $0x14c] sm:$0xf]
    %v625 = vld [vmem:[#allocation5 + $0x150] sm:$0xf]
    %v626 = vld [vmem:[#allocation5 + $0x154] sm:$0xf]
    %v627 = vld [vmem:[#allocation5 + $0x158] sm:$0xf]
    %v628 = vld [vmem:[#allocation5 + $0x15c] sm:$0xf]
    %v629 = vld [vmem:[#allocation5 + $0x160] sm:$0xf]
    %v630 = vld [vmem:[#allocation5 + $0x164] sm:$0xf]
    %v631 = vld [vmem:[#allocation5 + $0x168] sm:$0xf]
    %v632 = vld [vmem:[#allocation5 + $0x16c] sm:$0xf]
    %v633 = vld [vmem:[#allocation5 + $0x170] sm:$0xf]
    %v634 = vld [vmem:[#allocation5 + $0x174] sm:$0xf]
    %v635 = vld [vmem:[#allocation5 + $0x178] sm:$0xf]
    %v636 = vld [vmem:[#allocation5 + $0x17c] sm:$0xf]
    %v637 = vld [vmem:[#allocation5 + $0x180] sm:$0xf]
    %v638 = vld [vmem:[#allocation5 + $0x184] sm:$0xf]
    %v639 = vld [vmem:[#allocation5 + $0x188] sm:$0xf]
    %v640 = vld [vmem:[#allocation5 + $0x18c] sm:$0xf]
    %v641 = vld [vmem:[#allocation5 + $0x190] sm:$0xf]
    %v642 = vld [vmem:[#allocation5 + $0x194] sm:$0xf]
    %v643 = vld [vmem:[#allocation5 + $0x198] sm:$0xf]
    %v644 = vld [vmem:[#allocation5 + $0x19c] sm:$0xf]
    %v645 = vld [vmem:[#allocation5 + $0x1a0] sm:$0xf]
    %v646 = vld [vmem:[#allocation5 + $0x1a4] sm:$0xf]
    %v647 = vld [vmem:[#allocation5 + $0x1a8] sm:$0xf]
    %v648 = vld [vmem:[#allocation5 + $0x1ac] sm:$0xf]
    %v649 = vld [vmem:[#allocation5 + $0x1b0] sm:$0xf]
    %v650 = vld [vmem:[#allocation5 + $0x1b4] sm:$0xf]
    %v651 = vld [vmem:[#allocation5 + $0x1b8] sm:$0xf]
    %v652 = vld [vmem:[#allocation5 + $0x1bc] sm:$0xf]
    %v653 = vld [vmem:[#allocation5 + $0x1c0] sm:$0xf]
    %v654 = vld [vmem:[#allocation5 + $0x1c4] sm:$0xf]
    %v655 = vld [vmem:[#allocation5 + $0x1c8] sm:$0xf]
    %v656 = vld [vmem:[#allocation5 + $0x1cc] sm:$0xf]
    %v657 = vld [vmem:[#allocation5 + $0x1d0] sm:$0xf]
    %v658 = vld [vmem:[#allocation5 + $0x1d4] sm:$0xf]
    %v659 = vld [vmem:[#allocation5 + $0x1d8] sm:$0xf]
    %v660 = vld [vmem:[#allocation5 + $0x1dc] sm:$0xf]
    %v661 = vld [vmem:[#allocation5 + $0x1e0] sm:$0xf]
    %v662 = vld [vmem:[#allocation5 + $0x1e4] sm:$0xf]
    %v663 = vld [vmem:[#allocation5 + $0x1e8] sm:$0xf]
    %v664 = vld [vmem:[#allocation5 + $0x1ec] sm:$0xf]
    %v665 = vld [vmem:[#allocation5 + $0x1f0] sm:$0xf]
    %v666 = vld [vmem:[#allocation5 + $0x1f4] sm:$0xf]
    %v667 = vld [vmem:[#allocation5 + $0x1f8] sm:$0xf]
    %v668 = vld [vmem:[#allocation5 + $0x1fc] sm:$0xf]
    %v669 = vld [vmem:[#allocation5 + $0x200] sm:$0xf]
    %v670 = vld [vmem:[#allocation5 + $0x204] sm:$0xf]
    %v671 = vld [vmem:[#allocation5 + $0x208] sm:$0xf]
    %v672 = vld [vmem:[#allocation5 + $0x20c] sm:$0xf]
    %v673 = vld [vmem:[#allocation5 + $0x210] sm:$0xf]
    %v674 = vld [vmem:[#allocation5 + $0x214] sm:$0xf]
    %v675 = vld [vmem:[#allocation5 + $0x218] sm:$0xf]
    %v676 = vld [vmem:[#allocation5 + $0x21c] sm:$0xf]
    %v677 = vld [vmem:[#allocation5 + $0x220] sm:$0xf]
    %v678 = vld [vmem:[#allocation5 + $0x224] sm:$0xf]
    %v679 = vld [vmem:[#allocation5 + $0x228] sm:$0xf]
    %v680 = vld [vmem:[#allocation5 + $0x22c] sm:$0xf]
    %v681 = vld [vmem:[#allocation5 + $0x230] sm:$0xf]
    %v682 = vld [vmem:[#allocation5 + $0x234] sm:$0xf]
    %v683 = vld [vmem:[#allocation5 + $0x238] sm:$0xf]
    %v684 = vld [vmem:[#allocation5 + $0x23c] sm:$0xf]
    %vm746 = vcmask 1046528
    %v747 = vrot.slane 0.0, 1
    %v748 = vsel %vm746, %v747, %v747
    %v749 = vrot.slane %v477, 1
    %v750 = vrot.slane %v287, 1
    %v751 = vsel %vm746, %v749, %v750
    %v752 = vrot.slane %v509, 1
    %v753 = vsel %vm746, %v750, %v752
    %v754 = vrot.slane %v478, 1
    %v755 = vrot.slane %v290, 1
    %v756 = vsel %vm746, %v754, %v755
    %v757 = vrot.slane %v510, 1
    %v758 = vsel %vm746, %v755, %v757
    %v759 = vrot.slane %v479, 1
    %v760 = vrot.slane %v293, 1
    %v761 = vsel %vm746, %v759, %v760
    %v762 = vrot.slane %v511, 1
    %v763 = vsel %vm746, %v760, %v762
    %v764 = vrot.slane %v480, 1
    %v765 = vrot.slane %v296, 1
    %v766 = vsel %vm746, %v764, %v765
    %v767 = vrot.slane %v512, 1
    %v768 = vsel %vm746, %v765, %v767
    %v769 = vrot.slane %v481, 1
    %v770 = vrot.slane %v299, 1
    %v771 = vsel %vm746, %v769, %v770
    %v772 = vrot.slane %v513, 1
    %v773 = vsel %vm746, %v770, %v772
    %v774 = vrot.slane %v482, 1
    %v775 = vrot.slane %v302, 1
    %v776 = vsel %vm746, %v774, %v775
    %v777 = vrot.slane %v514, 1
    %v778 = vsel %vm746, %v775, %v777
    %v779 = vrot.slane %v483, 1
    %v780 = vrot.slane %v305, 1
    %v781 = vsel %vm746, %v779, %v780
    %v782 = vrot.slane %v515, 1
    %v783 = vsel %vm746, %v780, %v782
    %v784 = vrot.slane %v484, 1
    %v785 = vrot.slane %v308, 1
    %v786 = vsel %vm746, %v784, %v785
    %v787 = vrot.slane %v516, 1
    %v788 = vsel %vm746, %v785, %v787
    %v789 = vrot.slane %v485, 1
    %v790 = vrot.slane %v311, 1
    %v791 = vsel %vm746, %v789, %v790
    %v792 = vrot.slane %v517, 1
    %v793 = vsel %vm746, %v790, %v792
    %v794 = vrot.slane %v486, 1
    %v795 = vrot.slane %v314, 1
    %v796 = vsel %vm746, %v794, %v795
    %v797 = vrot.slane %v518, 1
    %v798 = vsel %vm746, %v795, %v797
    %v799 = vrot.slane %v487, 1
    %v800 = vrot.slane %v317, 1
    %v801 = vsel %vm746, %v799, %v800
    %v802 = vrot.slane %v519, 1
    %v803 = vsel %vm746, %v800, %v802
    %v804 = vrot.slane %v488, 1
    %v805 = vrot.slane %v320, 1
    %v806 = vsel %vm746, %v804, %v805
    %v807 = vrot.slane %v520, 1
    %v808 = vsel %vm746, %v805, %v807
    %v809 = vrot.slane %v489, 1
    %v810 = vrot.slane %v323, 1
    %v811 = vsel %vm746, %v809, %v810
    %v812 = vrot.slane %v521, 1
    %v813 = vsel %vm746, %v810, %v812
    %v814 = vrot.slane %v490, 1
    %v815 = vrot.slane %v326, 1
    %v816 = vsel %vm746, %v814, %v815
    %v817 = vrot.slane %v522, 1
    %v818 = vsel %vm746, %v815, %v817
    %v819 = vrot.slane %v491, 1
    %v820 = vrot.slane %v329, 1
    %v821 = vsel %vm746, %v819, %v820
    %v822 = vrot.slane %v523, 1
    %v823 = vsel %vm746, %v820, %v822
    %v824 = vrot.slane %v493, 1
    %v825 = vrot.slane %v335, 1
    %v826 = vsel %vm746, %v824, %v825
    %v827 = vrot.slane %v525, 1
    %v828 = vsel %vm746, %v825, %v827
    %v829 = vrot.slane %v494, 1
    %v830 = vrot.slane %v338, 1
    %v831 = vsel %vm746, %v829, %v830
    %v832 = vrot.slane %v526, 1
    %v833 = vsel %vm746, %v830, %v832
    %v834 = vrot.slane %v495, 1
    %v835 = vrot.slane %v341, 1
    %v836 = vsel %vm746, %v834, %v835
    %v837 = vrot.slane %v527, 1
    %v838 = vsel %vm746, %v835, %v837
    %v839 = vrot.slane %v496, 1
    %v840 = vrot.slane %v344, 1
    %v841 = vsel %vm746, %v839, %v840
    %v842 = vrot.slane %v528, 1
    %v843 = vsel %vm746, %v840, %v842
    %v844 = vrot.slane %v497, 1
    %v845 = vrot.slane %v347, 1
    %v846 = vsel %vm746, %v844, %v845
    %v847 = vrot.slane %v529, 1
    %v848 = vsel %vm746, %v845, %v847
    %v849 = vrot.slane %v498, 1
    %v850 = vrot.slane %v350, 1
    %v851 = vsel %vm746, %v849, %v850
    %v852 = vrot.slane %v530, 1
    %v853 = vsel %vm746, %v850, %v852
    %v854 = vrot.slane %v499, 1
    %v855 = vrot.slane %v353, 1
    %v856 = vsel %vm746, %v854, %v855
    %v857 = vrot.slane %v531, 1
    %v858 = vsel %vm746, %v855, %v857
    %v859 = vrot.slane %v500, 1
    %v860 = vrot.slane %v356, 1
    %v861 = vsel %vm746, %v859, %v860
    %v862 = vrot.slane %v532, 1
    %v863 = vsel %vm746, %v860, %v862
    %v864 = vrot.slane %v501, 1
    %v865 = vrot.slane %v359, 1
    %v866 = vsel %vm746, %v864, %v865
    %v867 = vrot.slane %v533, 1
    %v868 = vsel %vm746, %v865, %v867
    %v869 = vrot.slane %v502, 1
    %v870 = vrot.slane %v362, 1
    %v871 = vsel %vm746, %v869, %v870
    %v872 = vrot.slane %v534, 1
    %v873 = vsel %vm746, %v870, %v872
    %v874 = vrot.slane %v503, 1
    %v875 = vrot.slane %v365, 1
    %v876 = vsel %vm746, %v874, %v875
    %v877 = vrot.slane %v535, 1
    %v878 = vsel %vm746, %v875, %v877
    %v879 = vrot.slane %v504, 1
    %v880 = vrot.slane %v368, 1
    %v881 = vsel %vm746, %v879, %v880
    %v882 = vrot.slane %v536, 1
    %v883 = vsel %vm746, %v880, %v882
    %v884 = vrot.slane %v505, 1
    %v885 = vrot.slane %v371, 1
    %v886 = vsel %vm746, %v884, %v885
    %v887 = vrot.slane %v537, 1
    %v888 = vsel %vm746, %v885, %v887
    %v889 = vrot.slane %v506, 1
    %v890 = vrot.slane %v374, 1
    %v891 = vsel %vm746, %v889, %v890
    %v892 = vrot.slane %v538, 1
    %v893 = vsel %vm746, %v890, %v892
    %v894 = vrot.slane %v507, 1
    %v895 = vrot.slane %v377, 1
    %v896 = vsel %vm746, %v894, %v895
    %v897 = vrot.slane %v539, 1
    %v898 = vsel %vm746, %v895, %v897
    %vm960 = vcmask 1045504
    %v961 = vrot.slane 0.0, 2
    %v962 = vsel %vm960, %v961, %v961
    %v963 = vrot.slane %v477, 2
    %v964 = vrot.slane %v287, 2
    %v965 = vsel %vm960, %v963, %v964
    %v966 = vrot.slane %v509, 2
    %v967 = vsel %vm960, %v964, %v966
    %v968 = vrot.slane %v478, 2
    %v969 = vrot.slane %v290, 2
    %v970 = vsel %vm960, %v968, %v969
    %v971 = vrot.slane %v510, 2
    %v972 = vsel %vm960, %v969, %v971
    %v973 = vrot.slane %v479, 2
    %v974 = vrot.slane %v293, 2
    %v975 = vsel %vm960, %v973, %v974
    %v976 = vrot.slane %v511, 2
    %v977 = vsel %vm960, %v974, %v976
    %v978 = vrot.slane %v480, 2
    %v979 = vrot.slane %v296, 2
    %v980 = vsel %vm960, %v978, %v979
    %v981 = vrot.slane %v512, 2
    %v982 = vsel %vm960, %v979, %v981
    %v983 = vrot.slane %v481, 2
    %v984 = vrot.slane %v299, 2
    %v985 = vsel %vm960, %v983, %v984
    %v986 = vrot.slane %v513, 2
    %v987 = vsel %vm960, %v984, %v986
    %v988 = vrot.slane %v482, 2
    %v989 = vrot.slane %v302, 2
    %v990 = vsel %vm960, %v988, %v989
    %v991 = vrot.slane %v514, 2
    %v992 = vsel %vm960, %v989, %v991
    %v993 = vrot.slane %v483, 2
    %v994 = vrot.slane %v305, 2
    %v995 = vsel %vm960, %v993, %v994
    %v996 = vrot.slane %v515, 2
    %v997 = vsel %vm960, %v994, %v996
    %v998 = vrot.slane %v484, 2
    %v999 = vrot.slane %v308, 2
    %v1000 = vsel %vm960, %v998, %v999
    %v1001 = vrot.slane %v516, 2
    %v1002 = vsel %vm960, %v999, %v1001
    %v1003 = vrot.slane %v485, 2
    %v1004 = vrot.slane %v311, 2
    %v1005 = vsel %vm960, %v1003, %v1004
    %v1006 = vrot.slane %v517, 2
    %v1007 = vsel %vm960, %v1004, %v1006
    %v1008 = vrot.slane %v486, 2
    %v1009 = vrot.slane %v314, 2
    %v1010 = vsel %vm960, %v1008, %v1009
    %v1011 = vrot.slane %v518, 2
    %v1012 = vsel %vm960, %v1009, %v1011
    %v1013 = vrot.slane %v487, 2
    %v1014 = vrot.slane %v317, 2
    %v1015 = vsel %vm960, %v1013, %v1014
    %v1016 = vrot.slane %v519, 2
    %v1017 = vsel %vm960, %v1014, %v1016
    %v1018 = vrot.slane %v488, 2
    %v1019 = vrot.slane %v320, 2
    %v1020 = vsel %vm960, %v1018, %v1019
    %v1021 = vrot.slane %v520, 2
    %v1022 = vsel %vm960, %v1019, %v1021
    %v1023 = vrot.slane %v489, 2
    %v1024 = vrot.slane %v323, 2
    %v1025 = vsel %vm960, %v1023, %v1024
    %v1026 = vrot.slane %v521, 2
    %v1027 = vsel %vm960, %v1024, %v1026
    %v1028 = vrot.slane %v490, 2
    %v1029 = vrot.slane %v326, 2
    %v1030 = vsel %vm960, %v1028, %v1029
    %v1031 = vrot.slane %v522, 2
    %v1032 = vsel %vm960, %v1029, %v1031
    %v1033 = vrot.slane %v491, 2
    %v1034 = vrot.slane %v329, 2
    %v1035 = vsel %vm960, %v1033, %v1034
    %v1036 = vrot.slane %v523, 2
    %v1037 = vsel %vm960, %v1034, %v1036
    %v1038 = vrot.slane %v493, 2
    %v1039 = vrot.slane %v335, 2
    %v1040 = vsel %vm960, %v1038, %v1039
    %v1041 = vrot.slane %v525, 2
    %v1042 = vsel %vm960, %v1039, %v1041
    %v1043 = vrot.slane %v494, 2
    %v1044 = vrot.slane %v338, 2
    %v1045 = vsel %vm960, %v1043, %v1044
    %v1046 = vrot.slane %v526, 2
    %v1047 = vsel %vm960, %v1044, %v1046
    %v1048 = vrot.slane %v495, 2
    %v1049 = vrot.slane %v341, 2
    %v1050 = vsel %vm960, %v1048, %v1049
    %v1051 = vrot.slane %v527, 2
    %v1052 = vsel %vm960, %v1049, %v1051
    %v1053 = vrot.slane %v496, 2
    %v1054 = vrot.slane %v344, 2
    %v1055 = vsel %vm960, %v1053, %v1054
    %v1056 = vrot.slane %v528, 2
    %v1057 = vsel %vm960, %v1054, %v1056
    %v1058 = vrot.slane %v497, 2
    %v1059 = vrot.slane %v347, 2
    %v1060 = vsel %vm960, %v1058, %v1059
    %v1061 = vrot.slane %v529, 2
    %v1062 = vsel %vm960, %v1059, %v1061
    %v1063 = vrot.slane %v498, 2
    %v1064 = vrot.slane %v350, 2
    %v1065 = vsel %vm960, %v1063, %v1064
    %v1066 = vrot.slane %v530, 2
    %v1067 = vsel %vm960, %v1064, %v1066
    %v1068 = vrot.slane %v499, 2
    %v1069 = vrot.slane %v353, 2
    %v1070 = vsel %vm960, %v1068, %v1069
    %v1071 = vrot.slane %v531, 2
    %v1072 = vsel %vm960, %v1069, %v1071
    %v1073 = vrot.slane %v500, 2
    %v1074 = vrot.slane %v356, 2
    %v1075 = vsel %vm960, %v1073, %v1074
    %v1076 = vrot.slane %v532, 2
    %v1077 = vsel %vm960, %v1074, %v1076
    %v1078 = vrot.slane %v501, 2
    %v1079 = vrot.slane %v359, 2
    %v1080 = vsel %vm960, %v1078, %v1079
    %v1081 = vrot.slane %v533, 2
    %v1082 = vsel %vm960, %v1079, %v1081
    %v1083 = vrot.slane %v502, 2
    %v1084 = vrot.slane %v362, 2
    %v1085 = vsel %vm960, %v1083, %v1084
    %v1086 = vrot.slane %v534, 2
    %v1087 = vsel %vm960, %v1084, %v1086
    %v1088 = vrot.slane %v503, 2
    %v1089 = vrot.slane %v365, 2
    %v1090 = vsel %vm960, %v1088, %v1089
    %v1091 = vrot.slane %v535, 2
    %v1092 = vsel %vm960, %v1089, %v1091
    %v1093 = vrot.slane %v504, 2
    %v1094 = vrot.slane %v368, 2
    %v1095 = vsel %vm960, %v1093, %v1094
    %v1096 = vrot.slane %v536, 2
    %v1097 = vsel %vm960, %v1094, %v1096
    %v1098 = vrot.slane %v505, 2
    %v1099 = vrot.slane %v371, 2
    %v1100 = vsel %vm960, %v1098, %v1099
    %v1101 = vrot.slane %v537, 2
    %v1102 = vsel %vm960, %v1099, %v1101
    %v1103 = vrot.slane %v506, 2
    %v1104 = vrot.slane %v374, 2
    %v1105 = vsel %vm960, %v1103, %v1104
    %v1106 = vrot.slane %v538, 2
    %v1107 = vsel %vm960, %v1104, %v1106
    %v1108 = vrot.slane %v507, 2
    %v1109 = vrot.slane %v377, 2
    %v1110 = vsel %vm960, %v1108, %v1109
    %v1111 = vrot.slane %v539, 2
    %v1112 = vsel %vm960, %v1109, %v1111
    %v1178 = vrot.slane %v492, 1
    %v1179 = vrot.slane %v332, 1
    %v1180 = vsel %vm746, %v1178, %v1179
    %v1181 = vrot.slane %v524, 1
    %v1182 = vsel %vm746, %v1179, %v1181
    %v1183 = vrot.slane %v508, 1
    %v1184 = vrot.slane %v380, 1
    %v1185 = vsel %vm746, %v1183, %v1184
    %v1186 = vrot.slane %v540, 1
    %v1187 = vsel %vm746, %v1184, %v1186
    %v1192 = vrot.slane %v492, 2
    %v1193 = vrot.slane %v332, 2
    %v1194 = vsel %vm960, %v1192, %v1193
    %v1195 = vrot.slane %v524, 2
    %v1196 = vsel %vm960, %v1193, %v1195
    %v1197 = vrot.slane %v508, 2
    %v1198 = vrot.slane %v380, 2
    %v1199 = vsel %vm960, %v1197, %v1198
    %v1200 = vrot.slane %v540, 2
    %v1201 = vsel %vm960, %v1198, %v1200
    %v1206 = vpack.c.bf16 0.0, 0.0
    %v1207 = vpack.c.bf16 %v748, %v748
    %v1208 = vpack.c.bf16 %v962, %v962
    %v1209 = vpack.c.bf16 %v287, %v477
    %v1210 = vpack.c.bf16 %v753, %v751
    %v1211 = vpack.c.bf16 %v967, %v965
    %v1212 = vpack.c.bf16 %v290, %v478
    %v1213 = vpack.c.bf16 %v758, %v756
    %v1214 = vpack.c.bf16 %v972, %v970
    %v1215 = vpack.c.bf16 %v293, %v479
    %v1216 = vpack.c.bf16 %v763, %v761
    %v1217 = vpack.c.bf16 %v977, %v975
    %v1218 = vpack.c.bf16 %v296, %v480
    %v1219 = vpack.c.bf16 %v768, %v766
    %v1220 = vpack.c.bf16 %v982, %v980
    %v1221 = vpack.c.bf16 %v299, %v481
    %v1222 = vpack.c.bf16 %v773, %v771
    %v1223 = vpack.c.bf16 %v987, %v985
    %v1224 = vpack.c.bf16 %v302, %v482
    %v1225 = vpack.c.bf16 %v778, %v776
    %v1226 = vpack.c.bf16 %v992, %v990
    %v1227 = vpack.c.bf16 %v305, %v483
    %v1228 = vpack.c.bf16 %v783, %v781
    %v1229 = vpack.c.bf16 %v997, %v995
    %v1230 = vpack.c.bf16 %v308, %v484
    %v1231 = vpack.c.bf16 %v788, %v786
    %v1232 = vpack.c.bf16 %v1002, %v1000
    %v1233 = vpack.c.bf16 %v311, %v485
    %v1234 = vpack.c.bf16 %v793, %v791
    %v1235 = vpack.c.bf16 %v1007, %v1005
    %v1236 = vpack.c.bf16 %v314, %v486
    %v1237 = vpack.c.bf16 %v798, %v796
    %v1238 = vpack.c.bf16 %v1012, %v1010
    %v1239 = vpack.c.bf16 %v317, %v487
    %v1240 = vpack.c.bf16 %v803, %v801
    %v1241 = vpack.c.bf16 %v1017, %v1015
    %v1242 = vpack.c.bf16 %v320, %v488
    %v1243 = vpack.c.bf16 %v808, %v806
    %v1244 = vpack.c.bf16 %v1022, %v1020
    %v1245 = vpack.c.bf16 %v323, %v489
    %v1246 = vpack.c.bf16 %v813, %v811
    %v1247 = vpack.c.bf16 %v1027, %v1025
    %v1248 = vpack.c.bf16 %v326, %v490
    %v1249 = vpack.c.bf16 %v818, %v816
    %v1250 = vpack.c.bf16 %v1032, %v1030
    %v1251 = vpack.c.bf16 %v329, %v491
    %v1252 = vpack.c.bf16 %v823, %v821
    %v1253 = vpack.c.bf16 %v1037, %v1035
    %v1254 = vpack.c.bf16 %v332, %v492
    %v1255 = vpack.c.bf16 %v1182, %v1180
    %v1256 = vpack.c.bf16 %v1196, %v1194
    %v1257 = vpack.c.bf16 %v335, %v493
    %v1258 = vpack.c.bf16 %v828, %v826
    %v1259 = vpack.c.bf16 %v1042, %v1040
    %v1260 = vpack.c.bf16 %v338, %v494
    %v1261 = vpack.c.bf16 %v833, %v831
    %v1262 = vpack.c.bf16 %v1047, %v1045
    %v1263 = vpack.c.bf16 %v341, %v495
    %v1264 = vpack.c.bf16 %v838, %v836
    %v1265 = vpack.c.bf16 %v1052, %v1050
    %v1266 = vpack.c.bf16 %v344, %v496
    %v1267 = vpack.c.bf16 %v843, %v841
    %v1268 = vpack.c.bf16 %v1057, %v1055
    %v1269 = vpack.c.bf16 %v347, %v497
    %v1270 = vpack.c.bf16 %v848, %v846
    %v1271 = vpack.c.bf16 %v1062, %v1060
    %v1272 = vpack.c.bf16 %v350, %v498
    %v1273 = vpack.c.bf16 %v853, %v851
    %v1274 = vpack.c.bf16 %v1067, %v1065
    %v1275 = vpack.c.bf16 %v353, %v499
    %v1276 = vpack.c.bf16 %v858, %v856
    %v1277 = vpack.c.bf16 %v1072, %v1070
    %v1278 = vpack.c.bf16 %v356, %v500
    %v1279 = vpack.c.bf16 %v863, %v861
    %v1280 = vpack.c.bf16 %v1077, %v1075
    %v1281 = vpack.c.bf16 %v359, %v501
    %v1282 = vpack.c.bf16 %v868, %v866
    %v1283 = vpack.c.bf16 %v1082, %v1080
    %v1284 = vpack.c.bf16 %v362, %v502
    %v1285 = vpack.c.bf16 %v873, %v871
    %v1286 = vpack.c.bf16 %v1087, %v1085
    %v1287 = vpack.c.bf16 %v365, %v503
    %v1288 = vpack.c.bf16 %v878, %v876
    %v1289 = vpack.c.bf16 %v1092, %v1090
    %v1290 = vpack.c.bf16 %v368, %v504
    %v1291 = vpack.c.bf16 %v883, %v881
    %v1292 = vpack.c.bf16 %v1097, %v1095
    %v1293 = vpack.c.bf16 %v371, %v505
    %v1294 = vpack.c.bf16 %v888, %v886
    %v1295 = vpack.c.bf16 %v1102, %v1100
    %v1296 = vpack.c.bf16 %v374, %v506
    %v1297 = vpack.c.bf16 %v893, %v891
    %v1298 = vpack.c.bf16 %v1107, %v1105
    %v1299 = vpack.c.bf16 %v377, %v507
    %v1300 = vpack.c.bf16 %v898, %v896
    %v1301 = vpack.c.bf16 %v1112, %v1110
    %v1302 = vpack.c.bf16 %v380, %v508
    %v1303 = vpack.c.bf16 %v1187, %v1185
    %v1304 = vpack.c.bf16 %v1201, %v1199
    %v1449 = vunpack.c.l.b16 %v541
    %v1450 = vunpack.c.l.b16 %v542
    %v1451 = vunpack.c.l.b16 %v543
    %v1452 = vunpack.c.l.b16 %v544
    %v1453 = vunpack.c.l.b16 %v545
    %v1454 = vunpack.c.l.b16 %v546
    %v1455 = vunpack.c.l.b16 %v547
    %v1456 = vunpack.c.l.b16 %v548
    %v1457 = vunpack.c.l.b16 %v549
    %v1458 = vunpack.c.l.b16 %v550
    %v1459 = vunpack.c.l.b16 %v551
    %v1460 = vunpack.c.l.b16 %v552
    %v1461 = vunpack.c.l.b16 %v553
    %v1462 = vunpack.c.l.b16 %v554
    %v1463 = vunpack.c.l.b16 %v555
    %v1464 = vunpack.c.l.b16 %v556
    %v1465 = vunpack.c.l.b16 %v557
    %v1466 = vunpack.c.l.b16 %v558
    %v1467 = vunpack.c.l.b16 %v559
    %v1468 = vunpack.c.l.b16 %v560
    %v1469 = vunpack.c.l.b16 %v561
    %v1470 = vunpack.c.l.b16 %v562
    %v1471 = vunpack.c.l.b16 %v563
    %v1472 = vunpack.c.l.b16 %v564
    %v1473 = vunpack.c.l.b16 %v565
    %v1474 = vunpack.c.l.b16 %v566
    %v1475 = vunpack.c.l.b16 %v567
    %v1476 = vunpack.c.l.b16 %v568
    %v1477 = vunpack.c.l.b16 %v569
    %v1478 = vunpack.c.l.b16 %v570
    %v1479 = vunpack.c.l.b16 %v571
    %v1480 = vunpack.c.l.b16 %v572
    %v1481 = vunpack.c.l.b16 %v573
    %v1482 = vunpack.c.l.b16 %v574
    %v1483 = vunpack.c.l.b16 %v575
    %v1484 = vunpack.c.l.b16 %v576
    %v1485 = vunpack.c.l.b16 %v577
    %v1486 = vunpack.c.l.b16 %v578
    %v1487 = vunpack.c.l.b16 %v579
    %v1488 = vunpack.c.l.b16 %v580
    %v1489 = vunpack.c.l.b16 %v581
    %v1490 = vunpack.c.l.b16 %v582
    %v1491 = vunpack.c.l.b16 %v583
    %v1492 = vunpack.c.l.b16 %v584
    %v1493 = vunpack.c.l.b16 %v585
    %v1494 = vunpack.c.l.b16 %v586
    %v1495 = vunpack.c.l.b16 %v587
    %v1496 = vunpack.c.l.b16 %v588
    %v1497 = vunpack.c.l.b16 %v589
    %v1498 = vunpack.c.l.b16 %v590
    %v1499 = vunpack.c.l.b16 %v591
    %v1500 = vunpack.c.l.b16 %v592
    %v1501 = vunpack.c.l.b16 %v593
    %v1502 = vunpack.c.l.b16 %v594
    %v1503 = vunpack.c.l.b16 %v595
    %v1504 = vunpack.c.l.b16 %v596
    %v1505 = vunpack.c.l.b16 %v597
    %v1506 = vunpack.c.l.b16 %v598
    %v1507 = vunpack.c.l.b16 %v599
    %v1508 = vunpack.c.l.b16 %v600
    %v1509 = vunpack.c.l.b16 %v601
    %v1510 = vunpack.c.l.b16 %v602
    %v1511 = vunpack.c.l.b16 %v603
    %v1512 = vunpack.c.l.b16 %v604
    %v1513 = vunpack.c.l.b16 %v605
    %v1514 = vunpack.c.l.b16 %v606
    %v1515 = vunpack.c.l.b16 %v607
    %v1516 = vunpack.c.l.b16 %v608
    %v1517 = vunpack.c.l.b16 %v609
    %v1518 = vunpack.c.l.b16 %v610
    %v1519 = vunpack.c.l.b16 %v611
    %v1520 = vunpack.c.l.b16 %v612
    %v1521 = vunpack.c.l.b16 %v613
    %v1522 = vunpack.c.l.b16 %v614
    %v1523 = vunpack.c.l.b16 %v615
    %v1524 = vunpack.c.l.b16 %v616
    %v1525 = vunpack.c.l.b16 %v617
    %v1526 = vunpack.c.l.b16 %v618
    %v1527 = vunpack.c.l.b16 %v619
    %v1528 = vunpack.c.l.b16 %v620
    %v1529 = vunpack.c.l.b16 %v621
    %v1530 = vunpack.c.l.b16 %v622
    %v1531 = vunpack.c.l.b16 %v623
    %v1532 = vunpack.c.l.b16 %v624
    %v1533 = vunpack.c.l.b16 %v625
    %v1534 = vunpack.c.l.b16 %v626
    %v1535 = vunpack.c.l.b16 %v627
    %v1536 = vunpack.c.l.b16 %v628
    %v1537 = vunpack.c.l.b16 %v629
    %v1538 = vunpack.c.l.b16 %v630
    %v1539 = vunpack.c.l.b16 %v631
    %v1540 = vunpack.c.l.b16 %v632
    %v1541 = vunpack.c.l.b16 %v633
    %v1542 = vunpack.c.l.b16 %v634
    %v1543 = vunpack.c.l.b16 %v635
    %v1544 = vunpack.c.l.b16 %v636
    %v1545 = vunpack.c.l.b16 %v637
    %v1546 = vunpack.c.l.b16 %v638
    %v1547 = vunpack.c.l.b16 %v639
    %v1548 = vunpack.c.l.b16 %v640
    %v1549 = vunpack.c.l.b16 %v641
    %v1550 = vunpack.c.l.b16 %v642
    %v1551 = vunpack.c.l.b16 %v643
    %v1552 = vunpack.c.l.b16 %v644
    %v1553 = vunpack.c.l.b16 %v645
    %v1554 = vunpack.c.l.b16 %v646
    %v1555 = vunpack.c.l.b16 %v647
    %v1556 = vunpack.c.l.b16 %v648
    %v1557 = vunpack.c.l.b16 %v649
    %v1558 = vunpack.c.l.b16 %v650
    %v1559 = vunpack.c.l.b16 %v651
    %v1560 = vunpack.c.l.b16 %v652
    %v1561 = vunpack.c.l.b16 %v653
    %v1562 = vunpack.c.l.b16 %v654
    %v1563 = vunpack.c.l.b16 %v655
    %v1564 = vunpack.c.l.b16 %v656
    %v1565 = vunpack.c.l.b16 %v657
    %v1566 = vunpack.c.l.b16 %v658
    %v1567 = vunpack.c.l.b16 %v659
    %v1568 = vunpack.c.l.b16 %v660
    %v1569 = vunpack.c.l.b16 %v661
    %v1570 = vunpack.c.l.b16 %v662
    %v1571 = vunpack.c.l.b16 %v663
    %v1572 = vunpack.c.l.b16 %v664
    %v1573 = vunpack.c.l.b16 %v665
    %v1574 = vunpack.c.l.b16 %v666
    %v1575 = vunpack.c.l.b16 %v667
    %v1576 = vunpack.c.l.b16 %v668
    %v1577 = vunpack.c.l.b16 %v669
    %v1578 = vunpack.c.l.b16 %v670
    %v1579 = vunpack.c.l.b16 %v671
    %v1580 = vunpack.c.l.b16 %v672
    %v1581 = vunpack.c.l.b16 %v673
    %v1582 = vunpack.c.l.b16 %v674
    %v1583 = vunpack.c.l.b16 %v675
    %v1584 = vunpack.c.l.b16 %v676
    %v1585 = vunpack.c.l.b16 %v677
    %v1586 = vunpack.c.l.b16 %v678
    %v1587 = vunpack.c.l.b16 %v679
    %v1588 = vunpack.c.l.b16 %v680
    %v1589 = vunpack.c.l.b16 %v681
    %v1590 = vunpack.c.l.b16 %v682
    %v1591 = vunpack.c.l.b16 %v683
    %v1592 = vunpack.c.l.b16 %v684
    %v1593 = vpack.c.b16 %v1450, %v1449
    %v1594 = vpack.c.b16 %v1452, %v1451
    %v1595 = vpack.c.b16 %v1454, %v1453
    %v1596 = vpack.c.b16 %v1456, %v1455
    %v1597 = vpack.c.b16 %v1458, %v1457
    %v1598 = vpack.c.b16 %v1460, %v1459
    %v1599 = vpack.c.b16 %v1462, %v1461
    %v1600 = vpack.c.b16 %v1464, %v1463
    %v1601 = vpack.c.b16 %v1466, %v1465
    %v1602 = vpack.c.b16 %v1468, %v1467
    %v1603 = vpack.c.b16 %v1470, %v1469
    %v1604 = vpack.c.b16 %v1472, %v1471
    %v1605 = vpack.c.b16 %v1474, %v1473
    %v1606 = vpack.c.b16 %v1476, %v1475
    %v1607 = vpack.c.b16 %v1478, %v1477
    %v1608 = vpack.c.b16 %v1480, %v1479
    %v1609 = vpack.c.b16 %v1482, %v1481
    %v1610 = vpack.c.b16 %v1484, %v1483
    %v1611 = vpack.c.b16 %v1486, %v1485
    %v1612 = vpack.c.b16 %v1488, %v1487
    %v1613 = vpack.c.b16 %v1490, %v1489
    %v1614 = vpack.c.b16 %v1492, %v1491
    %v1615 = vpack.c.b16 %v1494, %v1493
    %v1616 = vpack.c.b16 %v1496, %v1495
    %v1617 = vpack.c.b16 %v1498, %v1497
    %v1618 = vpack.c.b16 %v1500, %v1499
    %v1619 = vpack.c.b16 %v1502, %v1501
    %v1620 = vpack.c.b16 %v1504, %v1503
    %v1621 = vpack.c.b16 %v1506, %v1505
    %v1622 = vpack.c.b16 %v1508, %v1507
    %v1623 = vpack.c.b16 %v1510, %v1509
    %v1624 = vpack.c.b16 %v1512, %v1511
    %v1625 = vpack.c.b16 %v1514, %v1513
    %v1626 = vpack.c.b16 %v1516, %v1515
    %v1627 = vpack.c.b16 %v1518, %v1517
    %v1628 = vpack.c.b16 %v1520, %v1519
    %v1629 = vpack.c.b16 %v1522, %v1521
    %v1630 = vpack.c.b16 %v1524, %v1523
    %v1631 = vpack.c.b16 %v1526, %v1525
    %v1632 = vpack.c.b16 %v1528, %v1527
    %v1633 = vpack.c.b16 %v1530, %v1529
    %v1634 = vpack.c.b16 %v1532, %v1531
    %v1635 = vpack.c.b16 %v1534, %v1533
    %v1636 = vpack.c.b16 %v1536, %v1535
    %v1637 = vpack.c.b16 %v1538, %v1537
    %v1638 = vpack.c.b16 %v1540, %v1539
    %v1639 = vpack.c.b16 %v1542, %v1541
    %v1640 = vpack.c.b16 %v1544, %v1543
    %v1641 = vpack.c.b16 %v1546, %v1545
    %v1642 = vpack.c.b16 %v1548, %v1547
    %v1643 = vpack.c.b16 %v1550, %v1549
    %v1644 = vpack.c.b16 %v1552, %v1551
    %v1645 = vpack.c.b16 %v1554, %v1553
    %v1646 = vpack.c.b16 %v1556, %v1555
    %v1647 = vpack.c.b16 %v1558, %v1557
    %v1648 = vpack.c.b16 %v1560, %v1559
    %v1649 = vpack.c.b16 %v1562, %v1561
    %v1650 = vpack.c.b16 %v1564, %v1563
    %v1651 = vpack.c.b16 %v1566, %v1565
    %v1652 = vpack.c.b16 %v1568, %v1567
    %v1653 = vpack.c.b16 %v1570, %v1569
    %v1654 = vpack.c.b16 %v1572, %v1571
    %v1655 = vpack.c.b16 %v1574, %v1573
    %v1656 = vpack.c.b16 %v1576, %v1575
    %v1657 = vpack.c.b16 %v1578, %v1577
    %v1658 = vpack.c.b16 %v1580, %v1579
    %v1659 = vpack.c.b16 %v1582, %v1581
    %v1660 = vpack.c.b16 %v1584, %v1583
    %v1661 = vpack.c.b16 %v1586, %v1585
    %v1662 = vpack.c.b16 %v1588, %v1587
    %v1663 = vpack.c.b16 %v1590, %v1589
    %v1664 = vpack.c.b16 %v1592, %v1591
    %1737 = vmatprep.subr.bf16.mxu0 0
    %1738 = vmatpush1.bf16.msra.mxu0 %v1600
    %1739 = vmatprep.subr.bf16.mxu0 0
    %1740 = vmatpush1.bf16.msra.mxu0 %v1599
    %1741 = vmatprep.subr.bf16.mxu0 0
    %1742 = vmatpush1.bf16.msra.mxu0 %v1598
    %1743 = vmatprep.subr.bf16.mxu0 0
    %1744 = vmatpush1.bf16.msra.mxu0 %v1597
    %1745 = vmatprep.subr.bf16.mxu0 0
    %1746 = vmatpush1.bf16.msra.mxu0 %v1596
    %1747 = vmatprep.subr.bf16.mxu0 0
    %1748 = vmatpush1.bf16.msra.mxu0 %v1595
    %1749 = vmatprep.subr.bf16.mxu0 0
    %1750 = vmatpush1.bf16.msra.mxu0 %v1594
    %1751 = vmatprep.subr.bf16.mxu0 0
    %1752 = vmatpush1.bf16.msra.mxu0 %v1593
    %1753 = vmatprep.subr.bf16.mxu0 0
    %1754 = vmatpush2.bf16.msra.mxu0 %v1608
    %1755 = vmatprep.subr.bf16.mxu0 0
    %1756 = vmatpush2.bf16.msra.mxu0 %v1607
    %1757 = vmatprep.subr.bf16.mxu0 0
    %1758 = vmatpush2.bf16.msra.mxu0 %v1606
    %1759 = vmatprep.subr.bf16.mxu0 0
    %1760 = vmatpush2.bf16.msra.mxu0 %v1605
    %1761 = vmatprep.subr.bf16.mxu0 0
    %1762 = vmatpush2.bf16.msra.mxu0 %v1604
    %1763 = vmatprep.subr.bf16.mxu0 0
    %1764 = vmatpush2.bf16.msra.mxu0 %v1603
    %1765 = vmatprep.subr.bf16.mxu0 0
    %1766 = vmatpush2.bf16.msra.mxu0 %v1602
    %1767 = vmatprep.subr.bf16.mxu0 0
    %1768 = vmatpush2.bf16.msra.mxu0 %v1601
    %1769 = vmatprep.mubr.bf16.mxu0 %v1207
    %1770 = vmatmul.mubr.bf16.gmra.mxu0 %v1206
    %v1771 = vpop.f32.mrf.mxu0
    %v1772 = vadd.f32 0.0, %v1771
    %v1773 = vpop.f32.mrf.mxu0
    %v1774 = vpop.f32.mrf.mxu0
    %v1775 = vadd.f32 0.0, %v1774
    %v1776 = vpop.f32.mrf.mxu0
    %1777 = vmatprep.mubr.bf16.mxu0 %v1210
    %1778 = vmatmul.mubr.bf16.gmra.mxu0 %v1209
    %v1779 = vpop.f32.mrf.mxu0
    %v1780 = vadd.f32 0.0, %v1779
    %v1781 = vpop.f32.mrf.mxu0
    %v1782 = vpop.f32.mrf.mxu0
    %v1783 = vadd.f32 0.0, %v1782
    %v1784 = vpop.f32.mrf.mxu0
    %1785 = vmatprep.mubr.bf16.mxu0 %v1213
    %1786 = vmatmul.mubr.bf16.gmra.mxu0 %v1212
    %v1787 = vpop.f32.mrf.mxu0
    %v1788 = vadd.f32 0.0, %v1787
    %v1789 = vpop.f32.mrf.mxu0
    %v1790 = vpop.f32.mrf.mxu0
    %v1791 = vadd.f32 0.0, %v1790
    %v1792 = vpop.f32.mrf.mxu0
    %1793 = vmatprep.mubr.bf16.mxu0 %v1216
    %1794 = vmatmul.mubr.bf16.gmra.mxu0 %v1215
    %v1795 = vpop.f32.mrf.mxu0
    %v1796 = vadd.f32 0.0, %v1795
    %v1797 = vpop.f32.mrf.mxu0
    %v1798 = vpop.f32.mrf.mxu0
    %v1799 = vadd.f32 0.0, %v1798
    %v1800 = vpop.f32.mrf.mxu0
    %1801 = vmatprep.mubr.bf16.mxu0 %v1219
    %1802 = vmatmul.mubr.bf16.gmra.mxu0 %v1218
    %v1803 = vpop.f32.mrf.mxu0
    %v1804 = vadd.f32 0.0, %v1803
    %v1805 = vpop.f32.mrf.mxu0
    %v1806 = vpop.f32.mrf.mxu0
    %v1807 = vadd.f32 0.0, %v1806
    %v1808 = vpop.f32.mrf.mxu0
    %1809 = vmatprep.mubr.bf16.mxu0 %v1222
    %1810 = vmatmul.mubr.bf16.gmra.mxu0 %v1221
    %v1811 = vpop.f32.mrf.mxu0
    %v1812 = vadd.f32 0.0, %v1811
    %v1813 = vpop.f32.mrf.mxu0
    %v1814 = vpop.f32.mrf.mxu0
    %v1815 = vadd.f32 0.0, %v1814
    %v1816 = vpop.f32.mrf.mxu0
    %1817 = vmatprep.mubr.bf16.mxu0 %v1225
    %1818 = vmatmul.mubr.bf16.gmra.mxu0 %v1224
    %v1819 = vpop.f32.mrf.mxu0
    %v1820 = vadd.f32 0.0, %v1819
    %v1821 = vpop.f32.mrf.mxu0
    %v1822 = vpop.f32.mrf.mxu0
    %v1823 = vadd.f32 0.0, %v1822
    %v1824 = vpop.f32.mrf.mxu0
    %1825 = vmatprep.mubr.bf16.mxu0 %v1228
    %1826 = vmatmul.mubr.bf16.gmra.mxu0 %v1227
    %v1827 = vpop.f32.mrf.mxu0
    %v1828 = vadd.f32 0.0, %v1827
    %v1829 = vpop.f32.mrf.mxu0
    %v1830 = vpop.f32.mrf.mxu0
    %v1831 = vadd.f32 0.0, %v1830
    %v1832 = vpop.f32.mrf.mxu0
    %1833 = vmatprep.mubr.bf16.mxu0 %v1231
    %1834 = vmatmul.mubr.bf16.gmra.mxu0 %v1230
    %v1835 = vpop.f32.mrf.mxu0
    %v1836 = vadd.f32 0.0, %v1835
    %v1837 = vpop.f32.mrf.mxu0
    %v1838 = vpop.f32.mrf.mxu0
    %v1839 = vadd.f32 0.0, %v1838
    %v1840 = vpop.f32.mrf.mxu0
    %1841 = vmatprep.mubr.bf16.mxu0 %v1234
    %1842 = vmatmul.mubr.bf16.gmra.mxu0 %v1233
    %v1843 = vpop.f32.mrf.mxu0
    %v1844 = vadd.f32 0.0, %v1843
    %v1845 = vpop.f32.mrf.mxu0
    %v1846 = vpop.f32.mrf.mxu0
    %v1847 = vadd.f32 0.0, %v1846
    %v1848 = vpop.f32.mrf.mxu0
    %1849 = vmatprep.mubr.bf16.mxu0 %v1237
    %1850 = vmatmul.mubr.bf16.gmra.mxu0 %v1236
    %v1851 = vpop.f32.mrf.mxu0
    %v1852 = vadd.f32 0.0, %v1851
    %v1853 = vpop.f32.mrf.mxu0
    %v1854 = vpop.f32.mrf.mxu0
    %v1855 = vadd.f32 0.0, %v1854
    %v1856 = vpop.f32.mrf.mxu0
    %1857 = vmatprep.mubr.bf16.mxu0 %v1240
    %1858 = vmatmul.mubr.bf16.gmra.mxu0 %v1239
    %v1859 = vpop.f32.mrf.mxu0
    %v1860 = vadd.f32 0.0, %v1859
    %v1861 = vpop.f32.mrf.mxu0
    %v1862 = vpop.f32.mrf.mxu0
    %v1863 = vadd.f32 0.0, %v1862
    %v1864 = vpop.f32.mrf.mxu0
    %1865 = vmatprep.mubr.bf16.mxu0 %v1243
    %1866 = vmatmul.mubr.bf16.gmra.mxu0 %v1242
    %v1867 = vpop.f32.mrf.mxu0
    %v1868 = vadd.f32 0.0, %v1867
    %v1869 = vpop.f32.mrf.mxu0
    %v1870 = vpop.f32.mrf.mxu0
    %v1871 = vadd.f32 0.0, %v1870
    %v1872 = vpop.f32.mrf.mxu0
    %1873 = vmatprep.mubr.bf16.mxu0 %v1246
    %1874 = vmatmul.mubr.bf16.gmra.mxu0 %v1245
    %v1875 = vpop.f32.mrf.mxu0
    %v1876 = vadd.f32 0.0, %v1875
    %v1877 = vpop.f32.mrf.mxu0
    %v1878 = vpop.f32.mrf.mxu0
    %v1879 = vadd.f32 0.0, %v1878
    %v1880 = vpop.f32.mrf.mxu0
    %1881 = vmatprep.mubr.bf16.mxu0 %v1249
    %1882 = vmatmul.mubr.bf16.gmra.mxu0 %v1248
    %v1883 = vpop.f32.mrf.mxu0
    %v1884 = vadd.f32 0.0, %v1883
    %v1885 = vpop.f32.mrf.mxu0
    %v1886 = vpop.f32.mrf.mxu0
    %v1887 = vadd.f32 0.0, %v1886
    %v1888 = vpop.f32.mrf.mxu0
    %1889 = vmatprep.mubr.bf16.mxu0 %v1252
    %1890 = vmatmul.mubr.bf16.gmra.mxu0 %v1251
    %v1891 = vpop.f32.mrf.mxu0
    %v1892 = vadd.f32 0.0, %v1891
    %v1893 = vpop.f32.mrf.mxu0
    %v1894 = vpop.f32.mrf.mxu0
    %v1895 = vadd.f32 0.0, %v1894
    %v1896 = vpop.f32.mrf.mxu0
    %1897 = vmatprep.mubr.bf16.mxu0 %v1207
    %1898 = vmatmul.mubr.bf16.gmra.mxu0 %v1206
    %v1899 = vpop.f32.mrf.mxu0
    %v1900 = vadd.f32 0.0, %v1899
    %v1901 = vpop.f32.mrf.mxu0
    %v1902 = vpop.f32.mrf.mxu0
    %v1903 = vadd.f32 0.0, %v1902
    %v1904 = vpop.f32.mrf.mxu0
    %1905 = vmatprep.mubr.bf16.mxu0 %v1258
    %1906 = vmatmul.mubr.bf16.gmra.mxu0 %v1257
    %v1907 = vpop.f32.mrf.mxu0
    %v1908 = vadd.f32 0.0, %v1907
    %v1909 = vpop.f32.mrf.mxu0
    %v1910 = vpop.f32.mrf.mxu0
    %v1911 = vadd.f32 0.0, %v1910
    %v1912 = vpop.f32.mrf.mxu0
    %1913 = vmatprep.mubr.bf16.mxu0 %v1261
    %1914 = vmatmul.mubr.bf16.gmra.mxu0 %v1260
    %v1915 = vpop.f32.mrf.mxu0
    %v1916 = vadd.f32 0.0, %v1915
    %v1917 = vpop.f32.mrf.mxu0
    %v1918 = vpop.f32.mrf.mxu0
    %v1919 = vadd.f32 0.0, %v1918
    %v1920 = vpop.f32.mrf.mxu0
    %1921 = vmatprep.mubr.bf16.mxu0 %v1264
    %1922 = vmatmul.mubr.bf16.gmra.mxu0 %v1263
    %v1923 = vpop.f32.mrf.mxu0
    %v1924 = vadd.f32 0.0, %v1923
    %v1925 = vpop.f32.mrf.mxu0
    %v1926 = vpop.f32.mrf.mxu0
    %v1927 = vadd.f32 0.0, %v1926
    %v1928 = vpop.f32.mrf.mxu0
    %1929 = vmatprep.mubr.bf16.mxu0 %v1267
    %1930 = vmatmul.mubr.bf16.gmra.mxu0 %v1266
    %v1931 = vpop.f32.mrf.mxu0
    %v1932 = vadd.f32 0.0, %v1931
    %v1933 = vpop.f32.mrf.mxu0
    %v1934 = vpop.f32.mrf.mxu0
    %v1935 = vadd.f32 0.0, %v1934
    %v1936 = vpop.f32.mrf.mxu0
    %1937 = vmatprep.mubr.bf16.mxu0 %v1270
    %1938 = vmatmul.mubr.bf16.gmra.mxu0 %v1269
    %v1939 = vpop.f32.mrf.mxu0
    %v1940 = vadd.f32 0.0, %v1939
    %v1941 = vpop.f32.mrf.mxu0
    %v1942 = vpop.f32.mrf.mxu0
    %v1943 = vadd.f32 0.0, %v1942
    %v1944 = vpop.f32.mrf.mxu0
    %1945 = vmatprep.mubr.bf16.mxu0 %v1273
    %1946 = vmatmul.mubr.bf16.gmra.mxu0 %v1272
    %v1947 = vpop.f32.mrf.mxu0
    %v1948 = vadd.f32 0.0, %v1947
    %v1949 = vpop.f32.mrf.mxu0
    %v1950 = vpop.f32.mrf.mxu0
    %v1951 = vadd.f32 0.0, %v1950
    %v1952 = vpop.f32.mrf.mxu0
    %1953 = vmatprep.mubr.bf16.mxu0 %v1276
    %1954 = vmatmul.mubr.bf16.gmra.mxu0 %v1275
    %v1955 = vpop.f32.mrf.mxu0
    %v1956 = vadd.f32 0.0, %v1955
    %v1957 = vpop.f32.mrf.mxu0
    %v1958 = vpop.f32.mrf.mxu0
    %v1959 = vadd.f32 0.0, %v1958
    %v1960 = vpop.f32.mrf.mxu0
    %1961 = vmatprep.mubr.bf16.mxu0 %v1279
    %1962 = vmatmul.mubr.bf16.gmra.mxu0 %v1278
    %v1963 = vpop.f32.mrf.mxu0
    %v1964 = vadd.f32 0.0, %v1963
    %v1965 = vpop.f32.mrf.mxu0
    %v1966 = vpop.f32.mrf.mxu0
    %v1967 = vadd.f32 0.0, %v1966
    %v1968 = vpop.f32.mrf.mxu0
    %1969 = vmatprep.mubr.bf16.mxu0 %v1282
    %1970 = vmatmul.mubr.bf16.gmra.mxu0 %v1281
    %v1971 = vpop.f32.mrf.mxu0
    %v1972 = vadd.f32 0.0, %v1971
    %v1973 = vpop.f32.mrf.mxu0
    %v1974 = vpop.f32.mrf.mxu0
    %v1975 = vadd.f32 0.0, %v1974
    %v1976 = vpop.f32.mrf.mxu0
    %1977 = vmatprep.mubr.bf16.mxu0 %v1285
    %1978 = vmatmul.mubr.bf16.gmra.mxu0 %v1284
    %v1979 = vpop.f32.mrf.mxu0
    %v1980 = vadd.f32 0.0, %v1979
    %v1981 = vpop.f32.mrf.mxu0
    %v1982 = vpop.f32.mrf.mxu0
    %v1983 = vadd.f32 0.0, %v1982
    %v1984 = vpop.f32.mrf.mxu0
    %1985 = vmatprep.mubr.bf16.mxu0 %v1288
    %1986 = vmatmul.mubr.bf16.gmra.mxu0 %v1287
    %v1987 = vpop.f32.mrf.mxu0
    %v1988 = vadd.f32 0.0, %v1987
    %v1989 = vpop.f32.mrf.mxu0
    %v1990 = vpop.f32.mrf.mxu0
    %v1991 = vadd.f32 0.0, %v1990
    %v1992 = vpop.f32.mrf.mxu0
    %1993 = vmatprep.mubr.bf16.mxu0 %v1291
    %1994 = vmatmul.mubr.bf16.gmra.mxu0 %v1290
    %v1995 = vpop.f32.mrf.mxu0
    %v1996 = vadd.f32 0.0, %v1995
    %v1997 = vpop.f32.mrf.mxu0
    %v1998 = vpop.f32.mrf.mxu0
    %v1999 = vadd.f32 0.0, %v1998
    %v2000 = vpop.f32.mrf.mxu0
    %2001 = vmatprep.mubr.bf16.mxu0 %v1294
    %2002 = vmatmul.mubr.bf16.gmra.mxu0 %v1293
    %v2003 = vpop.f32.mrf.mxu0
    %v2004 = vadd.f32 0.0, %v2003
    %v2005 = vpop.f32.mrf.mxu0
    %v2006 = vpop.f32.mrf.mxu0
    %v2007 = vadd.f32 0.0, %v2006
    %v2008 = vpop.f32.mrf.mxu0
    %2009 = vmatprep.mubr.bf16.mxu0 %v1297
    %2010 = vmatmul.mubr.bf16.gmra.mxu0 %v1296
    %v2011 = vpop.f32.mrf.mxu0
    %v2012 = vadd.f32 0.0, %v2011
    %v2013 = vpop.f32.mrf.mxu0
    %v2014 = vpop.f32.mrf.mxu0
    %v2015 = vadd.f32 0.0, %v2014
    %v2016 = vpop.f32.mrf.mxu0
    %2017 = vmatprep.mubr.bf16.mxu0 %v1300
    %2018 = vmatmul.mubr.bf16.gmra.mxu0 %v1299
    %v2019 = vpop.f32.mrf.mxu0
    %v2020 = vadd.f32 0.0, %v2019
    %v2021 = vpop.f32.mrf.mxu0
    %v2022 = vpop.f32.mrf.mxu0
    %v2023 = vadd.f32 0.0, %v2022
    %v2024 = vpop.f32.mrf.mxu0
    %2025 = vdwg.mxu0
    %2026 = vmatprep.subr.bf16.mxu0 0
    %2027 = vmatpush1.bf16.msra.mxu0 %v1616
    %2028 = vmatprep.subr.bf16.mxu0 0
    %2029 = vmatpush1.bf16.msra.mxu0 %v1615
    %2030 = vmatprep.subr.bf16.mxu0 0
    %2031 = vmatpush1.bf16.msra.mxu0 %v1614
    %2032 = vmatprep.subr.bf16.mxu0 0
    %2033 = vmatpush1.bf16.msra.mxu0 %v1613
    %2034 = vmatprep.subr.bf16.mxu0 0
    %2035 = vmatpush1.bf16.msra.mxu0 %v1612
    %2036 = vmatprep.subr.bf16.mxu0 0
    %2037 = vmatpush1.bf16.msra.mxu0 %v1611
    %2038 = vmatprep.subr.bf16.mxu0 0
    %2039 = vmatpush1.bf16.msra.mxu0 %v1610
    %2040 = vmatprep.subr.bf16.mxu0 0
    %2041 = vmatpush1.bf16.msra.mxu0 %v1609
    %2042 = vmatprep.subr.bf16.mxu0 0
    %2043 = vmatpush2.bf16.msra.mxu0 %v1624
    %2044 = vmatprep.subr.bf16.mxu0 0
    %2045 = vmatpush2.bf16.msra.mxu0 %v1623
    %2046 = vmatprep.subr.bf16.mxu0 0
    %2047 = vmatpush2.bf16.msra.mxu0 %v1622
    %2048 = vmatprep.subr.bf16.mxu0 0
    %2049 = vmatpush2.bf16.msra.mxu0 %v1621
    %2050 = vmatprep.subr.bf16.mxu0 0
    %2051 = vmatpush2.bf16.msra.mxu0 %v1620
    %2052 = vmatprep.subr.bf16.mxu0 0
    %2053 = vmatpush2.bf16.msra.mxu0 %v1619
    %2054 = vmatprep.subr.bf16.mxu0 0
    %2055 = vmatpush2.bf16.msra.mxu0 %v1618
    %2056 = vmatprep.subr.bf16.mxu0 0
    %2057 = vmatpush2.bf16.msra.mxu0 %v1617
    %2058 = vmatprep.mubr.bf16.mxu0 %v1209
    %2059 = vmatmul.mubr.bf16.gmra.mxu0 %v1208
    %v2060 = vpop.f32.mrf.mxu0
    %v2061 = vadd.f32 %v1772, %v2060
    %v2062 = vpop.f32.mrf.mxu0
    %v2063 = vpop.f32.mrf.mxu0
    %v2064 = vadd.f32 %v1775, %v2063
    %v2065 = vpop.f32.mrf.mxu0
    %2066 = vmatprep.mubr.bf16.mxu0 %v1212
    %2067 = vmatmul.mubr.bf16.gmra.mxu0 %v1211
    %v2068 = vpop.f32.mrf.mxu0
    %v2069 = vadd.f32 %v1780, %v2068
    %v2070 = vpop.f32.mrf.mxu0
    %v2071 = vpop.f32.mrf.mxu0
    %v2072 = vadd.f32 %v1783, %v2071
    %v2073 = vpop.f32.mrf.mxu0
    %2074 = vmatprep.mubr.bf16.mxu0 %v1215
    %2075 = vmatmul.mubr.bf16.gmra.mxu0 %v1214
    %v2076 = vpop.f32.mrf.mxu0
    %v2077 = vadd.f32 %v1788, %v2076
    %v2078 = vpop.f32.mrf.mxu0
    %v2079 = vpop.f32.mrf.mxu0
    %v2080 = vadd.f32 %v1791, %v2079
    %v2081 = vpop.f32.mrf.mxu0
    %2082 = vmatprep.mubr.bf16.mxu0 %v1218
    %2083 = vmatmul.mubr.bf16.gmra.mxu0 %v1217
    %v2084 = vpop.f32.mrf.mxu0
    %v2085 = vadd.f32 %v1796, %v2084
    %v2086 = vpop.f32.mrf.mxu0
    %v2087 = vpop.f32.mrf.mxu0
    %v2088 = vadd.f32 %v1799, %v2087
    %v2089 = vpop.f32.mrf.mxu0
    %2090 = vmatprep.mubr.bf16.mxu0 %v1221
    %2091 = vmatmul.mubr.bf16.gmra.mxu0 %v1220
    %v2092 = vpop.f32.mrf.mxu0
    %v2093 = vadd.f32 %v1804, %v2092
    %v2094 = vpop.f32.mrf.mxu0
    %v2095 = vpop.f32.mrf.mxu0
    %v2096 = vadd.f32 %v1807, %v2095
    %v2097 = vpop.f32.mrf.mxu0
    %2098 = vmatprep.mubr.bf16.mxu0 %v1224
    %2099 = vmatmul.mubr.bf16.gmra.mxu0 %v1223
    %v2100 = vpop.f32.mrf.mxu0
    %v2101 = vadd.f32 %v1812, %v2100
    %v2102 = vpop.f32.mrf.mxu0
    %v2103 = vpop.f32.mrf.mxu0
    %v2104 = vadd.f32 %v1815, %v2103
    %v2105 = vpop.f32.mrf.mxu0
    %2106 = vmatprep.mubr.bf16.mxu0 %v1227
    %2107 = vmatmul.mubr.bf16.gmra.mxu0 %v1226
    %v2108 = vpop.f32.mrf.mxu0
    %v2109 = vadd.f32 %v1820, %v2108
    %v2110 = vpop.f32.mrf.mxu0
    %v2111 = vpop.f32.mrf.mxu0
    %v2112 = vadd.f32 %v1823, %v2111
    %v2113 = vpop.f32.mrf.mxu0
    %2114 = vmatprep.mubr.bf16.mxu0 %v1230
    %2115 = vmatmul.mubr.bf16.gmra.mxu0 %v1229
    %v2116 = vpop.f32.mrf.mxu0
    %v2117 = vadd.f32 %v1828, %v2116
    %v2118 = vpop.f32.mrf.mxu0
    %v2119 = vpop.f32.mrf.mxu0
    %v2120 = vadd.f32 %v1831, %v2119
    %v2121 = vpop.f32.mrf.mxu0
    %2122 = vmatprep.mubr.bf16.mxu0 %v1233
    %2123 = vmatmul.mubr.bf16.gmra.mxu0 %v1232
    %v2124 = vpop.f32.mrf.mxu0
    %v2125 = vadd.f32 %v1836, %v2124
    %v2126 = vpop.f32.mrf.mxu0
    %v2127 = vpop.f32.mrf.mxu0
    %v2128 = vadd.f32 %v1839, %v2127
    %v2129 = vpop.f32.mrf.mxu0
    %2130 = vmatprep.mubr.bf16.mxu0 %v1236
    %2131 = vmatmul.mubr.bf16.gmra.mxu0 %v1235
    %v2132 = vpop.f32.mrf.mxu0
    %v2133 = vadd.f32 %v1844, %v2132
    %v2134 = vpop.f32.mrf.mxu0
    %v2135 = vpop.f32.mrf.mxu0
    %v2136 = vadd.f32 %v1847, %v2135
    %v2137 = vpop.f32.mrf.mxu0
    %2138 = vmatprep.mubr.bf16.mxu0 %v1239
    %2139 = vmatmul.mubr.bf16.gmra.mxu0 %v1238
    %v2140 = vpop.f32.mrf.mxu0
    %v2141 = vadd.f32 %v1852, %v2140
    %v2142 = vpop.f32.mrf.mxu0
    %v2143 = vpop.f32.mrf.mxu0
    %v2144 = vadd.f32 %v1855, %v2143
    %v2145 = vpop.f32.mrf.mxu0
    %2146 = vmatprep.mubr.bf16.mxu0 %v1242
    %2147 = vmatmul.mubr.bf16.gmra.mxu0 %v1241
    %v2148 = vpop.f32.mrf.mxu0
    %v2149 = vadd.f32 %v1860, %v2148
    %v2150 = vpop.f32.mrf.mxu0
    %v2151 = vpop.f32.mrf.mxu0
    %v2152 = vadd.f32 %v1863, %v2151
    %v2153 = vpop.f32.mrf.mxu0
    %2154 = vmatprep.mubr.bf16.mxu0 %v1245
    %2155 = vmatmul.mubr.bf16.gmra.mxu0 %v1244
    %v2156 = vpop.f32.mrf.mxu0
    %v2157 = vadd.f32 %v1868, %v2156
    %v2158 = vpop.f32.mrf.mxu0
    %v2159 = vpop.f32.mrf.mxu0
    %v2160 = vadd.f32 %v1871, %v2159
    %v2161 = vpop.f32.mrf.mxu0
    %2162 = vmatprep.mubr.bf16.mxu0 %v1248
    %2163 = vmatmul.mubr.bf16.gmra.mxu0 %v1247
    %v2164 = vpop.f32.mrf.mxu0
    %v2165 = vadd.f32 %v1876, %v2164
    %v2166 = vpop.f32.mrf.mxu0
    %v2167 = vpop.f32.mrf.mxu0
    %v2168 = vadd.f32 %v1879, %v2167
    %v2169 = vpop.f32.mrf.mxu0
    %2170 = vmatprep.mubr.bf16.mxu0 %v1251
    %2171 = vmatmul.mubr.bf16.gmra.mxu0 %v1250
    %v2172 = vpop.f32.mrf.mxu0
    %v2173 = vadd.f32 %v1884, %v2172
    %v2174 = vpop.f32.mrf.mxu0
    %v2175 = vpop.f32.mrf.mxu0
    %v2176 = vadd.f32 %v1887, %v2175
    %v2177 = vpop.f32.mrf.mxu0
    %2178 = vmatprep.mubr.bf16.mxu0 %v1254
    %2179 = vmatmul.mubr.bf16.gmra.mxu0 %v1253
    %v2180 = vpop.f32.mrf.mxu0
    %v2181 = vadd.f32 %v1892, %v2180
    %v2182 = vpop.f32.mrf.mxu0
    %v2183 = vpop.f32.mrf.mxu0
    %v2184 = vadd.f32 %v1895, %v2183
    %v2185 = vpop.f32.mrf.mxu0
    %2186 = vmatprep.mubr.bf16.mxu0 %v1257
    %2187 = vmatmul.mubr.bf16.gmra.mxu0 %v1208
    %v2188 = vpop.f32.mrf.mxu0
    %v2189 = vadd.f32 %v1900, %v2188
    %v2190 = vpop.f32.mrf.mxu0
    %v2191 = vpop.f32.mrf.mxu0
    %v2192 = vadd.f32 %v1903, %v2191
    %v2193 = vpop.f32.mrf.mxu0
    %2194 = vmatprep.mubr.bf16.mxu0 %v1260
    %2195 = vmatmul.mubr.bf16.gmra.mxu0 %v1259
    %v2196 = vpop.f32.mrf.mxu0
    %v2197 = vadd.f32 %v1908, %v2196
    %v2198 = vpop.f32.mrf.mxu0
    %v2199 = vpop.f32.mrf.mxu0
    %v2200 = vadd.f32 %v1911, %v2199
    %v2201 = vpop.f32.mrf.mxu0
    %2202 = vmatprep.mubr.bf16.mxu0 %v1263
    %2203 = vmatmul.mubr.bf16.gmra.mxu0 %v1262
    %v2204 = vpop.f32.mrf.mxu0
    %v2205 = vadd.f32 %v1916, %v2204
    %v2206 = vpop.f32.mrf.mxu0
    %v2207 = vpop.f32.mrf.mxu0
    %v2208 = vadd.f32 %v1919, %v2207
    %v2209 = vpop.f32.mrf.mxu0
    %2210 = vmatprep.mubr.bf16.mxu0 %v1266
    %2211 = vmatmul.mubr.bf16.gmra.mxu0 %v1265
    %v2212 = vpop.f32.mrf.mxu0
    %v2213 = vadd.f32 %v1924, %v2212
    %v2214 = vpop.f32.mrf.mxu0
    %v2215 = vpop.f32.mrf.mxu0
    %v2216 = vadd.f32 %v1927, %v2215
    %v2217 = vpop.f32.mrf.mxu0
    %2218 = vmatprep.mubr.bf16.mxu0 %v1269
    %2219 = vmatmul.mubr.bf16.gmra.mxu0 %v1268
    %v2220 = vpop.f32.mrf.mxu0
    %v2221 = vadd.f32 %v1932, %v2220
    %v2222 = vpop.f32.mrf.mxu0
    %v2223 = vpop.f32.mrf.mxu0
    %v2224 = vadd.f32 %v1935, %v2223
    %v2225 = vpop.f32.mrf.mxu0
    %2226 = vmatprep.mubr.bf16.mxu0 %v1272
    %2227 = vmatmul.mubr.bf16.gmra.mxu0 %v1271
    %v2228 = vpop.f32.mrf.mxu0
    %v2229 = vadd.f32 %v1940, %v2228
    %v2230 = vpop.f32.mrf.mxu0
    %v2231 = vpop.f32.mrf.mxu0
    %v2232 = vadd.f32 %v1943, %v2231
    %v2233 = vpop.f32.mrf.mxu0
    %2234 = vmatprep.mubr.bf16.mxu0 %v1275
    %2235 = vmatmul.mubr.bf16.gmra.mxu0 %v1274
    %v2236 = vpop.f32.mrf.mxu0
    %v2237 = vadd.f32 %v1948, %v2236
    %v2238 = vpop.f32.mrf.mxu0
    %v2239 = vpop.f32.mrf.mxu0
    %v2240 = vadd.f32 %v1951, %v2239
    %v2241 = vpop.f32.mrf.mxu0
    %2242 = vmatprep.mubr.bf16.mxu0 %v1278
    %2243 = vmatmul.mubr.bf16.gmra.mxu0 %v1277
    %v2244 = vpop.f32.mrf.mxu0
    %v2245 = vadd.f32 %v1956, %v2244
    %v2246 = vpop.f32.mrf.mxu0
    %v2247 = vpop.f32.mrf.mxu0
    %v2248 = vadd.f32 %v1959, %v2247
    %v2249 = vpop.f32.mrf.mxu0
    %2250 = vmatprep.mubr.bf16.mxu0 %v1281
    %2251 = vmatmul.mubr.bf16.gmra.mxu0 %v1280
    %v2252 = vpop.f32.mrf.mxu0
    %v2253 = vadd.f32 %v1964, %v2252
    %v2254 = vpop.f32.mrf.mxu0
    %v2255 = vpop.f32.mrf.mxu0
    %v2256 = vadd.f32 %v1967, %v2255
    %v2257 = vpop.f32.mrf.mxu0
    %2258 = vmatprep.mubr.bf16.mxu0 %v1284
    %2259 = vmatmul.mubr.bf16.gmra.mxu0 %v1283
    %v2260 = vpop.f32.mrf.mxu0
    %v2261 = vadd.f32 %v1972, %v2260
    %v2262 = vpop.f32.mrf.mxu0
    %v2263 = vpop.f32.mrf.mxu0
    %v2264 = vadd.f32 %v1975, %v2263
    %v2265 = vpop.f32.mrf.mxu0
    %2266 = vmatprep.mubr.bf16.mxu0 %v1287
    %2267 = vmatmul.mubr.bf16.gmra.mxu0 %v1286
    %v2268 = vpop.f32.mrf.mxu0
    %v2269 = vadd.f32 %v1980, %v2268
    %v2270 = vpop.f32.mrf.mxu0
    %v2271 = vpop.f32.mrf.mxu0
    %v2272 = vadd.f32 %v1983, %v2271
    %v2273 = vpop.f32.mrf.mxu0
    %2274 = vmatprep.mubr.bf16.mxu0 %v1290
    %2275 = vmatmul.mubr.bf16.gmra.mxu0 %v1289
    %v2276 = vpop.f32.mrf.mxu0
    %v2277 = vadd.f32 %v1988, %v2276
    %v2278 = vpop.f32.mrf.mxu0
    %v2279 = vpop.f32.mrf.mxu0
    %v2280 = vadd.f32 %v1991, %v2279
    %v2281 = vpop.f32.mrf.mxu0
    %2282 = vmatprep.mubr.bf16.mxu0 %v1293
    %2283 = vmatmul.mubr.bf16.gmra.mxu0 %v1292
    %v2284 = vpop.f32.mrf.mxu0
    %v2285 = vadd.f32 %v1996, %v2284
    %v2286 = vpop.f32.mrf.mxu0
    %v2287 = vpop.f32.mrf.mxu0
    %v2288 = vadd.f32 %v1999, %v2287
    %v2289 = vpop.f32.mrf.mxu0
    %2290 = vmatprep.mubr.bf16.mxu0 %v1296
    %2291 = vmatmul.mubr.bf16.gmra.mxu0 %v1295
    %v2292 = vpop.f32.mrf.mxu0
    %v2293 = vadd.f32 %v2004, %v2292
    %v2294 = vpop.f32.mrf.mxu0
    %v2295 = vpop.f32.mrf.mxu0
    %v2296 = vadd.f32 %v2007, %v2295
    %v2297 = vpop.f32.mrf.mxu0
    %2298 = vmatprep.mubr.bf16.mxu0 %v1299
    %2299 = vmatmul.mubr.bf16.gmra.mxu0 %v1298
    %v2300 = vpop.f32.mrf.mxu0
    %v2301 = vadd.f32 %v2012, %v2300
    %v2302 = vpop.f32.mrf.mxu0
    %v2303 = vpop.f32.mrf.mxu0
    %v2304 = vadd.f32 %v2015, %v2303
    %v2305 = vpop.f32.mrf.mxu0
    %2306 = vmatprep.mubr.bf16.mxu0 %v1302
    %2307 = vmatmul.mubr.bf16.gmra.mxu0 %v1301
    %v2308 = vpop.f32.mrf.mxu0
    %v2309 = vadd.f32 %v2020, %v2308
    %v2310 = vpop.f32.mrf.mxu0
    %v2311 = vpop.f32.mrf.mxu0
    %v2312 = vadd.f32 %v2023, %v2311
    %v2313 = vpop.f32.mrf.mxu0
    %2314 = vdwg.mxu0
    %2315 = vmatprep.subr.bf16.mxu0 0
    %2316 = vmatpush1.bf16.msra.mxu0 %v1632
    %2317 = vmatprep.subr.bf16.mxu0 0
    %2318 = vmatpush1.bf16.msra.mxu0 %v1631
    %2319 = vmatprep.subr.bf16.mxu0 0
    %2320 = vmatpush1.bf16.msra.mxu0 %v1630
    %2321 = vmatprep.subr.bf16.mxu0 0
    %2322 = vmatpush1.bf16.msra.mxu0 %v1629
    %2323 = vmatprep.subr.bf16.mxu0 0
    %2324 = vmatpush1.bf16.msra.mxu0 %v1628
    %2325 = vmatprep.subr.bf16.mxu0 0
    %2326 = vmatpush1.bf16.msra.mxu0 %v1627
    %2327 = vmatprep.subr.bf16.mxu0 0
    %2328 = vmatpush1.bf16.msra.mxu0 %v1626
    %2329 = vmatprep.subr.bf16.mxu0 0
    %2330 = vmatpush1.bf16.msra.mxu0 %v1625
    %2331 = vmatprep.subr.bf16.mxu0 0
    %2332 = vmatpush2.bf16.msra.mxu0 %v1640
    %2333 = vmatprep.subr.bf16.mxu0 0
    %2334 = vmatpush2.bf16.msra.mxu0 %v1639
    %2335 = vmatprep.subr.bf16.mxu0 0
    %2336 = vmatpush2.bf16.msra.mxu0 %v1638
    %2337 = vmatprep.subr.bf16.mxu0 0
    %2338 = vmatpush2.bf16.msra.mxu0 %v1637
    %2339 = vmatprep.subr.bf16.mxu0 0
    %2340 = vmatpush2.bf16.msra.mxu0 %v1636
    %2341 = vmatprep.subr.bf16.mxu0 0
    %2342 = vmatpush2.bf16.msra.mxu0 %v1635
    %2343 = vmatprep.subr.bf16.mxu0 0
    %2344 = vmatpush2.bf16.msra.mxu0 %v1634
    %2345 = vmatprep.subr.bf16.mxu0 0
    %2346 = vmatpush2.bf16.msra.mxu0 %v1633
    %2347 = vmatprep.mubr.bf16.mxu0 %v1211
    %2348 = vmatmul.mubr.bf16.gmra.mxu0 %v1210
    %v2349 = vpop.f32.mrf.mxu0
    %v2350 = vadd.f32 %v2061, %v2349
    %v2351 = vpop.f32.mrf.mxu0
    %v2352 = vpop.f32.mrf.mxu0
    %v2353 = vadd.f32 %v2064, %v2352
    %v2354 = vpop.f32.mrf.mxu0
    %2355 = vmatprep.mubr.bf16.mxu0 %v1214
    %2356 = vmatmul.mubr.bf16.gmra.mxu0 %v1213
    %v2357 = vpop.f32.mrf.mxu0
    %v2358 = vadd.f32 %v2069, %v2357
    %v2359 = vpop.f32.mrf.mxu0
    %v2360 = vpop.f32.mrf.mxu0
    %v2361 = vadd.f32 %v2072, %v2360
    %v2362 = vpop.f32.mrf.mxu0
    %2363 = vmatprep.mubr.bf16.mxu0 %v1217
    %2364 = vmatmul.mubr.bf16.gmra.mxu0 %v1216
    %v2365 = vpop.f32.mrf.mxu0
    %v2366 = vadd.f32 %v2077, %v2365
    %v2367 = vpop.f32.mrf.mxu0
    %v2368 = vpop.f32.mrf.mxu0
    %v2369 = vadd.f32 %v2080, %v2368
    %v2370 = vpop.f32.mrf.mxu0
    %2371 = vmatprep.mubr.bf16.mxu0 %v1220
    %2372 = vmatmul.mubr.bf16.gmra.mxu0 %v1219
    %v2373 = vpop.f32.mrf.mxu0
    %v2374 = vadd.f32 %v2085, %v2373
    %v2375 = vpop.f32.mrf.mxu0
    %v2376 = vpop.f32.mrf.mxu0
    %v2377 = vadd.f32 %v2088, %v2376
    %v2378 = vpop.f32.mrf.mxu0
    %2379 = vmatprep.mubr.bf16.mxu0 %v1223
    %2380 = vmatmul.mubr.bf16.gmra.mxu0 %v1222
    %v2381 = vpop.f32.mrf.mxu0
    %v2382 = vadd.f32 %v2093, %v2381
    %v2383 = vpop.f32.mrf.mxu0
    %v2384 = vpop.f32.mrf.mxu0
    %v2385 = vadd.f32 %v2096, %v2384
    %v2386 = vpop.f32.mrf.mxu0
    %2387 = vmatprep.mubr.bf16.mxu0 %v1226
    %2388 = vmatmul.mubr.bf16.gmra.mxu0 %v1225
    %v2389 = vpop.f32.mrf.mxu0
    %v2390 = vadd.f32 %v2101, %v2389
    %v2391 = vpop.f32.mrf.mxu0
    %v2392 = vpop.f32.mrf.mxu0
    %v2393 = vadd.f32 %v2104, %v2392
    %v2394 = vpop.f32.mrf.mxu0
    %2395 = vmatprep.mubr.bf16.mxu0 %v1229
    %2396 = vmatmul.mubr.bf16.gmra.mxu0 %v1228
    %v2397 = vpop.f32.mrf.mxu0
    %v2398 = vadd.f32 %v2109, %v2397
    %v2399 = vpop.f32.mrf.mxu0
    %v2400 = vpop.f32.mrf.mxu0
    %v2401 = vadd.f32 %v2112, %v2400
    %v2402 = vpop.f32.mrf.mxu0
    %2403 = vmatprep.mubr.bf16.mxu0 %v1232
    %2404 = vmatmul.mubr.bf16.gmra.mxu0 %v1231
    %v2405 = vpop.f32.mrf.mxu0
    %v2406 = vadd.f32 %v2117, %v2405
    %v2407 = vpop.f32.mrf.mxu0
    %v2408 = vpop.f32.mrf.mxu0
    %v2409 = vadd.f32 %v2120, %v2408
    %v2410 = vpop.f32.mrf.mxu0
    %2411 = vmatprep.mubr.bf16.mxu0 %v1235
    %2412 = vmatmul.mubr.bf16.gmra.mxu0 %v1234
    %v2413 = vpop.f32.mrf.mxu0
    %v2414 = vadd.f32 %v2125, %v2413
    %v2415 = vpop.f32.mrf.mxu0
    %v2416 = vpop.f32.mrf.mxu0
    %v2417 = vadd.f32 %v2128, %v2416
    %v2418 = vpop.f32.mrf.mxu0
    %2419 = vmatprep.mubr.bf16.mxu0 %v1238
    %2420 = vmatmul.mubr.bf16.gmra.mxu0 %v1237
    %v2421 = vpop.f32.mrf.mxu0
    %v2422 = vadd.f32 %v2133, %v2421
    %v2423 = vpop.f32.mrf.mxu0
    %v2424 = vpop.f32.mrf.mxu0
    %v2425 = vadd.f32 %v2136, %v2424
    %v2426 = vpop.f32.mrf.mxu0
    %2427 = vmatprep.mubr.bf16.mxu0 %v1241
    %2428 = vmatmul.mubr.bf16.gmra.mxu0 %v1240
    %v2429 = vpop.f32.mrf.mxu0
    %v2430 = vadd.f32 %v2141, %v2429
    %v2431 = vpop.f32.mrf.mxu0
    %v2432 = vpop.f32.mrf.mxu0
    %v2433 = vadd.f32 %v2144, %v2432
    %v2434 = vpop.f32.mrf.mxu0
    %2435 = vmatprep.mubr.bf16.mxu0 %v1244
    %2436 = vmatmul.mubr.bf16.gmra.mxu0 %v1243
    %v2437 = vpop.f32.mrf.mxu0
    %v2438 = vadd.f32 %v2149, %v2437
    %v2439 = vpop.f32.mrf.mxu0
    %v2440 = vpop.f32.mrf.mxu0
    %v2441 = vadd.f32 %v2152, %v2440
    %v2442 = vpop.f32.mrf.mxu0
    %2443 = vmatprep.mubr.bf16.mxu0 %v1247
    %2444 = vmatmul.mubr.bf16.gmra.mxu0 %v1246
    %v2445 = vpop.f32.mrf.mxu0
    %v2446 = vadd.f32 %v2157, %v2445
    %v2447 = vpop.f32.mrf.mxu0
    %v2448 = vpop.f32.mrf.mxu0
    %v2449 = vadd.f32 %v2160, %v2448
    %v2450 = vpop.f32.mrf.mxu0
    %2451 = vmatprep.mubr.bf16.mxu0 %v1250
    %2452 = vmatmul.mubr.bf16.gmra.mxu0 %v1249
    %v2453 = vpop.f32.mrf.mxu0
    %v2454 = vadd.f32 %v2165, %v2453
    %v2455 = vpop.f32.mrf.mxu0
    %v2456 = vpop.f32.mrf.mxu0
    %v2457 = vadd.f32 %v2168, %v2456
    %v2458 = vpop.f32.mrf.mxu0
    %2459 = vmatprep.mubr.bf16.mxu0 %v1253
    %2460 = vmatmul.mubr.bf16.gmra.mxu0 %v1252
    %v2461 = vpop.f32.mrf.mxu0
    %v2462 = vadd.f32 %v2173, %v2461
    %v2463 = vpop.f32.mrf.mxu0
    %v2464 = vpop.f32.mrf.mxu0
    %v2465 = vadd.f32 %v2176, %v2464
    %v2466 = vpop.f32.mrf.mxu0
    %2467 = vmatprep.mubr.bf16.mxu0 %v1256
    %2468 = vmatmul.mubr.bf16.gmra.mxu0 %v1255
    %v2469 = vpop.f32.mrf.mxu0
    %v2470 = vadd.f32 %v2181, %v2469
    %v2471 = vpop.f32.mrf.mxu0
    %v2472 = vpop.f32.mrf.mxu0
    %v2473 = vadd.f32 %v2184, %v2472
    %v2474 = vpop.f32.mrf.mxu0
    %2475 = vmatprep.mubr.bf16.mxu0 %v1259
    %2476 = vmatmul.mubr.bf16.gmra.mxu0 %v1258
    %v2477 = vpop.f32.mrf.mxu0
    %v2478 = vadd.f32 %v2189, %v2477
    %v2479 = vpop.f32.mrf.mxu0
    %v2480 = vpop.f32.mrf.mxu0
    %v2481 = vadd.f32 %v2192, %v2480
    %v2482 = vpop.f32.mrf.mxu0
    %2483 = vmatprep.mubr.bf16.mxu0 %v1262
    %2484 = vmatmul.mubr.bf16.gmra.mxu0 %v1261
    %v2485 = vpop.f32.mrf.mxu0
    %v2486 = vadd.f32 %v2197, %v2485
    %v2487 = vpop.f32.mrf.mxu0
    %v2488 = vpop.f32.mrf.mxu0
    %v2489 = vadd.f32 %v2200, %v2488
    %v2490 = vpop.f32.mrf.mxu0
    %2491 = vmatprep.mubr.bf16.mxu0 %v1265
    %2492 = vmatmul.mubr.bf16.gmra.mxu0 %v1264
    %v2493 = vpop.f32.mrf.mxu0
    %v2494 = vadd.f32 %v2205, %v2493
    %v2495 = vpop.f32.mrf.mxu0
    %v2496 = vpop.f32.mrf.mxu0
    %v2497 = vadd.f32 %v2208, %v2496
    %v2498 = vpop.f32.mrf.mxu0
    %2499 = vmatprep.mubr.bf16.mxu0 %v1268
    %2500 = vmatmul.mubr.bf16.gmra.mxu0 %v1267
    %v2501 = vpop.f32.mrf.mxu0
    %v2502 = vadd.f32 %v2213, %v2501
    %v2503 = vpop.f32.mrf.mxu0
    %v2504 = vpop.f32.mrf.mxu0
    %v2505 = vadd.f32 %v2216, %v2504
    %v2506 = vpop.f32.mrf.mxu0
    %2507 = vmatprep.mubr.bf16.mxu0 %v1271
    %2508 = vmatmul.mubr.bf16.gmra.mxu0 %v1270
    %v2509 = vpop.f32.mrf.mxu0
    %v2510 = vadd.f32 %v2221, %v2509
    %v2511 = vpop.f32.mrf.mxu0
    %v2512 = vpop.f32.mrf.mxu0
    %v2513 = vadd.f32 %v2224, %v2512
    %v2514 = vpop.f32.mrf.mxu0
    %2515 = vmatprep.mubr.bf16.mxu0 %v1274
    %2516 = vmatmul.mubr.bf16.gmra.mxu0 %v1273
    %v2517 = vpop.f32.mrf.mxu0
    %v2518 = vadd.f32 %v2229, %v2517
    %v2519 = vpop.f32.mrf.mxu0
    %v2520 = vpop.f32.mrf.mxu0
    %v2521 = vadd.f32 %v2232, %v2520
    %v2522 = vpop.f32.mrf.mxu0
    %2523 = vmatprep.mubr.bf16.mxu0 %v1277
    %2524 = vmatmul.mubr.bf16.gmra.mxu0 %v1276
    %v2525 = vpop.f32.mrf.mxu0
    %v2526 = vadd.f32 %v2237, %v2525
    %v2527 = vpop.f32.mrf.mxu0
    %v2528 = vpop.f32.mrf.mxu0
    %v2529 = vadd.f32 %v2240, %v2528
    %v2530 = vpop.f32.mrf.mxu0
    %2531 = vmatprep.mubr.bf16.mxu0 %v1280
    %2532 = vmatmul.mubr.bf16.gmra.mxu0 %v1279
    %v2533 = vpop.f32.mrf.mxu0
    %v2534 = vadd.f32 %v2245, %v2533
    %v2535 = vpop.f32.mrf.mxu0
    %v2536 = vpop.f32.mrf.mxu0
    %v2537 = vadd.f32 %v2248, %v2536
    %v2538 = vpop.f32.mrf.mxu0
    %2539 = vmatprep.mubr.bf16.mxu0 %v1283
    %2540 = vmatmul.mubr.bf16.gmra.mxu0 %v1282
    %v2541 = vpop.f32.mrf.mxu0
    %v2542 = vadd.f32 %v2253, %v2541
    %v2543 = vpop.f32.mrf.mxu0
    %v2544 = vpop.f32.mrf.mxu0
    %v2545 = vadd.f32 %v2256, %v2544
    %v2546 = vpop.f32.mrf.mxu0
    %2547 = vmatprep.mubr.bf16.mxu0 %v1286
    %2548 = vmatmul.mubr.bf16.gmra.mxu0 %v1285
    %v2549 = vpop.f32.mrf.mxu0
    %v2550 = vadd.f32 %v2261, %v2549
    %v2551 = vpop.f32.mrf.mxu0
    %v2552 = vpop.f32.mrf.mxu0
    %v2553 = vadd.f32 %v2264, %v2552
    %v2554 = vpop.f32.mrf.mxu0
    %2555 = vmatprep.mubr.bf16.mxu0 %v1289
    %2556 = vmatmul.mubr.bf16.gmra.mxu0 %v1288
    %v2557 = vpop.f32.mrf.mxu0
    %v2558 = vadd.f32 %v2269, %v2557
    %v2559 = vpop.f32.mrf.mxu0
    %v2560 = vpop.f32.mrf.mxu0
    %v2561 = vadd.f32 %v2272, %v2560
    %v2562 = vpop.f32.mrf.mxu0
    %2563 = vmatprep.mubr.bf16.mxu0 %v1292
    %2564 = vmatmul.mubr.bf16.gmra.mxu0 %v1291
    %v2565 = vpop.f32.mrf.mxu0
    %v2566 = vadd.f32 %v2277, %v2565
    %v2567 = vpop.f32.mrf.mxu0
    %v2568 = vpop.f32.mrf.mxu0
    %v2569 = vadd.f32 %v2280, %v2568
    %v2570 = vpop.f32.mrf.mxu0
    %2571 = vmatprep.mubr.bf16.mxu0 %v1295
    %2572 = vmatmul.mubr.bf16.gmra.mxu0 %v1294
    %v2573 = vpop.f32.mrf.mxu0
    %v2574 = vadd.f32 %v2285, %v2573
    %v2575 = vpop.f32.mrf.mxu0
    %v2576 = vpop.f32.mrf.mxu0
    %v2577 = vadd.f32 %v2288, %v2576
    %v2578 = vpop.f32.mrf.mxu0
    %2579 = vmatprep.mubr.bf16.mxu0 %v1298
    %2580 = vmatmul.mubr.bf16.gmra.mxu0 %v1297
    %v2581 = vpop.f32.mrf.mxu0
    %v2582 = vadd.f32 %v2293, %v2581
    %v2583 = vpop.f32.mrf.mxu0
    %v2584 = vpop.f32.mrf.mxu0
    %v2585 = vadd.f32 %v2296, %v2584
    %v2586 = vpop.f32.mrf.mxu0
    %2587 = vmatprep.mubr.bf16.mxu0 %v1301
    %2588 = vmatmul.mubr.bf16.gmra.mxu0 %v1300
    %v2589 = vpop.f32.mrf.mxu0
    %v2590 = vadd.f32 %v2301, %v2589
    %v2591 = vpop.f32.mrf.mxu0
    %v2592 = vpop.f32.mrf.mxu0
    %v2593 = vadd.f32 %v2304, %v2592
    %v2594 = vpop.f32.mrf.mxu0
    %2595 = vmatprep.mubr.bf16.mxu0 %v1304
    %2596 = vmatmul.mubr.bf16.gmra.mxu0 %v1303
    %v2597 = vpop.f32.mrf.mxu0
    %v2598 = vadd.f32 %v2309, %v2597
    %v2599 = vpop.f32.mrf.mxu0
    %v2600 = vpop.f32.mrf.mxu0
    %v2601 = vadd.f32 %v2312, %v2600
    %v2602 = vpop.f32.mrf.mxu0
    %2603 = vdwg.mxu0
    %2604 = vmatprep.subr.bf16.mxu0 0
    %2605 = vmatpush1.bf16.msra.mxu0 %v1648
    %2606 = vmatprep.subr.bf16.mxu0 0
    %2607 = vmatpush1.bf16.msra.mxu0 %v1647
    %2608 = vmatprep.subr.bf16.mxu0 0
    %2609 = vmatpush1.bf16.msra.mxu0 %v1646
    %2610 = vmatprep.subr.bf16.mxu0 0
    %2611 = vmatpush1.bf16.msra.mxu0 %v1645
    %2612 = vmatprep.subr.bf16.mxu0 0
    %2613 = vmatpush1.bf16.msra.mxu0 %v1644
    %2614 = vmatprep.subr.bf16.mxu0 0
    %2615 = vmatpush1.bf16.msra.mxu0 %v1643
    %2616 = vmatprep.subr.bf16.mxu0 0
    %2617 = vmatpush1.bf16.msra.mxu0 %v1642
    %2618 = vmatprep.subr.bf16.mxu0 0
    %2619 = vmatpush1.bf16.msra.mxu0 %v1641
    %2620 = vmatprep.subr.bf16.mxu0 0
    %2621 = vmatpush2.bf16.msra.mxu0 %v1656
    %2622 = vmatprep.subr.bf16.mxu0 0
    %2623 = vmatpush2.bf16.msra.mxu0 %v1655
    %2624 = vmatprep.subr.bf16.mxu0 0
    %2625 = vmatpush2.bf16.msra.mxu0 %v1654
    %2626 = vmatprep.subr.bf16.mxu0 0
    %2627 = vmatpush2.bf16.msra.mxu0 %v1653
    %2628 = vmatprep.subr.bf16.mxu0 0
    %2629 = vmatpush2.bf16.msra.mxu0 %v1652
    %2630 = vmatprep.subr.bf16.mxu0 0
    %2631 = vmatpush2.bf16.msra.mxu0 %v1651
    %2632 = vmatprep.subr.bf16.mxu0 0
    %2633 = vmatpush2.bf16.msra.mxu0 %v1650
    %2634 = vmatprep.subr.bf16.mxu0 0
    %2635 = vmatpush2.bf16.msra.mxu0 %v1649
    %2636 = vmatprep.mubr.bf16.mxu0 %v1213
    %2637 = vmatmul.mubr.bf16.gmra.mxu0 %v1212
    %v2638 = vpop.f32.mrf.mxu0
    %v2639 = vadd.f32 %v2350, %v2638
    %v2640 = vpop.f32.mrf.mxu0
    %v2641 = vpop.f32.mrf.mxu0
    %v2642 = vadd.f32 %v2353, %v2641
    %v2643 = vpop.f32.mrf.mxu0
    %2644 = vmatprep.mubr.bf16.mxu0 %v1216
    %2645 = vmatmul.mubr.bf16.gmra.mxu0 %v1215
    %v2646 = vpop.f32.mrf.mxu0
    %v2647 = vadd.f32 %v2358, %v2646
    %v2648 = vpop.f32.mrf.mxu0
    %v2649 = vpop.f32.mrf.mxu0
    %v2650 = vadd.f32 %v2361, %v2649
    %v2651 = vpop.f32.mrf.mxu0
    %2652 = vmatprep.mubr.bf16.mxu0 %v1219
    %2653 = vmatmul.mubr.bf16.gmra.mxu0 %v1218
    %v2654 = vpop.f32.mrf.mxu0
    %v2655 = vadd.f32 %v2366, %v2654
    %v2656 = vpop.f32.mrf.mxu0
    %v2657 = vpop.f32.mrf.mxu0
    %v2658 = vadd.f32 %v2369, %v2657
    %v2659 = vpop.f32.mrf.mxu0
    %2660 = vmatprep.mubr.bf16.mxu0 %v1222
    %2661 = vmatmul.mubr.bf16.gmra.mxu0 %v1221
    %v2662 = vpop.f32.mrf.mxu0
    %v2663 = vadd.f32 %v2374, %v2662
    %v2664 = vpop.f32.mrf.mxu0
    %v2665 = vpop.f32.mrf.mxu0
    %v2666 = vadd.f32 %v2377, %v2665
    %v2667 = vpop.f32.mrf.mxu0
    %2668 = vmatprep.mubr.bf16.mxu0 %v1225
    %2669 = vmatmul.mubr.bf16.gmra.mxu0 %v1224
    %v2670 = vpop.f32.mrf.mxu0
    %v2671 = vadd.f32 %v2382, %v2670
    %v2672 = vpop.f32.mrf.mxu0
    %v2673 = vpop.f32.mrf.mxu0
    %v2674 = vadd.f32 %v2385, %v2673
    %v2675 = vpop.f32.mrf.mxu0
    %2676 = vmatprep.mubr.bf16.mxu0 %v1228
    %2677 = vmatmul.mubr.bf16.gmra.mxu0 %v1227
    %v2678 = vpop.f32.mrf.mxu0
    %v2679 = vadd.f32 %v2390, %v2678
    %v2680 = vpop.f32.mrf.mxu0
    %v2681 = vpop.f32.mrf.mxu0
    %v2682 = vadd.f32 %v2393, %v2681
    %v2683 = vpop.f32.mrf.mxu0
    %2684 = vmatprep.mubr.bf16.mxu0 %v1231
    %2685 = vmatmul.mubr.bf16.gmra.mxu0 %v1230
    %v2686 = vpop.f32.mrf.mxu0
    %v2687 = vadd.f32 %v2398, %v2686
    %v2688 = vpop.f32.mrf.mxu0
    %v2689 = vpop.f32.mrf.mxu0
    %v2690 = vadd.f32 %v2401, %v2689
    %v2691 = vpop.f32.mrf.mxu0
    %2692 = vmatprep.mubr.bf16.mxu0 %v1234
    %2693 = vmatmul.mubr.bf16.gmra.mxu0 %v1233
    %v2694 = vpop.f32.mrf.mxu0
    %v2695 = vadd.f32 %v2406, %v2694
    %v2696 = vpop.f32.mrf.mxu0
    %v2697 = vpop.f32.mrf.mxu0
    %v2698 = vadd.f32 %v2409, %v2697
    %v2699 = vpop.f32.mrf.mxu0
    %2700 = vmatprep.mubr.bf16.mxu0 %v1237
    %2701 = vmatmul.mubr.bf16.gmra.mxu0 %v1236
    %v2702 = vpop.f32.mrf.mxu0
    %v2703 = vadd.f32 %v2414, %v2702
    %v2704 = vpop.f32.mrf.mxu0
    %v2705 = vpop.f32.mrf.mxu0
    %v2706 = vadd.f32 %v2417, %v2705
    %v2707 = vpop.f32.mrf.mxu0
    %2708 = vmatprep.mubr.bf16.mxu0 %v1240
    %2709 = vmatmul.mubr.bf16.gmra.mxu0 %v1239
    %v2710 = vpop.f32.mrf.mxu0
    %v2711 = vadd.f32 %v2422, %v2710
    %v2712 = vpop.f32.mrf.mxu0
    %v2713 = vpop.f32.mrf.mxu0
    %v2714 = vadd.f32 %v2425, %v2713
    %v2715 = vpop.f32.mrf.mxu0
    %2716 = vmatprep.mubr.bf16.mxu0 %v1243
    %2717 = vmatmul.mubr.bf16.gmra.mxu0 %v1242
    %v2718 = vpop.f32.mrf.mxu0
    %v2719 = vadd.f32 %v2430, %v2718
    %v2720 = vpop.f32.mrf.mxu0
    %v2721 = vpop.f32.mrf.mxu0
    %v2722 = vadd.f32 %v2433, %v2721
    %v2723 = vpop.f32.mrf.mxu0
    %2724 = vmatprep.mubr.bf16.mxu0 %v1246
    %2725 = vmatmul.mubr.bf16.gmra.mxu0 %v1245
    %v2726 = vpop.f32.mrf.mxu0
    %v2727 = vadd.f32 %v2438, %v2726
    %v2728 = vpop.f32.mrf.mxu0
    %v2729 = vpop.f32.mrf.mxu0
    %v2730 = vadd.f32 %v2441, %v2729
    %v2731 = vpop.f32.mrf.mxu0
    %2732 = vmatprep.mubr.bf16.mxu0 %v1249
    %2733 = vmatmul.mubr.bf16.gmra.mxu0 %v1248
    %v2734 = vpop.f32.mrf.mxu0
    %v2735 = vadd.f32 %v2446, %v2734
    %v2736 = vpop.f32.mrf.mxu0
    %v2737 = vpop.f32.mrf.mxu0
    %v2738 = vadd.f32 %v2449, %v2737
    %v2739 = vpop.f32.mrf.mxu0
    %2740 = vmatprep.mubr.bf16.mxu0 %v1252
    %2741 = vmatmul.mubr.bf16.gmra.mxu0 %v1251
    %v2742 = vpop.f32.mrf.mxu0
    %v2743 = vadd.f32 %v2454, %v2742
    %v2744 = vpop.f32.mrf.mxu0
    %v2745 = vpop.f32.mrf.mxu0
    %v2746 = vadd.f32 %v2457, %v2745
    %v2747 = vpop.f32.mrf.mxu0
    %2748 = vmatprep.mubr.bf16.mxu0 %v1255
    %2749 = vmatmul.mubr.bf16.gmra.mxu0 %v1254
    %v2750 = vpop.f32.mrf.mxu0
    %v2751 = vadd.f32 %v2462, %v2750
    %v2752 = vpop.f32.mrf.mxu0
    %v2753 = vpop.f32.mrf.mxu0
    %v2754 = vadd.f32 %v2465, %v2753
    %v2755 = vpop.f32.mrf.mxu0
    %2756 = vmatprep.mubr.bf16.mxu0 %v1207
    %2757 = vmatmul.mubr.bf16.gmra.mxu0 %v1206
    %v2758 = vpop.f32.mrf.mxu0
    %v2759 = vadd.f32 %v2470, %v2758
    %v2760 = vpop.f32.mrf.mxu0
    %v2761 = vpop.f32.mrf.mxu0
    %v2762 = vadd.f32 %v2473, %v2761
    %v2763 = vpop.f32.mrf.mxu0
    %2764 = vmatprep.mubr.bf16.mxu0 %v1261
    %2765 = vmatmul.mubr.bf16.gmra.mxu0 %v1260
    %v2766 = vpop.f32.mrf.mxu0
    %v2767 = vadd.f32 %v2478, %v2766
    %v2768 = vpop.f32.mrf.mxu0
    %v2769 = vpop.f32.mrf.mxu0
    %v2770 = vadd.f32 %v2481, %v2769
    %v2771 = vpop.f32.mrf.mxu0
    %2772 = vmatprep.mubr.bf16.mxu0 %v1264
    %2773 = vmatmul.mubr.bf16.gmra.mxu0 %v1263
    %v2774 = vpop.f32.mrf.mxu0
    %v2775 = vadd.f32 %v2486, %v2774
    %v2776 = vpop.f32.mrf.mxu0
    %v2777 = vpop.f32.mrf.mxu0
    %v2778 = vadd.f32 %v2489, %v2777
    %v2779 = vpop.f32.mrf.mxu0
    %2780 = vmatprep.mubr.bf16.mxu0 %v1267
    %2781 = vmatmul.mubr.bf16.gmra.mxu0 %v1266
    %v2782 = vpop.f32.mrf.mxu0
    %v2783 = vadd.f32 %v2494, %v2782
    %v2784 = vpop.f32.mrf.mxu0
    %v2785 = vpop.f32.mrf.mxu0
    %v2786 = vadd.f32 %v2497, %v2785
    %v2787 = vpop.f32.mrf.mxu0
    %2788 = vmatprep.mubr.bf16.mxu0 %v1270
    %2789 = vmatmul.mubr.bf16.gmra.mxu0 %v1269
    %v2790 = vpop.f32.mrf.mxu0
    %v2791 = vadd.f32 %v2502, %v2790
    %v2792 = vpop.f32.mrf.mxu0
    %v2793 = vpop.f32.mrf.mxu0
    %v2794 = vadd.f32 %v2505, %v2793
    %v2795 = vpop.f32.mrf.mxu0
    %2796 = vmatprep.mubr.bf16.mxu0 %v1273
    %2797 = vmatmul.mubr.bf16.gmra.mxu0 %v1272
    %v2798 = vpop.f32.mrf.mxu0
    %v2799 = vadd.f32 %v2510, %v2798
    %v2800 = vpop.f32.mrf.mxu0
    %v2801 = vpop.f32.mrf.mxu0
    %v2802 = vadd.f32 %v2513, %v2801
    %v2803 = vpop.f32.mrf.mxu0
    %2804 = vmatprep.mubr.bf16.mxu0 %v1276
    %2805 = vmatmul.mubr.bf16.gmra.mxu0 %v1275
    %v2806 = vpop.f32.mrf.mxu0
    %v2807 = vadd.f32 %v2518, %v2806
    %v2808 = vpop.f32.mrf.mxu0
    %v2809 = vpop.f32.mrf.mxu0
    %v2810 = vadd.f32 %v2521, %v2809
    %v2811 = vpop.f32.mrf.mxu0
    %2812 = vmatprep.mubr.bf16.mxu0 %v1279
    %2813 = vmatmul.mubr.bf16.gmra.mxu0 %v1278
    %v2814 = vpop.f32.mrf.mxu0
    %v2815 = vadd.f32 %v2526, %v2814
    %v2816 = vpop.f32.mrf.mxu0
    %v2817 = vpop.f32.mrf.mxu0
    %v2818 = vadd.f32 %v2529, %v2817
    %v2819 = vpop.f32.mrf.mxu0
    %2820 = vmatprep.mubr.bf16.mxu0 %v1282
    %2821 = vmatmul.mubr.bf16.gmra.mxu0 %v1281
    %v2822 = vpop.f32.mrf.mxu0
    %v2823 = vadd.f32 %v2534, %v2822
    %v2824 = vpop.f32.mrf.mxu0
    %v2825 = vpop.f32.mrf.mxu0
    %v2826 = vadd.f32 %v2537, %v2825
    %v2827 = vpop.f32.mrf.mxu0
    %2828 = vmatprep.mubr.bf16.mxu0 %v1285
    %2829 = vmatmul.mubr.bf16.gmra.mxu0 %v1284
    %v2830 = vpop.f32.mrf.mxu0
    %v2831 = vadd.f32 %v2542, %v2830
    %v2832 = vpop.f32.mrf.mxu0
    %v2833 = vpop.f32.mrf.mxu0
    %v2834 = vadd.f32 %v2545, %v2833
    %v2835 = vpop.f32.mrf.mxu0
    %2836 = vmatprep.mubr.bf16.mxu0 %v1288
    %2837 = vmatmul.mubr.bf16.gmra.mxu0 %v1287
    %v2838 = vpop.f32.mrf.mxu0
    %v2839 = vadd.f32 %v2550, %v2838
    %v2840 = vpop.f32.mrf.mxu0
    %v2841 = vpop.f32.mrf.mxu0
    %v2842 = vadd.f32 %v2553, %v2841
    %v2843 = vpop.f32.mrf.mxu0
    %2844 = vmatprep.mubr.bf16.mxu0 %v1291
    %2845 = vmatmul.mubr.bf16.gmra.mxu0 %v1290
    %v2846 = vpop.f32.mrf.mxu0
    %v2847 = vadd.f32 %v2558, %v2846
    %v2848 = vpop.f32.mrf.mxu0
    %v2849 = vpop.f32.mrf.mxu0
    %v2850 = vadd.f32 %v2561, %v2849
    %v2851 = vpop.f32.mrf.mxu0
    %2852 = vmatprep.mubr.bf16.mxu0 %v1294
    %2853 = vmatmul.mubr.bf16.gmra.mxu0 %v1293
    %v2854 = vpop.f32.mrf.mxu0
    %v2855 = vadd.f32 %v2566, %v2854
    %v2856 = vpop.f32.mrf.mxu0
    %v2857 = vpop.f32.mrf.mxu0
    %v2858 = vadd.f32 %v2569, %v2857
    %v2859 = vpop.f32.mrf.mxu0
    %2860 = vmatprep.mubr.bf16.mxu0 %v1297
    %2861 = vmatmul.mubr.bf16.gmra.mxu0 %v1296
    %v2862 = vpop.f32.mrf.mxu0
    %v2863 = vadd.f32 %v2574, %v2862
    %v2864 = vpop.f32.mrf.mxu0
    %v2865 = vpop.f32.mrf.mxu0
    %v2866 = vadd.f32 %v2577, %v2865
    %v2867 = vpop.f32.mrf.mxu0
    %2868 = vmatprep.mubr.bf16.mxu0 %v1300
    %2869 = vmatmul.mubr.bf16.gmra.mxu0 %v1299
    %v2870 = vpop.f32.mrf.mxu0
    %v2871 = vadd.f32 %v2582, %v2870
    %v2872 = vpop.f32.mrf.mxu0
    %v2873 = vpop.f32.mrf.mxu0
    %v2874 = vadd.f32 %v2585, %v2873
    %v2875 = vpop.f32.mrf.mxu0
    %2876 = vmatprep.mubr.bf16.mxu0 %v1303
    %2877 = vmatmul.mubr.bf16.gmra.mxu0 %v1302
    %v2878 = vpop.f32.mrf.mxu0
    %v2879 = vadd.f32 %v2590, %v2878
    %v2880 = vpop.f32.mrf.mxu0
    %v2881 = vpop.f32.mrf.mxu0
    %v2882 = vadd.f32 %v2593, %v2881
    %v2883 = vpop.f32.mrf.mxu0
    %2884 = vmatprep.mubr.bf16.mxu0 %v1207
    %2885 = vmatmul.mubr.bf16.gmra.mxu0 %v1206
    %v2886 = vpop.f32.mrf.mxu0
    %v2887 = vadd.f32 %v2598, %v2886
    %v2888 = vpop.f32.mrf.mxu0
    %v2889 = vpop.f32.mrf.mxu0
    %v2890 = vadd.f32 %v2601, %v2889
    %v2891 = vpop.f32.mrf.mxu0
    %2892 = vdwg.mxu0
    %2893 = vmatprep.subr.bf16.mxu0 0
    %2894 = vmatpush1.bf16.msra.mxu0 %v1664
    %2895 = vmatprep.subr.bf16.mxu0 0
    %2896 = vmatpush1.bf16.msra.mxu0 %v1663
    %2897 = vmatprep.subr.bf16.mxu0 0
    %2898 = vmatpush1.bf16.msra.mxu0 %v1662
    %2899 = vmatprep.subr.bf16.mxu0 0
    %2900 = vmatpush1.bf16.msra.mxu0 %v1661
    %2901 = vmatprep.subr.bf16.mxu0 0
    %2902 = vmatpush1.bf16.msra.mxu0 %v1660
    %2903 = vmatprep.subr.bf16.mxu0 0
    %2904 = vmatpush1.bf16.msra.mxu0 %v1659
    %2905 = vmatprep.subr.bf16.mxu0 0
    %2906 = vmatpush1.bf16.msra.mxu0 %v1658
    %2907 = vmatprep.subr.bf16.mxu0 0
    %2908 = vmatpush1.bf16.msra.mxu0 %v1657
    %2909 = vmatprep.subr.bf16.mxu0 0
    %2910 = vmatpush2.bf16.msra.mxu0 0
    %2911 = vmatprep.subr.bf16.mxu0 0
    %2912 = vmatpush2.bf16.msra.mxu0 0
    %2913 = vmatprep.subr.bf16.mxu0 0
    %2914 = vmatpush2.bf16.msra.mxu0 0
    %2915 = vmatprep.subr.bf16.mxu0 0
    %2916 = vmatpush2.bf16.msra.mxu0 0
    %2917 = vmatprep.subr.bf16.mxu0 0
    %2918 = vmatpush2.bf16.msra.mxu0 0
    %2919 = vmatprep.subr.bf16.mxu0 0
    %2920 = vmatpush2.bf16.msra.mxu0 0
    %2921 = vmatprep.subr.bf16.mxu0 0
    %2922 = vmatpush2.bf16.msra.mxu0 0
    %2923 = vmatprep.subr.bf16.mxu0 0
    %2924 = vmatpush2.bf16.msra.mxu0 0
    %2925 = vmatprep.mubr.bf16.mxu0 0
    %2926 = vmatmul.mubr.bf16.gmra.mxu0 %v1214
    %v2927 = vpop.f32.mrf.mxu0
    %v2928 = vadd.f32 %v2639, %v2927
    %v2929 = vpop.f32.mrf.mxu0
    %v2930 = vpop.f32.mrf.mxu0
    %v2931 = vadd.f32 %v2642, %v2930
    %v2932 = vpop.f32.mrf.mxu0
    %2933 = vmatprep.mubr.bf16.mxu0 0
    %2934 = vmatmul.mubr.bf16.gmra.mxu0 %v1217
    %v2935 = vpop.f32.mrf.mxu0
    %v2936 = vadd.f32 %v2647, %v2935
    %v2937 = vpop.f32.mrf.mxu0
    %v2938 = vpop.f32.mrf.mxu0
    %v2939 = vadd.f32 %v2650, %v2938
    %v2940 = vpop.f32.mrf.mxu0
    %2941 = vmatprep.mubr.bf16.mxu0 0
    %2942 = vmatmul.mubr.bf16.gmra.mxu0 %v1220
    %v2943 = vpop.f32.mrf.mxu0
    %v2944 = vadd.f32 %v2655, %v2943
    %v2945 = vpop.f32.mrf.mxu0
    %v2946 = vpop.f32.mrf.mxu0
    %v2947 = vadd.f32 %v2658, %v2946
    %v2948 = vpop.f32.mrf.mxu0
    %2949 = vmatprep.mubr.bf16.mxu0 0
    %2950 = vmatmul.mubr.bf16.gmra.mxu0 %v1223
    %v2951 = vpop.f32.mrf.mxu0
    %v2952 = vadd.f32 %v2663, %v2951
    %v2953 = vpop.f32.mrf.mxu0
    %v2954 = vpop.f32.mrf.mxu0
    %v2955 = vadd.f32 %v2666, %v2954
    %v2956 = vpop.f32.mrf.mxu0
    %2957 = vmatprep.mubr.bf16.mxu0 0
    %2958 = vmatmul.mubr.bf16.gmra.mxu0 %v1226
    %v2959 = vpop.f32.mrf.mxu0
    %v2960 = vadd.f32 %v2671, %v2959
    %v2961 = vpop.f32.mrf.mxu0
    %v2962 = vpop.f32.mrf.mxu0
    %v2963 = vadd.f32 %v2674, %v2962
    %v2964 = vpop.f32.mrf.mxu0
    %2965 = vmatprep.mubr.bf16.mxu0 0
    %2966 = vmatmul.mubr.bf16.gmra.mxu0 %v1229
    %v2967 = vpop.f32.mrf.mxu0
    %v2968 = vadd.f32 %v2679, %v2967
    %v2969 = vpop.f32.mrf.mxu0
    %v2970 = vpop.f32.mrf.mxu0
    %v2971 = vadd.f32 %v2682, %v2970
    %v2972 = vpop.f32.mrf.mxu0
    %2973 = vmatprep.mubr.bf16.mxu0 0
    %2974 = vmatmul.mubr.bf16.gmra.mxu0 %v1232
    %v2975 = vpop.f32.mrf.mxu0
    %v2976 = vadd.f32 %v2687, %v2975
    %v2977 = vpop.f32.mrf.mxu0
    %v2978 = vpop.f32.mrf.mxu0
    %v2979 = vadd.f32 %v2690, %v2978
    %v2980 = vpop.f32.mrf.mxu0
    %2981 = vmatprep.mubr.bf16.mxu0 0
    %2982 = vmatmul.mubr.bf16.gmra.mxu0 %v1235
    %v2983 = vpop.f32.mrf.mxu0
    %v2984 = vadd.f32 %v2695, %v2983
    %v2985 = vpop.f32.mrf.mxu0
    %v2986 = vpop.f32.mrf.mxu0
    %v2987 = vadd.f32 %v2698, %v2986
    %v2988 = vpop.f32.mrf.mxu0
    %2989 = vmatprep.mubr.bf16.mxu0 0
    %2990 = vmatmul.mubr.bf16.gmra.mxu0 %v1238
    %v2991 = vpop.f32.mrf.mxu0
    %v2992 = vadd.f32 %v2703, %v2991
    %v2993 = vpop.f32.mrf.mxu0
    %v2994 = vpop.f32.mrf.mxu0
    %v2995 = vadd.f32 %v2706, %v2994
    %v2996 = vpop.f32.mrf.mxu0
    %2997 = vmatprep.mubr.bf16.mxu0 0
    %2998 = vmatmul.mubr.bf16.gmra.mxu0 %v1241
    %v2999 = vpop.f32.mrf.mxu0
    %v3000 = vadd.f32 %v2711, %v2999
    %v3001 = vpop.f32.mrf.mxu0
    %v3002 = vpop.f32.mrf.mxu0
    %v3003 = vadd.f32 %v2714, %v3002
    %v3004 = vpop.f32.mrf.mxu0
    %3005 = vmatprep.mubr.bf16.mxu0 0
    %3006 = vmatmul.mubr.bf16.gmra.mxu0 %v1244
    %v3007 = vpop.f32.mrf.mxu0
    %v3008 = vadd.f32 %v2719, %v3007
    %v3009 = vpop.f32.mrf.mxu0
    %v3010 = vpop.f32.mrf.mxu0
    %v3011 = vadd.f32 %v2722, %v3010
    %v3012 = vpop.f32.mrf.mxu0
    %3013 = vmatprep.mubr.bf16.mxu0 0
    %3014 = vmatmul.mubr.bf16.gmra.mxu0 %v1247
    %v3015 = vpop.f32.mrf.mxu0
    %v3016 = vadd.f32 %v2727, %v3015
    %v3017 = vpop.f32.mrf.mxu0
    %v3018 = vpop.f32.mrf.mxu0
    %v3019 = vadd.f32 %v2730, %v3018
    %v3020 = vpop.f32.mrf.mxu0
    %3021 = vmatprep.mubr.bf16.mxu0 0
    %3022 = vmatmul.mubr.bf16.gmra.mxu0 %v1250
    %v3023 = vpop.f32.mrf.mxu0
    %v3024 = vadd.f32 %v2735, %v3023
    %v3025 = vpop.f32.mrf.mxu0
    %v3026 = vpop.f32.mrf.mxu0
    %v3027 = vadd.f32 %v2738, %v3026
    %v3028 = vpop.f32.mrf.mxu0
    %3029 = vmatprep.mubr.bf16.mxu0 0
    %3030 = vmatmul.mubr.bf16.gmra.mxu0 %v1253
    %v3031 = vpop.f32.mrf.mxu0
    %v3032 = vadd.f32 %v2743, %v3031
    %v3033 = vpop.f32.mrf.mxu0
    %v3034 = vpop.f32.mrf.mxu0
    %v3035 = vadd.f32 %v2746, %v3034
    %v3036 = vpop.f32.mrf.mxu0
    %3037 = vmatprep.mubr.bf16.mxu0 0
    %3038 = vmatmul.mubr.bf16.gmra.mxu0 %v1256
    %v3039 = vpop.f32.mrf.mxu0
    %v3040 = vadd.f32 %v2751, %v3039
    %v3041 = vpop.f32.mrf.mxu0
    %v3042 = vpop.f32.mrf.mxu0
    %v3043 = vadd.f32 %v2754, %v3042
    %v3044 = vpop.f32.mrf.mxu0
    %3045 = vmatprep.mubr.bf16.mxu0 0
    %3046 = vmatmul.mubr.bf16.gmra.mxu0 %v1208
    %v3047 = vpop.f32.mrf.mxu0
    %v3048 = vadd.f32 %v2759, %v3047
    %v3049 = vpop.f32.mrf.mxu0
    %v3050 = vpop.f32.mrf.mxu0
    %v3051 = vadd.f32 %v2762, %v3050
    %v3052 = vpop.f32.mrf.mxu0
    %3053 = vmatprep.mubr.bf16.mxu0 0
    %3054 = vmatmul.mubr.bf16.gmra.mxu0 %v1262
    %v3055 = vpop.f32.mrf.mxu0
    %v3056 = vadd.f32 %v2767, %v3055
    %v3057 = vpop.f32.mrf.mxu0
    %v3058 = vpop.f32.mrf.mxu0
    %v3059 = vadd.f32 %v2770, %v3058
    %v3060 = vpop.f32.mrf.mxu0
    %3061 = vmatprep.mubr.bf16.mxu0 0
    %3062 = vmatmul.mubr.bf16.gmra.mxu0 %v1265
    %v3063 = vpop.f32.mrf.mxu0
    %v3064 = vadd.f32 %v2775, %v3063
    %v3065 = vpop.f32.mrf.mxu0
    %v3066 = vpop.f32.mrf.mxu0
    %v3067 = vadd.f32 %v2778, %v3066
    %v3068 = vpop.f32.mrf.mxu0
    %3069 = vmatprep.mubr.bf16.mxu0 0
    %3070 = vmatmul.mubr.bf16.gmra.mxu0 %v1268
    %v3071 = vpop.f32.mrf.mxu0
    %v3072 = vadd.f32 %v2783, %v3071
    %v3073 = vpop.f32.mrf.mxu0
    %v3074 = vpop.f32.mrf.mxu0
    %v3075 = vadd.f32 %v2786, %v3074
    %v3076 = vpop.f32.mrf.mxu0
    %3077 = vmatprep.mubr.bf16.mxu0 0
    %3078 = vmatmul.mubr.bf16.gmra.mxu0 %v1271
    %v3079 = vpop.f32.mrf.mxu0
    %v3080 = vadd.f32 %v2791, %v3079
    %v3081 = vpop.f32.mrf.mxu0
    %v3082 = vpop.f32.mrf.mxu0
    %v3083 = vadd.f32 %v2794, %v3082
    %v3084 = vpop.f32.mrf.mxu0
    %3085 = vmatprep.mubr.bf16.mxu0 0
    %3086 = vmatmul.mubr.bf16.gmra.mxu0 %v1274
    %v3087 = vpop.f32.mrf.mxu0
    %v3088 = vadd.f32 %v2799, %v3087
    %v3089 = vpop.f32.mrf.mxu0
    %v3090 = vpop.f32.mrf.mxu0
    %v3091 = vadd.f32 %v2802, %v3090
    %v3092 = vpop.f32.mrf.mxu0
    %3093 = vmatprep.mubr.bf16.mxu0 0
    %3094 = vmatmul.mubr.bf16.gmra.mxu0 %v1277
    %v3095 = vpop.f32.mrf.mxu0
    %v3096 = vadd.f32 %v2807, %v3095
    %v3097 = vpop.f32.mrf.mxu0
    %v3098 = vpop.f32.mrf.mxu0
    %v3099 = vadd.f32 %v2810, %v3098
    %v3100 = vpop.f32.mrf.mxu0
    %3101 = vmatprep.mubr.bf16.mxu0 0
    %3102 = vmatmul.mubr.bf16.gmra.mxu0 %v1280
    %v3103 = vpop.f32.mrf.mxu0
    %v3104 = vadd.f32 %v2815, %v3103
    %v3105 = vpop.f32.mrf.mxu0
    %v3106 = vpop.f32.mrf.mxu0
    %v3107 = vadd.f32 %v2818, %v3106
    %v3108 = vpop.f32.mrf.mxu0
    %3109 = vmatprep.mubr.bf16.mxu0 0
    %3110 = vmatmul.mubr.bf16.gmra.mxu0 %v1283
    %v3111 = vpop.f32.mrf.mxu0
    %v3112 = vadd.f32 %v2823, %v3111
    %v3113 = vpop.f32.mrf.mxu0
    %v3114 = vpop.f32.mrf.mxu0
    %v3115 = vadd.f32 %v2826, %v3114
    %v3116 = vpop.f32.mrf.mxu0
    %3117 = vmatprep.mubr.bf16.mxu0 0
    %3118 = vmatmul.mubr.bf16.gmra.mxu0 %v1286
    %v3119 = vpop.f32.mrf.mxu0
    %v3120 = vadd.f32 %v2831, %v3119
    %v3121 = vpop.f32.mrf.mxu0
    %v3122 = vpop.f32.mrf.mxu0
    %v3123 = vadd.f32 %v2834, %v3122
    %v3124 = vpop.f32.mrf.mxu0
    %3125 = vmatprep.mubr.bf16.mxu0 0
    %3126 = vmatmul.mubr.bf16.gmra.mxu0 %v1289
    %v3127 = vpop.f32.mrf.mxu0
    %v3128 = vadd.f32 %v2839, %v3127
    %v3129 = vpop.f32.mrf.mxu0
    %v3130 = vpop.f32.mrf.mxu0
    %v3131 = vadd.f32 %v2842, %v3130
    %v3132 = vpop.f32.mrf.mxu0
    %3133 = vmatprep.mubr.bf16.mxu0 0
    %3134 = vmatmul.mubr.bf16.gmra.mxu0 %v1292
    %v3135 = vpop.f32.mrf.mxu0
    %v3136 = vadd.f32 %v2847, %v3135
    %v3137 = vpop.f32.mrf.mxu0
    %v3138 = vpop.f32.mrf.mxu0
    %v3139 = vadd.f32 %v2850, %v3138
    %v3140 = vpop.f32.mrf.mxu0
    %3141 = vmatprep.mubr.bf16.mxu0 0
    %3142 = vmatmul.mubr.bf16.gmra.mxu0 %v1295
    %v3143 = vpop.f32.mrf.mxu0
    %v3144 = vadd.f32 %v2855, %v3143
    %v3145 = vpop.f32.mrf.mxu0
    %v3146 = vpop.f32.mrf.mxu0
    %v3147 = vadd.f32 %v2858, %v3146
    %v3148 = vpop.f32.mrf.mxu0
    %3149 = vmatprep.mubr.bf16.mxu0 0
    %3150 = vmatmul.mubr.bf16.gmra.mxu0 %v1298
    %v3151 = vpop.f32.mrf.mxu0
    %v3152 = vadd.f32 %v2863, %v3151
    %v3153 = vpop.f32.mrf.mxu0
    %v3154 = vpop.f32.mrf.mxu0
    %v3155 = vadd.f32 %v2866, %v3154
    %v3156 = vpop.f32.mrf.mxu0
    %3157 = vmatprep.mubr.bf16.mxu0 0
    %3158 = vmatmul.mubr.bf16.gmra.mxu0 %v1301
    %v3159 = vpop.f32.mrf.mxu0
    %v3160 = vadd.f32 %v2871, %v3159
    %v3161 = vpop.f32.mrf.mxu0
    %v3162 = vpop.f32.mrf.mxu0
    %v3163 = vadd.f32 %v2874, %v3162
    %v3164 = vpop.f32.mrf.mxu0
    %3165 = vmatprep.mubr.bf16.mxu0 0
    %3166 = vmatmul.mubr.bf16.gmra.mxu0 %v1304
    %v3167 = vpop.f32.mrf.mxu0
    %v3168 = vadd.f32 %v2879, %v3167
    %v3169 = vpop.f32.mrf.mxu0
    %v3170 = vpop.f32.mrf.mxu0
    %v3171 = vadd.f32 %v2882, %v3170
    %v3172 = vpop.f32.mrf.mxu0
    %3173 = vmatprep.mubr.bf16.mxu0 0
    %3174 = vmatmul.mubr.bf16.gmra.mxu0 %v1208
    %v3175 = vpop.f32.mrf.mxu0
    %v3176 = vadd.f32 %v2887, %v3175
    %v3177 = vpop.f32.mrf.mxu0
    %v3178 = vpop.f32.mrf.mxu0
    %v3179 = vadd.f32 %v2890, %v3178
    %v3180 = vpop.f32.mrf.mxu0
    %3181 = vdwg.mxu0
    %v3182 = vld [vmem:[%s2] sm:$0x1]
    %v3183 = vld [vmem:[%s3] sm:$0x1]
    %v3184 = vadd.f32 %v2928, %v2931
    %v3185 = vadd.f32 %v3184, %v2936
    %v3186 = vadd.f32 %v3185, %v2939
    %v3187 = vadd.f32 %v3186, %v2944
    %v3188 = vadd.f32 %v3187, %v2947
    %v3189 = vadd.f32 %v3188, %v2952
    %v3190 = vadd.f32 %v3189, %v2955
    %v3191 = vadd.f32 %v3190, %v2960
    %v3192 = vadd.f32 %v3191, %v2963
    %v3193 = vadd.f32 %v3192, %v2968
    %v3194 = vadd.f32 %v3193, %v2971
    %v3195 = vadd.f32 %v3194, %v2976
    %v3196 = vadd.f32 %v3195, %v2979
    %v3197 = vadd.f32 %v3196, %v2984
    %v3198 = vadd.f32 %v3197, %v2987
    %v3199 = vadd.f32 %v3198, %v2992
    %v3200 = vadd.f32 %v3199, %v2995
    %v3201 = vadd.f32 %v3200, %v3000
    %v3202 = vadd.f32 %v3201, %v3003
    %v3203 = vadd.f32 %v3202, %v3008
    %v3204 = vadd.f32 %v3203, %v3011
    %v3205 = vadd.f32 %v3204, %v3016
    %v3206 = vadd.f32 %v3205, %v3019
    %v3207 = vadd.f32 %v3206, %v3024
    %v3208 = vadd.f32 %v3207, %v3027
    %v3209 = vadd.f32 %v3208, %v3032
    %v3210 = vadd.f32 %v3209, %v3035
    %v3211 = vadd.f32 %v3210, %v3040
    %v3212 = vadd.f32 %v3211, %v3043
    %v3213 = vadd.f32 %v3212, %v3048
    %v3214 = vadd.f32 %v3213, %v3051
    %v3215 = vadd.f32 %v3214, %v3056
    %v3216 = vadd.f32 %v3215, %v3059
    %v3217 = vadd.f32 %v3216, %v3064
    %v3218 = vadd.f32 %v3217, %v3067
    %v3219 = vadd.f32 %v3218, %v3072
    %v3220 = vadd.f32 %v3219, %v3075
    %v3221 = vadd.f32 %v3220, %v3080
    %v3222 = vadd.f32 %v3221, %v3083
    %v3223 = vadd.f32 %v3222, %v3088
    %v3224 = vadd.f32 %v3223, %v3091
    %v3225 = vadd.f32 %v3224, %v3096
    %v3226 = vadd.f32 %v3225, %v3099
    %v3227 = vadd.f32 %v3226, %v3104
    %v3228 = vadd.f32 %v3227, %v3107
    %v3229 = vadd.f32 %v3228, %v3112
    %v3230 = vadd.f32 %v3229, %v3115
    %v3231 = vadd.f32 %v3230, %v3120
    %v3232 = vadd.f32 %v3231, %v3123
    %v3233 = vadd.f32 %v3232, %v3128
    %v3234 = vadd.f32 %v3233, %v3131
    %v3235 = vadd.f32 %v3234, %v3136
    %v3236 = vadd.f32 %v3235, %v3139
    %v3237 = vadd.f32 %v3236, %v3144
    %v3238 = vadd.f32 %v3237, %v3147
    %v3239 = vadd.f32 %v3238, %v3152
    %v3240 = vadd.f32 %v3239, %v3155
    %v3241 = vadd.f32 %v3240, %v3160
    %v3242 = vadd.f32 %v3241, %v3163
    %v3243 = vadd.f32 %v3242, %v3168
    %v3244 = vadd.f32 %v3243, %v3171
    %v3245 = vadd.f32 %v3244, %v3176
    %v3246 = vadd.f32 %v3245, %v3179
    %v3247 = vrot.slane %v3246, 4
    %v3248 = vadd.f32 %v3246, %v3247
    %v3249 = vrot.slane %v3248, 2
    %v3250 = vadd.f32 %v3248, %v3249
    %v3251 = vrot.slane %v3250, 1
    %v3252 = vadd.f32 %v3250, %v3251
    %v3253 = vmul.f32 %v3252, 0.001953125
    %v3254 = vmul.f32 %v2928, %v2928
    %v3255 = vmul.f32 %v2931, %v2931
    %v3256 = vmul.f32 %v2936, %v2936
    %v3257 = vmul.f32 %v2939, %v2939
    %v3258 = vmul.f32 %v2944, %v2944
    %v3259 = vmul.f32 %v2947, %v2947
    %v3260 = vmul.f32 %v2952, %v2952
    %v3261 = vmul.f32 %v2955, %v2955
    %v3262 = vmul.f32 %v2960, %v2960
    %v3263 = vmul.f32 %v2963, %v2963
    %v3264 = vmul.f32 %v2968, %v2968
    %v3265 = vmul.f32 %v2971, %v2971
    %v3266 = vmul.f32 %v2976, %v2976
    %v3267 = vmul.f32 %v2979, %v2979
    %v3268 = vmul.f32 %v2984, %v2984
    %v3269 = vmul.f32 %v2987, %v2987
    %v3270 = vmul.f32 %v2992, %v2992
    %v3271 = vmul.f32 %v2995, %v2995
    %v3272 = vmul.f32 %v3000, %v3000
    %v3273 = vmul.f32 %v3003, %v3003
    %v3274 = vmul.f32 %v3008, %v3008
    %v3275 = vmul.f32 %v3011, %v3011
    %v3276 = vmul.f32 %v3016, %v3016
    %v3277 = vmul.f32 %v3019, %v3019
    %v3278 = vmul.f32 %v3024, %v3024
    %v3279 = vmul.f32 %v3027, %v3027
    %v3280 = vmul.f32 %v3032, %v3032
    %v3281 = vmul.f32 %v3035, %v3035
    %v3282 = vmul.f32 %v3040, %v3040
    %v3283 = vmul.f32 %v3043, %v3043
    %v3284 = vmul.f32 %v3048, %v3048
    %v3285 = vmul.f32 %v3051, %v3051
    %v3286 = vmul.f32 %v3056, %v3056
    %v3287 = vmul.f32 %v3059, %v3059
    %v3288 = vmul.f32 %v3064, %v3064
    %v3289 = vmul.f32 %v3067, %v3067
    %v3290 = vmul.f32 %v3072, %v3072
    %v3291 = vmul.f32 %v3075, %v3075
    %v3292 = vmul.f32 %v3080, %v3080
    %v3293 = vmul.f32 %v3083, %v3083
    %v3294 = vmul.f32 %v3088, %v3088
    %v3295 = vmul.f32 %v3091, %v3091
    %v3296 = vmul.f32 %v3096, %v3096
    %v3297 = vmul.f32 %v3099, %v3099
    %v3298 = vmul.f32 %v3104, %v3104
    %v3299 = vmul.f32 %v3107, %v3107
    %v3300 = vmul.f32 %v3112, %v3112
    %v3301 = vmul.f32 %v3115, %v3115
    %v3302 = vmul.f32 %v3120, %v3120
    %v3303 = vmul.f32 %v3123, %v3123
    %v3304 = vmul.f32 %v3128, %v3128
    %v3305 = vmul.f32 %v3131, %v3131
    %v3306 = vmul.f32 %v3136, %v3136
    %v3307 = vmul.f32 %v3139, %v3139
    %v3308 = vmul.f32 %v3144, %v3144
    %v3309 = vmul.f32 %v3147, %v3147
    %v3310 = vmul.f32 %v3152, %v3152
    %v3311 = vmul.f32 %v3155, %v3155
    %v3312 = vmul.f32 %v3160, %v3160
    %v3313 = vmul.f32 %v3163, %v3163
    %v3314 = vmul.f32 %v3168, %v3168
    %v3315 = vmul.f32 %v3171, %v3171
    %v3316 = vmul.f32 %v3176, %v3176
    %v3317 = vmul.f32 %v3179, %v3179
    %v3318 = vadd.f32 %v3254, %v3255
    %v3319 = vadd.f32 %v3318, %v3256
    %v3320 = vadd.f32 %v3319, %v3257
    %v3321 = vadd.f32 %v3320, %v3258
    %v3322 = vadd.f32 %v3321, %v3259
    %v3323 = vadd.f32 %v3322, %v3260
    %v3324 = vadd.f32 %v3323, %v3261
    %v3325 = vadd.f32 %v3324, %v3262
    %v3326 = vadd.f32 %v3325, %v3263
    %v3327 = vadd.f32 %v3326, %v3264
    %v3328 = vadd.f32 %v3327, %v3265
    %v3329 = vadd.f32 %v3328, %v3266
    %v3330 = vadd.f32 %v3329, %v3267
    %v3331 = vadd.f32 %v3330, %v3268
    %v3332 = vadd.f32 %v3331, %v3269
    %v3333 = vadd.f32 %v3332, %v3270
    %v3334 = vadd.f32 %v3333, %v3271
    %v3335 = vadd.f32 %v3334, %v3272
    %v3336 = vadd.f32 %v3335, %v3273
    %v3337 = vadd.f32 %v3336, %v3274
    %v3338 = vadd.f32 %v3337, %v3275
    %v3339 = vadd.f32 %v3338, %v3276
    %v3340 = vadd.f32 %v3339, %v3277
    %v3341 = vadd.f32 %v3340, %v3278
    %v3342 = vadd.f32 %v3341, %v3279
    %v3343 = vadd.f32 %v3342, %v3280
    %v3344 = vadd.f32 %v3343, %v3281
    %v3345 = vadd.f32 %v3344, %v3282
    %v3346 = vadd.f32 %v3345, %v3283
    %v3347 = vadd.f32 %v3346, %v3284
    %v3348 = vadd.f32 %v3347, %v3285
    %v3349 = vadd.f32 %v3348, %v3286
    %v3350 = vadd.f32 %v3349, %v3287
    %v3351 = vadd.f32 %v3350, %v3288
    %v3352 = vadd.f32 %v3351, %v3289
    %v3353 = vadd.f32 %v3352, %v3290
    %v3354 = vadd.f32 %v3353, %v3291
    %v3355 = vadd.f32 %v3354, %v3292
    %v3356 = vadd.f32 %v3355, %v3293
    %v3357 = vadd.f32 %v3356, %v3294
    %v3358 = vadd.f32 %v3357, %v3295
    %v3359 = vadd.f32 %v3358, %v3296
    %v3360 = vadd.f32 %v3359, %v3297
    %v3361 = vadd.f32 %v3360, %v3298
    %v3362 = vadd.f32 %v3361, %v3299
    %v3363 = vadd.f32 %v3362, %v3300
    %v3364 = vadd.f32 %v3363, %v3301
    %v3365 = vadd.f32 %v3364, %v3302
    %v3366 = vadd.f32 %v3365, %v3303
    %v3367 = vadd.f32 %v3366, %v3304
    %v3368 = vadd.f32 %v3367, %v3305
    %v3369 = vadd.f32 %v3368, %v3306
    %v3370 = vadd.f32 %v3369, %v3307
    %v3371 = vadd.f32 %v3370, %v3308
    %v3372 = vadd.f32 %v3371, %v3309
    %v3373 = vadd.f32 %v3372, %v3310
    %v3374 = vadd.f32 %v3373, %v3311
    %v3375 = vadd.f32 %v3374, %v3312
    %v3376 = vadd.f32 %v3375, %v3313
    %v3377 = vadd.f32 %v3376, %v3314
    %v3378 = vadd.f32 %v3377, %v3315
    %v3379 = vadd.f32 %v3378, %v3316
    %v3380 = vadd.f32 %v3379, %v3317
    %v3381 = vrot.slane %v3380, 4
    %v3382 = vadd.f32 %v3380, %v3381
    %v3383 = vrot.slane %v3382, 2
    %v3384 = vadd.f32 %v3382, %v3383
    %v3385 = vrot.slane %v3384, 1
    %v3386 = vadd.f32 %v3384, %v3385
    %v3387 = vmul.f32 %v3386, 0.001953125
    %v3388 = vmul.f32 %v3253, %v3253
    %v3389 = vsub.f32 %v3387, %v3388
    %v3390 = vadd.f32 %v3389, 1e-05
    %v3391 = vrsqrt.pop %v3390
    %v3392 = vmul.f32 %v3182, %v3391
    %v3393 = vmul.f32 %v3253, %v3392
    %v3394 = vsub.f32 %v3183, %v3393
    %v3396 = vlaneseq
    %v3397 = vshrl.u32 %v3396, 7
    %v3398 = vsub.s32 0, %v3397
    %v3399 = vrot.slane %v3392, %v3398
    %v3401 = vmul.f32 %v2928, %v3399
    %v3402 = vmul.f32 %v2931, %v3399
    %v3403 = vmul.f32 %v2936, %v3399
    %v3404 = vmul.f32 %v2939, %v3399
    %v3405 = vmul.f32 %v2944, %v3399
    %v3406 = vmul.f32 %v2947, %v3399
    %v3407 = vmul.f32 %v2952, %v3399
    %v3408 = vmul.f32 %v2955, %v3399
    %v3409 = vmul.f32 %v2960, %v3399
    %v3410 = vmul.f32 %v2963, %v3399
    %v3411 = vmul.f32 %v2968, %v3399
    %v3412 = vmul.f32 %v2971, %v3399
    %v3413 = vmul.f32 %v2976, %v3399
    %v3414 = vmul.f32 %v2979, %v3399
    %v3415 = vmul.f32 %v2984, %v3399
    %v3416 = vmul.f32 %v2987, %v3399
    %v3417 = vmul.f32 %v2992, %v3399
    %v3418 = vmul.f32 %v2995, %v3399
    %v3419 = vmul.f32 %v3000, %v3399
    %v3420 = vmul.f32 %v3003, %v3399
    %v3421 = vmul.f32 %v3008, %v3399
    %v3422 = vmul.f32 %v3011, %v3399
    %v3423 = vmul.f32 %v3016, %v3399
    %v3424 = vmul.f32 %v3019, %v3399
    %v3425 = vmul.f32 %v3024, %v3399
    %v3426 = vmul.f32 %v3027, %v3399
    %v3427 = vmul.f32 %v3032, %v3399
    %v3428 = vmul.f32 %v3035, %v3399
    %v3429 = vmul.f32 %v3040, %v3399
    %v3430 = vmul.f32 %v3043, %v3399
    %v3431 = vmul.f32 %v3048, %v3399
    %v3432 = vmul.f32 %v3051, %v3399
    %v3433 = vmul.f32 %v3056, %v3399
    %v3434 = vmul.f32 %v3059, %v3399
    %v3435 = vmul.f32 %v3064, %v3399
    %v3436 = vmul.f32 %v3067, %v3399
    %v3437 = vmul.f32 %v3072, %v3399
    %v3438 = vmul.f32 %v3075, %v3399
    %v3439 = vmul.f32 %v3080, %v3399
    %v3440 = vmul.f32 %v3083, %v3399
    %v3441 = vmul.f32 %v3088, %v3399
    %v3442 = vmul.f32 %v3091, %v3399
    %v3443 = vmul.f32 %v3096, %v3399
    %v3444 = vmul.f32 %v3099, %v3399
    %v3445 = vmul.f32 %v3104, %v3399
    %v3446 = vmul.f32 %v3107, %v3399
    %v3447 = vmul.f32 %v3112, %v3399
    %v3448 = vmul.f32 %v3115, %v3399
    %v3449 = vmul.f32 %v3120, %v3399
    %v3450 = vmul.f32 %v3123, %v3399
    %v3451 = vmul.f32 %v3128, %v3399
    %v3452 = vmul.f32 %v3131, %v3399
    %v3453 = vmul.f32 %v3136, %v3399
    %v3454 = vmul.f32 %v3139, %v3399
    %v3455 = vmul.f32 %v3144, %v3399
    %v3456 = vmul.f32 %v3147, %v3399
    %v3457 = vmul.f32 %v3152, %v3399
    %v3458 = vmul.f32 %v3155, %v3399
    %v3459 = vmul.f32 %v3160, %v3399
    %v3460 = vmul.f32 %v3163, %v3399
    %v3461 = vmul.f32 %v3168, %v3399
    %v3462 = vmul.f32 %v3171, %v3399
    %v3463 = vmul.f32 %v3176, %v3399
    %v3464 = vmul.f32 %v3179, %v3399
    %v3466 = vlaneseq
    %v3467 = vshrl.u32 %v3466, 7
    %v3468 = vsub.s32 0, %v3467
    %v3469 = vrot.slane %v3394, %v3468
    %v3471 = vadd.f32 %v3401, %v3469
    %v3472 = vadd.f32 %v3402, %v3469
    %v3473 = vadd.f32 %v3403, %v3469
    %v3474 = vadd.f32 %v3404, %v3469
    %v3475 = vadd.f32 %v3405, %v3469
    %v3476 = vadd.f32 %v3406, %v3469
    %v3477 = vadd.f32 %v3407, %v3469
    %v3478 = vadd.f32 %v3408, %v3469
    %v3479 = vadd.f32 %v3409, %v3469
    %v3480 = vadd.f32 %v3410, %v3469
    %v3481 = vadd.f32 %v3411, %v3469
    %v3482 = vadd.f32 %v3412, %v3469
    %v3483 = vadd.f32 %v3413, %v3469
    %v3484 = vadd.f32 %v3414, %v3469
    %v3485 = vadd.f32 %v3415, %v3469
    %v3486 = vadd.f32 %v3416, %v3469
    %v3487 = vadd.f32 %v3417, %v3469
    %v3488 = vadd.f32 %v3418, %v3469
    %v3489 = vadd.f32 %v3419, %v3469
    %v3490 = vadd.f32 %v3420, %v3469
    %v3491 = vadd.f32 %v3421, %v3469
    %v3492 = vadd.f32 %v3422, %v3469
    %v3493 = vadd.f32 %v3423, %v3469
    %v3494 = vadd.f32 %v3424, %v3469
    %v3495 = vadd.f32 %v3425, %v3469
    %v3496 = vadd.f32 %v3426, %v3469
    %v3497 = vadd.f32 %v3427, %v3469
    %v3498 = vadd.f32 %v3428, %v3469
    %v3499 = vadd.f32 %v3429, %v3469
    %v3500 = vadd.f32 %v3430, %v3469
    %v3501 = vadd.f32 %v3431, %v3469
    %v3502 = vadd.f32 %v3432, %v3469
    %v3503 = vadd.f32 %v3433, %v3469
    %v3504 = vadd.f32 %v3434, %v3469
    %v3505 = vadd.f32 %v3435, %v3469
    %v3506 = vadd.f32 %v3436, %v3469
    %v3507 = vadd.f32 %v3437, %v3469
    %v3508 = vadd.f32 %v3438, %v3469
    %v3509 = vadd.f32 %v3439, %v3469
    %v3510 = vadd.f32 %v3440, %v3469
    %v3511 = vadd.f32 %v3441, %v3469
    %v3512 = vadd.f32 %v3442, %v3469
    %v3513 = vadd.f32 %v3443, %v3469
    %v3514 = vadd.f32 %v3444, %v3469
    %v3515 = vadd.f32 %v3445, %v3469
    %v3516 = vadd.f32 %v3446, %v3469
    %v3517 = vadd.f32 %v3447, %v3469
    %v3518 = vadd.f32 %v3448, %v3469
    %v3519 = vadd.f32 %v3449, %v3469
    %v3520 = vadd.f32 %v3450, %v3469
    %v3521 = vadd.f32 %v3451, %v3469
    %v3522 = vadd.f32 %v3452, %v3469
    %v3523 = vadd.f32 %v3453, %v3469
    %v3524 = vadd.f32 %v3454, %v3469
    %v3525 = vadd.f32 %v3455, %v3469
    %v3526 = vadd.f32 %v3456, %v3469
    %v3527 = vadd.f32 %v3457, %v3469
    %v3528 = vadd.f32 %v3458, %v3469
    %v3529 = vadd.f32 %v3459, %v3469
    %v3530 = vadd.f32 %v3460, %v3469
    %v3531 = vadd.f32 %v3461, %v3469
    %v3532 = vadd.f32 %v3462, %v3469
    %v3533 = vadd.f32 %v3463, %v3469
    %v3534 = vadd.f32 %v3464, %v3469
    %v3535 = vmax.f32 %v3471, 0.0
    %v3536 = vmax.f32 %v3472, 0.0
    %v3537 = vmax.f32 %v3473, 0.0
    %v3538 = vmax.f32 %v3474, 0.0
    %v3539 = vmax.f32 %v3475, 0.0
    %v3540 = vmax.f32 %v3476, 0.0
    %v3541 = vmax.f32 %v3477, 0.0
    %v3542 = vmax.f32 %v3478, 0.0
    %v3543 = vmax.f32 %v3479, 0.0
    %v3544 = vmax.f32 %v3480, 0.0
    %v3545 = vmax.f32 %v3481, 0.0
    %v3546 = vmax.f32 %v3482, 0.0
    %v3547 = vmax.f32 %v3483, 0.0
    %v3548 = vmax.f32 %v3484, 0.0
    %v3549 = vmax.f32 %v3485, 0.0
    %v3550 = vmax.f32 %v3486, 0.0
    %v3551 = vmax.f32 %v3487, 0.0
    %v3552 = vmax.f32 %v3488, 0.0
    %v3553 = vmax.f32 %v3489, 0.0
    %v3554 = vmax.f32 %v3490, 0.0
    %v3555 = vmax.f32 %v3491, 0.0
    %v3556 = vmax.f32 %v3492, 0.0
    %v3557 = vmax.f32 %v3493, 0.0
    %v3558 = vmax.f32 %v3494, 0.0
    %v3559 = vmax.f32 %v3495, 0.0
    %v3560 = vmax.f32 %v3496, 0.0
    %v3561 = vmax.f32 %v3497, 0.0
    %v3562 = vmax.f32 %v3498, 0.0
    %v3563 = vmax.f32 %v3499, 0.0
    %v3564 = vmax.f32 %v3500, 0.0
    %v3565 = vmax.f32 %v3501, 0.0
    %v3566 = vmax.f32 %v3502, 0.0
    %v3567 = vmax.f32 %v3503, 0.0
    %v3568 = vmax.f32 %v3504, 0.0
    %v3569 = vmax.f32 %v3505, 0.0
    %v3570 = vmax.f32 %v3506, 0.0
    %v3571 = vmax.f32 %v3507, 0.0
    %v3572 = vmax.f32 %v3508, 0.0
    %v3573 = vmax.f32 %v3509, 0.0
    %v3574 = vmax.f32 %v3510, 0.0
    %v3575 = vmax.f32 %v3511, 0.0
    %v3576 = vmax.f32 %v3512, 0.0
    %v3577 = vmax.f32 %v3513, 0.0
    %v3578 = vmax.f32 %v3514, 0.0
    %v3579 = vmax.f32 %v3515, 0.0
    %v3580 = vmax.f32 %v3516, 0.0
    %v3581 = vmax.f32 %v3517, 0.0
    %v3582 = vmax.f32 %v3518, 0.0
    %v3583 = vmax.f32 %v3519, 0.0
    %v3584 = vmax.f32 %v3520, 0.0
    %v3585 = vmax.f32 %v3521, 0.0
    %v3586 = vmax.f32 %v3522, 0.0
    %v3587 = vmax.f32 %v3523, 0.0
    %v3588 = vmax.f32 %v3524, 0.0
    %v3589 = vmax.f32 %v3525, 0.0
    %v3590 = vmax.f32 %v3526, 0.0
    %v3591 = vmax.f32 %v3527, 0.0
    %v3592 = vmax.f32 %v3528, 0.0
    %v3593 = vmax.f32 %v3529, 0.0
    %v3594 = vmax.f32 %v3530, 0.0
    %v3595 = vmax.f32 %v3531, 0.0
    %v3596 = vmax.f32 %v3532, 0.0
    %v3597 = vmax.f32 %v3533, 0.0
    %v3598 = vmax.f32 %v3534, 0.0
    %v3663 = vrot.slane %v3535, 7
    %v3664 = vrot.slane %v3536, 7
    %v3665 = vsel %vm284, %v3663, %v3664
    %v3666 = vrot.slane %v3537, 7
    %v3667 = vrot.slane %v3538, 7
    %v3668 = vsel %vm284, %v3666, %v3667
    %v3669 = vrot.slane %v3539, 7
    %v3670 = vrot.slane %v3540, 7
    %v3671 = vsel %vm284, %v3669, %v3670
    %v3672 = vrot.slane %v3541, 7
    %v3673 = vrot.slane %v3542, 7
    %v3674 = vsel %vm284, %v3672, %v3673
    %v3675 = vrot.slane %v3543, 7
    %v3676 = vrot.slane %v3544, 7
    %v3677 = vsel %vm284, %v3675, %v3676
    %v3678 = vrot.slane %v3545, 7
    %v3679 = vrot.slane %v3546, 7
    %v3680 = vsel %vm284, %v3678, %v3679
    %v3681 = vrot.slane %v3547, 7
    %v3682 = vrot.slane %v3548, 7
    %v3683 = vsel %vm284, %v3681, %v3682
    %v3684 = vrot.slane %v3549, 7
    %v3685 = vrot.slane %v3550, 7
    %v3686 = vsel %vm284, %v3684, %v3685
    %v3687 = vrot.slane %v3551, 7
    %v3688 = vrot.slane %v3552, 7
    %v3689 = vsel %vm284, %v3687, %v3688
    %v3690 = vrot.slane %v3553, 7
    %v3691 = vrot.slane %v3554, 7
    %v3692 = vsel %vm284, %v3690, %v3691
    %v3693 = vrot.slane %v3555, 7
    %v3694 = vrot.slane %v3556, 7
    %v3695 = vsel %vm284, %v3693, %v3694
    %v3696 = vrot.slane %v3557, 7
    %v3697 = vrot.slane %v3558, 7
    %v3698 = vsel %vm284, %v3696, %v3697
    %v3699 = vrot.slane %v3559, 7
    %v3700 = vrot.slane %v3560, 7
    %v3701 = vsel %vm284, %v3699, %v3700
    %v3702 = vrot.slane %v3561, 7
    %v3703 = vrot.slane %v3562, 7
    %v3704 = vsel %vm284, %v3702, %v3703
    %v3705 = vrot.slane %v3563, 7
    %v3706 = vrot.slane %v3564, 7
    %v3707 = vsel %vm284, %v3705, %v3706
    %v3708 = vrot.slane %v3565, 7
    %v3709 = vrot.slane %v3566, 7
    %v3710 = vsel %vm284, %v3708, %v3709
    %v3711 = vrot.slane %v3567, 7
    %v3712 = vrot.slane %v3568, 7
    %v3713 = vsel %vm284, %v3711, %v3712
    %v3714 = vrot.slane %v3569, 7
    %v3715 = vrot.slane %v3570, 7
    %v3716 = vsel %vm284, %v3714, %v3715
    %v3717 = vrot.slane %v3571, 7
    %v3718 = vrot.slane %v3572, 7
    %v3719 = vsel %vm284, %v3717, %v3718
    %v3720 = vrot.slane %v3573, 7
    %v3721 = vrot.slane %v3574, 7
    %v3722 = vsel %vm284, %v3720, %v3721
    %v3723 = vrot.slane %v3575, 7
    %v3724 = vrot.slane %v3576, 7
    %v3725 = vsel %vm284, %v3723, %v3724
    %v3726 = vrot.slane %v3577, 7
    %v3727 = vrot.slane %v3578, 7
    %v3728 = vsel %vm284, %v3726, %v3727
    %v3729 = vrot.slane %v3579, 7
    %v3730 = vrot.slane %v3580, 7
    %v3731 = vsel %vm284, %v3729, %v3730
    %v3732 = vrot.slane %v3581, 7
    %v3733 = vrot.slane %v3582, 7
    %v3734 = vsel %vm284, %v3732, %v3733
    %v3735 = vrot.slane %v3583, 7
    %v3736 = vrot.slane %v3584, 7
    %v3737 = vsel %vm284, %v3735, %v3736
    %v3738 = vrot.slane %v3585, 7
    %v3739 = vrot.slane %v3586, 7
    %v3740 = vsel %vm284, %v3738, %v3739
    %v3741 = vrot.slane %v3587, 7
    %v3742 = vrot.slane %v3588, 7
    %v3743 = vsel %vm284, %v3741, %v3742
    %v3744 = vrot.slane %v3589, 7
    %v3745 = vrot.slane %v3590, 7
    %v3746 = vsel %vm284, %v3744, %v3745
    %v3747 = vrot.slane %v3591, 7
    %v3748 = vrot.slane %v3592, 7
    %v3749 = vsel %vm284, %v3747, %v3748
    %v3750 = vrot.slane %v3593, 7
    %v3751 = vrot.slane %v3594, 7
    %v3752 = vsel %vm284, %v3750, %v3751
    %v3753 = vrot.slane %v3595, 7
    %v3754 = vrot.slane %v3596, 7
    %v3755 = vsel %vm284, %v3753, %v3754
    %v3756 = vrot.slane %v3597, 7
    %v3757 = vrot.slane %v3598, 7
    %v3758 = vsel %vm284, %v3756, %v3757
    %v3855 = vsel %vm284, 0.0, %v3663
    %v3856 = vsel %vm284, 0.0, %v3666
    %v3857 = vsel %vm284, 0.0, %v3669
    %v3858 = vsel %vm284, 0.0, %v3672
    %v3859 = vsel %vm284, 0.0, %v3675
    %v3860 = vsel %vm284, 0.0, %v3678
    %v3861 = vsel %vm284, 0.0, %v3681
    %v3862 = vsel %vm284, 0.0, %v3684
    %v3863 = vsel %vm284, 0.0, %v3687
    %v3864 = vsel %vm284, 0.0, %v3690
    %v3865 = vsel %vm284, 0.0, %v3693
    %v3866 = vsel %vm284, 0.0, %v3696
    %v3867 = vsel %vm284, 0.0, %v3699
    %v3868 = vsel %vm284, 0.0, %v3702
    %v3869 = vsel %vm284, 0.0, %v3705
    %v3870 = vsel %vm284, 0.0, %v3708
    %v3871 = vsel %vm284, 0.0, %v3711
    %v3872 = vsel %vm284, 0.0, %v3714
    %v3873 = vsel %vm284, 0.0, %v3717
    %v3874 = vsel %vm284, 0.0, %v3720
    %v3875 = vsel %vm284, 0.0, %v3723
    %v3876 = vsel %vm284, 0.0, %v3726
    %v3877 = vsel %vm284, 0.0, %v3729
    %v3878 = vsel %vm284, 0.0, %v3732
    %v3879 = vsel %vm284, 0.0, %v3735
    %v3880 = vsel %vm284, 0.0, %v3738
    %v3881 = vsel %vm284, 0.0, %v3741
    %v3882 = vsel %vm284, 0.0, %v3744
    %v3883 = vsel %vm284, 0.0, %v3747
    %v3884 = vsel %vm284, 0.0, %v3750
    %v3885 = vsel %vm284, 0.0, %v3753
    %v3886 = vsel %vm284, 0.0, %v3756
    %v3887 = vsel %vm284, %v3664, 0.0
    %v3888 = vsel %vm284, %v3667, 0.0
    %v3889 = vsel %vm284, %v3670, 0.0
    %v3890 = vsel %vm284, %v3673, 0.0
    %v3891 = vsel %vm284, %v3676, 0.0
    %v3892 = vsel %vm284, %v3679, 0.0
    %v3893 = vsel %vm284, %v3682, 0.0
    %v3894 = vsel %vm284, %v3685, 0.0
    %v3895 = vsel %vm284, %v3688, 0.0
    %v3896 = vsel %vm284, %v3691, 0.0
    %v3897 = vsel %vm284, %v3694, 0.0
    %v3898 = vsel %vm284, %v3697, 0.0
    %v3899 = vsel %vm284, %v3700, 0.0
    %v3900 = vsel %vm284, %v3703, 0.0
    %v3901 = vsel %vm284, %v3706, 0.0
    %v3902 = vsel %vm284, %v3709, 0.0
    %v3903 = vsel %vm284, %v3712, 0.0
    %v3904 = vsel %vm284, %v3715, 0.0
    %v3905 = vsel %vm284, %v3718, 0.0
    %v3906 = vsel %vm284, %v3721, 0.0
    %v3907 = vsel %vm284, %v3724, 0.0
    %v3908 = vsel %vm284, %v3727, 0.0
    %v3909 = vsel %vm284, %v3730, 0.0
    %v3910 = vsel %vm284, %v3733, 0.0
    %v3911 = vsel %vm284, %v3736, 0.0
    %v3912 = vsel %vm284, %v3739, 0.0
    %v3913 = vsel %vm284, %v3742, 0.0
    %v3914 = vsel %vm284, %v3745, 0.0
    %v3915 = vsel %vm284, %v3748, 0.0
    %v3916 = vsel %vm284, %v3751, 0.0
    %v3917 = vsel %vm284, %v3754, 0.0
    %v3918 = vsel %vm284, %v3757, 0.0
    %v3919 = vld [vmem:[#allocation7] sm:$0xf]
    %v3920 = vld [vmem:[#allocation7 + $0x4] sm:$0xf]
    %v3921 = vld [vmem:[#allocation7 + $0x8] sm:$0xf]
    %v3922 = vld [vmem:[#allocation7 + $0xc] sm:$0xf]
    %v3923 = vld [vmem:[#allocation7 + $0x10] sm:$0xf]
    %v3924 = vld [vmem:[#allocation7 + $0x14] sm:$0xf]
    %v3925 = vld [vmem:[#allocation7 + $0x18] sm:$0xf]
    %v3926 = vld [vmem:[#allocation7 + $0x1c] sm:$0xf]
    %v3927 = vld [vmem:[#allocation7 + $0x20] sm:$0xf]
    %v3928 = vld [vmem:[#allocation7 + $0x24] sm:$0xf]
    %v3929 = vld [vmem:[#allocation7 + $0x28] sm:$0xf]
    %v3930 = vld [vmem:[#allocation7 + $0x2c] sm:$0xf]
    %v3931 = vld [vmem:[#allocation7 + $0x30] sm:$0xf]
    %v3932 = vld [vmem:[#allocation7 + $0x34] sm:$0xf]
    %v3933 = vld [vmem:[#allocation7 + $0x38] sm:$0xf]
    %v3934 = vld [vmem:[#allocation7 + $0x3c] sm:$0xf]
    %v3935 = vld [vmem:[#allocation7 + $0x40] sm:$0xf]
    %v3936 = vld [vmem:[#allocation7 + $0x44] sm:$0xf]
    %v3937 = vld [vmem:[#allocation7 + $0x48] sm:$0xf]
    %v3938 = vld [vmem:[#allocation7 + $0x4c] sm:$0xf]
    %v3939 = vld [vmem:[#allocation7 + $0x50] sm:$0xf]
    %v3940 = vld [vmem:[#allocation7 + $0x54] sm:$0xf]
    %v3941 = vld [vmem:[#allocation7 + $0x58] sm:$0xf]
    %v3942 = vld [vmem:[#allocation7 + $0x5c] sm:$0xf]
    %v3943 = vld [vmem:[#allocation7 + $0x60] sm:$0xf]
    %v3944 = vld [vmem:[#allocation7 + $0x64] sm:$0xf]
    %v3945 = vld [vmem:[#allocation7 + $0x68] sm:$0xf]
    %v3946 = vld [vmem:[#allocation7 + $0x6c] sm:$0xf]
    %v3947 = vld [vmem:[#allocation7 + $0x70] sm:$0xf]
    %v3948 = vld [vmem:[#allocation7 + $0x74] sm:$0xf]
    %v3949 = vld [vmem:[#allocation7 + $0x78] sm:$0xf]
    %v3950 = vld [vmem:[#allocation7 + $0x7c] sm:$0xf]
    %v3951 = vld [vmem:[#allocation7 + $0x80] sm:$0xf]
    %v3952 = vld [vmem:[#allocation7 + $0x84] sm:$0xf]
    %v3953 = vld [vmem:[#allocation7 + $0x88] sm:$0xf]
    %v3954 = vld [vmem:[#allocation7 + $0x8c] sm:$0xf]
    %v3955 = vld [vmem:[#allocation7 + $0x90] sm:$0xf]
    %v3956 = vld [vmem:[#allocation7 + $0x94] sm:$0xf]
    %v3957 = vld [vmem:[#allocation7 + $0x98] sm:$0xf]
    %v3958 = vld [vmem:[#allocation7 + $0x9c] sm:$0xf]
    %v3959 = vld [vmem:[#allocation7 + $0xa0] sm:$0xf]
    %v3960 = vld [vmem:[#allocation7 + $0xa4] sm:$0xf]
    %v3961 = vld [vmem:[#allocation7 + $0xa8] sm:$0xf]
    %v3962 = vld [vmem:[#allocation7 + $0xac] sm:$0xf]
    %v3963 = vld [vmem:[#allocation7 + $0xb0] sm:$0xf]
    %v3964 = vld [vmem:[#allocation7 + $0xb4] sm:$0xf]
    %v3965 = vld [vmem:[#allocation7 + $0xb8] sm:$0xf]
    %v3966 = vld [vmem:[#allocation7 + $0xbc] sm:$0xf]
    %v3967 = vld [vmem:[#allocation7 + $0xc0] sm:$0xf]
    %v3968 = vld [vmem:[#allocation7 + $0xc4] sm:$0xf]
    %v3969 = vld [vmem:[#allocation7 + $0xc8] sm:$0xf]
    %v3970 = vld [vmem:[#allocation7 + $0xcc] sm:$0xf]
    %v3971 = vld [vmem:[#allocation7 + $0xd0] sm:$0xf]
    %v3972 = vld [vmem:[#allocation7 + $0xd4] sm:$0xf]
    %v3973 = vld [vmem:[#allocation7 + $0xd8] sm:$0xf]
    %v3974 = vld [vmem:[#allocation7 + $0xdc] sm:$0xf]
    %v3975 = vld [vmem:[#allocation7 + $0xe0] sm:$0xf]
    %v3976 = vld [vmem:[#allocation7 + $0xe4] sm:$0xf]
    %v3977 = vld [vmem:[#allocation7 + $0xe8] sm:$0xf]
    %v3978 = vld [vmem:[#allocation7 + $0xec] sm:$0xf]
    %v3979 = vld [vmem:[#allocation7 + $0xf0] sm:$0xf]
    %v3980 = vld [vmem:[#allocation7 + $0xf4] sm:$0xf]
    %v3981 = vld [vmem:[#allocation7 + $0xf8] sm:$0xf]
    %v3982 = vld [vmem:[#allocation7 + $0xfc] sm:$0xf]
    %v3983 = vld [vmem:[#allocation7 + $0x100] sm:$0xf]
    %v3984 = vld [vmem:[#allocation7 + $0x104] sm:$0xf]
    %v3985 = vld [vmem:[#allocation7 + $0x108] sm:$0xf]
    %v3986 = vld [vmem:[#allocation7 + $0x10c] sm:$0xf]
    %v3987 = vld [vmem:[#allocation7 + $0x110] sm:$0xf]
    %v3988 = vld [vmem:[#allocation7 + $0x114] sm:$0xf]
    %v3989 = vld [vmem:[#allocation7 + $0x118] sm:$0xf]
    %v3990 = vld [vmem:[#allocation7 + $0x11c] sm:$0xf]
    %v3991 = vld [vmem:[#allocation7 + $0x120] sm:$0xf]
    %v3992 = vld [vmem:[#allocation7 + $0x124] sm:$0xf]
    %v3993 = vld [vmem:[#allocation7 + $0x128] sm:$0xf]
    %v3994 = vld [vmem:[#allocation7 + $0x12c] sm:$0xf]
    %v3995 = vld [vmem:[#allocation7 + $0x130] sm:$0xf]
    %v3996 = vld [vmem:[#allocation7 + $0x134] sm:$0xf]
    %v3997 = vld [vmem:[#allocation7 + $0x138] sm:$0xf]
    %v3998 = vld [vmem:[#allocation7 + $0x13c] sm:$0xf]
    %v3999 = vld [vmem:[#allocation7 + $0x140] sm:$0xf]
    %v4000 = vld [vmem:[#allocation7 + $0x144] sm:$0xf]
    %v4001 = vld [vmem:[#allocation7 + $0x148] sm:$0xf]
    %v4002 = vld [vmem:[#allocation7 + $0x14c] sm:$0xf]
    %v4003 = vld [vmem:[#allocation7 + $0x150] sm:$0xf]
    %v4004 = vld [vmem:[#allocation7 + $0x154] sm:$0xf]
    %v4005 = vld [vmem:[#allocation7 + $0x158] sm:$0xf]
    %v4006 = vld [vmem:[#allocation7 + $0x15c] sm:$0xf]
    %v4007 = vld [vmem:[#allocation7 + $0x160] sm:$0xf]
    %v4008 = vld [vmem:[#allocation7 + $0x164] sm:$0xf]
    %v4009 = vld [vmem:[#allocation7 + $0x168] sm:$0xf]
    %v4010 = vld [vmem:[#allocation7 + $0x16c] sm:$0xf]
    %v4011 = vld [vmem:[#allocation7 + $0x170] sm:$0xf]
    %v4012 = vld [vmem:[#allocation7 + $0x174] sm:$0xf]
    %v4013 = vld [vmem:[#allocation7 + $0x178] sm:$0xf]
    %v4014 = vld [vmem:[#allocation7 + $0x17c] sm:$0xf]
    %v4015 = vld [vmem:[#allocation7 + $0x180] sm:$0xf]
    %v4016 = vld [vmem:[#allocation7 + $0x184] sm:$0xf]
    %v4017 = vld [vmem:[#allocation7 + $0x188] sm:$0xf]
    %v4018 = vld [vmem:[#allocation7 + $0x18c] sm:$0xf]
    %v4019 = vld [vmem:[#allocation7 + $0x190] sm:$0xf]
    %v4020 = vld [vmem:[#allocation7 + $0x194] sm:$0xf]
    %v4021 = vld [vmem:[#allocation7 + $0x198] sm:$0xf]
    %v4022 = vld [vmem:[#allocation7 + $0x19c] sm:$0xf]
    %v4023 = vld [vmem:[#allocation7 + $0x1a0] sm:$0xf]
    %v4024 = vld [vmem:[#allocation7 + $0x1a4] sm:$0xf]
    %v4025 = vld [vmem:[#allocation7 + $0x1a8] sm:$0xf]
    %v4026 = vld [vmem:[#allocation7 + $0x1ac] sm:$0xf]
    %v4027 = vld [vmem:[#allocation7 + $0x1b0] sm:$0xf]
    %v4028 = vld [vmem:[#allocation7 + $0x1b4] sm:$0xf]
    %v4029 = vld [vmem:[#allocation7 + $0x1b8] sm:$0xf]
    %v4030 = vld [vmem:[#allocation7 + $0x1bc] sm:$0xf]
    %v4031 = vld [vmem:[#allocation7 + $0x1c0] sm:$0xf]
    %v4032 = vld [vmem:[#allocation7 + $0x1c4] sm:$0xf]
    %v4033 = vld [vmem:[#allocation7 + $0x1c8] sm:$0xf]
    %v4034 = vld [vmem:[#allocation7 + $0x1cc] sm:$0xf]
    %v4035 = vld [vmem:[#allocation7 + $0x1d0] sm:$0xf]
    %v4036 = vld [vmem:[#allocation7 + $0x1d4] sm:$0xf]
    %v4037 = vld [vmem:[#allocation7 + $0x1d8] sm:$0xf]
    %v4038 = vld [vmem:[#allocation7 + $0x1dc] sm:$0xf]
    %v4039 = vld [vmem:[#allocation7 + $0x1e0] sm:$0xf]
    %v4040 = vld [vmem:[#allocation7 + $0x1e4] sm:$0xf]
    %v4041 = vld [vmem:[#allocation7 + $0x1e8] sm:$0xf]
    %v4042 = vld [vmem:[#allocation7 + $0x1ec] sm:$0xf]
    %v4043 = vld [vmem:[#allocation7 + $0x1f0] sm:$0xf]
    %v4044 = vld [vmem:[#allocation7 + $0x1f4] sm:$0xf]
    %v4045 = vld [vmem:[#allocation7 + $0x1f8] sm:$0xf]
    %v4046 = vld [vmem:[#allocation7 + $0x1fc] sm:$0xf]
    %v4047 = vld [vmem:[#allocation7 + $0x200] sm:$0xf]
    %v4048 = vld [vmem:[#allocation7 + $0x204] sm:$0xf]
    %v4049 = vld [vmem:[#allocation7 + $0x208] sm:$0xf]
    %v4050 = vld [vmem:[#allocation7 + $0x20c] sm:$0xf]
    %v4051 = vld [vmem:[#allocation7 + $0x210] sm:$0xf]
    %v4052 = vld [vmem:[#allocation7 + $0x214] sm:$0xf]
    %v4053 = vld [vmem:[#allocation7 + $0x218] sm:$0xf]
    %v4054 = vld [vmem:[#allocation7 + $0x21c] sm:$0xf]
    %v4055 = vld [vmem:[#allocation7 + $0x220] sm:$0xf]
    %v4056 = vld [vmem:[#allocation7 + $0x224] sm:$0xf]
    %v4057 = vld [vmem:[#allocation7 + $0x228] sm:$0xf]
    %v4058 = vld [vmem:[#allocation7 + $0x22c] sm:$0xf]
    %v4059 = vld [vmem:[#allocation7 + $0x230] sm:$0xf]
    %v4060 = vld [vmem:[#allocation7 + $0x234] sm:$0xf]
    %v4061 = vld [vmem:[#allocation7 + $0x238] sm:$0xf]
    %v4062 = vld [vmem:[#allocation7 + $0x23c] sm:$0xf]
    %v4123 = vrot.slane %v3855, 1
    %v4124 = vrot.slane %v3665, 1
    %v4125 = vsel %vm746, %v4123, %v4124
    %v4126 = vrot.slane %v3887, 1
    %v4127 = vsel %vm746, %v4124, %v4126
    %v4128 = vrot.slane %v3856, 1
    %v4129 = vrot.slane %v3668, 1
    %v4130 = vsel %vm746, %v4128, %v4129
    %v4131 = vrot.slane %v3888, 1
    %v4132 = vsel %vm746, %v4129, %v4131
    %v4133 = vrot.slane %v3857, 1
    %v4134 = vrot.slane %v3671, 1
    %v4135 = vsel %vm746, %v4133, %v4134
    %v4136 = vrot.slane %v3889, 1
    %v4137 = vsel %vm746, %v4134, %v4136
    %v4138 = vrot.slane %v3858, 1
    %v4139 = vrot.slane %v3674, 1
    %v4140 = vsel %vm746, %v4138, %v4139
    %v4141 = vrot.slane %v3890, 1
    %v4142 = vsel %vm746, %v4139, %v4141
    %v4143 = vrot.slane %v3859, 1
    %v4144 = vrot.slane %v3677, 1
    %v4145 = vsel %vm746, %v4143, %v4144
    %v4146 = vrot.slane %v3891, 1
    %v4147 = vsel %vm746, %v4144, %v4146
    %v4148 = vrot.slane %v3860, 1
    %v4149 = vrot.slane %v3680, 1
    %v4150 = vsel %vm746, %v4148, %v4149
    %v4151 = vrot.slane %v3892, 1
    %v4152 = vsel %vm746, %v4149, %v4151
    %v4153 = vrot.slane %v3861, 1
    %v4154 = vrot.slane %v3683, 1
    %v4155 = vsel %vm746, %v4153, %v4154
    %v4156 = vrot.slane %v3893, 1
    %v4157 = vsel %vm746, %v4154, %v4156
    %v4158 = vrot.slane %v3862, 1
    %v4159 = vrot.slane %v3686, 1
    %v4160 = vsel %vm746, %v4158, %v4159
    %v4161 = vrot.slane %v3894, 1
    %v4162 = vsel %vm746, %v4159, %v4161
    %v4163 = vrot.slane %v3863, 1
    %v4164 = vrot.slane %v3689, 1
    %v4165 = vsel %vm746, %v4163, %v4164
    %v4166 = vrot.slane %v3895, 1
    %v4167 = vsel %vm746, %v4164, %v4166
    %v4168 = vrot.slane %v3864, 1
    %v4169 = vrot.slane %v3692, 1
    %v4170 = vsel %vm746, %v4168, %v4169
    %v4171 = vrot.slane %v3896, 1
    %v4172 = vsel %vm746, %v4169, %v4171
    %v4173 = vrot.slane %v3865, 1
    %v4174 = vrot.slane %v3695, 1
    %v4175 = vsel %vm746, %v4173, %v4174
    %v4176 = vrot.slane %v3897, 1
    %v4177 = vsel %vm746, %v4174, %v4176
    %v4178 = vrot.slane %v3866, 1
    %v4179 = vrot.slane %v3698, 1
    %v4180 = vsel %vm746, %v4178, %v4179
    %v4181 = vrot.slane %v3898, 1
    %v4182 = vsel %vm746, %v4179, %v4181
    %v4183 = vrot.slane %v3867, 1
    %v4184 = vrot.slane %v3701, 1
    %v4185 = vsel %vm746, %v4183, %v4184
    %v4186 = vrot.slane %v3899, 1
    %v4187 = vsel %vm746, %v4184, %v4186
    %v4188 = vrot.slane %v3868, 1
    %v4189 = vrot.slane %v3704, 1
    %v4190 = vsel %vm746, %v4188, %v4189
    %v4191 = vrot.slane %v3900, 1
    %v4192 = vsel %vm746, %v4189, %v4191
    %v4193 = vrot.slane %v3869, 1
    %v4194 = vrot.slane %v3707, 1
    %v4195 = vsel %vm746, %v4193, %v4194
    %v4196 = vrot.slane %v3901, 1
    %v4197 = vsel %vm746, %v4194, %v4196
    %v4198 = vrot.slane %v3871, 1
    %v4199 = vrot.slane %v3713, 1
    %v4200 = vsel %vm746, %v4198, %v4199
    %v4201 = vrot.slane %v3903, 1
    %v4202 = vsel %vm746, %v4199, %v4201
    %v4203 = vrot.slane %v3872, 1
    %v4204 = vrot.slane %v3716, 1
    %v4205 = vsel %vm746, %v4203, %v4204
    %v4206 = vrot.slane %v3904, 1
    %v4207 = vsel %vm746, %v4204, %v4206
    %v4208 = vrot.slane %v3873, 1
    %v4209 = vrot.slane %v3719, 1
    %v4210 = vsel %vm746, %v4208, %v4209
    %v4211 = vrot.slane %v3905, 1
    %v4212 = vsel %vm746, %v4209, %v4211
    %v4213 = vrot.slane %v3874, 1
    %v4214 = vrot.slane %v3722, 1
    %v4215 = vsel %vm746, %v4213, %v4214
    %v4216 = vrot.slane %v3906, 1
    %v4217 = vsel %vm746, %v4214, %v4216
    %v4218 = vrot.slane %v3875, 1
    %v4219 = vrot.slane %v3725, 1
    %v4220 = vsel %vm746, %v4218, %v4219
    %v4221 = vrot.slane %v3907, 1
    %v4222 = vsel %vm746, %v4219, %v4221
    %v4223 = vrot.slane %v3876, 1
    %v4224 = vrot.slane %v3728, 1
    %v4225 = vsel %vm746, %v4223, %v4224
    %v4226 = vrot.slane %v3908, 1
    %v4227 = vsel %vm746, %v4224, %v4226
    %v4228 = vrot.slane %v3877, 1
    %v4229 = vrot.slane %v3731, 1
    %v4230 = vsel %vm746, %v4228, %v4229
    %v4231 = vrot.slane %v3909, 1
    %v4232 = vsel %vm746, %v4229, %v4231
    %v4233 = vrot.slane %v3878, 1
    %v4234 = vrot.slane %v3734, 1
    %v4235 = vsel %vm746, %v4233, %v4234
    %v4236 = vrot.slane %v3910, 1
    %v4237 = vsel %vm746, %v4234, %v4236
    %v4238 = vrot.slane %v3879, 1
    %v4239 = vrot.slane %v3737, 1
    %v4240 = vsel %vm746, %v4238, %v4239
    %v4241 = vrot.slane %v3911, 1
    %v4242 = vsel %vm746, %v4239, %v4241
    %v4243 = vrot.slane %v3880, 1
    %v4244 = vrot.slane %v3740, 1
    %v4245 = vsel %vm746, %v4243, %v4244
    %v4246 = vrot.slane %v3912, 1
    %v4247 = vsel %vm746, %v4244, %v4246
    %v4248 = vrot.slane %v3881, 1
    %v4249 = vrot.slane %v3743, 1
    %v4250 = vsel %vm746, %v4248, %v4249
    %v4251 = vrot.slane %v3913, 1
    %v4252 = vsel %vm746, %v4249, %v4251
    %v4253 = vrot.slane %v3882, 1
    %v4254 = vrot.slane %v3746, 1
    %v4255 = vsel %vm746, %v4253, %v4254
    %v4256 = vrot.slane %v3914, 1
    %v4257 = vsel %vm746, %v4254, %v4256
    %v4258 = vrot.slane %v3883, 1
    %v4259 = vrot.slane %v3749, 1
    %v4260 = vsel %vm746, %v4258, %v4259
    %v4261 = vrot.slane %v3915, 1
    %v4262 = vsel %vm746, %v4259, %v4261
    %v4263 = vrot.slane %v3884, 1
    %v4264 = vrot.slane %v3752, 1
    %v4265 = vsel %vm746, %v4263, %v4264
    %v4266 = vrot.slane %v3916, 1
    %v4267 = vsel %vm746, %v4264, %v4266
    %v4268 = vrot.slane %v3885, 1
    %v4269 = vrot.slane %v3755, 1
    %v4270 = vsel %vm746, %v4268, %v4269
    %v4271 = vrot.slane %v3917, 1
    %v4272 = vsel %vm746, %v4269, %v4271
    %v4333 = vrot.slane %v3855, 2
    %v4334 = vrot.slane %v3665, 2
    %v4335 = vsel %vm960, %v4333, %v4334
    %v4336 = vrot.slane %v3887, 2
    %v4337 = vsel %vm960, %v4334, %v4336
    %v4338 = vrot.slane %v3856, 2
    %v4339 = vrot.slane %v3668, 2
    %v4340 = vsel %vm960, %v4338, %v4339
    %v4341 = vrot.slane %v3888, 2
    %v4342 = vsel %vm960, %v4339, %v4341
    %v4343 = vrot.slane %v3857, 2
    %v4344 = vrot.slane %v3671, 2
    %v4345 = vsel %vm960, %v4343, %v4344
    %v4346 = vrot.slane %v3889, 2
    %v4347 = vsel %vm960, %v4344, %v4346
    %v4348 = vrot.slane %v3858, 2
    %v4349 = vrot.slane %v3674, 2
    %v4350 = vsel %vm960, %v4348, %v4349
    %v4351 = vrot.slane %v3890, 2
    %v4352 = vsel %vm960, %v4349, %v4351
    %v4353 = vrot.slane %v3859, 2
    %v4354 = vrot.slane %v3677, 2
    %v4355 = vsel %vm960, %v4353, %v4354
    %v4356 = vrot.slane %v3891, 2
    %v4357 = vsel %vm960, %v4354, %v4356
    %v4358 = vrot.slane %v3860, 2
    %v4359 = vrot.slane %v3680, 2
    %v4360 = vsel %vm960, %v4358, %v4359
    %v4361 = vrot.slane %v3892, 2
    %v4362 = vsel %vm960, %v4359, %v4361
    %v4363 = vrot.slane %v3861, 2
    %v4364 = vrot.slane %v3683, 2
    %v4365 = vsel %vm960, %v4363, %v4364
    %v4366 = vrot.slane %v3893, 2
    %v4367 = vsel %vm960, %v4364, %v4366
    %v4368 = vrot.slane %v3862, 2
    %v4369 = vrot.slane %v3686, 2
    %v4370 = vsel %vm960, %v4368, %v4369
    %v4371 = vrot.slane %v3894, 2
    %v4372 = vsel %vm960, %v4369, %v4371
    %v4373 = vrot.slane %v3863, 2
    %v4374 = vrot.slane %v3689, 2
    %v4375 = vsel %vm960, %v4373, %v4374
    %v4376 = vrot.slane %v3895, 2
    %v4377 = vsel %vm960, %v4374, %v4376
    %v4378 = vrot.slane %v3864, 2
    %v4379 = vrot.slane %v3692, 2
    %v4380 = vsel %vm960, %v4378, %v4379
    %v4381 = vrot.slane %v3896, 2
    %v4382 = vsel %vm960, %v4379, %v4381
    %v4383 = vrot.slane %v3865, 2
    %v4384 = vrot.slane %v3695, 2
    %v4385 = vsel %vm960, %v4383, %v4384
    %v4386 = vrot.slane %v3897, 2
    %v4387 = vsel %vm960, %v4384, %v4386
    %v4388 = vrot.slane %v3866, 2
    %v4389 = vrot.slane %v3698, 2
    %v4390 = vsel %vm960, %v4388, %v4389
    %v4391 = vrot.slane %v3898, 2
    %v4392 = vsel %vm960, %v4389, %v4391
    %v4393 = vrot.slane %v3867, 2
    %v4394 = vrot.slane %v3701, 2
    %v4395 = vsel %vm960, %v4393, %v4394
    %v4396 = vrot.slane %v3899, 2
    %v4397 = vsel %vm960, %v4394, %v4396
    %v4398 = vrot.slane %v3868, 2
    %v4399 = vrot.slane %v3704, 2
    %v4400 = vsel %vm960, %v4398, %v4399
    %v4401 = vrot.slane %v3900, 2
    %v4402 = vsel %vm960, %v4399, %v4401
    %v4403 = vrot.slane %v3869, 2
    %v4404 = vrot.slane %v3707, 2
    %v4405 = vsel %vm960, %v4403, %v4404
    %v4406 = vrot.slane %v3901, 2
    %v4407 = vsel %vm960, %v4404, %v4406
    %v4408 = vrot.slane %v3871, 2
    %v4409 = vrot.slane %v3713, 2
    %v4410 = vsel %vm960, %v4408, %v4409
    %v4411 = vrot.slane %v3903, 2
    %v4412 = vsel %vm960, %v4409, %v4411
    %v4413 = vrot.slane %v3872, 2
    %v4414 = vrot.slane %v3716, 2
    %v4415 = vsel %vm960, %v4413, %v4414
    %v4416 = vrot.slane %v3904, 2
    %v4417 = vsel %vm960, %v4414, %v4416
    %v4418 = vrot.slane %v3873, 2
    %v4419 = vrot.slane %v3719, 2
    %v4420 = vsel %vm960, %v4418, %v4419
    %v4421 = vrot.slane %v3905, 2
    %v4422 = vsel %vm960, %v4419, %v4421
    %v4423 = vrot.slane %v3874, 2
    %v4424 = vrot.slane %v3722, 2
    %v4425 = vsel %vm960, %v4423, %v4424
    %v4426 = vrot.slane %v3906, 2
    %v4427 = vsel %vm960, %v4424, %v4426
    %v4428 = vrot.slane %v3875, 2
    %v4429 = vrot.slane %v3725, 2
    %v4430 = vsel %vm960, %v4428, %v4429
    %v4431 = vrot.slane %v3907, 2
    %v4432 = vsel %vm960, %v4429, %v4431
    %v4433 = vrot.slane %v3876, 2
    %v4434 = vrot.slane %v3728, 2
    %v4435 = vsel %vm960, %v4433, %v4434
    %v4436 = vrot.slane %v3908, 2
    %v4437 = vsel %vm960, %v4434, %v4436
    %v4438 = vrot.slane %v3877, 2
    %v4439 = vrot.slane %v3731, 2
    %v4440 = vsel %vm960, %v4438, %v4439
    %v4441 = vrot.slane %v3909, 2
    %v4442 = vsel %vm960, %v4439, %v4441
    %v4443 = vrot.slane %v3878, 2
    %v4444 = vrot.slane %v3734, 2
    %v4445 = vsel %vm960, %v4443, %v4444
    %v4446 = vrot.slane %v3910, 2
    %v4447 = vsel %vm960, %v4444, %v4446
    %v4448 = vrot.slane %v3879, 2
    %v4449 = vrot.slane %v3737, 2
    %v4450 = vsel %vm960, %v4448, %v4449
    %v4451 = vrot.slane %v3911, 2
    %v4452 = vsel %vm960, %v4449, %v4451
    %v4453 = vrot.slane %v3880, 2
    %v4454 = vrot.slane %v3740, 2
    %v4455 = vsel %vm960, %v4453, %v4454
    %v4456 = vrot.slane %v3912, 2
    %v4457 = vsel %vm960, %v4454, %v4456
    %v4458 = vrot.slane %v3881, 2
    %v4459 = vrot.slane %v3743, 2
    %v4460 = vsel %vm960, %v4458, %v4459
    %v4461 = vrot.slane %v3913, 2
    %v4462 = vsel %vm960, %v4459, %v4461
    %v4463 = vrot.slane %v3882, 2
    %v4464 = vrot.slane %v3746, 2
    %v4465 = vsel %vm960, %v4463, %v4464
    %v4466 = vrot.slane %v3914, 2
    %v4467 = vsel %vm960, %v4464, %v4466
    %v4468 = vrot.slane %v3883, 2
    %v4469 = vrot.slane %v3749, 2
    %v4470 = vsel %vm960, %v4468, %v4469
    %v4471 = vrot.slane %v3915, 2
    %v4472 = vsel %vm960, %v4469, %v4471
    %v4473 = vrot.slane %v3884, 2
    %v4474 = vrot.slane %v3752, 2
    %v4475 = vsel %vm960, %v4473, %v4474
    %v4476 = vrot.slane %v3916, 2
    %v4477 = vsel %vm960, %v4474, %v4476
    %v4478 = vrot.slane %v3885, 2
    %v4479 = vrot.slane %v3755, 2
    %v4480 = vsel %vm960, %v4478, %v4479
    %v4481 = vrot.slane %v3917, 2
    %v4482 = vsel %vm960, %v4479, %v4481
    %v4547 = vrot.slane %v3870, 1
    %v4548 = vrot.slane %v3710, 1
    %v4549 = vsel %vm746, %v4547, %v4548
    %v4550 = vrot.slane %v3902, 1
    %v4551 = vsel %vm746, %v4548, %v4550
    %v4552 = vrot.slane %v3886, 1
    %v4553 = vrot.slane %v3758, 1
    %v4554 = vsel %vm746, %v4552, %v4553
    %v4555 = vrot.slane %v3918, 1
    %v4556 = vsel %vm746, %v4553, %v4555
    %v4561 = vrot.slane %v3870, 2
    %v4562 = vrot.slane %v3710, 2
    %v4563 = vsel %vm960, %v4561, %v4562
    %v4564 = vrot.slane %v3902, 2
    %v4565 = vsel %vm960, %v4562, %v4564
    %v4566 = vrot.slane %v3886, 2
    %v4567 = vrot.slane %v3758, 2
    %v4568 = vsel %vm960, %v4566, %v4567
    %v4569 = vrot.slane %v3918, 2
    %v4570 = vsel %vm960, %v4567, %v4569
    %v4575 = vpack.c.bf16 %v3665, %v3855
    %v4576 = vpack.c.bf16 %v4127, %v4125
    %v4577 = vpack.c.bf16 %v4337, %v4335
    %v4578 = vpack.c.bf16 %v3668, %v3856
    %v4579 = vpack.c.bf16 %v4132, %v4130
    %v4580 = vpack.c.bf16 %v4342, %v4340
    %v4581 = vpack.c.bf16 %v3671, %v3857
    %v4582 = vpack.c.bf16 %v4137, %v4135
    %v4583 = vpack.c.bf16 %v4347, %v4345
    %v4584 = vpack.c.bf16 %v3674, %v3858
    %v4585 = vpack.c.bf16 %v4142, %v4140
    %v4586 = vpack.c.bf16 %v4352, %v4350
    %v4587 = vpack.c.bf16 %v3677, %v3859
    %v4588 = vpack.c.bf16 %v4147, %v4145
    %v4589 = vpack.c.bf16 %v4357, %v4355
    %v4590 = vpack.c.bf16 %v3680, %v3860
    %v4591 = vpack.c.bf16 %v4152, %v4150
    %v4592 = vpack.c.bf16 %v4362, %v4360
    %v4593 = vpack.c.bf16 %v3683, %v3861
    %v4594 = vpack.c.bf16 %v4157, %v4155
    %v4595 = vpack.c.bf16 %v4367, %v4365
    %v4596 = vpack.c.bf16 %v3686, %v3862
    %v4597 = vpack.c.bf16 %v4162, %v4160
    %v4598 = vpack.c.bf16 %v4372, %v4370
    %v4599 = vpack.c.bf16 %v3689, %v3863
    %v4600 = vpack.c.bf16 %v4167, %v4165
    %v4601 = vpack.c.bf16 %v4377, %v4375
    %v4602 = vpack.c.bf16 %v3692, %v3864
    %v4603 = vpack.c.bf16 %v4172, %v4170
    %v4604 = vpack.c.bf16 %v4382, %v4380
    %v4605 = vpack.c.bf16 %v3695, %v3865
    %v4606 = vpack.c.bf16 %v4177, %v4175
    %v4607 = vpack.c.bf16 %v4387, %v4385
    %v4608 = vpack.c.bf16 %v3698, %v3866
    %v4609 = vpack.c.bf16 %v4182, %v4180
    %v4610 = vpack.c.bf16 %v4392, %v4390
    %v4611 = vpack.c.bf16 %v3701, %v3867
    %v4612 = vpack.c.bf16 %v4187, %v4185
    %v4613 = vpack.c.bf16 %v4397, %v4395
    %v4614 = vpack.c.bf16 %v3704, %v3868
    %v4615 = vpack.c.bf16 %v4192, %v4190
    %v4616 = vpack.c.bf16 %v4402, %v4400
    %v4617 = vpack.c.bf16 %v3707, %v3869
    %v4618 = vpack.c.bf16 %v4197, %v4195
    %v4619 = vpack.c.bf16 %v4407, %v4405
    %v4620 = vpack.c.bf16 %v3710, %v3870
    %v4621 = vpack.c.bf16 %v4551, %v4549
    %v4622 = vpack.c.bf16 %v4565, %v4563
    %v4623 = vpack.c.bf16 %v3713, %v3871
    %v4624 = vpack.c.bf16 %v4202, %v4200
    %v4625 = vpack.c.bf16 %v4412, %v4410
    %v4626 = vpack.c.bf16 %v3716, %v3872
    %v4627 = vpack.c.bf16 %v4207, %v4205
    %v4628 = vpack.c.bf16 %v4417, %v4415
    %v4629 = vpack.c.bf16 %v3719, %v3873
    %v4630 = vpack.c.bf16 %v4212, %v4210
    %v4631 = vpack.c.bf16 %v4422, %v4420
    %v4632 = vpack.c.bf16 %v3722, %v3874
    %v4633 = vpack.c.bf16 %v4217, %v4215
    %v4634 = vpack.c.bf16 %v4427, %v4425
    %v4635 = vpack.c.bf16 %v3725, %v3875
    %v4636 = vpack.c.bf16 %v4222, %v4220
    %v4637 = vpack.c.bf16 %v4432, %v4430
    %v4638 = vpack.c.bf16 %v3728, %v3876
    %v4639 = vpack.c.bf16 %v4227, %v4225
    %v4640 = vpack.c.bf16 %v4437, %v4435
    %v4641 = vpack.c.bf16 %v3731, %v3877
    %v4642 = vpack.c.bf16 %v4232, %v4230
    %v4643 = vpack.c.bf16 %v4442, %v4440
    %v4644 = vpack.c.bf16 %v3734, %v3878
    %v4645 = vpack.c.bf16 %v4237, %v4235
    %v4646 = vpack.c.bf16 %v4447, %v4445
    %v4647 = vpack.c.bf16 %v3737, %v3879
    %v4648 = vpack.c.bf16 %v4242, %v4240
    %v4649 = vpack.c.bf16 %v4452, %v4450
    %v4650 = vpack.c.bf16 %v3740, %v3880
    %v4651 = vpack.c.bf16 %v4247, %v4245
    %v4652 = vpack.c.bf16 %v4457, %v4455
    %v4653 = vpack.c.bf16 %v3743, %v3881
    %v4654 = vpack.c.bf16 %v4252, %v4250
    %v4655 = vpack.c.bf16 %v4462, %v4460
    %v4656 = vpack.c.bf16 %v3746, %v3882
    %v4657 = vpack.c.bf16 %v4257, %v4255
    %v4658 = vpack.c.bf16 %v4467, %v4465
    %v4659 = vpack.c.bf16 %v3749, %v3883
    %v4660 = vpack.c.bf16 %v4262, %v4260
    %v4661 = vpack.c.bf16 %v4472, %v4470
    %v4662 = vpack.c.bf16 %v3752, %v3884
    %v4663 = vpack.c.bf16 %v4267, %v4265
    %v4664 = vpack.c.bf16 %v4477, %v4475
    %v4665 = vpack.c.bf16 %v3755, %v3885
    %v4666 = vpack.c.bf16 %v4272, %v4270
    %v4667 = vpack.c.bf16 %v4482, %v4480
    %v4668 = vpack.c.bf16 %v3758, %v3886
    %v4669 = vpack.c.bf16 %v4556, %v4554
    %v4670 = vpack.c.bf16 %v4570, %v4568
    %v4815 = vunpack.c.l.b16 %v3919
    %v4816 = vunpack.c.l.b16 %v3920
    %v4817 = vunpack.c.l.b16 %v3921
    %v4818 = vunpack.c.l.b16 %v3922
    %v4819 = vunpack.c.l.b16 %v3923
    %v4820 = vunpack.c.l.b16 %v3924
    %v4821 = vunpack.c.l.b16 %v3925
    %v4822 = vunpack.c.l.b16 %v3926
    %v4823 = vunpack.c.l.b16 %v3927
    %v4824 = vunpack.c.l.b16 %v3928
    %v4825 = vunpack.c.l.b16 %v3929
    %v4826 = vunpack.c.l.b16 %v3930
    %v4827 = vunpack.c.l.b16 %v3931
    %v4828 = vunpack.c.l.b16 %v3932
    %v4829 = vunpack.c.l.b16 %v3933
    %v4830 = vunpack.c.l.b16 %v3934
    %v4831 = vunpack.c.l.b16 %v3935
    %v4832 = vunpack.c.l.b16 %v3936
    %v4833 = vunpack.c.l.b16 %v3937
    %v4834 = vunpack.c.l.b16 %v3938
    %v4835 = vunpack.c.l.b16 %v3939
    %v4836 = vunpack.c.l.b16 %v3940
    %v4837 = vunpack.c.l.b16 %v3941
    %v4838 = vunpack.c.l.b16 %v3942
    %v4839 = vunpack.c.l.b16 %v3943
    %v4840 = vunpack.c.l.b16 %v3944
    %v4841 = vunpack.c.l.b16 %v3945
    %v4842 = vunpack.c.l.b16 %v3946
    %v4843 = vunpack.c.l.b16 %v3947
    %v4844 = vunpack.c.l.b16 %v3948
    %v4845 = vunpack.c.l.b16 %v3949
    %v4846 = vunpack.c.l.b16 %v3950
    %v4847 = vunpack.c.l.b16 %v3951
    %v4848 = vunpack.c.l.b16 %v3952
    %v4849 = vunpack.c.l.b16 %v3953
    %v4850 = vunpack.c.l.b16 %v3954
    %v4851 = vunpack.c.l.b16 %v3955
    %v4852 = vunpack.c.l.b16 %v3956
    %v4853 = vunpack.c.l.b16 %v3957
    %v4854 = vunpack.c.l.b16 %v3958
    %v4855 = vunpack.c.l.b16 %v3959
    %v4856 = vunpack.c.l.b16 %v3960
    %v4857 = vunpack.c.l.b16 %v3961
    %v4858 = vunpack.c.l.b16 %v3962
    %v4859 = vunpack.c.l.b16 %v3963
    %v4860 = vunpack.c.l.b16 %v3964
    %v4861 = vunpack.c.l.b16 %v3965
    %v4862 = vunpack.c.l.b16 %v3966
    %v4863 = vunpack.c.l.b16 %v3967
    %v4864 = vunpack.c.l.b16 %v3968
    %v4865 = vunpack.c.l.b16 %v3969
    %v4866 = vunpack.c.l.b16 %v3970
    %v4867 = vunpack.c.l.b16 %v3971
    %v4868 = vunpack.c.l.b16 %v3972
    %v4869 = vunpack.c.l.b16 %v3973
    %v4870 = vunpack.c.l.b16 %v3974
    %v4871 = vunpack.c.l.b16 %v3975
    %v4872 = vunpack.c.l.b16 %v3976
    %v4873 = vunpack.c.l.b16 %v3977
    %v4874 = vunpack.c.l.b16 %v3978
    %v4875 = vunpack.c.l.b16 %v3979
    %v4876 = vunpack.c.l.b16 %v3980
    %v4877 = vunpack.c.l.b16 %v3981
    %v4878 = vunpack.c.l.b16 %v3982
    %v4879 = vunpack.c.l.b16 %v3983
    %v4880 = vunpack.c.l.b16 %v3984
    %v4881 = vunpack.c.l.b16 %v3985
    %v4882 = vunpack.c.l.b16 %v3986
    %v4883 = vunpack.c.l.b16 %v3987
    %v4884 = vunpack.c.l.b16 %v3988
    %v4885 = vunpack.c.l.b16 %v3989
    %v4886 = vunpack.c.l.b16 %v3990
    %v4887 = vunpack.c.l.b16 %v3991
    %v4888 = vunpack.c.l.b16 %v3992
    %v4889 = vunpack.c.l.b16 %v3993
    %v4890 = vunpack.c.l.b16 %v3994
    %v4891 = vunpack.c.l.b16 %v3995
    %v4892 = vunpack.c.l.b16 %v3996
    %v4893 = vunpack.c.l.b16 %v3997
    %v4894 = vunpack.c.l.b16 %v3998
    %v4895 = vunpack.c.l.b16 %v3999
    %v4896 = vunpack.c.l.b16 %v4000
    %v4897 = vunpack.c.l.b16 %v4001
    %v4898 = vunpack.c.l.b16 %v4002
    %v4899 = vunpack.c.l.b16 %v4003
    %v4900 = vunpack.c.l.b16 %v4004
    %v4901 = vunpack.c.l.b16 %v4005
    %v4902 = vunpack.c.l.b16 %v4006
    %v4903 = vunpack.c.l.b16 %v4007
    %v4904 = vunpack.c.l.b16 %v4008
    %v4905 = vunpack.c.l.b16 %v4009
    %v4906 = vunpack.c.l.b16 %v4010
    %v4907 = vunpack.c.l.b16 %v4011
    %v4908 = vunpack.c.l.b16 %v4012
    %v4909 = vunpack.c.l.b16 %v4013
    %v4910 = vunpack.c.l.b16 %v4014
    %v4911 = vunpack.c.l.b16 %v4015
    %v4912 = vunpack.c.l.b16 %v4016
    %v4913 = vunpack.c.l.b16 %v4017
    %v4914 = vunpack.c.l.b16 %v4018
    %v4915 = vunpack.c.l.b16 %v4019
    %v4916 = vunpack.c.l.b16 %v4020
    %v4917 = vunpack.c.l.b16 %v4021
    %v4918 = vunpack.c.l.b16 %v4022
    %v4919 = vunpack.c.l.b16 %v4023
    %v4920 = vunpack.c.l.b16 %v4024
    %v4921 = vunpack.c.l.b16 %v4025
    %v4922 = vunpack.c.l.b16 %v4026
    %v4923 = vunpack.c.l.b16 %v4027
    %v4924 = vunpack.c.l.b16 %v4028
    %v4925 = vunpack.c.l.b16 %v4029
    %v4926 = vunpack.c.l.b16 %v4030
    %v4927 = vunpack.c.l.b16 %v4031
    %v4928 = vunpack.c.l.b16 %v4032
    %v4929 = vunpack.c.l.b16 %v4033
    %v4930 = vunpack.c.l.b16 %v4034
    %v4931 = vunpack.c.l.b16 %v4035
    %v4932 = vunpack.c.l.b16 %v4036
    %v4933 = vunpack.c.l.b16 %v4037
    %v4934 = vunpack.c.l.b16 %v4038
    %v4935 = vunpack.c.l.b16 %v4039
    %v4936 = vunpack.c.l.b16 %v4040
    %v4937 = vunpack.c.l.b16 %v4041
    %v4938 = vunpack.c.l.b16 %v4042
    %v4939 = vunpack.c.l.b16 %v4043
    %v4940 = vunpack.c.l.b16 %v4044
    %v4941 = vunpack.c.l.b16 %v4045
    %v4942 = vunpack.c.l.b16 %v4046
    %v4943 = vunpack.c.l.b16 %v4047
    %v4944 = vunpack.c.l.b16 %v4048
    %v4945 = vunpack.c.l.b16 %v4049
    %v4946 = vunpack.c.l.b16 %v4050
    %v4947 = vunpack.c.l.b16 %v4051
    %v4948 = vunpack.c.l.b16 %v4052
    %v4949 = vunpack.c.l.b16 %v4053
    %v4950 = vunpack.c.l.b16 %v4054
    %v4951 = vunpack.c.l.b16 %v4055
    %v4952 = vunpack.c.l.b16 %v4056
    %v4953 = vunpack.c.l.b16 %v4057
    %v4954 = vunpack.c.l.b16 %v4058
    %v4955 = vunpack.c.l.b16 %v4059
    %v4956 = vunpack.c.l.b16 %v4060
    %v4957 = vunpack.c.l.b16 %v4061
    %v4958 = vunpack.c.l.b16 %v4062
    %v4959 = vpack.c.b16 %v4816, %v4815
    %v4960 = vpack.c.b16 %v4818, %v4817
    %v4961 = vpack.c.b16 %v4820, %v4819
    %v4962 = vpack.c.b16 %v4822, %v4821
    %v4963 = vpack.c.b16 %v4824, %v4823
    %v4964 = vpack.c.b16 %v4826, %v4825
    %v4965 = vpack.c.b16 %v4828, %v4827
    %v4966 = vpack.c.b16 %v4830, %v4829
    %v4967 = vpack.c.b16 %v4832, %v4831
    %v4968 = vpack.c.b16 %v4834, %v4833
    %v4969 = vpack.c.b16 %v4836, %v4835
    %v4970 = vpack.c.b16 %v4838, %v4837
    %v4971 = vpack.c.b16 %v4840, %v4839
    %v4972 = vpack.c.b16 %v4842, %v4841
    %v4973 = vpack.c.b16 %v4844, %v4843
    %v4974 = vpack.c.b16 %v4846, %v4845
    %v4975 = vpack.c.b16 %v4848, %v4847
    %v4976 = vpack.c.b16 %v4850, %v4849
    %v4977 = vpack.c.b16 %v4852, %v4851
    %v4978 = vpack.c.b16 %v4854, %v4853
    %v4979 = vpack.c.b16 %v4856, %v4855
    %v4980 = vpack.c.b16 %v4858, %v4857
    %v4981 = vpack.c.b16 %v4860, %v4859
    %v4982 = vpack.c.b16 %v4862, %v4861
    %v4983 = vpack.c.b16 %v4864, %v4863
    %v4984 = vpack.c.b16 %v4866, %v4865
    %v4985 = vpack.c.b16 %v4868, %v4867
    %v4986 = vpack.c.b16 %v4870, %v4869
    %v4987 = vpack.c.b16 %v4872, %v4871
    %v4988 = vpack.c.b16 %v4874, %v4873
    %v4989 = vpack.c.b16 %v4876, %v4875
    %v4990 = vpack.c.b16 %v4878, %v4877
    %v4991 = vpack.c.b16 %v4880, %v4879
    %v4992 = vpack.c.b16 %v4882, %v4881
    %v4993 = vpack.c.b16 %v4884, %v4883
    %v4994 = vpack.c.b16 %v4886, %v4885
    %v4995 = vpack.c.b16 %v4888, %v4887
    %v4996 = vpack.c.b16 %v4890, %v4889
    %v4997 = vpack.c.b16 %v4892, %v4891
    %v4998 = vpack.c.b16 %v4894, %v4893
    %v4999 = vpack.c.b16 %v4896, %v4895
    %v5000 = vpack.c.b16 %v4898, %v4897
    %v5001 = vpack.c.b16 %v4900, %v4899
    %v5002 = vpack.c.b16 %v4902, %v4901
    %v5003 = vpack.c.b16 %v4904, %v4903
    %v5004 = vpack.c.b16 %v4906, %v4905
    %v5005 = vpack.c.b16 %v4908, %v4907
    %v5006 = vpack.c.b16 %v4910, %v4909
    %v5007 = vpack.c.b16 %v4912, %v4911
    %v5008 = vpack.c.b16 %v4914, %v4913
    %v5009 = vpack.c.b16 %v4916, %v4915
    %v5010 = vpack.c.b16 %v4918, %v4917
    %v5011 = vpack.c.b16 %v4920, %v4919
    %v5012 = vpack.c.b16 %v4922, %v4921
    %v5013 = vpack.c.b16 %v4924, %v4923
    %v5014 = vpack.c.b16 %v4926, %v4925
    %v5015 = vpack.c.b16 %v4928, %v4927
    %v5016 = vpack.c.b16 %v4930, %v4929
    %v5017 = vpack.c.b16 %v4932, %v4931
    %v5018 = vpack.c.b16 %v4934, %v4933
    %v5019 = vpack.c.b16 %v4936, %v4935
    %v5020 = vpack.c.b16 %v4938, %v4937
    %v5021 = vpack.c.b16 %v4940, %v4939
    %v5022 = vpack.c.b16 %v4942, %v4941
    %v5023 = vpack.c.b16 %v4944, %v4943
    %v5024 = vpack.c.b16 %v4946, %v4945
    %v5025 = vpack.c.b16 %v4948, %v4947
    %v5026 = vpack.c.b16 %v4950, %v4949
    %v5027 = vpack.c.b16 %v4952, %v4951
    %v5028 = vpack.c.b16 %v4954, %v4953
    %v5029 = vpack.c.b16 %v4956, %v4955
    %v5030 = vpack.c.b16 %v4958, %v4957
    %5103 = vmatprep.subr.bf16.mxu0 0
    %5104 = vmatpush1.bf16.msra.mxu0 %v4966
    %5105 = vmatprep.subr.bf16.mxu0 0
    %5106 = vmatpush1.bf16.msra.mxu0 %v4965
    %5107 = vmatprep.subr.bf16.mxu0 0
    %5108 = vmatpush1.bf16.msra.mxu0 %v4964
    %5109 = vmatprep.subr.bf16.mxu0 0
    %5110 = vmatpush1.bf16.msra.mxu0 %v4963
    %5111 = vmatprep.subr.bf16.mxu0 0
    %5112 = vmatpush1.bf16.msra.mxu0 %v4962
    %5113 = vmatprep.subr.bf16.mxu0 0
    %5114 = vmatpush1.bf16.msra.mxu0 %v4961
    %5115 = vmatprep.subr.bf16.mxu0 0
    %5116 = vmatpush1.bf16.msra.mxu0 %v4960
    %5117 = vmatprep.subr.bf16.mxu0 0
    %5118 = vmatpush1.bf16.msra.mxu0 %v4959
    %5119 = vmatprep.subr.bf16.mxu0 0
    %5120 = vmatpush2.bf16.msra.mxu0 %v4974
    %5121 = vmatprep.subr.bf16.mxu0 0
    %5122 = vmatpush2.bf16.msra.mxu0 %v4973
    %5123 = vmatprep.subr.bf16.mxu0 0
    %5124 = vmatpush2.bf16.msra.mxu0 %v4972
    %5125 = vmatprep.subr.bf16.mxu0 0
    %5126 = vmatpush2.bf16.msra.mxu0 %v4971
    %5127 = vmatprep.subr.bf16.mxu0 0
    %5128 = vmatpush2.bf16.msra.mxu0 %v4970
    %5129 = vmatprep.subr.bf16.mxu0 0
    %5130 = vmatpush2.bf16.msra.mxu0 %v4969
    %5131 = vmatprep.subr.bf16.mxu0 0
    %5132 = vmatpush2.bf16.msra.mxu0 %v4968
    %5133 = vmatprep.subr.bf16.mxu0 0
    %5134 = vmatpush2.bf16.msra.mxu0 %v4967
    %5135 = vmatprep.mubr.bf16.mxu0 %v1207
    %5136 = vmatmul.mubr.bf16.gmra.mxu0 %v1206
    %v5137 = vpop.f32.mrf.mxu0
    %v5138 = vadd.f32 0.0, %v5137
    %v5139 = vpop.f32.mrf.mxu0
    %v5140 = vpop.f32.mrf.mxu0
    %v5141 = vadd.f32 0.0, %v5140
    %v5142 = vpop.f32.mrf.mxu0
    %5143 = vmatprep.mubr.bf16.mxu0 %v4576
    %5144 = vmatmul.mubr.bf16.gmra.mxu0 %v4575
    %v5145 = vpop.f32.mrf.mxu0
    %v5146 = vadd.f32 0.0, %v5145
    %v5147 = vpop.f32.mrf.mxu0
    %v5148 = vpop.f32.mrf.mxu0
    %v5149 = vadd.f32 0.0, %v5148
    %v5150 = vpop.f32.mrf.mxu0
    %5151 = vmatprep.mubr.bf16.mxu0 %v4579
    %5152 = vmatmul.mubr.bf16.gmra.mxu0 %v4578
    %v5153 = vpop.f32.mrf.mxu0
    %v5154 = vadd.f32 0.0, %v5153
    %v5155 = vpop.f32.mrf.mxu0
    %v5156 = vpop.f32.mrf.mxu0
    %v5157 = vadd.f32 0.0, %v5156
    %v5158 = vpop.f32.mrf.mxu0
    %5159 = vmatprep.mubr.bf16.mxu0 %v4582
    %5160 = vmatmul.mubr.bf16.gmra.mxu0 %v4581
    %v5161 = vpop.f32.mrf.mxu0
    %v5162 = vadd.f32 0.0, %v5161
    %v5163 = vpop.f32.mrf.mxu0
    %v5164 = vpop.f32.mrf.mxu0
    %v5165 = vadd.f32 0.0, %v5164
    %v5166 = vpop.f32.mrf.mxu0
    %5167 = vmatprep.mubr.bf16.mxu0 %v4585
    %5168 = vmatmul.mubr.bf16.gmra.mxu0 %v4584
    %v5169 = vpop.f32.mrf.mxu0
    %v5170 = vadd.f32 0.0, %v5169
    %v5171 = vpop.f32.mrf.mxu0
    %v5172 = vpop.f32.mrf.mxu0
    %v5173 = vadd.f32 0.0, %v5172
    %v5174 = vpop.f32.mrf.mxu0
    %5175 = vmatprep.mubr.bf16.mxu0 %v4588
    %5176 = vmatmul.mubr.bf16.gmra.mxu0 %v4587
    %v5177 = vpop.f32.mrf.mxu0
    %v5178 = vadd.f32 0.0, %v5177
    %v5179 = vpop.f32.mrf.mxu0
    %v5180 = vpop.f32.mrf.mxu0
    %v5181 = vadd.f32 0.0, %v5180
    %v5182 = vpop.f32.mrf.mxu0
    %5183 = vmatprep.mubr.bf16.mxu0 %v4591
    %5184 = vmatmul.mubr.bf16.gmra.mxu0 %v4590
    %v5185 = vpop.f32.mrf.mxu0
    %v5186 = vadd.f32 0.0, %v5185
    %v5187 = vpop.f32.mrf.mxu0
    %v5188 = vpop.f32.mrf.mxu0
    %v5189 = vadd.f32 0.0, %v5188
    %v5190 = vpop.f32.mrf.mxu0
    %5191 = vmatprep.mubr.bf16.mxu0 %v4594
    %5192 = vmatmul.mubr.bf16.gmra.mxu0 %v4593
    %v5193 = vpop.f32.mrf.mxu0
    %v5194 = vadd.f32 0.0, %v5193
    %v5195 = vpop.f32.mrf.mxu0
    %v5196 = vpop.f32.mrf.mxu0
    %v5197 = vadd.f32 0.0, %v5196
    %v5198 = vpop.f32.mrf.mxu0
    %5199 = vmatprep.mubr.bf16.mxu0 %v4597
    %5200 = vmatmul.mubr.bf16.gmra.mxu0 %v4596
    %v5201 = vpop.f32.mrf.mxu0
    %v5202 = vadd.f32 0.0, %v5201
    %v5203 = vpop.f32.mrf.mxu0
    %v5204 = vpop.f32.mrf.mxu0
    %v5205 = vadd.f32 0.0, %v5204
    %v5206 = vpop.f32.mrf.mxu0
    %5207 = vmatprep.mubr.bf16.mxu0 %v4600
    %5208 = vmatmul.mubr.bf16.gmra.mxu0 %v4599
    %v5209 = vpop.f32.mrf.mxu0
    %v5210 = vadd.f32 0.0, %v5209
    %v5211 = vpop.f32.mrf.mxu0
    %v5212 = vpop.f32.mrf.mxu0
    %v5213 = vadd.f32 0.0, %v5212
    %v5214 = vpop.f32.mrf.mxu0
    %5215 = vmatprep.mubr.bf16.mxu0 %v4603
    %5216 = vmatmul.mubr.bf16.gmra.mxu0 %v4602
    %v5217 = vpop.f32.mrf.mxu0
    %v5218 = vadd.f32 0.0, %v5217
    %v5219 = vpop.f32.mrf.mxu0
    %v5220 = vpop.f32.mrf.mxu0
    %v5221 = vadd.f32 0.0, %v5220
    %v5222 = vpop.f32.mrf.mxu0
    %5223 = vmatprep.mubr.bf16.mxu0 %v4606
    %5224 = vmatmul.mubr.bf16.gmra.mxu0 %v4605
    %v5225 = vpop.f32.mrf.mxu0
    %v5226 = vadd.f32 0.0, %v5225
    %v5227 = vpop.f32.mrf.mxu0
    %v5228 = vpop.f32.mrf.mxu0
    %v5229 = vadd.f32 0.0, %v5228
    %v5230 = vpop.f32.mrf.mxu0
    %5231 = vmatprep.mubr.bf16.mxu0 %v4609
    %5232 = vmatmul.mubr.bf16.gmra.mxu0 %v4608
    %v5233 = vpop.f32.mrf.mxu0
    %v5234 = vadd.f32 0.0, %v5233
    %v5235 = vpop.f32.mrf.mxu0
    %v5236 = vpop.f32.mrf.mxu0
    %v5237 = vadd.f32 0.0, %v5236
    %v5238 = vpop.f32.mrf.mxu0
    %5239 = vmatprep.mubr.bf16.mxu0 %v4612
    %5240 = vmatmul.mubr.bf16.gmra.mxu0 %v4611
    %v5241 = vpop.f32.mrf.mxu0
    %v5242 = vadd.f32 0.0, %v5241
    %v5243 = vpop.f32.mrf.mxu0
    %v5244 = vpop.f32.mrf.mxu0
    %v5245 = vadd.f32 0.0, %v5244
    %v5246 = vpop.f32.mrf.mxu0
    %5247 = vmatprep.mubr.bf16.mxu0 %v4615
    %5248 = vmatmul.mubr.bf16.gmra.mxu0 %v4614
    %v5249 = vpop.f32.mrf.mxu0
    %v5250 = vadd.f32 0.0, %v5249
    %v5251 = vpop.f32.mrf.mxu0
    %v5252 = vpop.f32.mrf.mxu0
    %v5253 = vadd.f32 0.0, %v5252
    %v5254 = vpop.f32.mrf.mxu0
    %5255 = vmatprep.mubr.bf16.mxu0 %v4618
    %5256 = vmatmul.mubr.bf16.gmra.mxu0 %v4617
    %v5257 = vpop.f32.mrf.mxu0
    %v5258 = vadd.f32 0.0, %v5257
    %v5259 = vpop.f32.mrf.mxu0
    %v5260 = vpop.f32.mrf.mxu0
    %v5261 = vadd.f32 0.0, %v5260
    %v5262 = vpop.f32.mrf.mxu0
    %5263 = vmatprep.mubr.bf16.mxu0 %v1207
    %5264 = vmatmul.mubr.bf16.gmra.mxu0 %v1206
    %v5265 = vpop.f32.mrf.mxu0
    %v5266 = vadd.f32 0.0, %v5265
    %v5267 = vpop.f32.mrf.mxu0
    %v5268 = vpop.f32.mrf.mxu0
    %v5269 = vadd.f32 0.0, %v5268
    %v5270 = vpop.f32.mrf.mxu0
    %5271 = vmatprep.mubr.bf16.mxu0 %v4624
    %5272 = vmatmul.mubr.bf16.gmra.mxu0 %v4623
    %v5273 = vpop.f32.mrf.mxu0
    %v5274 = vadd.f32 0.0, %v5273
    %v5275 = vpop.f32.mrf.mxu0
    %v5276 = vpop.f32.mrf.mxu0
    %v5277 = vadd.f32 0.0, %v5276
    %v5278 = vpop.f32.mrf.mxu0
    %5279 = vmatprep.mubr.bf16.mxu0 %v4627
    %5280 = vmatmul.mubr.bf16.gmra.mxu0 %v4626
    %v5281 = vpop.f32.mrf.mxu0
    %v5282 = vadd.f32 0.0, %v5281
    %v5283 = vpop.f32.mrf.mxu0
    %v5284 = vpop.f32.mrf.mxu0
    %v5285 = vadd.f32 0.0, %v5284
    %v5286 = vpop.f32.mrf.mxu0
    %5287 = vmatprep.mubr.bf16.mxu0 %v4630
    %5288 = vmatmul.mubr.bf16.gmra.mxu0 %v4629
    %v5289 = vpop.f32.mrf.mxu0
    %v5290 = vadd.f32 0.0, %v5289
    %v5291 = vpop.f32.mrf.mxu0
    %v5292 = vpop.f32.mrf.mxu0
    %v5293 = vadd.f32 0.0, %v5292
    %v5294 = vpop.f32.mrf.mxu0
    %5295 = vmatprep.mubr.bf16.mxu0 %v4633
    %5296 = vmatmul.mubr.bf16.gmra.mxu0 %v4632
    %v5297 = vpop.f32.mrf.mxu0
    %v5298 = vadd.f32 0.0, %v5297
    %v5299 = vpop.f32.mrf.mxu0
    %v5300 = vpop.f32.mrf.mxu0
    %v5301 = vadd.f32 0.0, %v5300
    %v5302 = vpop.f32.mrf.mxu0
    %5303 = vmatprep.mubr.bf16.mxu0 %v4636
    %5304 = vmatmul.mubr.bf16.gmra.mxu0 %v4635
    %v5305 = vpop.f32.mrf.mxu0
    %v5306 = vadd.f32 0.0, %v5305
    %v5307 = vpop.f32.mrf.mxu0
    %v5308 = vpop.f32.mrf.mxu0
    %v5309 = vadd.f32 0.0, %v5308
    %v5310 = vpop.f32.mrf.mxu0
    %5311 = vmatprep.mubr.bf16.mxu0 %v4639
    %5312 = vmatmul.mubr.bf16.gmra.mxu0 %v4638
    %v5313 = vpop.f32.mrf.mxu0
    %v5314 = vadd.f32 0.0, %v5313
    %v5315 = vpop.f32.mrf.mxu0
    %v5316 = vpop.f32.mrf.mxu0
    %v5317 = vadd.f32 0.0, %v5316
    %v5318 = vpop.f32.mrf.mxu0
    %5319 = vmatprep.mubr.bf16.mxu0 %v4642
    %5320 = vmatmul.mubr.bf16.gmra.mxu0 %v4641
    %v5321 = vpop.f32.mrf.mxu0
    %v5322 = vadd.f32 0.0, %v5321
    %v5323 = vpop.f32.mrf.mxu0
    %v5324 = vpop.f32.mrf.mxu0
    %v5325 = vadd.f32 0.0, %v5324
    %v5326 = vpop.f32.mrf.mxu0
    %5327 = vmatprep.mubr.bf16.mxu0 %v4645
    %5328 = vmatmul.mubr.bf16.gmra.mxu0 %v4644
    %v5329 = vpop.f32.mrf.mxu0
    %v5330 = vadd.f32 0.0, %v5329
    %v5331 = vpop.f32.mrf.mxu0
    %v5332 = vpop.f32.mrf.mxu0
    %v5333 = vadd.f32 0.0, %v5332
    %v5334 = vpop.f32.mrf.mxu0
    %5335 = vmatprep.mubr.bf16.mxu0 %v4648
    %5336 = vmatmul.mubr.bf16.gmra.mxu0 %v4647
    %v5337 = vpop.f32.mrf.mxu0
    %v5338 = vadd.f32 0.0, %v5337
    %v5339 = vpop.f32.mrf.mxu0
    %v5340 = vpop.f32.mrf.mxu0
    %v5341 = vadd.f32 0.0, %v5340
    %v5342 = vpop.f32.mrf.mxu0
    %5343 = vmatprep.mubr.bf16.mxu0 %v4651
    %5344 = vmatmul.mubr.bf16.gmra.mxu0 %v4650
    %v5345 = vpop.f32.mrf.mxu0
    %v5346 = vadd.f32 0.0, %v5345
    %v5347 = vpop.f32.mrf.mxu0
    %v5348 = vpop.f32.mrf.mxu0
    %v5349 = vadd.f32 0.0, %v5348
    %v5350 = vpop.f32.mrf.mxu0
    %5351 = vmatprep.mubr.bf16.mxu0 %v4654
    %5352 = vmatmul.mubr.bf16.gmra.mxu0 %v4653
    %v5353 = vpop.f32.mrf.mxu0
    %v5354 = vadd.f32 0.0, %v5353
    %v5355 = vpop.f32.mrf.mxu0
    %v5356 = vpop.f32.mrf.mxu0
    %v5357 = vadd.f32 0.0, %v5356
    %v5358 = vpop.f32.mrf.mxu0
    %5359 = vmatprep.mubr.bf16.mxu0 %v4657
    %5360 = vmatmul.mubr.bf16.gmra.mxu0 %v4656
    %v5361 = vpop.f32.mrf.mxu0
    %v5362 = vadd.f32 0.0, %v5361
    %v5363 = vpop.f32.mrf.mxu0
    %v5364 = vpop.f32.mrf.mxu0
    %v5365 = vadd.f32 0.0, %v5364
    %v5366 = vpop.f32.mrf.mxu0
    %5367 = vmatprep.mubr.bf16.mxu0 %v4660
    %5368 = vmatmul.mubr.bf16.gmra.mxu0 %v4659
    %v5369 = vpop.f32.mrf.mxu0
    %v5370 = vadd.f32 0.0, %v5369
    %v5371 = vpop.f32.mrf.mxu0
    %v5372 = vpop.f32.mrf.mxu0
    %v5373 = vadd.f32 0.0, %v5372
    %v5374 = vpop.f32.mrf.mxu0
    %5375 = vmatprep.mubr.bf16.mxu0 %v4663
    %5376 = vmatmul.mubr.bf16.gmra.mxu0 %v4662
    %v5377 = vpop.f32.mrf.mxu0
    %v5378 = vadd.f32 0.0, %v5377
    %v5379 = vpop.f32.mrf.mxu0
    %v5380 = vpop.f32.mrf.mxu0
    %v5381 = vadd.f32 0.0, %v5380
    %v5382 = vpop.f32.mrf.mxu0
    %5383 = vmatprep.mubr.bf16.mxu0 %v4666
    %5384 = vmatmul.mubr.bf16.gmra.mxu0 %v4665
    %v5385 = vpop.f32.mrf.mxu0
    %v5386 = vadd.f32 0.0, %v5385
    %v5387 = vpop.f32.mrf.mxu0
    %v5388 = vpop.f32.mrf.mxu0
    %v5389 = vadd.f32 0.0, %v5388
    %v5390 = vpop.f32.mrf.mxu0
    %5391 = vdwg.mxu0
    %5392 = vmatprep.subr.bf16.mxu0 0
    %5393 = vmatpush1.bf16.msra.mxu0 %v4982
    %5394 = vmatprep.subr.bf16.mxu0 0
    %5395 = vmatpush1.bf16.msra.mxu0 %v4981
    %5396 = vmatprep.subr.bf16.mxu0 0
    %5397 = vmatpush1.bf16.msra.mxu0 %v4980
    %5398 = vmatprep.subr.bf16.mxu0 0
    %5399 = vmatpush1.bf16.msra.mxu0 %v4979
    %5400 = vmatprep.subr.bf16.mxu0 0
    %5401 = vmatpush1.bf16.msra.mxu0 %v4978
    %5402 = vmatprep.subr.bf16.mxu0 0
    %5403 = vmatpush1.bf16.msra.mxu0 %v4977
    %5404 = vmatprep.subr.bf16.mxu0 0
    %5405 = vmatpush1.bf16.msra.mxu0 %v4976
    %5406 = vmatprep.subr.bf16.mxu0 0
    %5407 = vmatpush1.bf16.msra.mxu0 %v4975
    %5408 = vmatprep.subr.bf16.mxu0 0
    %5409 = vmatpush2.bf16.msra.mxu0 %v4990
    %5410 = vmatprep.subr.bf16.mxu0 0
    %5411 = vmatpush2.bf16.msra.mxu0 %v4989
    %5412 = vmatprep.subr.bf16.mxu0 0
    %5413 = vmatpush2.bf16.msra.mxu0 %v4988
    %5414 = vmatprep.subr.bf16.mxu0 0
    %5415 = vmatpush2.bf16.msra.mxu0 %v4987
    %5416 = vmatprep.subr.bf16.mxu0 0
    %5417 = vmatpush2.bf16.msra.mxu0 %v4986
    %5418 = vmatprep.subr.bf16.mxu0 0
    %5419 = vmatpush2.bf16.msra.mxu0 %v4985
    %5420 = vmatprep.subr.bf16.mxu0 0
    %5421 = vmatpush2.bf16.msra.mxu0 %v4984
    %5422 = vmatprep.subr.bf16.mxu0 0
    %5423 = vmatpush2.bf16.msra.mxu0 %v4983
    %5424 = vmatprep.mubr.bf16.mxu0 %v4575
    %5425 = vmatmul.mubr.bf16.gmra.mxu0 %v1208
    %v5426 = vpop.f32.mrf.mxu0
    %v5427 = vadd.f32 %v5138, %v5426
    %v5428 = vpop.f32.mrf.mxu0
    %v5429 = vpop.f32.mrf.mxu0
    %v5430 = vadd.f32 %v5141, %v5429
    %v5431 = vpop.f32.mrf.mxu0
    %5432 = vmatprep.mubr.bf16.mxu0 %v4578
    %5433 = vmatmul.mubr.bf16.gmra.mxu0 %v4577
    %v5434 = vpop.f32.mrf.mxu0
    %v5435 = vadd.f32 %v5146, %v5434
    %v5436 = vpop.f32.mrf.mxu0
    %v5437 = vpop.f32.mrf.mxu0
    %v5438 = vadd.f32 %v5149, %v5437
    %v5439 = vpop.f32.mrf.mxu0
    %5440 = vmatprep.mubr.bf16.mxu0 %v4581
    %5441 = vmatmul.mubr.bf16.gmra.mxu0 %v4580
    %v5442 = vpop.f32.mrf.mxu0
    %v5443 = vadd.f32 %v5154, %v5442
    %v5444 = vpop.f32.mrf.mxu0
    %v5445 = vpop.f32.mrf.mxu0
    %v5446 = vadd.f32 %v5157, %v5445
    %v5447 = vpop.f32.mrf.mxu0
    %5448 = vmatprep.mubr.bf16.mxu0 %v4584
    %5449 = vmatmul.mubr.bf16.gmra.mxu0 %v4583
    %v5450 = vpop.f32.mrf.mxu0
    %v5451 = vadd.f32 %v5162, %v5450
    %v5452 = vpop.f32.mrf.mxu0
    %v5453 = vpop.f32.mrf.mxu0
    %v5454 = vadd.f32 %v5165, %v5453
    %v5455 = vpop.f32.mrf.mxu0
    %5456 = vmatprep.mubr.bf16.mxu0 %v4587
    %5457 = vmatmul.mubr.bf16.gmra.mxu0 %v4586
    %v5458 = vpop.f32.mrf.mxu0
    %v5459 = vadd.f32 %v5170, %v5458
    %v5460 = vpop.f32.mrf.mxu0
    %v5461 = vpop.f32.mrf.mxu0
    %v5462 = vadd.f32 %v5173, %v5461
    %v5463 = vpop.f32.mrf.mxu0
    %5464 = vmatprep.mubr.bf16.mxu0 %v4590
    %5465 = vmatmul.mubr.bf16.gmra.mxu0 %v4589
    %v5466 = vpop.f32.mrf.mxu0
    %v5467 = vadd.f32 %v5178, %v5466
    %v5468 = vpop.f32.mrf.mxu0
    %v5469 = vpop.f32.mrf.mxu0
    %v5470 = vadd.f32 %v5181, %v5469
    %v5471 = vpop.f32.mrf.mxu0
    %5472 = vmatprep.mubr.bf16.mxu0 %v4593
    %5473 = vmatmul.mubr.bf16.gmra.mxu0 %v4592
    %v5474 = vpop.f32.mrf.mxu0
    %v5475 = vadd.f32 %v5186, %v5474
    %v5476 = vpop.f32.mrf.mxu0
    %v5477 = vpop.f32.mrf.mxu0
    %v5478 = vadd.f32 %v5189, %v5477
    %v5479 = vpop.f32.mrf.mxu0
    %5480 = vmatprep.mubr.bf16.mxu0 %v4596
    %5481 = vmatmul.mubr.bf16.gmra.mxu0 %v4595
    %v5482 = vpop.f32.mrf.mxu0
    %v5483 = vadd.f32 %v5194, %v5482
    %v5484 = vpop.f32.mrf.mxu0
    %v5485 = vpop.f32.mrf.mxu0
    %v5486 = vadd.f32 %v5197, %v5485
    %v5487 = vpop.f32.mrf.mxu0
    %5488 = vmatprep.mubr.bf16.mxu0 %v4599
    %5489 = vmatmul.mubr.bf16.gmra.mxu0 %v4598
    %v5490 = vpop.f32.mrf.mxu0
    %v5491 = vadd.f32 %v5202, %v5490
    %v5492 = vpop.f32.mrf.mxu0
    %v5493 = vpop.f32.mrf.mxu0
    %v5494 = vadd.f32 %v5205, %v5493
    %v5495 = vpop.f32.mrf.mxu0
    %5496 = vmatprep.mubr.bf16.mxu0 %v4602
    %5497 = vmatmul.mubr.bf16.gmra.mxu0 %v4601
    %v5498 = vpop.f32.mrf.mxu0
    %v5499 = vadd.f32 %v5210, %v5498
    %v5500 = vpop.f32.mrf.mxu0
    %v5501 = vpop.f32.mrf.mxu0
    %v5502 = vadd.f32 %v5213, %v5501
    %v5503 = vpop.f32.mrf.mxu0
    %5504 = vmatprep.mubr.bf16.mxu0 %v4605
    %5505 = vmatmul.mubr.bf16.gmra.mxu0 %v4604
    %v5506 = vpop.f32.mrf.mxu0
    %v5507 = vadd.f32 %v5218, %v5506
    %v5508 = vpop.f32.mrf.mxu0
    %v5509 = vpop.f32.mrf.mxu0
    %v5510 = vadd.f32 %v5221, %v5509
    %v5511 = vpop.f32.mrf.mxu0
    %5512 = vmatprep.mubr.bf16.mxu0 %v4608
    %5513 = vmatmul.mubr.bf16.gmra.mxu0 %v4607
    %v5514 = vpop.f32.mrf.mxu0
    %v5515 = vadd.f32 %v5226, %v5514
    %v5516 = vpop.f32.mrf.mxu0
    %v5517 = vpop.f32.mrf.mxu0
    %v5518 = vadd.f32 %v5229, %v5517
    %v5519 = vpop.f32.mrf.mxu0
    %5520 = vmatprep.mubr.bf16.mxu0 %v4611
    %5521 = vmatmul.mubr.bf16.gmra.mxu0 %v4610
    %v5522 = vpop.f32.mrf.mxu0
    %v5523 = vadd.f32 %v5234, %v5522
    %v5524 = vpop.f32.mrf.mxu0
    %v5525 = vpop.f32.mrf.mxu0
    %v5526 = vadd.f32 %v5237, %v5525
    %v5527 = vpop.f32.mrf.mxu0
    %5528 = vmatprep.mubr.bf16.mxu0 %v4614
    %5529 = vmatmul.mubr.bf16.gmra.mxu0 %v4613
    %v5530 = vpop.f32.mrf.mxu0
    %v5531 = vadd.f32 %v5242, %v5530
    %v5532 = vpop.f32.mrf.mxu0
    %v5533 = vpop.f32.mrf.mxu0
    %v5534 = vadd.f32 %v5245, %v5533
    %v5535 = vpop.f32.mrf.mxu0
    %5536 = vmatprep.mubr.bf16.mxu0 %v4617
    %5537 = vmatmul.mubr.bf16.gmra.mxu0 %v4616
    %v5538 = vpop.f32.mrf.mxu0
    %v5539 = vadd.f32 %v5250, %v5538
    %v5540 = vpop.f32.mrf.mxu0
    %v5541 = vpop.f32.mrf.mxu0
    %v5542 = vadd.f32 %v5253, %v5541
    %v5543 = vpop.f32.mrf.mxu0
    %5544 = vmatprep.mubr.bf16.mxu0 %v4620
    %5545 = vmatmul.mubr.bf16.gmra.mxu0 %v4619
    %v5546 = vpop.f32.mrf.mxu0
    %v5547 = vadd.f32 %v5258, %v5546
    %v5548 = vpop.f32.mrf.mxu0
    %v5549 = vpop.f32.mrf.mxu0
    %v5550 = vadd.f32 %v5261, %v5549
    %v5551 = vpop.f32.mrf.mxu0
    %5552 = vmatprep.mubr.bf16.mxu0 %v4623
    %5553 = vmatmul.mubr.bf16.gmra.mxu0 %v1208
    %v5554 = vpop.f32.mrf.mxu0
    %v5555 = vadd.f32 %v5266, %v5554
    %v5556 = vpop.f32.mrf.mxu0
    %v5557 = vpop.f32.mrf.mxu0
    %v5558 = vadd.f32 %v5269, %v5557
    %v5559 = vpop.f32.mrf.mxu0
    %5560 = vmatprep.mubr.bf16.mxu0 %v4626
    %5561 = vmatmul.mubr.bf16.gmra.mxu0 %v4625
    %v5562 = vpop.f32.mrf.mxu0
    %v5563 = vadd.f32 %v5274, %v5562
    %v5564 = vpop.f32.mrf.mxu0
    %v5565 = vpop.f32.mrf.mxu0
    %v5566 = vadd.f32 %v5277, %v5565
    %v5567 = vpop.f32.mrf.mxu0
    %5568 = vmatprep.mubr.bf16.mxu0 %v4629
    %5569 = vmatmul.mubr.bf16.gmra.mxu0 %v4628
    %v5570 = vpop.f32.mrf.mxu0
    %v5571 = vadd.f32 %v5282, %v5570
    %v5572 = vpop.f32.mrf.mxu0
    %v5573 = vpop.f32.mrf.mxu0
    %v5574 = vadd.f32 %v5285, %v5573
    %v5575 = vpop.f32.mrf.mxu0
    %5576 = vmatprep.mubr.bf16.mxu0 %v4632
    %5577 = vmatmul.mubr.bf16.gmra.mxu0 %v4631
    %v5578 = vpop.f32.mrf.mxu0
    %v5579 = vadd.f32 %v5290, %v5578
    %v5580 = vpop.f32.mrf.mxu0
    %v5581 = vpop.f32.mrf.mxu0
    %v5582 = vadd.f32 %v5293, %v5581
    %v5583 = vpop.f32.mrf.mxu0
    %5584 = vmatprep.mubr.bf16.mxu0 %v4635
    %5585 = vmatmul.mubr.bf16.gmra.mxu0 %v4634
    %v5586 = vpop.f32.mrf.mxu0
    %v5587 = vadd.f32 %v5298, %v5586
    %v5588 = vpop.f32.mrf.mxu0
    %v5589 = vpop.f32.mrf.mxu0
    %v5590 = vadd.f32 %v5301, %v5589
    %v5591 = vpop.f32.mrf.mxu0
    %5592 = vmatprep.mubr.bf16.mxu0 %v4638
    %5593 = vmatmul.mubr.bf16.gmra.mxu0 %v4637
    %v5594 = vpop.f32.mrf.mxu0
    %v5595 = vadd.f32 %v5306, %v5594
    %v5596 = vpop.f32.mrf.mxu0
    %v5597 = vpop.f32.mrf.mxu0
    %v5598 = vadd.f32 %v5309, %v5597
    %v5599 = vpop.f32.mrf.mxu0
    %5600 = vmatprep.mubr.bf16.mxu0 %v4641
    %5601 = vmatmul.mubr.bf16.gmra.mxu0 %v4640
    %v5602 = vpop.f32.mrf.mxu0
    %v5603 = vadd.f32 %v5314, %v5602
    %v5604 = vpop.f32.mrf.mxu0
    %v5605 = vpop.f32.mrf.mxu0
    %v5606 = vadd.f32 %v5317, %v5605
    %v5607 = vpop.f32.mrf.mxu0
    %5608 = vmatprep.mubr.bf16.mxu0 %v4644
    %5609 = vmatmul.mubr.bf16.gmra.mxu0 %v4643
    %v5610 = vpop.f32.mrf.mxu0
    %v5611 = vadd.f32 %v5322, %v5610
    %v5612 = vpop.f32.mrf.mxu0
    %v5613 = vpop.f32.mrf.mxu0
    %v5614 = vadd.f32 %v5325, %v5613
    %v5615 = vpop.f32.mrf.mxu0
    %5616 = vmatprep.mubr.bf16.mxu0 %v4647
    %5617 = vmatmul.mubr.bf16.gmra.mxu0 %v4646
    %v5618 = vpop.f32.mrf.mxu0
    %v5619 = vadd.f32 %v5330, %v5618
    %v5620 = vpop.f32.mrf.mxu0
    %v5621 = vpop.f32.mrf.mxu0
    %v5622 = vadd.f32 %v5333, %v5621
    %v5623 = vpop.f32.mrf.mxu0
    %5624 = vmatprep.mubr.bf16.mxu0 %v4650
    %5625 = vmatmul.mubr.bf16.gmra.mxu0 %v4649
    %v5626 = vpop.f32.mrf.mxu0
    %v5627 = vadd.f32 %v5338, %v5626
    %v5628 = vpop.f32.mrf.mxu0
    %v5629 = vpop.f32.mrf.mxu0
    %v5630 = vadd.f32 %v5341, %v5629
    %v5631 = vpop.f32.mrf.mxu0
    %5632 = vmatprep.mubr.bf16.mxu0 %v4653
    %5633 = vmatmul.mubr.bf16.gmra.mxu0 %v4652
    %v5634 = vpop.f32.mrf.mxu0
    %v5635 = vadd.f32 %v5346, %v5634
    %v5636 = vpop.f32.mrf.mxu0
    %v5637 = vpop.f32.mrf.mxu0
    %v5638 = vadd.f32 %v5349, %v5637
    %v5639 = vpop.f32.mrf.mxu0
    %5640 = vmatprep.mubr.bf16.mxu0 %v4656
    %5641 = vmatmul.mubr.bf16.gmra.mxu0 %v4655
    %v5642 = vpop.f32.mrf.mxu0
    %v5643 = vadd.f32 %v5354, %v5642
    %v5644 = vpop.f32.mrf.mxu0
    %v5645 = vpop.f32.mrf.mxu0
    %v5646 = vadd.f32 %v5357, %v5645
    %v5647 = vpop.f32.mrf.mxu0
    %5648 = vmatprep.mubr.bf16.mxu0 %v4659
    %5649 = vmatmul.mubr.bf16.gmra.mxu0 %v4658
    %v5650 = vpop.f32.mrf.mxu0
    %v5651 = vadd.f32 %v5362, %v5650
    %v5652 = vpop.f32.mrf.mxu0
    %v5653 = vpop.f32.mrf.mxu0
    %v5654 = vadd.f32 %v5365, %v5653
    %v5655 = vpop.f32.mrf.mxu0
    %5656 = vmatprep.mubr.bf16.mxu0 %v4662
    %5657 = vmatmul.mubr.bf16.gmra.mxu0 %v4661
    %v5658 = vpop.f32.mrf.mxu0
    %v5659 = vadd.f32 %v5370, %v5658
    %v5660 = vpop.f32.mrf.mxu0
    %v5661 = vpop.f32.mrf.mxu0
    %v5662 = vadd.f32 %v5373, %v5661
    %v5663 = vpop.f32.mrf.mxu0
    %5664 = vmatprep.mubr.bf16.mxu0 %v4665
    %5665 = vmatmul.mubr.bf16.gmra.mxu0 %v4664
    %v5666 = vpop.f32.mrf.mxu0
    %v5667 = vadd.f32 %v5378, %v5666
    %v5668 = vpop.f32.mrf.mxu0
    %v5669 = vpop.f32.mrf.mxu0
    %v5670 = vadd.f32 %v5381, %v5669
    %v5671 = vpop.f32.mrf.mxu0
    %5672 = vmatprep.mubr.bf16.mxu0 %v4668
    %5673 = vmatmul.mubr.bf16.gmra.mxu0 %v4667
    %v5674 = vpop.f32.mrf.mxu0
    %v5675 = vadd.f32 %v5386, %v5674
    %v5676 = vpop.f32.mrf.mxu0
    %v5677 = vpop.f32.mrf.mxu0
    %v5678 = vadd.f32 %v5389, %v5677
    %v5679 = vpop.f32.mrf.mxu0
    %5680 = vdwg.mxu0
    %5681 = vmatprep.subr.bf16.mxu0 0
    %5682 = vmatpush1.bf16.msra.mxu0 %v4998
    %5683 = vmatprep.subr.bf16.mxu0 0
    %5684 = vmatpush1.bf16.msra.mxu0 %v4997
    %5685 = vmatprep.subr.bf16.mxu0 0
    %5686 = vmatpush1.bf16.msra.mxu0 %v4996
    %5687 = vmatprep.subr.bf16.mxu0 0
    %5688 = vmatpush1.bf16.msra.mxu0 %v4995
    %5689 = vmatprep.subr.bf16.mxu0 0
    %5690 = vmatpush1.bf16.msra.mxu0 %v4994
    %5691 = vmatprep.subr.bf16.mxu0 0
    %5692 = vmatpush1.bf16.msra.mxu0 %v4993
    %5693 = vmatprep.subr.bf16.mxu0 0
    %5694 = vmatpush1.bf16.msra.mxu0 %v4992
    %5695 = vmatprep.subr.bf16.mxu0 0
    %5696 = vmatpush1.bf16.msra.mxu0 %v4991
    %5697 = vmatprep.subr.bf16.mxu0 0
    %5698 = vmatpush2.bf16.msra.mxu0 %v5006
    %5699 = vmatprep.subr.bf16.mxu0 0
    %5700 = vmatpush2.bf16.msra.mxu0 %v5005
    %5701 = vmatprep.subr.bf16.mxu0 0
    %5702 = vmatpush2.bf16.msra.mxu0 %v5004
    %5703 = vmatprep.subr.bf16.mxu0 0
    %5704 = vmatpush2.bf16.msra.mxu0 %v5003
    %5705 = vmatprep.subr.bf16.mxu0 0
    %5706 = vmatpush2.bf16.msra.mxu0 %v5002
    %5707 = vmatprep.subr.bf16.mxu0 0
    %5708 = vmatpush2.bf16.msra.mxu0 %v5001
    %5709 = vmatprep.subr.bf16.mxu0 0
    %5710 = vmatpush2.bf16.msra.mxu0 %v5000
    %5711 = vmatprep.subr.bf16.mxu0 0
    %5712 = vmatpush2.bf16.msra.mxu0 %v4999
    %5713 = vmatprep.mubr.bf16.mxu0 %v4577
    %5714 = vmatmul.mubr.bf16.gmra.mxu0 %v4576
    %v5715 = vpop.f32.mrf.mxu0
    %v5716 = vadd.f32 %v5427, %v5715
    %v5717 = vpop.f32.mrf.mxu0
    %v5718 = vpop.f32.mrf.mxu0
    %v5719 = vadd.f32 %v5430, %v5718
    %v5720 = vpop.f32.mrf.mxu0
    %5721 = vmatprep.mubr.bf16.mxu0 %v4580
    %5722 = vmatmul.mubr.bf16.gmra.mxu0 %v4579
    %v5723 = vpop.f32.mrf.mxu0
    %v5724 = vadd.f32 %v5435, %v5723
    %v5725 = vpop.f32.mrf.mxu0
    %v5726 = vpop.f32.mrf.mxu0
    %v5727 = vadd.f32 %v5438, %v5726
    %v5728 = vpop.f32.mrf.mxu0
    %5729 = vmatprep.mubr.bf16.mxu0 %v4583
    %5730 = vmatmul.mubr.bf16.gmra.mxu0 %v4582
    %v5731 = vpop.f32.mrf.mxu0
    %v5732 = vadd.f32 %v5443, %v5731
    %v5733 = vpop.f32.mrf.mxu0
    %v5734 = vpop.f32.mrf.mxu0
    %v5735 = vadd.f32 %v5446, %v5734
    %v5736 = vpop.f32.mrf.mxu0
    %5737 = vmatprep.mubr.bf16.mxu0 %v4586
    %5738 = vmatmul.mubr.bf16.gmra.mxu0 %v4585
    %v5739 = vpop.f32.mrf.mxu0
    %v5740 = vadd.f32 %v5451, %v5739
    %v5741 = vpop.f32.mrf.mxu0
    %v5742 = vpop.f32.mrf.mxu0
    %v5743 = vadd.f32 %v5454, %v5742
    %v5744 = vpop.f32.mrf.mxu0
    %5745 = vmatprep.mubr.bf16.mxu0 %v4589
    %5746 = vmatmul.mubr.bf16.gmra.mxu0 %v4588
    %v5747 = vpop.f32.mrf.mxu0
    %v5748 = vadd.f32 %v5459, %v5747
    %v5749 = vpop.f32.mrf.mxu0
    %v5750 = vpop.f32.mrf.mxu0
    %v5751 = vadd.f32 %v5462, %v5750
    %v5752 = vpop.f32.mrf.mxu0
    %5753 = vmatprep.mubr.bf16.mxu0 %v4592
    %5754 = vmatmul.mubr.bf16.gmra.mxu0 %v4591
    %v5755 = vpop.f32.mrf.mxu0
    %v5756 = vadd.f32 %v5467, %v5755
    %v5757 = vpop.f32.mrf.mxu0
    %v5758 = vpop.f32.mrf.mxu0
    %v5759 = vadd.f32 %v5470, %v5758
    %v5760 = vpop.f32.mrf.mxu0
    %5761 = vmatprep.mubr.bf16.mxu0 %v4595
    %5762 = vmatmul.mubr.bf16.gmra.mxu0 %v4594
    %v5763 = vpop.f32.mrf.mxu0
    %v5764 = vadd.f32 %v5475, %v5763
    %v5765 = vpop.f32.mrf.mxu0
    %v5766 = vpop.f32.mrf.mxu0
    %v5767 = vadd.f32 %v5478, %v5766
    %v5768 = vpop.f32.mrf.mxu0
    %5769 = vmatprep.mubr.bf16.mxu0 %v4598
    %5770 = vmatmul.mubr.bf16.gmra.mxu0 %v4597
    %v5771 = vpop.f32.mrf.mxu0
    %v5772 = vadd.f32 %v5483, %v5771
    %v5773 = vpop.f32.mrf.mxu0
    %v5774 = vpop.f32.mrf.mxu0
    %v5775 = vadd.f32 %v5486, %v5774
    %v5776 = vpop.f32.mrf.mxu0
    %5777 = vmatprep.mubr.bf16.mxu0 %v4601
    %5778 = vmatmul.mubr.bf16.gmra.mxu0 %v4600
    %v5779 = vpop.f32.mrf.mxu0
    %v5780 = vadd.f32 %v5491, %v5779
    %v5781 = vpop.f32.mrf.mxu0
    %v5782 = vpop.f32.mrf.mxu0
    %v5783 = vadd.f32 %v5494, %v5782
    %v5784 = vpop.f32.mrf.mxu0
    %5785 = vmatprep.mubr.bf16.mxu0 %v4604
    %5786 = vmatmul.mubr.bf16.gmra.mxu0 %v4603
    %v5787 = vpop.f32.mrf.mxu0
    %v5788 = vadd.f32 %v5499, %v5787
    %v5789 = vpop.f32.mrf.mxu0
    %v5790 = vpop.f32.mrf.mxu0
    %v5791 = vadd.f32 %v5502, %v5790
    %v5792 = vpop.f32.mrf.mxu0
    %5793 = vmatprep.mubr.bf16.mxu0 %v4607
    %5794 = vmatmul.mubr.bf16.gmra.mxu0 %v4606
    %v5795 = vpop.f32.mrf.mxu0
    %v5796 = vadd.f32 %v5507, %v5795
    %v5797 = vpop.f32.mrf.mxu0
    %v5798 = vpop.f32.mrf.mxu0
    %v5799 = vadd.f32 %v5510, %v5798
    %v5800 = vpop.f32.mrf.mxu0
    %5801 = vmatprep.mubr.bf16.mxu0 %v4610
    %5802 = vmatmul.mubr.bf16.gmra.mxu0 %v4609
    %v5803 = vpop.f32.mrf.mxu0
    %v5804 = vadd.f32 %v5515, %v5803
    %v5805 = vpop.f32.mrf.mxu0
    %v5806 = vpop.f32.mrf.mxu0
    %v5807 = vadd.f32 %v5518, %v5806
    %v5808 = vpop.f32.mrf.mxu0
    %5809 = vmatprep.mubr.bf16.mxu0 %v4613
    %5810 = vmatmul.mubr.bf16.gmra.mxu0 %v4612
    %v5811 = vpop.f32.mrf.mxu0
    %v5812 = vadd.f32 %v5523, %v5811
    %v5813 = vpop.f32.mrf.mxu0
    %v5814 = vpop.f32.mrf.mxu0
    %v5815 = vadd.f32 %v5526, %v5814
    %v5816 = vpop.f32.mrf.mxu0
    %5817 = vmatprep.mubr.bf16.mxu0 %v4616
    %5818 = vmatmul.mubr.bf16.gmra.mxu0 %v4615
    %v5819 = vpop.f32.mrf.mxu0
    %v5820 = vadd.f32 %v5531, %v5819
    %v5821 = vpop.f32.mrf.mxu0
    %v5822 = vpop.f32.mrf.mxu0
    %v5823 = vadd.f32 %v5534, %v5822
    %v5824 = vpop.f32.mrf.mxu0
    %5825 = vmatprep.mubr.bf16.mxu0 %v4619
    %5826 = vmatmul.mubr.bf16.gmra.mxu0 %v4618
    %v5827 = vpop.f32.mrf.mxu0
    %v5828 = vadd.f32 %v5539, %v5827
    %v5829 = vpop.f32.mrf.mxu0
    %v5830 = vpop.f32.mrf.mxu0
    %v5831 = vadd.f32 %v5542, %v5830
    %v5832 = vpop.f32.mrf.mxu0
    %5833 = vmatprep.mubr.bf16.mxu0 %v4622
    %5834 = vmatmul.mubr.bf16.gmra.mxu0 %v4621
    %v5835 = vpop.f32.mrf.mxu0
    %v5836 = vadd.f32 %v5547, %v5835
    %v5837 = vpop.f32.mrf.mxu0
    %v5838 = vpop.f32.mrf.mxu0
    %v5839 = vadd.f32 %v5550, %v5838
    %v5840 = vpop.f32.mrf.mxu0
    %5841 = vmatprep.mubr.bf16.mxu0 %v4625
    %5842 = vmatmul.mubr.bf16.gmra.mxu0 %v4624
    %v5843 = vpop.f32.mrf.mxu0
    %v5844 = vadd.f32 %v5555, %v5843
    %v5845 = vpop.f32.mrf.mxu0
    %v5846 = vpop.f32.mrf.mxu0
    %v5847 = vadd.f32 %v5558, %v5846
    %v5848 = vpop.f32.mrf.mxu0
    %5849 = vmatprep.mubr.bf16.mxu0 %v4628
    %5850 = vmatmul.mubr.bf16.gmra.mxu0 %v4627
    %v5851 = vpop.f32.mrf.mxu0
    %v5852 = vadd.f32 %v5563, %v5851
    %v5853 = vpop.f32.mrf.mxu0
    %v5854 = vpop.f32.mrf.mxu0
    %v5855 = vadd.f32 %v5566, %v5854
    %v5856 = vpop.f32.mrf.mxu0
    %5857 = vmatprep.mubr.bf16.mxu0 %v4631
    %5858 = vmatmul.mubr.bf16.gmra.mxu0 %v4630
    %v5859 = vpop.f32.mrf.mxu0
    %v5860 = vadd.f32 %v5571, %v5859
    %v5861 = vpop.f32.mrf.mxu0
    %v5862 = vpop.f32.mrf.mxu0
    %v5863 = vadd.f32 %v5574, %v5862
    %v5864 = vpop.f32.mrf.mxu0
    %5865 = vmatprep.mubr.bf16.mxu0 %v4634
    %5866 = vmatmul.mubr.bf16.gmra.mxu0 %v4633
    %v5867 = vpop.f32.mrf.mxu0
    %v5868 = vadd.f32 %v5579, %v5867
    %v5869 = vpop.f32.mrf.mxu0
    %v5870 = vpop.f32.mrf.mxu0
    %v5871 = vadd.f32 %v5582, %v5870
    %v5872 = vpop.f32.mrf.mxu0
    %5873 = vmatprep.mubr.bf16.mxu0 %v4637
    %5874 = vmatmul.mubr.bf16.gmra.mxu0 %v4636
    %v5875 = vpop.f32.mrf.mxu0
    %v5876 = vadd.f32 %v5587, %v5875
    %v5877 = vpop.f32.mrf.mxu0
    %v5878 = vpop.f32.mrf.mxu0
    %v5879 = vadd.f32 %v5590, %v5878
    %v5880 = vpop.f32.mrf.mxu0
    %5881 = vmatprep.mubr.bf16.mxu0 %v4640
    %5882 = vmatmul.mubr.bf16.gmra.mxu0 %v4639
    %v5883 = vpop.f32.mrf.mxu0
    %v5884 = vadd.f32 %v5595, %v5883
    %v5885 = vpop.f32.mrf.mxu0
    %v5886 = vpop.f32.mrf.mxu0
    %v5887 = vadd.f32 %v5598, %v5886
    %v5888 = vpop.f32.mrf.mxu0
    %5889 = vmatprep.mubr.bf16.mxu0 %v4643
    %5890 = vmatmul.mubr.bf16.gmra.mxu0 %v4642
    %v5891 = vpop.f32.mrf.mxu0
    %v5892 = vadd.f32 %v5603, %v5891
    %v5893 = vpop.f32.mrf.mxu0
    %v5894 = vpop.f32.mrf.mxu0
    %v5895 = vadd.f32 %v5606, %v5894
    %v5896 = vpop.f32.mrf.mxu0
    %5897 = vmatprep.mubr.bf16.mxu0 %v4646
    %5898 = vmatmul.mubr.bf16.gmra.mxu0 %v4645
    %v5899 = vpop.f32.mrf.mxu0
    %v5900 = vadd.f32 %v5611, %v5899
    %v5901 = vpop.f32.mrf.mxu0
    %v5902 = vpop.f32.mrf.mxu0
    %v5903 = vadd.f32 %v5614, %v5902
    %v5904 = vpop.f32.mrf.mxu0
    %5905 = vmatprep.mubr.bf16.mxu0 %v4649
    %5906 = vmatmul.mubr.bf16.gmra.mxu0 %v4648
    %v5907 = vpop.f32.mrf.mxu0
    %v5908 = vadd.f32 %v5619, %v5907
    %v5909 = vpop.f32.mrf.mxu0
    %v5910 = vpop.f32.mrf.mxu0
    %v5911 = vadd.f32 %v5622, %v5910
    %v5912 = vpop.f32.mrf.mxu0
    %5913 = vmatprep.mubr.bf16.mxu0 %v4652
    %5914 = vmatmul.mubr.bf16.gmra.mxu0 %v4651
    %v5915 = vpop.f32.mrf.mxu0
    %v5916 = vadd.f32 %v5627, %v5915
    %v5917 = vpop.f32.mrf.mxu0
    %v5918 = vpop.f32.mrf.mxu0
    %v5919 = vadd.f32 %v5630, %v5918
    %v5920 = vpop.f32.mrf.mxu0
    %5921 = vmatprep.mubr.bf16.mxu0 %v4655
    %5922 = vmatmul.mubr.bf16.gmra.mxu0 %v4654
    %v5923 = vpop.f32.mrf.mxu0
    %v5924 = vadd.f32 %v5635, %v5923
    %v5925 = vpop.f32.mrf.mxu0
    %v5926 = vpop.f32.mrf.mxu0
    %v5927 = vadd.f32 %v5638, %v5926
    %v5928 = vpop.f32.mrf.mxu0
    %5929 = vmatprep.mubr.bf16.mxu0 %v4658
    %5930 = vmatmul.mubr.bf16.gmra.mxu0 %v4657
    %v5931 = vpop.f32.mrf.mxu0
    %v5932 = vadd.f32 %v5643, %v5931
    %v5933 = vpop.f32.mrf.mxu0
    %v5934 = vpop.f32.mrf.mxu0
    %v5935 = vadd.f32 %v5646, %v5934
    %v5936 = vpop.f32.mrf.mxu0
    %5937 = vmatprep.mubr.bf16.mxu0 %v4661
    %5938 = vmatmul.mubr.bf16.gmra.mxu0 %v4660
    %v5939 = vpop.f32.mrf.mxu0
    %v5940 = vadd.f32 %v5651, %v5939
    %v5941 = vpop.f32.mrf.mxu0
    %v5942 = vpop.f32.mrf.mxu0
    %v5943 = vadd.f32 %v5654, %v5942
    %v5944 = vpop.f32.mrf.mxu0
    %5945 = vmatprep.mubr.bf16.mxu0 %v4664
    %5946 = vmatmul.mubr.bf16.gmra.mxu0 %v4663
    %v5947 = vpop.f32.mrf.mxu0
    %v5948 = vadd.f32 %v5659, %v5947
    %v5949 = vpop.f32.mrf.mxu0
    %v5950 = vpop.f32.mrf.mxu0
    %v5951 = vadd.f32 %v5662, %v5950
    %v5952 = vpop.f32.mrf.mxu0
    %5953 = vmatprep.mubr.bf16.mxu0 %v4667
    %5954 = vmatmul.mubr.bf16.gmra.mxu0 %v4666
    %v5955 = vpop.f32.mrf.mxu0
    %v5956 = vadd.f32 %v5667, %v5955
    %v5957 = vpop.f32.mrf.mxu0
    %v5958 = vpop.f32.mrf.mxu0
    %v5959 = vadd.f32 %v5670, %v5958
    %v5960 = vpop.f32.mrf.mxu0
    %5961 = vmatprep.mubr.bf16.mxu0 %v4670
    %5962 = vmatmul.mubr.bf16.gmra.mxu0 %v4669
    %v5963 = vpop.f32.mrf.mxu0
    %v5964 = vadd.f32 %v5675, %v5963
    %v5965 = vpop.f32.mrf.mxu0
    %v5966 = vpop.f32.mrf.mxu0
    %v5967 = vadd.f32 %v5678, %v5966
    %v5968 = vpop.f32.mrf.mxu0
    %5969 = vdwg.mxu0
    %5970 = vmatprep.subr.bf16.mxu0 0
    %5971 = vmatpush1.bf16.msra.mxu0 %v5014
    %5972 = vmatprep.subr.bf16.mxu0 0
    %5973 = vmatpush1.bf16.msra.mxu0 %v5013
    %5974 = vmatprep.subr.bf16.mxu0 0
    %5975 = vmatpush1.bf16.msra.mxu0 %v5012
    %5976 = vmatprep.subr.bf16.mxu0 0
    %5977 = vmatpush1.bf16.msra.mxu0 %v5011
    %5978 = vmatprep.subr.bf16.mxu0 0
    %5979 = vmatpush1.bf16.msra.mxu0 %v5010
    %5980 = vmatprep.subr.bf16.mxu0 0
    %5981 = vmatpush1.bf16.msra.mxu0 %v5009
    %5982 = vmatprep.subr.bf16.mxu0 0
    %5983 = vmatpush1.bf16.msra.mxu0 %v5008
    %5984 = vmatprep.subr.bf16.mxu0 0
    %5985 = vmatpush1.bf16.msra.mxu0 %v5007
    %5986 = vmatprep.subr.bf16.mxu0 0
    %5987 = vmatpush2.bf16.msra.mxu0 %v5022
    %5988 = vmatprep.subr.bf16.mxu0 0
    %5989 = vmatpush2.bf16.msra.mxu0 %v5021
    %5990 = vmatprep.subr.bf16.mxu0 0
    %5991 = vmatpush2.bf16.msra.mxu0 %v5020
    %5992 = vmatprep.subr.bf16.mxu0 0
    %5993 = vmatpush2.bf16.msra.mxu0 %v5019
    %5994 = vmatprep.subr.bf16.mxu0 0
    %5995 = vmatpush2.bf16.msra.mxu0 %v5018
    %5996 = vmatprep.subr.bf16.mxu0 0
    %5997 = vmatpush2.bf16.msra.mxu0 %v5017
    %5998 = vmatprep.subr.bf16.mxu0 0
    %5999 = vmatpush2.bf16.msra.mxu0 %v5016
    %6000 = vmatprep.subr.bf16.mxu0 0
    %6001 = vmatpush2.bf16.msra.mxu0 %v5015
    %6002 = vmatprep.mubr.bf16.mxu0 %v4579
    %6003 = vmatmul.mubr.bf16.gmra.mxu0 %v4578
    %v6004 = vpop.f32.mrf.mxu0
    %v6005 = vadd.f32 %v5716, %v6004
    %v6006 = vpop.f32.mrf.mxu0
    %v6007 = vpop.f32.mrf.mxu0
    %v6008 = vadd.f32 %v5719, %v6007
    %v6009 = vpop.f32.mrf.mxu0
    %6010 = vmatprep.mubr.bf16.mxu0 %v4582
    %6011 = vmatmul.mubr.bf16.gmra.mxu0 %v4581
    %v6012 = vpop.f32.mrf.mxu0
    %v6013 = vadd.f32 %v5724, %v6012
    %v6014 = vpop.f32.mrf.mxu0
    %v6015 = vpop.f32.mrf.mxu0
    %v6016 = vadd.f32 %v5727, %v6015
    %v6017 = vpop.f32.mrf.mxu0
    %6018 = vmatprep.mubr.bf16.mxu0 %v4585
    %6019 = vmatmul.mubr.bf16.gmra.mxu0 %v4584
    %v6020 = vpop.f32.mrf.mxu0
    %v6021 = vadd.f32 %v5732, %v6020
    %v6022 = vpop.f32.mrf.mxu0
    %v6023 = vpop.f32.mrf.mxu0
    %v6024 = vadd.f32 %v5735, %v6023
    %v6025 = vpop.f32.mrf.mxu0
    %6026 = vmatprep.mubr.bf16.mxu0 %v4588
    %6027 = vmatmul.mubr.bf16.gmra.mxu0 %v4587
    %v6028 = vpop.f32.mrf.mxu0
    %v6029 = vadd.f32 %v5740, %v6028
    %v6030 = vpop.f32.mrf.mxu0
    %v6031 = vpop.f32.mrf.mxu0
    %v6032 = vadd.f32 %v5743, %v6031
    %v6033 = vpop.f32.mrf.mxu0
    %6034 = vmatprep.mubr.bf16.mxu0 %v4591
    %6035 = vmatmul.mubr.bf16.gmra.mxu0 %v4590
    %v6036 = vpop.f32.mrf.mxu0
    %v6037 = vadd.f32 %v5748, %v6036
    %v6038 = vpop.f32.mrf.mxu0
    %v6039 = vpop.f32.mrf.mxu0
    %v6040 = vadd.f32 %v5751, %v6039
    %v6041 = vpop.f32.mrf.mxu0
    %6042 = vmatprep.mubr.bf16.mxu0 %v4594
    %6043 = vmatmul.mubr.bf16.gmra.mxu0 %v4593
    %v6044 = vpop.f32.mrf.mxu0
    %v6045 = vadd.f32 %v5756, %v6044
    %v6046 = vpop.f32.mrf.mxu0
    %v6047 = vpop.f32.mrf.mxu0
    %v6048 = vadd.f32 %v5759, %v6047
    %v6049 = vpop.f32.mrf.mxu0
    %6050 = vmatprep.mubr.bf16.mxu0 %v4597
    %6051 = vmatmul.mubr.bf16.gmra.mxu0 %v4596
    %v6052 = vpop.f32.mrf.mxu0
    %v6053 = vadd.f32 %v5764, %v6052
    %v6054 = vpop.f32.mrf.mxu0
    %v6055 = vpop.f32.mrf.mxu0
    %v6056 = vadd.f32 %v5767, %v6055
    %v6057 = vpop.f32.mrf.mxu0
    %6058 = vmatprep.mubr.bf16.mxu0 %v4600
    %6059 = vmatmul.mubr.bf16.gmra.mxu0 %v4599
    %v6060 = vpop.f32.mrf.mxu0
    %v6061 = vadd.f32 %v5772, %v6060
    %v6062 = vpop.f32.mrf.mxu0
    %v6063 = vpop.f32.mrf.mxu0
    %v6064 = vadd.f32 %v5775, %v6063
    %v6065 = vpop.f32.mrf.mxu0
    %6066 = vmatprep.mubr.bf16.mxu0 %v4603
    %6067 = vmatmul.mubr.bf16.gmra.mxu0 %v4602
    %v6068 = vpop.f32.mrf.mxu0
    %v6069 = vadd.f32 %v5780, %v6068
    %v6070 = vpop.f32.mrf.mxu0
    %v6071 = vpop.f32.mrf.mxu0
    %v6072 = vadd.f32 %v5783, %v6071
    %v6073 = vpop.f32.mrf.mxu0
    %6074 = vmatprep.mubr.bf16.mxu0 %v4606
    %6075 = vmatmul.mubr.bf16.gmra.mxu0 %v4605
    %v6076 = vpop.f32.mrf.mxu0
    %v6077 = vadd.f32 %v5788, %v6076
    %v6078 = vpop.f32.mrf.mxu0
    %v6079 = vpop.f32.mrf.mxu0
    %v6080 = vadd.f32 %v5791, %v6079
    %v6081 = vpop.f32.mrf.mxu0
    %6082 = vmatprep.mubr.bf16.mxu0 %v4609
    %6083 = vmatmul.mubr.bf16.gmra.mxu0 %v4608
    %v6084 = vpop.f32.mrf.mxu0
    %v6085 = vadd.f32 %v5796, %v6084
    %v6086 = vpop.f32.mrf.mxu0
    %v6087 = vpop.f32.mrf.mxu0
    %v6088 = vadd.f32 %v5799, %v6087
    %v6089 = vpop.f32.mrf.mxu0
    %6090 = vmatprep.mubr.bf16.mxu0 %v4612
    %6091 = vmatmul.mubr.bf16.gmra.mxu0 %v4611
    %v6092 = vpop.f32.mrf.mxu0
    %v6093 = vadd.f32 %v5804, %v6092
    %v6094 = vpop.f32.mrf.mxu0
    %v6095 = vpop.f32.mrf.mxu0
    %v6096 = vadd.f32 %v5807, %v6095
    %v6097 = vpop.f32.mrf.mxu0
    %6098 = vmatprep.mubr.bf16.mxu0 %v4615
    %6099 = vmatmul.mubr.bf16.gmra.mxu0 %v4614
    %v6100 = vpop.f32.mrf.mxu0
    %v6101 = vadd.f32 %v5812, %v6100
    %v6102 = vpop.f32.mrf.mxu0
    %v6103 = vpop.f32.mrf.mxu0
    %v6104 = vadd.f32 %v5815, %v6103
    %v6105 = vpop.f32.mrf.mxu0
    %6106 = vmatprep.mubr.bf16.mxu0 %v4618
    %6107 = vmatmul.mubr.bf16.gmra.mxu0 %v4617
    %v6108 = vpop.f32.mrf.mxu0
    %v6109 = vadd.f32 %v5820, %v6108
    %v6110 = vpop.f32.mrf.mxu0
    %v6111 = vpop.f32.mrf.mxu0
    %v6112 = vadd.f32 %v5823, %v6111
    %v6113 = vpop.f32.mrf.mxu0
    %6114 = vmatprep.mubr.bf16.mxu0 %v4621
    %6115 = vmatmul.mubr.bf16.gmra.mxu0 %v4620
    %v6116 = vpop.f32.mrf.mxu0
    %v6117 = vadd.f32 %v5828, %v6116
    %v6118 = vpop.f32.mrf.mxu0
    %v6119 = vpop.f32.mrf.mxu0
    %v6120 = vadd.f32 %v5831, %v6119
    %v6121 = vpop.f32.mrf.mxu0
    %6122 = vmatprep.mubr.bf16.mxu0 %v1207
    %6123 = vmatmul.mubr.bf16.gmra.mxu0 %v1206
    %v6124 = vpop.f32.mrf.mxu0
    %v6125 = vadd.f32 %v5836, %v6124
    %v6126 = vpop.f32.mrf.mxu0
    %v6127 = vpop.f32.mrf.mxu0
    %v6128 = vadd.f32 %v5839, %v6127
    %v6129 = vpop.f32.mrf.mxu0
    %6130 = vmatprep.mubr.bf16.mxu0 %v4627
    %6131 = vmatmul.mubr.bf16.gmra.mxu0 %v4626
    %v6132 = vpop.f32.mrf.mxu0
    %v6133 = vadd.f32 %v5844, %v6132
    %v6134 = vpop.f32.mrf.mxu0
    %v6135 = vpop.f32.mrf.mxu0
    %v6136 = vadd.f32 %v5847, %v6135
    %v6137 = vpop.f32.mrf.mxu0
    %6138 = vmatprep.mubr.bf16.mxu0 %v4630
    %6139 = vmatmul.mubr.bf16.gmra.mxu0 %v4629
    %v6140 = vpop.f32.mrf.mxu0
    %v6141 = vadd.f32 %v5852, %v6140
    %v6142 = vpop.f32.mrf.mxu0
    %v6143 = vpop.f32.mrf.mxu0
    %v6144 = vadd.f32 %v5855, %v6143
    %v6145 = vpop.f32.mrf.mxu0
    %6146 = vmatprep.mubr.bf16.mxu0 %v4633
    %6147 = vmatmul.mubr.bf16.gmra.mxu0 %v4632
    %v6148 = vpop.f32.mrf.mxu0
    %v6149 = vadd.f32 %v5860, %v6148
    %v6150 = vpop.f32.mrf.mxu0
    %v6151 = vpop.f32.mrf.mxu0
    %v6152 = vadd.f32 %v5863, %v6151
    %v6153 = vpop.f32.mrf.mxu0
    %6154 = vmatprep.mubr.bf16.mxu0 %v4636
    %6155 = vmatmul.mubr.bf16.gmra.mxu0 %v4635
    %v6156 = vpop.f32.mrf.mxu0
    %v6157 = vadd.f32 %v5868, %v6156
    %v6158 = vpop.f32.mrf.mxu0
    %v6159 = vpop.f32.mrf.mxu0
    %v6160 = vadd.f32 %v5871, %v6159
    %v6161 = vpop.f32.mrf.mxu0
    %6162 = vmatprep.mubr.bf16.mxu0 %v4639
    %6163 = vmatmul.mubr.bf16.gmra.mxu0 %v4638
    %v6164 = vpop.f32.mrf.mxu0
    %v6165 = vadd.f32 %v5876, %v6164
    %v6166 = vpop.f32.mrf.mxu0
    %v6167 = vpop.f32.mrf.mxu0
    %v6168 = vadd.f32 %v5879, %v6167
    %v6169 = vpop.f32.mrf.mxu0
    %6170 = vmatprep.mubr.bf16.mxu0 %v4642
    %6171 = vmatmul.mubr.bf16.gmra.mxu0 %v4641
    %v6172 = vpop.f32.mrf.mxu0
    %v6173 = vadd.f32 %v5884, %v6172
    %v6174 = vpop.f32.mrf.mxu0
    %v6175 = vpop.f32.mrf.mxu0
    %v6176 = vadd.f32 %v5887, %v6175
    %v6177 = vpop.f32.mrf.mxu0
    %6178 = vmatprep.mubr.bf16.mxu0 %v4645
    %6179 = vmatmul.mubr.bf16.gmra.mxu0 %v4644
    %v6180 = vpop.f32.mrf.mxu0
    %v6181 = vadd.f32 %v5892, %v6180
    %v6182 = vpop.f32.mrf.mxu0
    %v6183 = vpop.f32.mrf.mxu0
    %v6184 = vadd.f32 %v5895, %v6183
    %v6185 = vpop.f32.mrf.mxu0
    %6186 = vmatprep.mubr.bf16.mxu0 %v4648
    %6187 = vmatmul.mubr.bf16.gmra.mxu0 %v4647
    %v6188 = vpop.f32.mrf.mxu0
    %v6189 = vadd.f32 %v5900, %v6188
    %v6190 = vpop.f32.mrf.mxu0
    %v6191 = vpop.f32.mrf.mxu0
    %v6192 = vadd.f32 %v5903, %v6191
    %v6193 = vpop.f32.mrf.mxu0
    %6194 = vmatprep.mubr.bf16.mxu0 %v4651
    %6195 = vmatmul.mubr.bf16.gmra.mxu0 %v4650
    %v6196 = vpop.f32.mrf.mxu0
    %v6197 = vadd.f32 %v5908, %v6196
    %v6198 = vpop.f32.mrf.mxu0
    %v6199 = vpop.f32.mrf.mxu0
    %v6200 = vadd.f32 %v5911, %v6199
    %v6201 = vpop.f32.mrf.mxu0
    %6202 = vmatprep.mubr.bf16.mxu0 %v4654
    %6203 = vmatmul.mubr.bf16.gmra.mxu0 %v4653
    %v6204 = vpop.f32.mrf.mxu0
    %v6205 = vadd.f32 %v5916, %v6204
    %v6206 = vpop.f32.mrf.mxu0
    %v6207 = vpop.f32.mrf.mxu0
    %v6208 = vadd.f32 %v5919, %v6207
    %v6209 = vpop.f32.mrf.mxu0
    %6210 = vmatprep.mubr.bf16.mxu0 %v4657
    %6211 = vmatmul.mubr.bf16.gmra.mxu0 %v4656
    %v6212 = vpop.f32.mrf.mxu0
    %v6213 = vadd.f32 %v5924, %v6212
    %v6214 = vpop.f32.mrf.mxu0
    %v6215 = vpop.f32.mrf.mxu0
    %v6216 = vadd.f32 %v5927, %v6215
    %v6217 = vpop.f32.mrf.mxu0
    %6218 = vmatprep.mubr.bf16.mxu0 %v4660
    %6219 = vmatmul.mubr.bf16.gmra.mxu0 %v4659
    %v6220 = vpop.f32.mrf.mxu0
    %v6221 = vadd.f32 %v5932, %v6220
    %v6222 = vpop.f32.mrf.mxu0
    %v6223 = vpop.f32.mrf.mxu0
    %v6224 = vadd.f32 %v5935, %v6223
    %v6225 = vpop.f32.mrf.mxu0
    %6226 = vmatprep.mubr.bf16.mxu0 %v4663
    %6227 = vmatmul.mubr.bf16.gmra.mxu0 %v4662
    %v6228 = vpop.f32.mrf.mxu0
    %v6229 = vadd.f32 %v5940, %v6228
    %v6230 = vpop.f32.mrf.mxu0
    %v6231 = vpop.f32.mrf.mxu0
    %v6232 = vadd.f32 %v5943, %v6231
    %v6233 = vpop.f32.mrf.mxu0
    %6234 = vmatprep.mubr.bf16.mxu0 %v4666
    %6235 = vmatmul.mubr.bf16.gmra.mxu0 %v4665
    %v6236 = vpop.f32.mrf.mxu0
    %v6237 = vadd.f32 %v5948, %v6236
    %v6238 = vpop.f32.mrf.mxu0
    %v6239 = vpop.f32.mrf.mxu0
    %v6240 = vadd.f32 %v5951, %v6239
    %v6241 = vpop.f32.mrf.mxu0
    %6242 = vmatprep.mubr.bf16.mxu0 %v4669
    %6243 = vmatmul.mubr.bf16.gmra.mxu0 %v4668
    %v6244 = vpop.f32.mrf.mxu0
    %v6245 = vadd.f32 %v5956, %v6244
    %v6246 = vpop.f32.mrf.mxu0
    %v6247 = vpop.f32.mrf.mxu0
    %v6248 = vadd.f32 %v5959, %v6247
    %v6249 = vpop.f32.mrf.mxu0
    %6250 = vmatprep.mubr.bf16.mxu0 %v1207
    %6251 = vmatmul.mubr.bf16.gmra.mxu0 %v1206
    %v6252 = vpop.f32.mrf.mxu0
    %v6253 = vadd.f32 %v5964, %v6252
    %v6254 = vpop.f32.mrf.mxu0
    %v6255 = vpop.f32.mrf.mxu0
    %v6256 = vadd.f32 %v5967, %v6255
    %v6257 = vpop.f32.mrf.mxu0
    %6258 = vdwg.mxu0
    %6259 = vmatprep.subr.bf16.mxu0 0
    %6260 = vmatpush1.bf16.msra.mxu0 %v5030
    %6261 = vmatprep.subr.bf16.mxu0 0
    %6262 = vmatpush1.bf16.msra.mxu0 %v5029
    %6263 = vmatprep.subr.bf16.mxu0 0
    %6264 = vmatpush1.bf16.msra.mxu0 %v5028
    %6265 = vmatprep.subr.bf16.mxu0 0
    %6266 = vmatpush1.bf16.msra.mxu0 %v5027
    %6267 = vmatprep.subr.bf16.mxu0 0
    %6268 = vmatpush1.bf16.msra.mxu0 %v5026
    %6269 = vmatprep.subr.bf16.mxu0 0
    %6270 = vmatpush1.bf16.msra.mxu0 %v5025
    %6271 = vmatprep.subr.bf16.mxu0 0
    %6272 = vmatpush1.bf16.msra.mxu0 %v5024
    %6273 = vmatprep.subr.bf16.mxu0 0
    %6274 = vmatpush1.bf16.msra.mxu0 %v5023
    %6275 = vmatprep.subr.bf16.mxu0 0
    %6276 = vmatpush2.bf16.msra.mxu0 0
    %6277 = vmatprep.subr.bf16.mxu0 0
    %6278 = vmatpush2.bf16.msra.mxu0 0
    %6279 = vmatprep.subr.bf16.mxu0 0
    %6280 = vmatpush2.bf16.msra.mxu0 0
    %6281 = vmatprep.subr.bf16.mxu0 0
    %6282 = vmatpush2.bf16.msra.mxu0 0
    %6283 = vmatprep.subr.bf16.mxu0 0
    %6284 = vmatpush2.bf16.msra.mxu0 0
    %6285 = vmatprep.subr.bf16.mxu0 0
    %6286 = vmatpush2.bf16.msra.mxu0 0
    %6287 = vmatprep.subr.bf16.mxu0 0
    %6288 = vmatpush2.bf16.msra.mxu0 0
    %6289 = vmatprep.subr.bf16.mxu0 0
    %6290 = vmatpush2.bf16.msra.mxu0 0
    %6291 = vmatprep.mubr.bf16.mxu0 0
    %6292 = vmatmul.mubr.bf16.gmra.mxu0 %v4580
    %v6293 = vpop.f32.mrf.mxu0
    %v6294 = vadd.f32 %v6005, %v6293
    %v6295 = vpop.f32.mrf.mxu0
    %v6296 = vpop.f32.mrf.mxu0
    %v6297 = vadd.f32 %v6008, %v6296
    %v6298 = vpop.f32.mrf.mxu0
    %6299 = vmatprep.mubr.bf16.mxu0 0
    %6300 = vmatmul.mubr.bf16.gmra.mxu0 %v4583
    %v6301 = vpop.f32.mrf.mxu0
    %v6302 = vadd.f32 %v6013, %v6301
    %v6303 = vpop.f32.mrf.mxu0
    %v6304 = vpop.f32.mrf.mxu0
    %v6305 = vadd.f32 %v6016, %v6304
    %v6306 = vpop.f32.mrf.mxu0
    %6307 = vmatprep.mubr.bf16.mxu0 0
    %6308 = vmatmul.mubr.bf16.gmra.mxu0 %v4586
    %v6309 = vpop.f32.mrf.mxu0
    %v6310 = vadd.f32 %v6021, %v6309
    %v6311 = vpop.f32.mrf.mxu0
    %v6312 = vpop.f32.mrf.mxu0
    %v6313 = vadd.f32 %v6024, %v6312
    %v6314 = vpop.f32.mrf.mxu0
    %6315 = vmatprep.mubr.bf16.mxu0 0
    %6316 = vmatmul.mubr.bf16.gmra.mxu0 %v4589
    %v6317 = vpop.f32.mrf.mxu0
    %v6318 = vadd.f32 %v6029, %v6317
    %v6319 = vpop.f32.mrf.mxu0
    %v6320 = vpop.f32.mrf.mxu0
    %v6321 = vadd.f32 %v6032, %v6320
    %v6322 = vpop.f32.mrf.mxu0
    %6323 = vmatprep.mubr.bf16.mxu0 0
    %6324 = vmatmul.mubr.bf16.gmra.mxu0 %v4592
    %v6325 = vpop.f32.mrf.mxu0
    %v6326 = vadd.f32 %v6037, %v6325
    %v6327 = vpop.f32.mrf.mxu0
    %v6328 = vpop.f32.mrf.mxu0
    %v6329 = vadd.f32 %v6040, %v6328
    %v6330 = vpop.f32.mrf.mxu0
    %6331 = vmatprep.mubr.bf16.mxu0 0
    %6332 = vmatmul.mubr.bf16.gmra.mxu0 %v4595
    %v6333 = vpop.f32.mrf.mxu0
    %v6334 = vadd.f32 %v6045, %v6333
    %v6335 = vpop.f32.mrf.mxu0
    %v6336 = vpop.f32.mrf.mxu0
    %v6337 = vadd.f32 %v6048, %v6336
    %v6338 = vpop.f32.mrf.mxu0
    %6339 = vmatprep.mubr.bf16.mxu0 0
    %6340 = vmatmul.mubr.bf16.gmra.mxu0 %v4598
    %v6341 = vpop.f32.mrf.mxu0
    %v6342 = vadd.f32 %v6053, %v6341
    %v6343 = vpop.f32.mrf.mxu0
    %v6344 = vpop.f32.mrf.mxu0
    %v6345 = vadd.f32 %v6056, %v6344
    %v6346 = vpop.f32.mrf.mxu0
    %6347 = vmatprep.mubr.bf16.mxu0 0
    %6348 = vmatmul.mubr.bf16.gmra.mxu0 %v4601
    %v6349 = vpop.f32.mrf.mxu0
    %v6350 = vadd.f32 %v6061, %v6349
    %v6351 = vpop.f32.mrf.mxu0
    %v6352 = vpop.f32.mrf.mxu0
    %v6353 = vadd.f32 %v6064, %v6352
    %v6354 = vpop.f32.mrf.mxu0
    %6355 = vmatprep.mubr.bf16.mxu0 0
    %6356 = vmatmul.mubr.bf16.gmra.mxu0 %v4604
    %v6357 = vpop.f32.mrf.mxu0
    %v6358 = vadd.f32 %v6069, %v6357
    %v6359 = vpop.f32.mrf.mxu0
    %v6360 = vpop.f32.mrf.mxu0
    %v6361 = vadd.f32 %v6072, %v6360
    %v6362 = vpop.f32.mrf.mxu0
    %6363 = vmatprep.mubr.bf16.mxu0 0
    %6364 = vmatmul.mubr.bf16.gmra.mxu0 %v4607
    %v6365 = vpop.f32.mrf.mxu0
    %v6366 = vadd.f32 %v6077, %v6365
    %v6367 = vpop.f32.mrf.mxu0
    %v6368 = vpop.f32.mrf.mxu0
    %v6369 = vadd.f32 %v6080, %v6368
    %v6370 = vpop.f32.mrf.mxu0
    %6371 = vmatprep.mubr.bf16.mxu0 0
    %6372 = vmatmul.mubr.bf16.gmra.mxu0 %v4610
    %v6373 = vpop.f32.mrf.mxu0
    %v6374 = vadd.f32 %v6085, %v6373
    %v6375 = vpop.f32.mrf.mxu0
    %v6376 = vpop.f32.mrf.mxu0
    %v6377 = vadd.f32 %v6088, %v6376
    %v6378 = vpop.f32.mrf.mxu0
    %6379 = vmatprep.mubr.bf16.mxu0 0
    %6380 = vmatmul.mubr.bf16.gmra.mxu0 %v4613
    %v6381 = vpop.f32.mrf.mxu0
    %v6382 = vadd.f32 %v6093, %v6381
    %v6383 = vpop.f32.mrf.mxu0
    %v6384 = vpop.f32.mrf.mxu0
    %v6385 = vadd.f32 %v6096, %v6384
    %v6386 = vpop.f32.mrf.mxu0
    %6387 = vmatprep.mubr.bf16.mxu0 0
    %6388 = vmatmul.mubr.bf16.gmra.mxu0 %v4616
    %v6389 = vpop.f32.mrf.mxu0
    %v6390 = vadd.f32 %v6101, %v6389
    %v6391 = vpop.f32.mrf.mxu0
    %v6392 = vpop.f32.mrf.mxu0
    %v6393 = vadd.f32 %v6104, %v6392
    %v6394 = vpop.f32.mrf.mxu0
    %6395 = vmatprep.mubr.bf16.mxu0 0
    %6396 = vmatmul.mubr.bf16.gmra.mxu0 %v4619
    %v6397 = vpop.f32.mrf.mxu0
    %v6398 = vadd.f32 %v6109, %v6397
    %v6399 = vpop.f32.mrf.mxu0
    %v6400 = vpop.f32.mrf.mxu0
    %v6401 = vadd.f32 %v6112, %v6400
    %v6402 = vpop.f32.mrf.mxu0
    %6403 = vmatprep.mubr.bf16.mxu0 0
    %6404 = vmatmul.mubr.bf16.gmra.mxu0 %v4622
    %v6405 = vpop.f32.mrf.mxu0
    %v6406 = vadd.f32 %v6117, %v6405
    %v6407 = vpop.f32.mrf.mxu0
    %v6408 = vpop.f32.mrf.mxu0
    %v6409 = vadd.f32 %v6120, %v6408
    %v6410 = vpop.f32.mrf.mxu0
    %6411 = vmatprep.mubr.bf16.mxu0 0
    %6412 = vmatmul.mubr.bf16.gmra.mxu0 %v1208
    %v6413 = vpop.f32.mrf.mxu0
    %v6414 = vadd.f32 %v6125, %v6413
    %v6415 = vpop.f32.mrf.mxu0
    %v6416 = vpop.f32.mrf.mxu0
    %v6417 = vadd.f32 %v6128, %v6416
    %v6418 = vpop.f32.mrf.mxu0
    %6419 = vmatprep.mubr.bf16.mxu0 0
    %6420 = vmatmul.mubr.bf16.gmra.mxu0 %v4628
    %v6421 = vpop.f32.mrf.mxu0
    %v6422 = vadd.f32 %v6133, %v6421
    %v6423 = vpop.f32.mrf.mxu0
    %v6424 = vpop.f32.mrf.mxu0
    %v6425 = vadd.f32 %v6136, %v6424
    %v6426 = vpop.f32.mrf.mxu0
    %6427 = vmatprep.mubr.bf16.mxu0 0
    %6428 = vmatmul.mubr.bf16.gmra.mxu0 %v4631
    %v6429 = vpop.f32.mrf.mxu0
    %v6430 = vadd.f32 %v6141, %v6429
    %v6431 = vpop.f32.mrf.mxu0
    %v6432 = vpop.f32.mrf.mxu0
    %v6433 = vadd.f32 %v6144, %v6432
    %v6434 = vpop.f32.mrf.mxu0
    %6435 = vmatprep.mubr.bf16.mxu0 0
    %6436 = vmatmul.mubr.bf16.gmra.mxu0 %v4634
    %v6437 = vpop.f32.mrf.mxu0
    %v6438 = vadd.f32 %v6149, %v6437
    %v6439 = vpop.f32.mrf.mxu0
    %v6440 = vpop.f32.mrf.mxu0
    %v6441 = vadd.f32 %v6152, %v6440
    %v6442 = vpop.f32.mrf.mxu0
    %6443 = vmatprep.mubr.bf16.mxu0 0
    %6444 = vmatmul.mubr.bf16.gmra.mxu0 %v4637
    %v6445 = vpop.f32.mrf.mxu0
    %v6446 = vadd.f32 %v6157, %v6445
    %v6447 = vpop.f32.mrf.mxu0
    %v6448 = vpop.f32.mrf.mxu0
    %v6449 = vadd.f32 %v6160, %v6448
    %v6450 = vpop.f32.mrf.mxu0
    %6451 = vmatprep.mubr.bf16.mxu0 0
    %6452 = vmatmul.mubr.bf16.gmra.mxu0 %v4640
    %v6453 = vpop.f32.mrf.mxu0
    %v6454 = vadd.f32 %v6165, %v6453
    %v6455 = vpop.f32.mrf.mxu0
    %v6456 = vpop.f32.mrf.mxu0
    %v6457 = vadd.f32 %v6168, %v6456
    %v6458 = vpop.f32.mrf.mxu0
    %6459 = vmatprep.mubr.bf16.mxu0 0
    %6460 = vmatmul.mubr.bf16.gmra.mxu0 %v4643
    %v6461 = vpop.f32.mrf.mxu0
    %v6462 = vadd.f32 %v6173, %v6461
    %v6463 = vpop.f32.mrf.mxu0
    %v6464 = vpop.f32.mrf.mxu0
    %v6465 = vadd.f32 %v6176, %v6464
    %v6466 = vpop.f32.mrf.mxu0
    %6467 = vmatprep.mubr.bf16.mxu0 0
    %6468 = vmatmul.mubr.bf16.gmra.mxu0 %v4646
    %v6469 = vpop.f32.mrf.mxu0
    %v6470 = vadd.f32 %v6181, %v6469
    %v6471 = vpop.f32.mrf.mxu0
    %v6472 = vpop.f32.mrf.mxu0
    %v6473 = vadd.f32 %v6184, %v6472
    %v6474 = vpop.f32.mrf.mxu0
    %6475 = vmatprep.mubr.bf16.mxu0 0
    %6476 = vmatmul.mubr.bf16.gmra.mxu0 %v4649
    %v6477 = vpop.f32.mrf.mxu0
    %v6478 = vadd.f32 %v6189, %v6477
    %v6479 = vpop.f32.mrf.mxu0
    %v6480 = vpop.f32.mrf.mxu0
    %v6481 = vadd.f32 %v6192, %v6480
    %v6482 = vpop.f32.mrf.mxu0
    %6483 = vmatprep.mubr.bf16.mxu0 0
    %6484 = vmatmul.mubr.bf16.gmra.mxu0 %v4652
    %v6485 = vpop.f32.mrf.mxu0
    %v6486 = vadd.f32 %v6197, %v6485
    %v6487 = vpop.f32.mrf.mxu0
    %v6488 = vpop.f32.mrf.mxu0
    %v6489 = vadd.f32 %v6200, %v6488
    %v6490 = vpop.f32.mrf.mxu0
    %6491 = vmatprep.mubr.bf16.mxu0 0
    %6492 = vmatmul.mubr.bf16.gmra.mxu0 %v4655
    %v6493 = vpop.f32.mrf.mxu0
    %v6494 = vadd.f32 %v6205, %v6493
    %v6495 = vpop.f32.mrf.mxu0
    %v6496 = vpop.f32.mrf.mxu0
    %v6497 = vadd.f32 %v6208, %v6496
    %v6498 = vpop.f32.mrf.mxu0
    %6499 = vmatprep.mubr.bf16.mxu0 0
    %6500 = vmatmul.mubr.bf16.gmra.mxu0 %v4658
    %v6501 = vpop.f32.mrf.mxu0
    %v6502 = vadd.f32 %v6213, %v6501
    %v6503 = vpop.f32.mrf.mxu0
    %v6504 = vpop.f32.mrf.mxu0
    %v6505 = vadd.f32 %v6216, %v6504
    %v6506 = vpop.f32.mrf.mxu0
    %6507 = vmatprep.mubr.bf16.mxu0 0
    %6508 = vmatmul.mubr.bf16.gmra.mxu0 %v4661
    %v6509 = vpop.f32.mrf.mxu0
    %v6510 = vadd.f32 %v6221, %v6509
    %v6511 = vpop.f32.mrf.mxu0
    %v6512 = vpop.f32.mrf.mxu0
    %v6513 = vadd.f32 %v6224, %v6512
    %v6514 = vpop.f32.mrf.mxu0
    %6515 = vmatprep.mubr.bf16.mxu0 0
    %6516 = vmatmul.mubr.bf16.gmra.mxu0 %v4664
    %v6517 = vpop.f32.mrf.mxu0
    %v6518 = vadd.f32 %v6229, %v6517
    %v6519 = vpop.f32.mrf.mxu0
    %v6520 = vpop.f32.mrf.mxu0
    %v6521 = vadd.f32 %v6232, %v6520
    %v6522 = vpop.f32.mrf.mxu0
    %6523 = vmatprep.mubr.bf16.mxu0 0
    %6524 = vmatmul.mubr.bf16.gmra.mxu0 %v4667
    %v6525 = vpop.f32.mrf.mxu0
    %v6526 = vadd.f32 %v6237, %v6525
    %v6527 = vpop.f32.mrf.mxu0
    %v6528 = vpop.f32.mrf.mxu0
    %v6529 = vadd.f32 %v6240, %v6528
    %v6530 = vpop.f32.mrf.mxu0
    %6531 = vmatprep.mubr.bf16.mxu0 0
    %6532 = vmatmul.mubr.bf16.gmra.mxu0 %v4670
    %v6533 = vpop.f32.mrf.mxu0
    %v6534 = vadd.f32 %v6245, %v6533
    %v6535 = vpop.f32.mrf.mxu0
    %v6536 = vpop.f32.mrf.mxu0
    %v6537 = vadd.f32 %v6248, %v6536
    %v6538 = vpop.f32.mrf.mxu0
    %6539 = vmatprep.mubr.bf16.mxu0 0
    %6540 = vmatmul.mubr.bf16.gmra.mxu0 %v1208
    %v6541 = vpop.f32.mrf.mxu0
    %v6542 = vadd.f32 %v6253, %v6541
    %v6543 = vpop.f32.mrf.mxu0
    %v6544 = vpop.f32.mrf.mxu0
    %v6545 = vadd.f32 %v6256, %v6544
    %v6546 = vpop.f32.mrf.mxu0
    %6547 = vdwg.mxu0
    %v6548 = vld [vmem:[%s5] sm:$0x1]
    %v6549 = vld [vmem:[%s6] sm:$0x1]
    %v6550 = vadd.f32 %v6294, %v6297
    %v6551 = vadd.f32 %v6550, %v6302
    %v6552 = vadd.f32 %v6551, %v6305
    %v6553 = vadd.f32 %v6552, %v6310
    %v6554 = vadd.f32 %v6553, %v6313
    %v6555 = vadd.f32 %v6554, %v6318
    %v6556 = vadd.f32 %v6555, %v6321
    %v6557 = vadd.f32 %v6556, %v6326
    %v6558 = vadd.f32 %v6557, %v6329
    %v6559 = vadd.f32 %v6558, %v6334
    %v6560 = vadd.f32 %v6559, %v6337
    %v6561 = vadd.f32 %v6560, %v6342
    %v6562 = vadd.f32 %v6561, %v6345
    %v6563 = vadd.f32 %v6562, %v6350
    %v6564 = vadd.f32 %v6563, %v6353
    %v6565 = vadd.f32 %v6564, %v6358
    %v6566 = vadd.f32 %v6565, %v6361
    %v6567 = vadd.f32 %v6566, %v6366
    %v6568 = vadd.f32 %v6567, %v6369
    %v6569 = vadd.f32 %v6568, %v6374
    %v6570 = vadd.f32 %v6569, %v6377
    %v6571 = vadd.f32 %v6570, %v6382
    %v6572 = vadd.f32 %v6571, %v6385
    %v6573 = vadd.f32 %v6572, %v6390
    %v6574 = vadd.f32 %v6573, %v6393
    %v6575 = vadd.f32 %v6574, %v6398
    %v6576 = vadd.f32 %v6575, %v6401
    %v6577 = vadd.f32 %v6576, %v6406
    %v6578 = vadd.f32 %v6577, %v6409
    %v6579 = vadd.f32 %v6578, %v6414
    %v6580 = vadd.f32 %v6579, %v6417
    %v6581 = vadd.f32 %v6580, %v6422
    %v6582 = vadd.f32 %v6581, %v6425
    %v6583 = vadd.f32 %v6582, %v6430
    %v6584 = vadd.f32 %v6583, %v6433
    %v6585 = vadd.f32 %v6584, %v6438
    %v6586 = vadd.f32 %v6585, %v6441
    %v6587 = vadd.f32 %v6586, %v6446
    %v6588 = vadd.f32 %v6587, %v6449
    %v6589 = vadd.f32 %v6588, %v6454
    %v6590 = vadd.f32 %v6589, %v6457
    %v6591 = vadd.f32 %v6590, %v6462
    %v6592 = vadd.f32 %v6591, %v6465
    %v6593 = vadd.f32 %v6592, %v6470
    %v6594 = vadd.f32 %v6593, %v6473
    %v6595 = vadd.f32 %v6594, %v6478
    %v6596 = vadd.f32 %v6595, %v6481
    %v6597 = vadd.f32 %v6596, %v6486
    %v6598 = vadd.f32 %v6597, %v6489
    %v6599 = vadd.f32 %v6598, %v6494
    %v6600 = vadd.f32 %v6599, %v6497
    %v6601 = vadd.f32 %v6600, %v6502
    %v6602 = vadd.f32 %v6601, %v6505
    %v6603 = vadd.f32 %v6602, %v6510
    %v6604 = vadd.f32 %v6603, %v6513
    %v6605 = vadd.f32 %v6604, %v6518
    %v6606 = vadd.f32 %v6605, %v6521
    %v6607 = vadd.f32 %v6606, %v6526
    %v6608 = vadd.f32 %v6607, %v6529
    %v6609 = vadd.f32 %v6608, %v6534
    %v6610 = vadd.f32 %v6609, %v6537
    %v6611 = vadd.f32 %v6610, %v6542
    %v6612 = vadd.f32 %v6611, %v6545
    %v6613 = vrot.slane %v6612, 4
    %v6614 = vadd.f32 %v6612, %v6613
    %v6615 = vrot.slane %v6614, 2
    %v6616 = vadd.f32 %v6614, %v6615
    %v6617 = vrot.slane %v6616, 1
    %v6618 = vadd.f32 %v6616, %v6617
    %v6619 = vmul.f32 %v6618, 0.001953125
    %v6620 = vmul.f32 %v6294, %v6294
    %v6621 = vmul.f32 %v6297, %v6297
    %v6622 = vmul.f32 %v6302, %v6302
    %v6623 = vmul.f32 %v6305, %v6305
    %v6624 = vmul.f32 %v6310, %v6310
    %v6625 = vmul.f32 %v6313, %v6313
    %v6626 = vmul.f32 %v6318, %v6318
    %v6627 = vmul.f32 %v6321, %v6321
    %v6628 = vmul.f32 %v6326, %v6326
    %v6629 = vmul.f32 %v6329, %v6329
    %v6630 = vmul.f32 %v6334, %v6334
    %v6631 = vmul.f32 %v6337, %v6337
    %v6632 = vmul.f32 %v6342, %v6342
    %v6633 = vmul.f32 %v6345, %v6345
    %v6634 = vmul.f32 %v6350, %v6350
    %v6635 = vmul.f32 %v6353, %v6353
    %v6636 = vmul.f32 %v6358, %v6358
    %v6637 = vmul.f32 %v6361, %v6361
    %v6638 = vmul.f32 %v6366, %v6366
    %v6639 = vmul.f32 %v6369, %v6369
    %v6640 = vmul.f32 %v6374, %v6374
    %v6641 = vmul.f32 %v6377, %v6377
    %v6642 = vmul.f32 %v6382, %v6382
    %v6643 = vmul.f32 %v6385, %v6385
    %v6644 = vmul.f32 %v6390, %v6390
    %v6645 = vmul.f32 %v6393, %v6393
    %v6646 = vmul.f32 %v6398, %v6398
    %v6647 = vmul.f32 %v6401, %v6401
    %v6648 = vmul.f32 %v6406, %v6406
    %v6649 = vmul.f32 %v6409, %v6409
    %v6650 = vmul.f32 %v6414, %v6414
    %v6651 = vmul.f32 %v6417, %v6417
    %v6652 = vmul.f32 %v6422, %v6422
    %v6653 = vmul.f32 %v6425, %v6425
    %v6654 = vmul.f32 %v6430, %v6430
    %v6655 = vmul.f32 %v6433, %v6433
    %v6656 = vmul.f32 %v6438, %v6438
    %v6657 = vmul.f32 %v6441, %v6441
    %v6658 = vmul.f32 %v6446, %v6446
    %v6659 = vmul.f32 %v6449, %v6449
    %v6660 = vmul.f32 %v6454, %v6454
    %v6661 = vmul.f32 %v6457, %v6457
    %v6662 = vmul.f32 %v6462, %v6462
    %v6663 = vmul.f32 %v6465, %v6465
    %v6664 = vmul.f32 %v6470, %v6470
    %v6665 = vmul.f32 %v6473, %v6473
    %v6666 = vmul.f32 %v6478, %v6478
    %v6667 = vmul.f32 %v6481, %v6481
    %v6668 = vmul.f32 %v6486, %v6486
    %v6669 = vmul.f32 %v6489, %v6489
    %v6670 = vmul.f32 %v6494, %v6494
    %v6671 = vmul.f32 %v6497, %v6497
    %v6672 = vmul.f32 %v6502, %v6502
    %v6673 = vmul.f32 %v6505, %v6505
    %v6674 = vmul.f32 %v6510, %v6510
    %v6675 = vmul.f32 %v6513, %v6513
    %v6676 = vmul.f32 %v6518, %v6518
    %v6677 = vmul.f32 %v6521, %v6521
    %v6678 = vmul.f32 %v6526, %v6526
    %v6679 = vmul.f32 %v6529, %v6529
    %v6680 = vmul.f32 %v6534, %v6534
    %v6681 = vmul.f32 %v6537, %v6537
    %v6682 = vmul.f32 %v6542, %v6542
    %v6683 = vmul.f32 %v6545, %v6545
    %v6684 = vadd.f32 %v6620, %v6621
    %v6685 = vadd.f32 %v6684, %v6622
    %v6686 = vadd.f32 %v6685, %v6623
    %v6687 = vadd.f32 %v6686, %v6624
    %v6688 = vadd.f32 %v6687, %v6625
    %v6689 = vadd.f32 %v6688, %v6626
    %v6690 = vadd.f32 %v6689, %v6627
    %v6691 = vadd.f32 %v6690, %v6628
    %v6692 = vadd.f32 %v6691, %v6629
    %v6693 = vadd.f32 %v6692, %v6630
    %v6694 = vadd.f32 %v6693, %v6631
    %v6695 = vadd.f32 %v6694, %v6632
    %v6696 = vadd.f32 %v6695, %v6633
    %v6697 = vadd.f32 %v6696, %v6634
    %v6698 = vadd.f32 %v6697, %v6635
    %v6699 = vadd.f32 %v6698, %v6636
    %v6700 = vadd.f32 %v6699, %v6637
    %v6701 = vadd.f32 %v6700, %v6638
    %v6702 = vadd.f32 %v6701, %v6639
    %v6703 = vadd.f32 %v6702, %v6640
    %v6704 = vadd.f32 %v6703, %v6641
    %v6705 = vadd.f32 %v6704, %v6642
    %v6706 = vadd.f32 %v6705, %v6643
    %v6707 = vadd.f32 %v6706, %v6644
    %v6708 = vadd.f32 %v6707, %v6645
    %v6709 = vadd.f32 %v6708, %v6646
    %v6710 = vadd.f32 %v6709, %v6647
    %v6711 = vadd.f32 %v6710, %v6648
    %v6712 = vadd.f32 %v6711, %v6649
    %v6713 = vadd.f32 %v6712, %v6650
    %v6714 = vadd.f32 %v6713, %v6651
    %v6715 = vadd.f32 %v6714, %v6652
    %v6716 = vadd.f32 %v6715, %v6653
    %v6717 = vadd.f32 %v6716, %v6654
    %v6718 = vadd.f32 %v6717, %v6655
    %v6719 = vadd.f32 %v6718, %v6656
    %v6720 = vadd.f32 %v6719, %v6657
    %v6721 = vadd.f32 %v6720, %v6658
    %v6722 = vadd.f32 %v6721, %v6659
    %v6723 = vadd.f32 %v6722, %v6660
    %v6724 = vadd.f32 %v6723, %v6661
    %v6725 = vadd.f32 %v6724, %v6662
    %v6726 = vadd.f32 %v6725, %v6663
    %v6727 = vadd.f32 %v6726, %v6664
    %v6728 = vadd.f32 %v6727, %v6665
    %v6729 = vadd.f32 %v6728, %v6666
    %v6730 = vadd.f32 %v6729, %v6667
    %v6731 = vadd.f32 %v6730, %v6668
    %v6732 = vadd.f32 %v6731, %v6669
    %v6733 = vadd.f32 %v6732, %v6670
    %v6734 = vadd.f32 %v6733, %v6671
    %v6735 = vadd.f32 %v6734, %v6672
    %v6736 = vadd.f32 %v6735, %v6673
    %v6737 = vadd.f32 %v6736, %v6674
    %v6738 = vadd.f32 %v6737, %v6675
    %v6739 = vadd.f32 %v6738, %v6676
    %v6740 = vadd.f32 %v6739, %v6677
    %v6741 = vadd.f32 %v6740, %v6678
    %v6742 = vadd.f32 %v6741, %v6679
    %v6743 = vadd.f32 %v6742, %v6680
    %v6744 = vadd.f32 %v6743, %v6681
    %v6745 = vadd.f32 %v6744, %v6682
    %v6746 = vadd.f32 %v6745, %v6683
    %v6747 = vrot.slane %v6746, 4
    %v6748 = vadd.f32 %v6746, %v6747
    %v6749 = vrot.slane %v6748, 2
    %v6750 = vadd.f32 %v6748, %v6749
    %v6751 = vrot.slane %v6750, 1
    %v6752 = vadd.f32 %v6750, %v6751
    %v6753 = vmul.f32 %v6752, 0.001953125
    %v6754 = vmul.f32 %v6619, %v6619
    %v6755 = vsub.f32 %v6753, %v6754
    %v6756 = vadd.f32 %v6755, 1e-05
    %v6757 = vrsqrt.pop %v6756
    %v6758 = vmul.f32 %v6548, %v6757
    %v6759 = vmul.f32 %v6619, %v6758
    %v6760 = vsub.f32 %v6549, %v6759
    %v6762 = vlaneseq
    %v6763 = vshrl.u32 %v6762, 7
    %v6764 = vsub.s32 0, %v6763
    %v6765 = vrot.slane %v6758, %v6764
    %v6767 = vmul.f32 %v6294, %v6765
    %v6768 = vmul.f32 %v6297, %v6765
    %v6769 = vmul.f32 %v6302, %v6765
    %v6770 = vmul.f32 %v6305, %v6765
    %v6771 = vmul.f32 %v6310, %v6765
    %v6772 = vmul.f32 %v6313, %v6765
    %v6773 = vmul.f32 %v6318, %v6765
    %v6774 = vmul.f32 %v6321, %v6765
    %v6775 = vmul.f32 %v6326, %v6765
    %v6776 = vmul.f32 %v6329, %v6765
    %v6777 = vmul.f32 %v6334, %v6765
    %v6778 = vmul.f32 %v6337, %v6765
    %v6779 = vmul.f32 %v6342, %v6765
    %v6780 = vmul.f32 %v6345, %v6765
    %v6781 = vmul.f32 %v6350, %v6765
    %v6782 = vmul.f32 %v6353, %v6765
    %v6783 = vmul.f32 %v6358, %v6765
    %v6784 = vmul.f32 %v6361, %v6765
    %v6785 = vmul.f32 %v6366, %v6765
    %v6786 = vmul.f32 %v6369, %v6765
    %v6787 = vmul.f32 %v6374, %v6765
    %v6788 = vmul.f32 %v6377, %v6765
    %v6789 = vmul.f32 %v6382, %v6765
    %v6790 = vmul.f32 %v6385, %v6765
    %v6791 = vmul.f32 %v6390, %v6765
    %v6792 = vmul.f32 %v6393, %v6765
    %v6793 = vmul.f32 %v6398, %v6765
    %v6794 = vmul.f32 %v6401, %v6765
    %v6795 = vmul.f32 %v6406, %v6765
    %v6796 = vmul.f32 %v6409, %v6765
    %v6797 = vmul.f32 %v6414, %v6765
    %v6798 = vmul.f32 %v6417, %v6765
    %v6799 = vmul.f32 %v6422, %v6765
    %v6800 = vmul.f32 %v6425, %v6765
    %v6801 = vmul.f32 %v6430, %v6765
    %v6802 = vmul.f32 %v6433, %v6765
    %v6803 = vmul.f32 %v6438, %v6765
    %v6804 = vmul.f32 %v6441, %v6765
    %v6805 = vmul.f32 %v6446, %v6765
    %v6806 = vmul.f32 %v6449, %v6765
    %v6807 = vmul.f32 %v6454, %v6765
    %v6808 = vmul.f32 %v6457, %v6765
    %v6809 = vmul.f32 %v6462, %v6765
    %v6810 = vmul.f32 %v6465, %v6765
    %v6811 = vmul.f32 %v6470, %v6765
    %v6812 = vmul.f32 %v6473, %v6765
    %v6813 = vmul.f32 %v6478, %v6765
    %v6814 = vmul.f32 %v6481, %v6765
    %v6815 = vmul.f32 %v6486, %v6765
    %v6816 = vmul.f32 %v6489, %v6765
    %v6817 = vmul.f32 %v6494, %v6765
    %v6818 = vmul.f32 %v6497, %v6765
    %v6819 = vmul.f32 %v6502, %v6765
    %v6820 = vmul.f32 %v6505, %v6765
    %v6821 = vmul.f32 %v6510, %v6765
    %v6822 = vmul.f32 %v6513, %v6765
    %v6823 = vmul.f32 %v6518, %v6765
    %v6824 = vmul.f32 %v6521, %v6765
    %v6825 = vmul.f32 %v6526, %v6765
    %v6826 = vmul.f32 %v6529, %v6765
    %v6827 = vmul.f32 %v6534, %v6765
    %v6828 = vmul.f32 %v6537, %v6765
    %v6829 = vmul.f32 %v6542, %v6765
    %v6830 = vmul.f32 %v6545, %v6765
    %v6832 = vlaneseq
    %v6833 = vshrl.u32 %v6832, 7
    %v6834 = vsub.s32 0, %v6833
    %v6835 = vrot.slane %v6760, %v6834
    %v6837 = vadd.f32 %v6767, %v6835
    %v6838 = vadd.f32 %v6768, %v6835
    %v6839 = vadd.f32 %v6769, %v6835
    %v6840 = vadd.f32 %v6770, %v6835
    %v6841 = vadd.f32 %v6771, %v6835
    %v6842 = vadd.f32 %v6772, %v6835
    %v6843 = vadd.f32 %v6773, %v6835
    %v6844 = vadd.f32 %v6774, %v6835
    %v6845 = vadd.f32 %v6775, %v6835
    %v6846 = vadd.f32 %v6776, %v6835
    %v6847 = vadd.f32 %v6777, %v6835
    %v6848 = vadd.f32 %v6778, %v6835
    %v6849 = vadd.f32 %v6779, %v6835
    %v6850 = vadd.f32 %v6780, %v6835
    %v6851 = vadd.f32 %v6781, %v6835
    %v6852 = vadd.f32 %v6782, %v6835
    %v6853 = vadd.f32 %v6783, %v6835
    %v6854 = vadd.f32 %v6784, %v6835
    %v6855 = vadd.f32 %v6785, %v6835
    %v6856 = vadd.f32 %v6786, %v6835
    %v6857 = vadd.f32 %v6787, %v6835
    %v6858 = vadd.f32 %v6788, %v6835
    %v6859 = vadd.f32 %v6789, %v6835
    %v6860 = vadd.f32 %v6790, %v6835
    %v6861 = vadd.f32 %v6791, %v6835
    %v6862 = vadd.f32 %v6792, %v6835
    %v6863 = vadd.f32 %v6793, %v6835
    %v6864 = vadd.f32 %v6794, %v6835
    %v6865 = vadd.f32 %v6795, %v6835
    %v6866 = vadd.f32 %v6796, %v6835
    %v6867 = vadd.f32 %v6797, %v6835
    %v6868 = vadd.f32 %v6798, %v6835
    %v6869 = vadd.f32 %v6799, %v6835
    %v6870 = vadd.f32 %v6800, %v6835
    %v6871 = vadd.f32 %v6801, %v6835
    %v6872 = vadd.f32 %v6802, %v6835
    %v6873 = vadd.f32 %v6803, %v6835
    %v6874 = vadd.f32 %v6804, %v6835
    %v6875 = vadd.f32 %v6805, %v6835
    %v6876 = vadd.f32 %v6806, %v6835
    %v6877 = vadd.f32 %v6807, %v6835
    %v6878 = vadd.f32 %v6808, %v6835
    %v6879 = vadd.f32 %v6809, %v6835
    %v6880 = vadd.f32 %v6810, %v6835
    %v6881 = vadd.f32 %v6811, %v6835
    %v6882 = vadd.f32 %v6812, %v6835
    %v6883 = vadd.f32 %v6813, %v6835
    %v6884 = vadd.f32 %v6814, %v6835
    %v6885 = vadd.f32 %v6815, %v6835
    %v6886 = vadd.f32 %v6816, %v6835
    %v6887 = vadd.f32 %v6817, %v6835
    %v6888 = vadd.f32 %v6818, %v6835
    %v6889 = vadd.f32 %v6819, %v6835
    %v6890 = vadd.f32 %v6820, %v6835
    %v6891 = vadd.f32 %v6821, %v6835
    %v6892 = vadd.f32 %v6822, %v6835
    %v6893 = vadd.f32 %v6823, %v6835
    %v6894 = vadd.f32 %v6824, %v6835
    %v6895 = vadd.f32 %v6825, %v6835
    %v6896 = vadd.f32 %v6826, %v6835
    %v6897 = vadd.f32 %v6827, %v6835
    %v6898 = vadd.f32 %v6828, %v6835
    %v6899 = vadd.f32 %v6829, %v6835
    %v6900 = vadd.f32 %v6830, %v6835
    %v6901 = vld [vmem:[#allocation8] sm:$0xf]
    %v6902 = vld [vmem:[#allocation8 + $0x4] sm:$0xf]
    %v6903 = vld [vmem:[#allocation8 + $0x8] sm:$0xf]
    %v6904 = vld [vmem:[#allocation8 + $0xc] sm:$0xf]
    %v6905 = vld [vmem:[#allocation8 + $0x10] sm:$0xf]
    %v6906 = vld [vmem:[#allocation8 + $0x14] sm:$0xf]
    %v6907 = vld [vmem:[#allocation8 + $0x18] sm:$0xf]
    %v6908 = vld [vmem:[#allocation8 + $0x1c] sm:$0xf]
    %v6909 = vld [vmem:[#allocation8 + $0x20] sm:$0xf]
    %v6910 = vld [vmem:[#allocation8 + $0x24] sm:$0xf]
    %v6911 = vld [vmem:[#allocation8 + $0x28] sm:$0xf]
    %v6912 = vld [vmem:[#allocation8 + $0x2c] sm:$0xf]
    %v6913 = vld [vmem:[#allocation8 + $0x30] sm:$0xf]
    %v6914 = vld [vmem:[#allocation8 + $0x34] sm:$0xf]
    %v6915 = vld [vmem:[#allocation8 + $0x38] sm:$0xf]
    %v6916 = vld [vmem:[#allocation8 + $0x3c] sm:$0xf]
    %v6917 = vld [vmem:[#allocation8 + $0x40] sm:$0xf]
    %v6918 = vld [vmem:[#allocation8 + $0x44] sm:$0xf]
    %v6919 = vld [vmem:[#allocation8 + $0x48] sm:$0xf]
    %v6920 = vld [vmem:[#allocation8 + $0x4c] sm:$0xf]
    %v6921 = vld [vmem:[#allocation8 + $0x50] sm:$0xf]
    %v6922 = vld [vmem:[#allocation8 + $0x54] sm:$0xf]
    %v6923 = vld [vmem:[#allocation8 + $0x58] sm:$0xf]
    %v6924 = vld [vmem:[#allocation8 + $0x5c] sm:$0xf]
    %v6925 = vld [vmem:[#allocation8 + $0x60] sm:$0xf]
    %v6926 = vld [vmem:[#allocation8 + $0x64] sm:$0xf]
    %v6927 = vld [vmem:[#allocation8 + $0x68] sm:$0xf]
    %v6928 = vld [vmem:[#allocation8 + $0x6c] sm:$0xf]
    %v6929 = vld [vmem:[#allocation8 + $0x70] sm:$0xf]
    %v6930 = vld [vmem:[#allocation8 + $0x74] sm:$0xf]
    %v6931 = vld [vmem:[#allocation8 + $0x78] sm:$0xf]
    %v6932 = vld [vmem:[#allocation8 + $0x7c] sm:$0xf]
    %v6933 = vld [vmem:[#allocation8 + $0x80] sm:$0xf]
    %v6934 = vld [vmem:[#allocation8 + $0x84] sm:$0xf]
    %v6935 = vld [vmem:[#allocation8 + $0x88] sm:$0xf]
    %v6936 = vld [vmem:[#allocation8 + $0x8c] sm:$0xf]
    %v6937 = vld [vmem:[#allocation8 + $0x90] sm:$0xf]
    %v6938 = vld [vmem:[#allocation8 + $0x94] sm:$0xf]
    %v6939 = vld [vmem:[#allocation8 + $0x98] sm:$0xf]
    %v6940 = vld [vmem:[#allocation8 + $0x9c] sm:$0xf]
    %v6941 = vld [vmem:[#allocation8 + $0xa0] sm:$0xf]
    %v6942 = vld [vmem:[#allocation8 + $0xa4] sm:$0xf]
    %v6943 = vld [vmem:[#allocation8 + $0xa8] sm:$0xf]
    %v6944 = vld [vmem:[#allocation8 + $0xac] sm:$0xf]
    %v6945 = vld [vmem:[#allocation8 + $0xb0] sm:$0xf]
    %v6946 = vld [vmem:[#allocation8 + $0xb4] sm:$0xf]
    %v6947 = vld [vmem:[#allocation8 + $0xb8] sm:$0xf]
    %v6948 = vld [vmem:[#allocation8 + $0xbc] sm:$0xf]
    %v6949 = vld [vmem:[#allocation8 + $0xc0] sm:$0xf]
    %v6950 = vld [vmem:[#allocation8 + $0xc4] sm:$0xf]
    %v6951 = vld [vmem:[#allocation8 + $0xc8] sm:$0xf]
    %v6952 = vld [vmem:[#allocation8 + $0xcc] sm:$0xf]
    %v6953 = vld [vmem:[#allocation8 + $0xd0] sm:$0xf]
    %v6954 = vld [vmem:[#allocation8 + $0xd4] sm:$0xf]
    %v6955 = vld [vmem:[#allocation8 + $0xd8] sm:$0xf]
    %v6956 = vld [vmem:[#allocation8 + $0xdc] sm:$0xf]
    %v6957 = vld [vmem:[#allocation8 + $0xe0] sm:$0xf]
    %v6958 = vld [vmem:[#allocation8 + $0xe4] sm:$0xf]
    %v6959 = vld [vmem:[#allocation8 + $0xe8] sm:$0xf]
    %v6960 = vld [vmem:[#allocation8 + $0xec] sm:$0xf]
    %v6961 = vld [vmem:[#allocation8 + $0xf0] sm:$0xf]
    %v6962 = vld [vmem:[#allocation8 + $0xf4] sm:$0xf]
    %v6963 = vld [vmem:[#allocation8 + $0xf8] sm:$0xf]
    %v6964 = vld [vmem:[#allocation8 + $0xfc] sm:$0xf]
    %v6965 = vld [vmem:[#allocation8 + $0x100] sm:$0xf]
    %v6966 = vld [vmem:[#allocation8 + $0x104] sm:$0xf]
    %v6967 = vld [vmem:[#allocation8 + $0x108] sm:$0xf]
    %v6968 = vld [vmem:[#allocation8 + $0x10c] sm:$0xf]
    %v6969 = vld [vmem:[#allocation8 + $0x110] sm:$0xf]
    %v6970 = vld [vmem:[#allocation8 + $0x114] sm:$0xf]
    %v6971 = vld [vmem:[#allocation8 + $0x118] sm:$0xf]
    %v6972 = vld [vmem:[#allocation8 + $0x11c] sm:$0xf]
    %v6973 = vld [vmem:[#allocation8 + $0x120] sm:$0xf]
    %v6974 = vld [vmem:[#allocation8 + $0x124] sm:$0xf]
    %v6975 = vld [vmem:[#allocation8 + $0x128] sm:$0xf]
    %v6976 = vld [vmem:[#allocation8 + $0x12c] sm:$0xf]
    %v6977 = vld [vmem:[#allocation8 + $0x130] sm:$0xf]
    %v6978 = vld [vmem:[#allocation8 + $0x134] sm:$0xf]
    %v6979 = vld [vmem:[#allocation8 + $0x138] sm:$0xf]
    %v6980 = vld [vmem:[#allocation8 + $0x13c] sm:$0xf]
    %v6981 = vld [vmem:[#allocation8 + $0x140] sm:$0xf]
    %v6982 = vld [vmem:[#allocation8 + $0x144] sm:$0xf]
    %v6983 = vld [vmem:[#allocation8 + $0x148] sm:$0xf]
    %v6984 = vld [vmem:[#allocation8 + $0x14c] sm:$0xf]
    %v6985 = vld [vmem:[#allocation8 + $0x150] sm:$0xf]
    %v6986 = vld [vmem:[#allocation8 + $0x154] sm:$0xf]
    %v6987 = vld [vmem:[#allocation8 + $0x158] sm:$0xf]
    %v6988 = vld [vmem:[#allocation8 + $0x15c] sm:$0xf]
    %v6989 = vld [vmem:[#allocation8 + $0x160] sm:$0xf]
    %v6990 = vld [vmem:[#allocation8 + $0x164] sm:$0xf]
    %v6991 = vld [vmem:[#allocation8 + $0x168] sm:$0xf]
    %v6992 = vld [vmem:[#allocation8 + $0x16c] sm:$0xf]
    %v6993 = vld [vmem:[#allocation8 + $0x170] sm:$0xf]
    %v6994 = vld [vmem:[#allocation8 + $0x174] sm:$0xf]
    %v6995 = vld [vmem:[#allocation8 + $0x178] sm:$0xf]
    %v6996 = vld [vmem:[#allocation8 + $0x17c] sm:$0xf]
    %v6997 = vld [vmem:[#allocation8 + $0x180] sm:$0xf]
    %v6998 = vld [vmem:[#allocation8 + $0x184] sm:$0xf]
    %v6999 = vld [vmem:[#allocation8 + $0x188] sm:$0xf]
    %v7000 = vld [vmem:[#allocation8 + $0x18c] sm:$0xf]
    %v7001 = vld [vmem:[#allocation8 + $0x190] sm:$0xf]
    %v7002 = vld [vmem:[#allocation8 + $0x194] sm:$0xf]
    %v7003 = vld [vmem:[#allocation8 + $0x198] sm:$0xf]
    %v7004 = vld [vmem:[#allocation8 + $0x19c] sm:$0xf]
    %v7005 = vld [vmem:[#allocation8 + $0x1a0] sm:$0xf]
    %v7006 = vld [vmem:[#allocation8 + $0x1a4] sm:$0xf]
    %v7007 = vld [vmem:[#allocation8 + $0x1a8] sm:$0xf]
    %v7008 = vld [vmem:[#allocation8 + $0x1ac] sm:$0xf]
    %v7009 = vld [vmem:[#allocation8 + $0x1b0] sm:$0xf]
    %v7010 = vld [vmem:[#allocation8 + $0x1b4] sm:$0xf]
    %v7011 = vld [vmem:[#allocation8 + $0x1b8] sm:$0xf]
    %v7012 = vld [vmem:[#allocation8 + $0x1bc] sm:$0xf]
    %v7013 = vld [vmem:[#allocation8 + $0x1c0] sm:$0xf]
    %v7014 = vld [vmem:[#allocation8 + $0x1c4] sm:$0xf]
    %v7015 = vld [vmem:[#allocation8 + $0x1c8] sm:$0xf]
    %v7016 = vld [vmem:[#allocation8 + $0x1cc] sm:$0xf]
    %v7017 = vld [vmem:[#allocation8 + $0x1d0] sm:$0xf]
    %v7018 = vld [vmem:[#allocation8 + $0x1d4] sm:$0xf]
    %v7019 = vld [vmem:[#allocation8 + $0x1d8] sm:$0xf]
    %v7020 = vld [vmem:[#allocation8 + $0x1dc] sm:$0xf]
    %v7021 = vld [vmem:[#allocation8 + $0x1e0] sm:$0xf]
    %v7022 = vld [vmem:[#allocation8 + $0x1e4] sm:$0xf]
    %v7023 = vld [vmem:[#allocation8 + $0x1e8] sm:$0xf]
    %v7024 = vld [vmem:[#allocation8 + $0x1ec] sm:$0xf]
    %v7025 = vld [vmem:[#allocation8 + $0x1f0] sm:$0xf]
    %v7026 = vld [vmem:[#allocation8 + $0x1f4] sm:$0xf]
    %v7027 = vld [vmem:[#allocation8 + $0x1f8] sm:$0xf]
    %v7028 = vld [vmem:[#allocation8 + $0x1fc] sm:$0xf]
    %v7029 = vld [vmem:[#allocation8 + $0x200] sm:$0xf]
    %v7030 = vld [vmem:[#allocation8 + $0x204] sm:$0xf]
    %v7031 = vld [vmem:[#allocation8 + $0x208] sm:$0xf]
    %v7032 = vld [vmem:[#allocation8 + $0x20c] sm:$0xf]
    %v7033 = vld [vmem:[#allocation8 + $0x210] sm:$0xf]
    %v7034 = vld [vmem:[#allocation8 + $0x214] sm:$0xf]
    %v7035 = vld [vmem:[#allocation8 + $0x218] sm:$0xf]
    %v7036 = vld [vmem:[#allocation8 + $0x21c] sm:$0xf]
    %v7037 = vld [vmem:[#allocation8 + $0x220] sm:$0xf]
    %v7038 = vld [vmem:[#allocation8 + $0x224] sm:$0xf]
    %v7039 = vld [vmem:[#allocation8 + $0x228] sm:$0xf]
    %v7040 = vld [vmem:[#allocation8 + $0x22c] sm:$0xf]
    %v7041 = vld [vmem:[#allocation8 + $0x230] sm:$0xf]
    %v7042 = vld [vmem:[#allocation8 + $0x234] sm:$0xf]
    %v7043 = vld [vmem:[#allocation8 + $0x238] sm:$0xf]
    %v7044 = vld [vmem:[#allocation8 + $0x23c] sm:$0xf]
    %v7189 = vunpack.c.l.b16 %v6901
    %v7190 = vunpack.c.l.b16 %v6902
    %v7191 = vunpack.c.l.b16 %v6903
    %v7192 = vunpack.c.l.b16 %v6904
    %v7193 = vunpack.c.l.b16 %v6905
    %v7194 = vunpack.c.l.b16 %v6906
    %v7195 = vunpack.c.l.b16 %v6907
    %v7196 = vunpack.c.l.b16 %v6908
    %v7197 = vunpack.c.l.b16 %v6909
    %v7198 = vunpack.c.l.b16 %v6910
    %v7199 = vunpack.c.l.b16 %v6911
    %v7200 = vunpack.c.l.b16 %v6912
    %v7201 = vunpack.c.l.b16 %v6913
    %v7202 = vunpack.c.l.b16 %v6914
    %v7203 = vunpack.c.l.b16 %v6915
    %v7204 = vunpack.c.l.b16 %v6916
    %v7205 = vunpack.c.l.b16 %v6917
    %v7206 = vunpack.c.l.b16 %v6918
    %v7207 = vunpack.c.l.b16 %v6919
    %v7208 = vunpack.c.l.b16 %v6920
    %v7209 = vunpack.c.l.b16 %v6921
    %v7210 = vunpack.c.l.b16 %v6922
    %v7211 = vunpack.c.l.b16 %v6923
    %v7212 = vunpack.c.l.b16 %v6924
    %v7213 = vunpack.c.l.b16 %v6925
    %v7214 = vunpack.c.l.b16 %v6926
    %v7215 = vunpack.c.l.b16 %v6927
    %v7216 = vunpack.c.l.b16 %v6928
    %v7217 = vunpack.c.l.b16 %v6929
    %v7218 = vunpack.c.l.b16 %v6930
    %v7219 = vunpack.c.l.b16 %v6931
    %v7220 = vunpack.c.l.b16 %v6932
    %v7221 = vunpack.c.l.b16 %v6933
    %v7222 = vunpack.c.l.b16 %v6934
    %v7223 = vunpack.c.l.b16 %v6935
    %v7224 = vunpack.c.l.b16 %v6936
    %v7225 = vunpack.c.l.b16 %v6937
    %v7226 = vunpack.c.l.b16 %v6938
    %v7227 = vunpack.c.l.b16 %v6939
    %v7228 = vunpack.c.l.b16 %v6940
    %v7229 = vunpack.c.l.b16 %v6941
    %v7230 = vunpack.c.l.b16 %v6942
    %v7231 = vunpack.c.l.b16 %v6943
    %v7232 = vunpack.c.l.b16 %v6944
    %v7233 = vunpack.c.l.b16 %v6945
    %v7234 = vunpack.c.l.b16 %v6946
    %v7235 = vunpack.c.l.b16 %v6947
    %v7236 = vunpack.c.l.b16 %v6948
    %v7237 = vunpack.c.l.b16 %v6949
    %v7238 = vunpack.c.l.b16 %v6950
    %v7239 = vunpack.c.l.b16 %v6951
    %v7240 = vunpack.c.l.b16 %v6952
    %v7241 = vunpack.c.l.b16 %v6953
    %v7242 = vunpack.c.l.b16 %v6954
    %v7243 = vunpack.c.l.b16 %v6955
    %v7244 = vunpack.c.l.b16 %v6956
    %v7245 = vunpack.c.l.b16 %v6957
    %v7246 = vunpack.c.l.b16 %v6958
    %v7247 = vunpack.c.l.b16 %v6959
    %v7248 = vunpack.c.l.b16 %v6960
    %v7249 = vunpack.c.l.b16 %v6961
    %v7250 = vunpack.c.l.b16 %v6962
    %v7251 = vunpack.c.l.b16 %v6963
    %v7252 = vunpack.c.l.b16 %v6964
    %v7253 = vunpack.c.l.b16 %v6965
    %v7254 = vunpack.c.l.b16 %v6966
    %v7255 = vunpack.c.l.b16 %v6967
    %v7256 = vunpack.c.l.b16 %v6968
    %v7257 = vunpack.c.l.b16 %v6969
    %v7258 = vunpack.c.l.b16 %v6970
    %v7259 = vunpack.c.l.b16 %v6971
    %v7260 = vunpack.c.l.b16 %v6972
    %v7261 = vunpack.c.l.b16 %v6973
    %v7262 = vunpack.c.l.b16 %v6974
    %v7263 = vunpack.c.l.b16 %v6975
    %v7264 = vunpack.c.l.b16 %v6976
    %v7265 = vunpack.c.l.b16 %v6977
    %v7266 = vunpack.c.l.b16 %v6978
    %v7267 = vunpack.c.l.b16 %v6979
    %v7268 = vunpack.c.l.b16 %v6980
    %v7269 = vunpack.c.l.b16 %v6981
    %v7270 = vunpack.c.l.b16 %v6982
    %v7271 = vunpack.c.l.b16 %v6983
    %v7272 = vunpack.c.l.b16 %v6984
    %v7273 = vunpack.c.l.b16 %v6985
    %v7274 = vunpack.c.l.b16 %v6986
    %v7275 = vunpack.c.l.b16 %v6987
    %v7276 = vunpack.c.l.b16 %v6988
    %v7277 = vunpack.c.l.b16 %v6989
    %v7278 = vunpack.c.l.b16 %v6990
    %v7279 = vunpack.c.l.b16 %v6991
    %v7280 = vunpack.c.l.b16 %v6992
    %v7281 = vunpack.c.l.b16 %v6993
    %v7282 = vunpack.c.l.b16 %v6994
    %v7283 = vunpack.c.l.b16 %v6995
    %v7284 = vunpack.c.l.b16 %v6996
    %v7285 = vunpack.c.l.b16 %v6997
    %v7286 = vunpack.c.l.b16 %v6998
    %v7287 = vunpack.c.l.b16 %v6999
    %v7288 = vunpack.c.l.b16 %v7000
    %v7289 = vunpack.c.l.b16 %v7001
    %v7290 = vunpack.c.l.b16 %v7002
    %v7291 = vunpack.c.l.b16 %v7003
    %v7292 = vunpack.c.l.b16 %v7004
    %v7293 = vunpack.c.l.b16 %v7005
    %v7294 = vunpack.c.l.b16 %v7006
    %v7295 = vunpack.c.l.b16 %v7007
    %v7296 = vunpack.c.l.b16 %v7008
    %v7297 = vunpack.c.l.b16 %v7009
    %v7298 = vunpack.c.l.b16 %v7010
    %v7299 = vunpack.c.l.b16 %v7011
    %v7300 = vunpack.c.l.b16 %v7012
    %v7301 = vunpack.c.l.b16 %v7013
    %v7302 = vunpack.c.l.b16 %v7014
    %v7303 = vunpack.c.l.b16 %v7015
    %v7304 = vunpack.c.l.b16 %v7016
    %v7305 = vunpack.c.l.b16 %v7017
    %v7306 = vunpack.c.l.b16 %v7018
    %v7307 = vunpack.c.l.b16 %v7019
    %v7308 = vunpack.c.l.b16 %v7020
    %v7309 = vunpack.c.l.b16 %v7021
    %v7310 = vunpack.c.l.b16 %v7022
    %v7311 = vunpack.c.l.b16 %v7023
    %v7312 = vunpack.c.l.b16 %v7024
    %v7313 = vunpack.c.l.b16 %v7025
    %v7314 = vunpack.c.l.b16 %v7026
    %v7315 = vunpack.c.l.b16 %v7027
    %v7316 = vunpack.c.l.b16 %v7028
    %v7317 = vunpack.c.l.b16 %v7029
    %v7318 = vunpack.c.l.b16 %v7030
    %v7319 = vunpack.c.l.b16 %v7031
    %v7320 = vunpack.c.l.b16 %v7032
    %v7321 = vunpack.c.l.b16 %v7033
    %v7322 = vunpack.c.l.b16 %v7034
    %v7323 = vunpack.c.l.b16 %v7035
    %v7324 = vunpack.c.l.b16 %v7036
    %v7325 = vunpack.c.l.b16 %v7037
    %v7326 = vunpack.c.l.b16 %v7038
    %v7327 = vunpack.c.l.b16 %v7039
    %v7328 = vunpack.c.l.b16 %v7040
    %v7329 = vunpack.c.l.b16 %v7041
    %v7330 = vunpack.c.l.b16 %v7042
    %v7331 = vunpack.c.l.b16 %v7043
    %v7332 = vunpack.c.l.b16 %v7044
    %v7333 = vpack.c.b16 %v7190, %v7189
    %v7334 = vpack.c.b16 %v7192, %v7191
    %v7335 = vpack.c.b16 %v7194, %v7193
    %v7336 = vpack.c.b16 %v7196, %v7195
    %v7337 = vpack.c.b16 %v7198, %v7197
    %v7338 = vpack.c.b16 %v7200, %v7199
    %v7339 = vpack.c.b16 %v7202, %v7201
    %v7340 = vpack.c.b16 %v7204, %v7203
    %v7341 = vpack.c.b16 %v7206, %v7205
    %v7342 = vpack.c.b16 %v7208, %v7207
    %v7343 = vpack.c.b16 %v7210, %v7209
    %v7344 = vpack.c.b16 %v7212, %v7211
    %v7345 = vpack.c.b16 %v7214, %v7213
    %v7346 = vpack.c.b16 %v7216, %v7215
    %v7347 = vpack.c.b16 %v7218, %v7217
    %v7348 = vpack.c.b16 %v7220, %v7219
    %v7349 = vpack.c.b16 %v7222, %v7221
    %v7350 = vpack.c.b16 %v7224, %v7223
    %v7351 = vpack.c.b16 %v7226, %v7225
    %v7352 = vpack.c.b16 %v7228, %v7227
    %v7353 = vpack.c.b16 %v7230, %v7229
    %v7354 = vpack.c.b16 %v7232, %v7231
    %v7355 = vpack.c.b16 %v7234, %v7233
    %v7356 = vpack.c.b16 %v7236, %v7235
    %v7357 = vpack.c.b16 %v7238, %v7237
    %v7358 = vpack.c.b16 %v7240, %v7239
    %v7359 = vpack.c.b16 %v7242, %v7241
    %v7360 = vpack.c.b16 %v7244, %v7243
    %v7361 = vpack.c.b16 %v7246, %v7245
    %v7362 = vpack.c.b16 %v7248, %v7247
    %v7363 = vpack.c.b16 %v7250, %v7249
    %v7364 = vpack.c.b16 %v7252, %v7251
    %v7365 = vpack.c.b16 %v7254, %v7253
    %v7366 = vpack.c.b16 %v7256, %v7255
    %v7367 = vpack.c.b16 %v7258, %v7257
    %v7368 = vpack.c.b16 %v7260, %v7259
    %v7369 = vpack.c.b16 %v7262, %v7261
    %v7370 = vpack.c.b16 %v7264, %v7263
    %v7371 = vpack.c.b16 %v7266, %v7265
    %v7372 = vpack.c.b16 %v7268, %v7267
    %v7373 = vpack.c.b16 %v7270, %v7269
    %v7374 = vpack.c.b16 %v7272, %v7271
    %v7375 = vpack.c.b16 %v7274, %v7273
    %v7376 = vpack.c.b16 %v7276, %v7275
    %v7377 = vpack.c.b16 %v7278, %v7277
    %v7378 = vpack.c.b16 %v7280, %v7279
    %v7379 = vpack.c.b16 %v7282, %v7281
    %v7380 = vpack.c.b16 %v7284, %v7283
    %v7381 = vpack.c.b16 %v7286, %v7285
    %v7382 = vpack.c.b16 %v7288, %v7287
    %v7383 = vpack.c.b16 %v7290, %v7289
    %v7384 = vpack.c.b16 %v7292, %v7291
    %v7385 = vpack.c.b16 %v7294, %v7293
    %v7386 = vpack.c.b16 %v7296, %v7295
    %v7387 = vpack.c.b16 %v7298, %v7297
    %v7388 = vpack.c.b16 %v7300, %v7299
    %v7389 = vpack.c.b16 %v7302, %v7301
    %v7390 = vpack.c.b16 %v7304, %v7303
    %v7391 = vpack.c.b16 %v7306, %v7305
    %v7392 = vpack.c.b16 %v7308, %v7307
    %v7393 = vpack.c.b16 %v7310, %v7309
    %v7394 = vpack.c.b16 %v7312, %v7311
    %v7395 = vpack.c.b16 %v7314, %v7313
    %v7396 = vpack.c.b16 %v7316, %v7315
    %v7397 = vpack.c.b16 %v7318, %v7317
    %v7398 = vpack.c.b16 %v7320, %v7319
    %v7399 = vpack.c.b16 %v7322, %v7321
    %v7400 = vpack.c.b16 %v7324, %v7323
    %v7401 = vpack.c.b16 %v7326, %v7325
    %v7402 = vpack.c.b16 %v7328, %v7327
    %v7403 = vpack.c.b16 %v7330, %v7329
    %v7404 = vpack.c.b16 %v7332, %v7331
    %7477 = vmatprep.subr.bf16.mxu0 0
    %7478 = vmatpush1.bf16.msra.mxu0 %v7340
    %7479 = vmatprep.subr.bf16.mxu0 0
    %7480 = vmatpush1.bf16.msra.mxu0 %v7339
    %7481 = vmatprep.subr.bf16.mxu0 0
    %7482 = vmatpush1.bf16.msra.mxu0 %v7338
    %7483 = vmatprep.subr.bf16.mxu0 0
    %7484 = vmatpush1.bf16.msra.mxu0 %v7337
    %7485 = vmatprep.subr.bf16.mxu0 0
    %7486 = vmatpush1.bf16.msra.mxu0 %v7336
    %7487 = vmatprep.subr.bf16.mxu0 0
    %7488 = vmatpush1.bf16.msra.mxu0 %v7335
    %7489 = vmatprep.subr.bf16.mxu0 0
    %7490 = vmatpush1.bf16.msra.mxu0 %v7334
    %7491 = vmatprep.subr.bf16.mxu0 0
    %7492 = vmatpush1.bf16.msra.mxu0 %v7333
    %7493 = vmatprep.subr.bf16.mxu0 0
    %7494 = vmatpush2.bf16.msra.mxu0 %v7348
    %7495 = vmatprep.subr.bf16.mxu0 0
    %7496 = vmatpush2.bf16.msra.mxu0 %v7347
    %7497 = vmatprep.subr.bf16.mxu0 0
    %7498 = vmatpush2.bf16.msra.mxu0 %v7346
    %7499 = vmatprep.subr.bf16.mxu0 0
    %7500 = vmatpush2.bf16.msra.mxu0 %v7345
    %7501 = vmatprep.subr.bf16.mxu0 0
    %7502 = vmatpush2.bf16.msra.mxu0 %v7344
    %7503 = vmatprep.subr.bf16.mxu0 0
    %7504 = vmatpush2.bf16.msra.mxu0 %v7343
    %7505 = vmatprep.subr.bf16.mxu0 0
    %7506 = vmatpush2.bf16.msra.mxu0 %v7342
    %7507 = vmatprep.subr.bf16.mxu0 0
    %7508 = vmatpush2.bf16.msra.mxu0 %v7341
    %7509 = vmatprep.mubr.bf16.mxu0 %v1207
    %7510 = vmatmul.mubr.bf16.gmra.mxu0 %v1206
    %v7511 = vpop.f32.mrf.mxu0
    %v7512 = vadd.f32 0.0, %v7511
    %v7513 = vpop.f32.mrf.mxu0
    %v7514 = vpop.f32.mrf.mxu0
    %v7515 = vadd.f32 0.0, %v7514
    %v7516 = vpop.f32.mrf.mxu0
    %7517 = vmatprep.mubr.bf16.mxu0 %v1210
    %7518 = vmatmul.mubr.bf16.gmra.mxu0 %v1209
    %v7519 = vpop.f32.mrf.mxu0
    %v7520 = vadd.f32 0.0, %v7519
    %v7521 = vpop.f32.mrf.mxu0
    %v7522 = vpop.f32.mrf.mxu0
    %v7523 = vadd.f32 0.0, %v7522
    %v7524 = vpop.f32.mrf.mxu0
    %7525 = vmatprep.mubr.bf16.mxu0 %v1213
    %7526 = vmatmul.mubr.bf16.gmra.mxu0 %v1212
    %v7527 = vpop.f32.mrf.mxu0
    %v7528 = vadd.f32 0.0, %v7527
    %v7529 = vpop.f32.mrf.mxu0
    %v7530 = vpop.f32.mrf.mxu0
    %v7531 = vadd.f32 0.0, %v7530
    %v7532 = vpop.f32.mrf.mxu0
    %7533 = vmatprep.mubr.bf16.mxu0 %v1216
    %7534 = vmatmul.mubr.bf16.gmra.mxu0 %v1215
    %v7535 = vpop.f32.mrf.mxu0
    %v7536 = vadd.f32 0.0, %v7535
    %v7537 = vpop.f32.mrf.mxu0
    %v7538 = vpop.f32.mrf.mxu0
    %v7539 = vadd.f32 0.0, %v7538
    %v7540 = vpop.f32.mrf.mxu0
    %7541 = vmatprep.mubr.bf16.mxu0 %v1219
    %7542 = vmatmul.mubr.bf16.gmra.mxu0 %v1218
    %v7543 = vpop.f32.mrf.mxu0
    %v7544 = vadd.f32 0.0, %v7543
    %v7545 = vpop.f32.mrf.mxu0
    %v7546 = vpop.f32.mrf.mxu0
    %v7547 = vadd.f32 0.0, %v7546
    %v7548 = vpop.f32.mrf.mxu0
    %7549 = vmatprep.mubr.bf16.mxu0 %v1222
    %7550 = vmatmul.mubr.bf16.gmra.mxu0 %v1221
    %v7551 = vpop.f32.mrf.mxu0
    %v7552 = vadd.f32 0.0, %v7551
    %v7553 = vpop.f32.mrf.mxu0
    %v7554 = vpop.f32.mrf.mxu0
    %v7555 = vadd.f32 0.0, %v7554
    %v7556 = vpop.f32.mrf.mxu0
    %7557 = vmatprep.mubr.bf16.mxu0 %v1225
    %7558 = vmatmul.mubr.bf16.gmra.mxu0 %v1224
    %v7559 = vpop.f32.mrf.mxu0
    %v7560 = vadd.f32 0.0, %v7559
    %v7561 = vpop.f32.mrf.mxu0
    %v7562 = vpop.f32.mrf.mxu0
    %v7563 = vadd.f32 0.0, %v7562
    %v7564 = vpop.f32.mrf.mxu0
    %7565 = vmatprep.mubr.bf16.mxu0 %v1228
    %7566 = vmatmul.mubr.bf16.gmra.mxu0 %v1227
    %v7567 = vpop.f32.mrf.mxu0
    %v7568 = vadd.f32 0.0, %v7567
    %v7569 = vpop.f32.mrf.mxu0
    %v7570 = vpop.f32.mrf.mxu0
    %v7571 = vadd.f32 0.0, %v7570
    %v7572 = vpop.f32.mrf.mxu0
    %7573 = vmatprep.mubr.bf16.mxu0 %v1231
    %7574 = vmatmul.mubr.bf16.gmra.mxu0 %v1230
    %v7575 = vpop.f32.mrf.mxu0
    %v7576 = vadd.f32 0.0, %v7575
    %v7577 = vpop.f32.mrf.mxu0
    %v7578 = vpop.f32.mrf.mxu0
    %v7579 = vadd.f32 0.0, %v7578
    %v7580 = vpop.f32.mrf.mxu0
    %7581 = vmatprep.mubr.bf16.mxu0 %v1234
    %7582 = vmatmul.mubr.bf16.gmra.mxu0 %v1233
    %v7583 = vpop.f32.mrf.mxu0
    %v7584 = vadd.f32 0.0, %v7583
    %v7585 = vpop.f32.mrf.mxu0
    %v7586 = vpop.f32.mrf.mxu0
    %v7587 = vadd.f32 0.0, %v7586
    %v7588 = vpop.f32.mrf.mxu0
    %7589 = vmatprep.mubr.bf16.mxu0 %v1237
    %7590 = vmatmul.mubr.bf16.gmra.mxu0 %v1236
    %v7591 = vpop.f32.mrf.mxu0
    %v7592 = vadd.f32 0.0, %v7591
    %v7593 = vpop.f32.mrf.mxu0
    %v7594 = vpop.f32.mrf.mxu0
    %v7595 = vadd.f32 0.0, %v7594
    %v7596 = vpop.f32.mrf.mxu0
    %7597 = vmatprep.mubr.bf16.mxu0 %v1240
    %7598 = vmatmul.mubr.bf16.gmra.mxu0 %v1239
    %v7599 = vpop.f32.mrf.mxu0
    %v7600 = vadd.f32 0.0, %v7599
    %v7601 = vpop.f32.mrf.mxu0
    %v7602 = vpop.f32.mrf.mxu0
    %v7603 = vadd.f32 0.0, %v7602
    %v7604 = vpop.f32.mrf.mxu0
    %7605 = vmatprep.mubr.bf16.mxu0 %v1243
    %7606 = vmatmul.mubr.bf16.gmra.mxu0 %v1242
    %v7607 = vpop.f32.mrf.mxu0
    %v7608 = vadd.f32 0.0, %v7607
    %v7609 = vpop.f32.mrf.mxu0
    %v7610 = vpop.f32.mrf.mxu0
    %v7611 = vadd.f32 0.0, %v7610
    %v7612 = vpop.f32.mrf.mxu0
    %7613 = vmatprep.mubr.bf16.mxu0 %v1246
    %7614 = vmatmul.mubr.bf16.gmra.mxu0 %v1245
    %v7615 = vpop.f32.mrf.mxu0
    %v7616 = vadd.f32 0.0, %v7615
    %v7617 = vpop.f32.mrf.mxu0
    %v7618 = vpop.f32.mrf.mxu0
    %v7619 = vadd.f32 0.0, %v7618
    %v7620 = vpop.f32.mrf.mxu0
    %7621 = vmatprep.mubr.bf16.mxu0 %v1249
    %7622 = vmatmul.mubr.bf16.gmra.mxu0 %v1248
    %v7623 = vpop.f32.mrf.mxu0
    %v7624 = vadd.f32 0.0, %v7623
    %v7625 = vpop.f32.mrf.mxu0
    %v7626 = vpop.f32.mrf.mxu0
    %v7627 = vadd.f32 0.0, %v7626
    %v7628 = vpop.f32.mrf.mxu0
    %7629 = vmatprep.mubr.bf16.mxu0 %v1252
    %7630 = vmatmul.mubr.bf16.gmra.mxu0 %v1251
    %v7631 = vpop.f32.mrf.mxu0
    %v7632 = vadd.f32 0.0, %v7631
    %v7633 = vpop.f32.mrf.mxu0
    %v7634 = vpop.f32.mrf.mxu0
    %v7635 = vadd.f32 0.0, %v7634
    %v7636 = vpop.f32.mrf.mxu0
    %7637 = vmatprep.mubr.bf16.mxu0 %v1207
    %7638 = vmatmul.mubr.bf16.gmra.mxu0 %v1206
    %v7639 = vpop.f32.mrf.mxu0
    %v7640 = vadd.f32 0.0, %v7639
    %v7641 = vpop.f32.mrf.mxu0
    %v7642 = vpop.f32.mrf.mxu0
    %v7643 = vadd.f32 0.0, %v7642
    %v7644 = vpop.f32.mrf.mxu0
    %7645 = vmatprep.mubr.bf16.mxu0 %v1258
    %7646 = vmatmul.mubr.bf16.gmra.mxu0 %v1257
    %v7647 = vpop.f32.mrf.mxu0
    %v7648 = vadd.f32 0.0, %v7647
    %v7649 = vpop.f32.mrf.mxu0
    %v7650 = vpop.f32.mrf.mxu0
    %v7651 = vadd.f32 0.0, %v7650
    %v7652 = vpop.f32.mrf.mxu0
    %7653 = vmatprep.mubr.bf16.mxu0 %v1261
    %7654 = vmatmul.mubr.bf16.gmra.mxu0 %v1260
    %v7655 = vpop.f32.mrf.mxu0
    %v7656 = vadd.f32 0.0, %v7655
    %v7657 = vpop.f32.mrf.mxu0
    %v7658 = vpop.f32.mrf.mxu0
    %v7659 = vadd.f32 0.0, %v7658
    %v7660 = vpop.f32.mrf.mxu0
    %7661 = vmatprep.mubr.bf16.mxu0 %v1264
    %7662 = vmatmul.mubr.bf16.gmra.mxu0 %v1263
    %v7663 = vpop.f32.mrf.mxu0
    %v7664 = vadd.f32 0.0, %v7663
    %v7665 = vpop.f32.mrf.mxu0
    %v7666 = vpop.f32.mrf.mxu0
    %v7667 = vadd.f32 0.0, %v7666
    %v7668 = vpop.f32.mrf.mxu0
    %7669 = vmatprep.mubr.bf16.mxu0 %v1267
    %7670 = vmatmul.mubr.bf16.gmra.mxu0 %v1266
    %v7671 = vpop.f32.mrf.mxu0
    %v7672 = vadd.f32 0.0, %v7671
    %v7673 = vpop.f32.mrf.mxu0
    %v7674 = vpop.f32.mrf.mxu0
    %v7675 = vadd.f32 0.0, %v7674
    %v7676 = vpop.f32.mrf.mxu0
    %7677 = vmatprep.mubr.bf16.mxu0 %v1270
    %7678 = vmatmul.mubr.bf16.gmra.mxu0 %v1269
    %v7679 = vpop.f32.mrf.mxu0
    %v7680 = vadd.f32 0.0, %v7679
    %v7681 = vpop.f32.mrf.mxu0
    %v7682 = vpop.f32.mrf.mxu0
    %v7683 = vadd.f32 0.0, %v7682
    %v7684 = vpop.f32.mrf.mxu0
    %7685 = vmatprep.mubr.bf16.mxu0 %v1273
    %7686 = vmatmul.mubr.bf16.gmra.mxu0 %v1272
    %v7687 = vpop.f32.mrf.mxu0
    %v7688 = vadd.f32 0.0, %v7687
    %v7689 = vpop.f32.mrf.mxu0
    %v7690 = vpop.f32.mrf.mxu0
    %v7691 = vadd.f32 0.0, %v7690
    %v7692 = vpop.f32.mrf.mxu0
    %7693 = vmatprep.mubr.bf16.mxu0 %v1276
    %7694 = vmatmul.mubr.bf16.gmra.mxu0 %v1275
    %v7695 = vpop.f32.mrf.mxu0
    %v7696 = vadd.f32 0.0, %v7695
    %v7697 = vpop.f32.mrf.mxu0
    %v7698 = vpop.f32.mrf.mxu0
    %v7699 = vadd.f32 0.0, %v7698
    %v7700 = vpop.f32.mrf.mxu0
    %7701 = vmatprep.mubr.bf16.mxu0 %v1279
    %7702 = vmatmul.mubr.bf16.gmra.mxu0 %v1278
    %v7703 = vpop.f32.mrf.mxu0
    %v7704 = vadd.f32 0.0, %v7703
    %v7705 = vpop.f32.mrf.mxu0
    %v7706 = vpop.f32.mrf.mxu0
    %v7707 = vadd.f32 0.0, %v7706
    %v7708 = vpop.f32.mrf.mxu0
    %7709 = vmatprep.mubr.bf16.mxu0 %v1282
    %7710 = vmatmul.mubr.bf16.gmra.mxu0 %v1281
    %v7711 = vpop.f32.mrf.mxu0
    %v7712 = vadd.f32 0.0, %v7711
    %v7713 = vpop.f32.mrf.mxu0
    %v7714 = vpop.f32.mrf.mxu0
    %v7715 = vadd.f32 0.0, %v7714
    %v7716 = vpop.f32.mrf.mxu0
    %7717 = vmatprep.mubr.bf16.mxu0 %v1285
    %7718 = vmatmul.mubr.bf16.gmra.mxu0 %v1284
    %v7719 = vpop.f32.mrf.mxu0
    %v7720 = vadd.f32 0.0, %v7719
    %v7721 = vpop.f32.mrf.mxu0
    %v7722 = vpop.f32.mrf.mxu0
    %v7723 = vadd.f32 0.0, %v7722
    %v7724 = vpop.f32.mrf.mxu0
    %7725 = vmatprep.mubr.bf16.mxu0 %v1288
    %7726 = vmatmul.mubr.bf16.gmra.mxu0 %v1287
    %v7727 = vpop.f32.mrf.mxu0
    %v7728 = vadd.f32 0.0, %v7727
    %v7729 = vpop.f32.mrf.mxu0
    %v7730 = vpop.f32.mrf.mxu0
    %v7731 = vadd.f32 0.0, %v7730
    %v7732 = vpop.f32.mrf.mxu0
    %7733 = vmatprep.mubr.bf16.mxu0 %v1291
    %7734 = vmatmul.mubr.bf16.gmra.mxu0 %v1290
    %v7735 = vpop.f32.mrf.mxu0
    %v7736 = vadd.f32 0.0, %v7735
    %v7737 = vpop.f32.mrf.mxu0
    %v7738 = vpop.f32.mrf.mxu0
    %v7739 = vadd.f32 0.0, %v7738
    %v7740 = vpop.f32.mrf.mxu0
    %7741 = vmatprep.mubr.bf16.mxu0 %v1294
    %7742 = vmatmul.mubr.bf16.gmra.mxu0 %v1293
    %v7743 = vpop.f32.mrf.mxu0
    %v7744 = vadd.f32 0.0, %v7743
    %v7745 = vpop.f32.mrf.mxu0
    %v7746 = vpop.f32.mrf.mxu0
    %v7747 = vadd.f32 0.0, %v7746
    %v7748 = vpop.f32.mrf.mxu0
    %7749 = vmatprep.mubr.bf16.mxu0 %v1297
    %7750 = vmatmul.mubr.bf16.gmra.mxu0 %v1296
    %v7751 = vpop.f32.mrf.mxu0
    %v7752 = vadd.f32 0.0, %v7751
    %v7753 = vpop.f32.mrf.mxu0
    %v7754 = vpop.f32.mrf.mxu0
    %v7755 = vadd.f32 0.0, %v7754
    %v7756 = vpop.f32.mrf.mxu0
    %7757 = vmatprep.mubr.bf16.mxu0 %v1300
    %7758 = vmatmul.mubr.bf16.gmra.mxu0 %v1299
    %v7759 = vpop.f32.mrf.mxu0
    %v7760 = vadd.f32 0.0, %v7759
    %v7761 = vpop.f32.mrf.mxu0
    %v7762 = vpop.f32.mrf.mxu0
    %v7763 = vadd.f32 0.0, %v7762
    %v7764 = vpop.f32.mrf.mxu0
    %7765 = vdwg.mxu0
    %7766 = vmatprep.subr.bf16.mxu0 0
    %7767 = vmatpush1.bf16.msra.mxu0 %v7356
    %7768 = vmatprep.subr.bf16.mxu0 0
    %7769 = vmatpush1.bf16.msra.mxu0 %v7355
    %7770 = vmatprep.subr.bf16.mxu0 0
    %7771 = vmatpush1.bf16.msra.mxu0 %v7354
    %7772 = vmatprep.subr.bf16.mxu0 0
    %7773 = vmatpush1.bf16.msra.mxu0 %v7353
    %7774 = vmatprep.subr.bf16.mxu0 0
    %7775 = vmatpush1.bf16.msra.mxu0 %v7352
    %7776 = vmatprep.subr.bf16.mxu0 0
    %7777 = vmatpush1.bf16.msra.mxu0 %v7351
    %7778 = vmatprep.subr.bf16.mxu0 0
    %7779 = vmatpush1.bf16.msra.mxu0 %v7350
    %7780 = vmatprep.subr.bf16.mxu0 0
    %7781 = vmatpush1.bf16.msra.mxu0 %v7349
    %7782 = vmatprep.subr.bf16.mxu0 0
    %7783 = vmatpush2.bf16.msra.mxu0 %v7364
    %7784 = vmatprep.subr.bf16.mxu0 0
    %7785 = vmatpush2.bf16.msra.mxu0 %v7363
    %7786 = vmatprep.subr.bf16.mxu0 0
    %7787 = vmatpush2.bf16.msra.mxu0 %v7362
    %7788 = vmatprep.subr.bf16.mxu0 0
    %7789 = vmatpush2.bf16.msra.mxu0 %v7361
    %7790 = vmatprep.subr.bf16.mxu0 0
    %7791 = vmatpush2.bf16.msra.mxu0 %v7360
    %7792 = vmatprep.subr.bf16.mxu0 0
    %7793 = vmatpush2.bf16.msra.mxu0 %v7359
    %7794 = vmatprep.subr.bf16.mxu0 0
    %7795 = vmatpush2.bf16.msra.mxu0 %v7358
    %7796 = vmatprep.subr.bf16.mxu0 0
    %7797 = vmatpush2.bf16.msra.mxu0 %v7357
    %7798 = vmatprep.mubr.bf16.mxu0 %v1209
    %7799 = vmatmul.mubr.bf16.gmra.mxu0 %v1208
    %v7800 = vpop.f32.mrf.mxu0
    %v7801 = vadd.f32 %v7512, %v7800
    %v7802 = vpop.f32.mrf.mxu0
    %v7803 = vpop.f32.mrf.mxu0
    %v7804 = vadd.f32 %v7515, %v7803
    %v7805 = vpop.f32.mrf.mxu0
    %7806 = vmatprep.mubr.bf16.mxu0 %v1212
    %7807 = vmatmul.mubr.bf16.gmra.mxu0 %v1211
    %v7808 = vpop.f32.mrf.mxu0
    %v7809 = vadd.f32 %v7520, %v7808
    %v7810 = vpop.f32.mrf.mxu0
    %v7811 = vpop.f32.mrf.mxu0
    %v7812 = vadd.f32 %v7523, %v7811
    %v7813 = vpop.f32.mrf.mxu0
    %7814 = vmatprep.mubr.bf16.mxu0 %v1215
    %7815 = vmatmul.mubr.bf16.gmra.mxu0 %v1214
    %v7816 = vpop.f32.mrf.mxu0
    %v7817 = vadd.f32 %v7528, %v7816
    %v7818 = vpop.f32.mrf.mxu0
    %v7819 = vpop.f32.mrf.mxu0
    %v7820 = vadd.f32 %v7531, %v7819
    %v7821 = vpop.f32.mrf.mxu0
    %7822 = vmatprep.mubr.bf16.mxu0 %v1218
    %7823 = vmatmul.mubr.bf16.gmra.mxu0 %v1217
    %v7824 = vpop.f32.mrf.mxu0
    %v7825 = vadd.f32 %v7536, %v7824
    %v7826 = vpop.f32.mrf.mxu0
    %v7827 = vpop.f32.mrf.mxu0
    %v7828 = vadd.f32 %v7539, %v7827
    %v7829 = vpop.f32.mrf.mxu0
    %7830 = vmatprep.mubr.bf16.mxu0 %v1221
    %7831 = vmatmul.mubr.bf16.gmra.mxu0 %v1220
    %v7832 = vpop.f32.mrf.mxu0
    %v7833 = vadd.f32 %v7544, %v7832
    %v7834 = vpop.f32.mrf.mxu0
    %v7835 = vpop.f32.mrf.mxu0
    %v7836 = vadd.f32 %v7547, %v7835
    %v7837 = vpop.f32.mrf.mxu0
    %7838 = vmatprep.mubr.bf16.mxu0 %v1224
    %7839 = vmatmul.mubr.bf16.gmra.mxu0 %v1223
    %v7840 = vpop.f32.mrf.mxu0
    %v7841 = vadd.f32 %v7552, %v7840
    %v7842 = vpop.f32.mrf.mxu0
    %v7843 = vpop.f32.mrf.mxu0
    %v7844 = vadd.f32 %v7555, %v7843
    %v7845 = vpop.f32.mrf.mxu0
    %7846 = vmatprep.mubr.bf16.mxu0 %v1227
    %7847 = vmatmul.mubr.bf16.gmra.mxu0 %v1226
    %v7848 = vpop.f32.mrf.mxu0
    %v7849 = vadd.f32 %v7560, %v7848
    %v7850 = vpop.f32.mrf.mxu0
    %v7851 = vpop.f32.mrf.mxu0
    %v7852 = vadd.f32 %v7563, %v7851
    %v7853 = vpop.f32.mrf.mxu0
    %7854 = vmatprep.mubr.bf16.mxu0 %v1230
    %7855 = vmatmul.mubr.bf16.gmra.mxu0 %v1229
    %v7856 = vpop.f32.mrf.mxu0
    %v7857 = vadd.f32 %v7568, %v7856
    %v7858 = vpop.f32.mrf.mxu0
    %v7859 = vpop.f32.mrf.mxu0
    %v7860 = vadd.f32 %v7571, %v7859
    %v7861 = vpop.f32.mrf.mxu0
    %7862 = vmatprep.mubr.bf16.mxu0 %v1233
    %7863 = vmatmul.mubr.bf16.gmra.mxu0 %v1232
    %v7864 = vpop.f32.mrf.mxu0
    %v7865 = vadd.f32 %v7576, %v7864
    %v7866 = vpop.f32.mrf.mxu0
    %v7867 = vpop.f32.mrf.mxu0
    %v7868 = vadd.f32 %v7579, %v7867
    %v7869 = vpop.f32.mrf.mxu0
    %7870 = vmatprep.mubr.bf16.mxu0 %v1236
    %7871 = vmatmul.mubr.bf16.gmra.mxu0 %v1235
    %v7872 = vpop.f32.mrf.mxu0
    %v7873 = vadd.f32 %v7584, %v7872
    %v7874 = vpop.f32.mrf.mxu0
    %v7875 = vpop.f32.mrf.mxu0
    %v7876 = vadd.f32 %v7587, %v7875
    %v7877 = vpop.f32.mrf.mxu0
    %7878 = vmatprep.mubr.bf16.mxu0 %v1239
    %7879 = vmatmul.mubr.bf16.gmra.mxu0 %v1238
    %v7880 = vpop.f32.mrf.mxu0
    %v7881 = vadd.f32 %v7592, %v7880
    %v7882 = vpop.f32.mrf.mxu0
    %v7883 = vpop.f32.mrf.mxu0
    %v7884 = vadd.f32 %v7595, %v7883
    %v7885 = vpop.f32.mrf.mxu0
    %7886 = vmatprep.mubr.bf16.mxu0 %v1242
    %7887 = vmatmul.mubr.bf16.gmra.mxu0 %v1241
    %v7888 = vpop.f32.mrf.mxu0
    %v7889 = vadd.f32 %v7600, %v7888
    %v7890 = vpop.f32.mrf.mxu0
    %v7891 = vpop.f32.mrf.mxu0
    %v7892 = vadd.f32 %v7603, %v7891
    %v7893 = vpop.f32.mrf.mxu0
    %7894 = vmatprep.mubr.bf16.mxu0 %v1245
    %7895 = vmatmul.mubr.bf16.gmra.mxu0 %v1244
    %v7896 = vpop.f32.mrf.mxu0
    %v7897 = vadd.f32 %v7608, %v7896
    %v7898 = vpop.f32.mrf.mxu0
    %v7899 = vpop.f32.mrf.mxu0
    %v7900 = vadd.f32 %v7611, %v7899
    %v7901 = vpop.f32.mrf.mxu0
    %7902 = vmatprep.mubr.bf16.mxu0 %v1248
    %7903 = vmatmul.mubr.bf16.gmra.mxu0 %v1247
    %v7904 = vpop.f32.mrf.mxu0
    %v7905 = vadd.f32 %v7616, %v7904
    %v7906 = vpop.f32.mrf.mxu0
    %v7907 = vpop.f32.mrf.mxu0
    %v7908 = vadd.f32 %v7619, %v7907
    %v7909 = vpop.f32.mrf.mxu0
    %7910 = vmatprep.mubr.bf16.mxu0 %v1251
    %7911 = vmatmul.mubr.bf16.gmra.mxu0 %v1250
    %v7912 = vpop.f32.mrf.mxu0
    %v7913 = vadd.f32 %v7624, %v7912
    %v7914 = vpop.f32.mrf.mxu0
    %v7915 = vpop.f32.mrf.mxu0
    %v7916 = vadd.f32 %v7627, %v7915
    %v7917 = vpop.f32.mrf.mxu0
    %7918 = vmatprep.mubr.bf16.mxu0 %v1254
    %7919 = vmatmul.mubr.bf16.gmra.mxu0 %v1253
    %v7920 = vpop.f32.mrf.mxu0
    %v7921 = vadd.f32 %v7632, %v7920
    %v7922 = vpop.f32.mrf.mxu0
    %v7923 = vpop.f32.mrf.mxu0
    %v7924 = vadd.f32 %v7635, %v7923
    %v7925 = vpop.f32.mrf.mxu0
    %7926 = vmatprep.mubr.bf16.mxu0 %v1257
    %7927 = vmatmul.mubr.bf16.gmra.mxu0 %v1208
    %v7928 = vpop.f32.mrf.mxu0
    %v7929 = vadd.f32 %v7640, %v7928
    %v7930 = vpop.f32.mrf.mxu0
    %v7931 = vpop.f32.mrf.mxu0
    %v7932 = vadd.f32 %v7643, %v7931
    %v7933 = vpop.f32.mrf.mxu0
    %7934 = vmatprep.mubr.bf16.mxu0 %v1260
    %7935 = vmatmul.mubr.bf16.gmra.mxu0 %v1259
    %v7936 = vpop.f32.mrf.mxu0
    %v7937 = vadd.f32 %v7648, %v7936
    %v7938 = vpop.f32.mrf.mxu0
    %v7939 = vpop.f32.mrf.mxu0
    %v7940 = vadd.f32 %v7651, %v7939
    %v7941 = vpop.f32.mrf.mxu0
    %7942 = vmatprep.mubr.bf16.mxu0 %v1263
    %7943 = vmatmul.mubr.bf16.gmra.mxu0 %v1262
    %v7944 = vpop.f32.mrf.mxu0
    %v7945 = vadd.f32 %v7656, %v7944
    %v7946 = vpop.f32.mrf.mxu0
    %v7947 = vpop.f32.mrf.mxu0
    %v7948 = vadd.f32 %v7659, %v7947
    %v7949 = vpop.f32.mrf.mxu0
    %7950 = vmatprep.mubr.bf16.mxu0 %v1266
    %7951 = vmatmul.mubr.bf16.gmra.mxu0 %v1265
    %v7952 = vpop.f32.mrf.mxu0
    %v7953 = vadd.f32 %v7664, %v7952
    %v7954 = vpop.f32.mrf.mxu0
    %v7955 = vpop.f32.mrf.mxu0
    %v7956 = vadd.f32 %v7667, %v7955
    %v7957 = vpop.f32.mrf.mxu0
    %7958 = vmatprep.mubr.bf16.mxu0 %v1269
    %7959 = vmatmul.mubr.bf16.gmra.mxu0 %v1268
    %v7960 = vpop.f32.mrf.mxu0
    %v7961 = vadd.f32 %v7672, %v7960
    %v7962 = vpop.f32.mrf.mxu0
    %v7963 = vpop.f32.mrf.mxu0
    %v7964 = vadd.f32 %v7675, %v7963
    %v7965 = vpop.f32.mrf.mxu0
    %7966 = vmatprep.mubr.bf16.mxu0 %v1272
    %7967 = vmatmul.mubr.bf16.gmra.mxu0 %v1271
    %v7968 = vpop.f32.mrf.mxu0
    %v7969 = vadd.f32 %v7680, %v7968
    %v7970 = vpop.f32.mrf.mxu0
    %v7971 = vpop.f32.mrf.mxu0
    %v7972 = vadd.f32 %v7683, %v7971
    %v7973 = vpop.f32.mrf.mxu0
    %7974 = vmatprep.mubr.bf16.mxu0 %v1275
    %7975 = vmatmul.mubr.bf16.gmra.mxu0 %v1274
    %v7976 = vpop.f32.mrf.mxu0
    %v7977 = vadd.f32 %v7688, %v7976
    %v7978 = vpop.f32.mrf.mxu0
    %v7979 = vpop.f32.mrf.mxu0
    %v7980 = vadd.f32 %v7691, %v7979
    %v7981 = vpop.f32.mrf.mxu0
    %7982 = vmatprep.mubr.bf16.mxu0 %v1278
    %7983 = vmatmul.mubr.bf16.gmra.mxu0 %v1277
    %v7984 = vpop.f32.mrf.mxu0
    %v7985 = vadd.f32 %v7696, %v7984
    %v7986 = vpop.f32.mrf.mxu0
    %v7987 = vpop.f32.mrf.mxu0
    %v7988 = vadd.f32 %v7699, %v7987
    %v7989 = vpop.f32.mrf.mxu0
    %7990 = vmatprep.mubr.bf16.mxu0 %v1281
    %7991 = vmatmul.mubr.bf16.gmra.mxu0 %v1280
    %v7992 = vpop.f32.mrf.mxu0
    %v7993 = vadd.f32 %v7704, %v7992
    %v7994 = vpop.f32.mrf.mxu0
    %v7995 = vpop.f32.mrf.mxu0
    %v7996 = vadd.f32 %v7707, %v7995
    %v7997 = vpop.f32.mrf.mxu0
    %7998 = vmatprep.mubr.bf16.mxu0 %v1284
    %7999 = vmatmul.mubr.bf16.gmra.mxu0 %v1283
    %v8000 = vpop.f32.mrf.mxu0
    %v8001 = vadd.f32 %v7712, %v8000
    %v8002 = vpop.f32.mrf.mxu0
    %v8003 = vpop.f32.mrf.mxu0
    %v8004 = vadd.f32 %v7715, %v8003
    %v8005 = vpop.f32.mrf.mxu0
    %8006 = vmatprep.mubr.bf16.mxu0 %v1287
    %8007 = vmatmul.mubr.bf16.gmra.mxu0 %v1286
    %v8008 = vpop.f32.mrf.mxu0
    %v8009 = vadd.f32 %v7720, %v8008
    %v8010 = vpop.f32.mrf.mxu0
    %v8011 = vpop.f32.mrf.mxu0
    %v8012 = vadd.f32 %v7723, %v8011
    %v8013 = vpop.f32.mrf.mxu0
    %8014 = vmatprep.mubr.bf16.mxu0 %v1290
    %8015 = vmatmul.mubr.bf16.gmra.mxu0 %v1289
    %v8016 = vpop.f32.mrf.mxu0
    %v8017 = vadd.f32 %v7728, %v8016
    %v8018 = vpop.f32.mrf.mxu0
    %v8019 = vpop.f32.mrf.mxu0
    %v8020 = vadd.f32 %v7731, %v8019
    %v8021 = vpop.f32.mrf.mxu0
    %8022 = vmatprep.mubr.bf16.mxu0 %v1293
    %8023 = vmatmul.mubr.bf16.gmra.mxu0 %v1292
    %v8024 = vpop.f32.mrf.mxu0
    %v8025 = vadd.f32 %v7736, %v8024
    %v8026 = vpop.f32.mrf.mxu0
    %v8027 = vpop.f32.mrf.mxu0
    %v8028 = vadd.f32 %v7739, %v8027
    %v8029 = vpop.f32.mrf.mxu0
    %8030 = vmatprep.mubr.bf16.mxu0 %v1296
    %8031 = vmatmul.mubr.bf16.gmra.mxu0 %v1295
    %v8032 = vpop.f32.mrf.mxu0
    %v8033 = vadd.f32 %v7744, %v8032
    %v8034 = vpop.f32.mrf.mxu0
    %v8035 = vpop.f32.mrf.mxu0
    %v8036 = vadd.f32 %v7747, %v8035
    %v8037 = vpop.f32.mrf.mxu0
    %8038 = vmatprep.mubr.bf16.mxu0 %v1299
    %8039 = vmatmul.mubr.bf16.gmra.mxu0 %v1298
    %v8040 = vpop.f32.mrf.mxu0
    %v8041 = vadd.f32 %v7752, %v8040
    %v8042 = vpop.f32.mrf.mxu0
    %v8043 = vpop.f32.mrf.mxu0
    %v8044 = vadd.f32 %v7755, %v8043
    %v8045 = vpop.f32.mrf.mxu0
    %8046 = vmatprep.mubr.bf16.mxu0 %v1302
    %8047 = vmatmul.mubr.bf16.gmra.mxu0 %v1301
    %v8048 = vpop.f32.mrf.mxu0
    %v8049 = vadd.f32 %v7760, %v8048
    %v8050 = vpop.f32.mrf.mxu0
    %v8051 = vpop.f32.mrf.mxu0
    %v8052 = vadd.f32 %v7763, %v8051
    %v8053 = vpop.f32.mrf.mxu0
    %8054 = vdwg.mxu0
    %8055 = vmatprep.subr.bf16.mxu0 0
    %8056 = vmatpush1.bf16.msra.mxu0 %v7372
    %8057 = vmatprep.subr.bf16.mxu0 0
    %8058 = vmatpush1.bf16.msra.mxu0 %v7371
    %8059 = vmatprep.subr.bf16.mxu0 0
    %8060 = vmatpush1.bf16.msra.mxu0 %v7370
    %8061 = vmatprep.subr.bf16.mxu0 0
    %8062 = vmatpush1.bf16.msra.mxu0 %v7369
    %8063 = vmatprep.subr.bf16.mxu0 0
    %8064 = vmatpush1.bf16.msra.mxu0 %v7368
    %8065 = vmatprep.subr.bf16.mxu0 0
    %8066 = vmatpush1.bf16.msra.mxu0 %v7367
    %8067 = vmatprep.subr.bf16.mxu0 0
    %8068 = vmatpush1.bf16.msra.mxu0 %v7366
    %8069 = vmatprep.subr.bf16.mxu0 0
    %8070 = vmatpush1.bf16.msra.mxu0 %v7365
    %8071 = vmatprep.subr.bf16.mxu0 0
    %8072 = vmatpush2.bf16.msra.mxu0 %v7380
    %8073 = vmatprep.subr.bf16.mxu0 0
    %8074 = vmatpush2.bf16.msra.mxu0 %v7379
    %8075 = vmatprep.subr.bf16.mxu0 0
    %8076 = vmatpush2.bf16.msra.mxu0 %v7378
    %8077 = vmatprep.subr.bf16.mxu0 0
    %8078 = vmatpush2.bf16.msra.mxu0 %v7377
    %8079 = vmatprep.subr.bf16.mxu0 0
    %8080 = vmatpush2.bf16.msra.mxu0 %v7376
    %8081 = vmatprep.subr.bf16.mxu0 0
    %8082 = vmatpush2.bf16.msra.mxu0 %v7375
    %8083 = vmatprep.subr.bf16.mxu0 0
    %8084 = vmatpush2.bf16.msra.mxu0 %v7374
    %8085 = vmatprep.subr.bf16.mxu0 0
    %8086 = vmatpush2.bf16.msra.mxu0 %v7373
    %8087 = vmatprep.mubr.bf16.mxu0 %v1211
    %8088 = vmatmul.mubr.bf16.gmra.mxu0 %v1210
    %v8089 = vpop.f32.mrf.mxu0
    %v8090 = vadd.f32 %v7801, %v8089
    %v8091 = vpop.f32.mrf.mxu0
    %v8092 = vpop.f32.mrf.mxu0
    %v8093 = vadd.f32 %v7804, %v8092
    %v8094 = vpop.f32.mrf.mxu0
    %8095 = vmatprep.mubr.bf16.mxu0 %v1214
    %8096 = vmatmul.mubr.bf16.gmra.mxu0 %v1213
    %v8097 = vpop.f32.mrf.mxu0
    %v8098 = vadd.f32 %v7809, %v8097
    %v8099 = vpop.f32.mrf.mxu0
    %v8100 = vpop.f32.mrf.mxu0
    %v8101 = vadd.f32 %v7812, %v8100
    %v8102 = vpop.f32.mrf.mxu0
    %8103 = vmatprep.mubr.bf16.mxu0 %v1217
    %8104 = vmatmul.mubr.bf16.gmra.mxu0 %v1216
    %v8105 = vpop.f32.mrf.mxu0
    %v8106 = vadd.f32 %v7817, %v8105
    %v8107 = vpop.f32.mrf.mxu0
    %v8108 = vpop.f32.mrf.mxu0
    %v8109 = vadd.f32 %v7820, %v8108
    %v8110 = vpop.f32.mrf.mxu0
    %8111 = vmatprep.mubr.bf16.mxu0 %v1220
    %8112 = vmatmul.mubr.bf16.gmra.mxu0 %v1219
    %v8113 = vpop.f32.mrf.mxu0
    %v8114 = vadd.f32 %v7825, %v8113
    %v8115 = vpop.f32.mrf.mxu0
    %v8116 = vpop.f32.mrf.mxu0
    %v8117 = vadd.f32 %v7828, %v8116
    %v8118 = vpop.f32.mrf.mxu0
    %8119 = vmatprep.mubr.bf16.mxu0 %v1223
    %8120 = vmatmul.mubr.bf16.gmra.mxu0 %v1222
    %v8121 = vpop.f32.mrf.mxu0
    %v8122 = vadd.f32 %v7833, %v8121
    %v8123 = vpop.f32.mrf.mxu0
    %v8124 = vpop.f32.mrf.mxu0
    %v8125 = vadd.f32 %v7836, %v8124
    %v8126 = vpop.f32.mrf.mxu0
    %8127 = vmatprep.mubr.bf16.mxu0 %v1226
    %8128 = vmatmul.mubr.bf16.gmra.mxu0 %v1225
    %v8129 = vpop.f32.mrf.mxu0
    %v8130 = vadd.f32 %v7841, %v8129
    %v8131 = vpop.f32.mrf.mxu0
    %v8132 = vpop.f32.mrf.mxu0
    %v8133 = vadd.f32 %v7844, %v8132
    %v8134 = vpop.f32.mrf.mxu0
    %8135 = vmatprep.mubr.bf16.mxu0 %v1229
    %8136 = vmatmul.mubr.bf16.gmra.mxu0 %v1228
    %v8137 = vpop.f32.mrf.mxu0
    %v8138 = vadd.f32 %v7849, %v8137
    %v8139 = vpop.f32.mrf.mxu0
    %v8140 = vpop.f32.mrf.mxu0
    %v8141 = vadd.f32 %v7852, %v8140
    %v8142 = vpop.f32.mrf.mxu0
    %8143 = vmatprep.mubr.bf16.mxu0 %v1232
    %8144 = vmatmul.mubr.bf16.gmra.mxu0 %v1231
    %v8145 = vpop.f32.mrf.mxu0
    %v8146 = vadd.f32 %v7857, %v8145
    %v8147 = vpop.f32.mrf.mxu0
    %v8148 = vpop.f32.mrf.mxu0
    %v8149 = vadd.f32 %v7860, %v8148
    %v8150 = vpop.f32.mrf.mxu0
    %8151 = vmatprep.mubr.bf16.mxu0 %v1235
    %8152 = vmatmul.mubr.bf16.gmra.mxu0 %v1234
    %v8153 = vpop.f32.mrf.mxu0
    %v8154 = vadd.f32 %v7865, %v8153
    %v8155 = vpop.f32.mrf.mxu0
    %v8156 = vpop.f32.mrf.mxu0
    %v8157 = vadd.f32 %v7868, %v8156
    %v8158 = vpop.f32.mrf.mxu0
    %8159 = vmatprep.mubr.bf16.mxu0 %v1238
    %8160 = vmatmul.mubr.bf16.gmra.mxu0 %v1237
    %v8161 = vpop.f32.mrf.mxu0
    %v8162 = vadd.f32 %v7873, %v8161
    %v8163 = vpop.f32.mrf.mxu0
    %v8164 = vpop.f32.mrf.mxu0
    %v8165 = vadd.f32 %v7876, %v8164
    %v8166 = vpop.f32.mrf.mxu0
    %8167 = vmatprep.mubr.bf16.mxu0 %v1241
    %8168 = vmatmul.mubr.bf16.gmra.mxu0 %v1240
    %v8169 = vpop.f32.mrf.mxu0
    %v8170 = vadd.f32 %v7881, %v8169
    %v8171 = vpop.f32.mrf.mxu0
    %v8172 = vpop.f32.mrf.mxu0
    %v8173 = vadd.f32 %v7884, %v8172
    %v8174 = vpop.f32.mrf.mxu0
    %8175 = vmatprep.mubr.bf16.mxu0 %v1244
    %8176 = vmatmul.mubr.bf16.gmra.mxu0 %v1243
    %v8177 = vpop.f32.mrf.mxu0
    %v8178 = vadd.f32 %v7889, %v8177
    %v8179 = vpop.f32.mrf.mxu0
    %v8180 = vpop.f32.mrf.mxu0
    %v8181 = vadd.f32 %v7892, %v8180
    %v8182 = vpop.f32.mrf.mxu0
    %8183 = vmatprep.mubr.bf16.mxu0 %v1247
    %8184 = vmatmul.mubr.bf16.gmra.mxu0 %v1246
    %v8185 = vpop.f32.mrf.mxu0
    %v8186 = vadd.f32 %v7897, %v8185
    %v8187 = vpop.f32.mrf.mxu0
    %v8188 = vpop.f32.mrf.mxu0
    %v8189 = vadd.f32 %v7900, %v8188
    %v8190 = vpop.f32.mrf.mxu0
    %8191 = vmatprep.mubr.bf16.mxu0 %v1250
    %8192 = vmatmul.mubr.bf16.gmra.mxu0 %v1249
    %v8193 = vpop.f32.mrf.mxu0
    %v8194 = vadd.f32 %v7905, %v8193
    %v8195 = vpop.f32.mrf.mxu0
    %v8196 = vpop.f32.mrf.mxu0
    %v8197 = vadd.f32 %v7908, %v8196
    %v8198 = vpop.f32.mrf.mxu0
    %8199 = vmatprep.mubr.bf16.mxu0 %v1253
    %8200 = vmatmul.mubr.bf16.gmra.mxu0 %v1252
    %v8201 = vpop.f32.mrf.mxu0
    %v8202 = vadd.f32 %v7913, %v8201
    %v8203 = vpop.f32.mrf.mxu0
    %v8204 = vpop.f32.mrf.mxu0
    %v8205 = vadd.f32 %v7916, %v8204
    %v8206 = vpop.f32.mrf.mxu0
    %8207 = vmatprep.mubr.bf16.mxu0 %v1256
    %8208 = vmatmul.mubr.bf16.gmra.mxu0 %v1255
    %v8209 = vpop.f32.mrf.mxu0
    %v8210 = vadd.f32 %v7921, %v8209
    %v8211 = vpop.f32.mrf.mxu0
    %v8212 = vpop.f32.mrf.mxu0
    %v8213 = vadd.f32 %v7924, %v8212
    %v8214 = vpop.f32.mrf.mxu0
    %8215 = vmatprep.mubr.bf16.mxu0 %v1259
    %8216 = vmatmul.mubr.bf16.gmra.mxu0 %v1258
    %v8217 = vpop.f32.mrf.mxu0
    %v8218 = vadd.f32 %v7929, %v8217
    %v8219 = vpop.f32.mrf.mxu0
    %v8220 = vpop.f32.mrf.mxu0
    %v8221 = vadd.f32 %v7932, %v8220
    %v8222 = vpop.f32.mrf.mxu0
    %8223 = vmatprep.mubr.bf16.mxu0 %v1262
    %8224 = vmatmul.mubr.bf16.gmra.mxu0 %v1261
    %v8225 = vpop.f32.mrf.mxu0
    %v8226 = vadd.f32 %v7937, %v8225
    %v8227 = vpop.f32.mrf.mxu0
    %v8228 = vpop.f32.mrf.mxu0
    %v8229 = vadd.f32 %v7940, %v8228
    %v8230 = vpop.f32.mrf.mxu0
    %8231 = vmatprep.mubr.bf16.mxu0 %v1265
    %8232 = vmatmul.mubr.bf16.gmra.mxu0 %v1264
    %v8233 = vpop.f32.mrf.mxu0
    %v8234 = vadd.f32 %v7945, %v8233
    %v8235 = vpop.f32.mrf.mxu0
    %v8236 = vpop.f32.mrf.mxu0
    %v8237 = vadd.f32 %v7948, %v8236
    %v8238 = vpop.f32.mrf.mxu0
    %8239 = vmatprep.mubr.bf16.mxu0 %v1268
    %8240 = vmatmul.mubr.bf16.gmra.mxu0 %v1267
    %v8241 = vpop.f32.mrf.mxu0
    %v8242 = vadd.f32 %v7953, %v8241
    %v8243 = vpop.f32.mrf.mxu0
    %v8244 = vpop.f32.mrf.mxu0
    %v8245 = vadd.f32 %v7956, %v8244
    %v8246 = vpop.f32.mrf.mxu0
    %8247 = vmatprep.mubr.bf16.mxu0 %v1271
    %8248 = vmatmul.mubr.bf16.gmra.mxu0 %v1270
    %v8249 = vpop.f32.mrf.mxu0
    %v8250 = vadd.f32 %v7961, %v8249
    %v8251 = vpop.f32.mrf.mxu0
    %v8252 = vpop.f32.mrf.mxu0
    %v8253 = vadd.f32 %v7964, %v8252
    %v8254 = vpop.f32.mrf.mxu0
    %8255 = vmatprep.mubr.bf16.mxu0 %v1274
    %8256 = vmatmul.mubr.bf16.gmra.mxu0 %v1273
    %v8257 = vpop.f32.mrf.mxu0
    %v8258 = vadd.f32 %v7969, %v8257
    %v8259 = vpop.f32.mrf.mxu0
    %v8260 = vpop.f32.mrf.mxu0
    %v8261 = vadd.f32 %v7972, %v8260
    %v8262 = vpop.f32.mrf.mxu0
    %8263 = vmatprep.mubr.bf16.mxu0 %v1277
    %8264 = vmatmul.mubr.bf16.gmra.mxu0 %v1276
    %v8265 = vpop.f32.mrf.mxu0
    %v8266 = vadd.f32 %v7977, %v8265
    %v8267 = vpop.f32.mrf.mxu0
    %v8268 = vpop.f32.mrf.mxu0
    %v8269 = vadd.f32 %v7980, %v8268
    %v8270 = vpop.f32.mrf.mxu0
    %8271 = vmatprep.mubr.bf16.mxu0 %v1280
    %8272 = vmatmul.mubr.bf16.gmra.mxu0 %v1279
    %v8273 = vpop.f32.mrf.mxu0
    %v8274 = vadd.f32 %v7985, %v8273
    %v8275 = vpop.f32.mrf.mxu0
    %v8276 = vpop.f32.mrf.mxu0
    %v8277 = vadd.f32 %v7988, %v8276
    %v8278 = vpop.f32.mrf.mxu0
    %8279 = vmatprep.mubr.bf16.mxu0 %v1283
    %8280 = vmatmul.mubr.bf16.gmra.mxu0 %v1282
    %v8281 = vpop.f32.mrf.mxu0
    %v8282 = vadd.f32 %v7993, %v8281
    %v8283 = vpop.f32.mrf.mxu0
    %v8284 = vpop.f32.mrf.mxu0
    %v8285 = vadd.f32 %v7996, %v8284
    %v8286 = vpop.f32.mrf.mxu0
    %8287 = vmatprep.mubr.bf16.mxu0 %v1286
    %8288 = vmatmul.mubr.bf16.gmra.mxu0 %v1285
    %v8289 = vpop.f32.mrf.mxu0
    %v8290 = vadd.f32 %v8001, %v8289
    %v8291 = vpop.f32.mrf.mxu0
    %v8292 = vpop.f32.mrf.mxu0
    %v8293 = vadd.f32 %v8004, %v8292
    %v8294 = vpop.f32.mrf.mxu0
    %8295 = vmatprep.mubr.bf16.mxu0 %v1289
    %8296 = vmatmul.mubr.bf16.gmra.mxu0 %v1288
    %v8297 = vpop.f32.mrf.mxu0
    %v8298 = vadd.f32 %v8009, %v8297
    %v8299 = vpop.f32.mrf.mxu0
    %v8300 = vpop.f32.mrf.mxu0
    %v8301 = vadd.f32 %v8012, %v8300
    %v8302 = vpop.f32.mrf.mxu0
    %8303 = vmatprep.mubr.bf16.mxu0 %v1292
    %8304 = vmatmul.mubr.bf16.gmra.mxu0 %v1291
    %v8305 = vpop.f32.mrf.mxu0
    %v8306 = vadd.f32 %v8017, %v8305
    %v8307 = vpop.f32.mrf.mxu0
    %v8308 = vpop.f32.mrf.mxu0
    %v8309 = vadd.f32 %v8020, %v8308
    %v8310 = vpop.f32.mrf.mxu0
    %8311 = vmatprep.mubr.bf16.mxu0 %v1295
    %8312 = vmatmul.mubr.bf16.gmra.mxu0 %v1294
    %v8313 = vpop.f32.mrf.mxu0
    %v8314 = vadd.f32 %v8025, %v8313
    %v8315 = vpop.f32.mrf.mxu0
    %v8316 = vpop.f32.mrf.mxu0
    %v8317 = vadd.f32 %v8028, %v8316
    %v8318 = vpop.f32.mrf.mxu0
    %8319 = vmatprep.mubr.bf16.mxu0 %v1298
    %8320 = vmatmul.mubr.bf16.gmra.mxu0 %v1297
    %v8321 = vpop.f32.mrf.mxu0
    %v8322 = vadd.f32 %v8033, %v8321
    %v8323 = vpop.f32.mrf.mxu0
    %v8324 = vpop.f32.mrf.mxu0
    %v8325 = vadd.f32 %v8036, %v8324
    %v8326 = vpop.f32.mrf.mxu0
    %8327 = vmatprep.mubr.bf16.mxu0 %v1301
    %8328 = vmatmul.mubr.bf16.gmra.mxu0 %v1300
    %v8329 = vpop.f32.mrf.mxu0
    %v8330 = vadd.f32 %v8041, %v8329
    %v8331 = vpop.f32.mrf.mxu0
    %v8332 = vpop.f32.mrf.mxu0
    %v8333 = vadd.f32 %v8044, %v8332
    %v8334 = vpop.f32.mrf.mxu0
    %8335 = vmatprep.mubr.bf16.mxu0 %v1304
    %8336 = vmatmul.mubr.bf16.gmra.mxu0 %v1303
    %v8337 = vpop.f32.mrf.mxu0
    %v8338 = vadd.f32 %v8049, %v8337
    %v8339 = vpop.f32.mrf.mxu0
    %v8340 = vpop.f32.mrf.mxu0
    %v8341 = vadd.f32 %v8052, %v8340
    %v8342 = vpop.f32.mrf.mxu0
    %8343 = vdwg.mxu0
    %8344 = vmatprep.subr.bf16.mxu0 0
    %8345 = vmatpush1.bf16.msra.mxu0 %v7388
    %8346 = vmatprep.subr.bf16.mxu0 0
    %8347 = vmatpush1.bf16.msra.mxu0 %v7387
    %8348 = vmatprep.subr.bf16.mxu0 0
    %8349 = vmatpush1.bf16.msra.mxu0 %v7386
    %8350 = vmatprep.subr.bf16.mxu0 0
    %8351 = vmatpush1.bf16.msra.mxu0 %v7385
    %8352 = vmatprep.subr.bf16.mxu0 0
    %8353 = vmatpush1.bf16.msra.mxu0 %v7384
    %8354 = vmatprep.subr.bf16.mxu0 0
    %8355 = vmatpush1.bf16.msra.mxu0 %v7383
    %8356 = vmatprep.subr.bf16.mxu0 0
    %8357 = vmatpush1.bf16.msra.mxu0 %v7382
    %8358 = vmatprep.subr.bf16.mxu0 0
    %8359 = vmatpush1.bf16.msra.mxu0 %v7381
    %8360 = vmatprep.subr.bf16.mxu0 0
    %8361 = vmatpush2.bf16.msra.mxu0 %v7396
    %8362 = vmatprep.subr.bf16.mxu0 0
    %8363 = vmatpush2.bf16.msra.mxu0 %v7395
    %8364 = vmatprep.subr.bf16.mxu0 0
    %8365 = vmatpush2.bf16.msra.mxu0 %v7394
    %8366 = vmatprep.subr.bf16.mxu0 0
    %8367 = vmatpush2.bf16.msra.mxu0 %v7393
    %8368 = vmatprep.subr.bf16.mxu0 0
    %8369 = vmatpush2.bf16.msra.mxu0 %v7392
    %8370 = vmatprep.subr.bf16.mxu0 0
    %8371 = vmatpush2.bf16.msra.mxu0 %v7391
    %8372 = vmatprep.subr.bf16.mxu0 0
    %8373 = vmatpush2.bf16.msra.mxu0 %v7390
    %8374 = vmatprep.subr.bf16.mxu0 0
    %8375 = vmatpush2.bf16.msra.mxu0 %v7389
    %8376 = vmatprep.mubr.bf16.mxu0 %v1213
    %8377 = vmatmul.mubr.bf16.gmra.mxu0 %v1212
    %v8378 = vpop.f32.mrf.mxu0
    %v8379 = vadd.f32 %v8090, %v8378
    %v8380 = vpop.f32.mrf.mxu0
    %v8381 = vpop.f32.mrf.mxu0
    %v8382 = vadd.f32 %v8093, %v8381
    %v8383 = vpop.f32.mrf.mxu0
    %8384 = vmatprep.mubr.bf16.mxu0 %v1216
    %8385 = vmatmul.mubr.bf16.gmra.mxu0 %v1215
    %v8386 = vpop.f32.mrf.mxu0
    %v8387 = vadd.f32 %v8098, %v8386
    %v8388 = vpop.f32.mrf.mxu0
    %v8389 = vpop.f32.mrf.mxu0
    %v8390 = vadd.f32 %v8101, %v8389
    %v8391 = vpop.f32.mrf.mxu0
    %8392 = vmatprep.mubr.bf16.mxu0 %v1219
    %8393 = vmatmul.mubr.bf16.gmra.mxu0 %v1218
    %v8394 = vpop.f32.mrf.mxu0
    %v8395 = vadd.f32 %v8106, %v8394
    %v8396 = vpop.f32.mrf.mxu0
    %v8397 = vpop.f32.mrf.mxu0
    %v8398 = vadd.f32 %v8109, %v8397
    %v8399 = vpop.f32.mrf.mxu0
    %8400 = vmatprep.mubr.bf16.mxu0 %v1222
    %8401 = vmatmul.mubr.bf16.gmra.mxu0 %v1221
    %v8402 = vpop.f32.mrf.mxu0
    %v8403 = vadd.f32 %v8114, %v8402
    %v8404 = vpop.f32.mrf.mxu0
    %v8405 = vpop.f32.mrf.mxu0
    %v8406 = vadd.f32 %v8117, %v8405
    %v8407 = vpop.f32.mrf.mxu0
    %8408 = vmatprep.mubr.bf16.mxu0 %v1225
    %8409 = vmatmul.mubr.bf16.gmra.mxu0 %v1224
    %v8410 = vpop.f32.mrf.mxu0
    %v8411 = vadd.f32 %v8122, %v8410
    %v8412 = vpop.f32.mrf.mxu0
    %v8413 = vpop.f32.mrf.mxu0
    %v8414 = vadd.f32 %v8125, %v8413
    %v8415 = vpop.f32.mrf.mxu0
    %8416 = vmatprep.mubr.bf16.mxu0 %v1228
    %8417 = vmatmul.mubr.bf16.gmra.mxu0 %v1227
    %v8418 = vpop.f32.mrf.mxu0
    %v8419 = vadd.f32 %v8130, %v8418
    %v8420 = vpop.f32.mrf.mxu0
    %v8421 = vpop.f32.mrf.mxu0
    %v8422 = vadd.f32 %v8133, %v8421
    %v8423 = vpop.f32.mrf.mxu0
    %8424 = vmatprep.mubr.bf16.mxu0 %v1231
    %8425 = vmatmul.mubr.bf16.gmra.mxu0 %v1230
    %v8426 = vpop.f32.mrf.mxu0
    %v8427 = vadd.f32 %v8138, %v8426
    %v8428 = vpop.f32.mrf.mxu0
    %v8429 = vpop.f32.mrf.mxu0
    %v8430 = vadd.f32 %v8141, %v8429
    %v8431 = vpop.f32.mrf.mxu0
    %8432 = vmatprep.mubr.bf16.mxu0 %v1234
    %8433 = vmatmul.mubr.bf16.gmra.mxu0 %v1233
    %v8434 = vpop.f32.mrf.mxu0
    %v8435 = vadd.f32 %v8146, %v8434
    %v8436 = vpop.f32.mrf.mxu0
    %v8437 = vpop.f32.mrf.mxu0
    %v8438 = vadd.f32 %v8149, %v8437
    %v8439 = vpop.f32.mrf.mxu0
    %8440 = vmatprep.mubr.bf16.mxu0 %v1237
    %8441 = vmatmul.mubr.bf16.gmra.mxu0 %v1236
    %v8442 = vpop.f32.mrf.mxu0
    %v8443 = vadd.f32 %v8154, %v8442
    %v8444 = vpop.f32.mrf.mxu0
    %v8445 = vpop.f32.mrf.mxu0
    %v8446 = vadd.f32 %v8157, %v8445
    %v8447 = vpop.f32.mrf.mxu0
    %8448 = vmatprep.mubr.bf16.mxu0 %v1240
    %8449 = vmatmul.mubr.bf16.gmra.mxu0 %v1239
    %v8450 = vpop.f32.mrf.mxu0
    %v8451 = vadd.f32 %v8162, %v8450
    %v8452 = vpop.f32.mrf.mxu0
    %v8453 = vpop.f32.mrf.mxu0
    %v8454 = vadd.f32 %v8165, %v8453
    %v8455 = vpop.f32.mrf.mxu0
    %8456 = vmatprep.mubr.bf16.mxu0 %v1243
    %8457 = vmatmul.mubr.bf16.gmra.mxu0 %v1242
    %v8458 = vpop.f32.mrf.mxu0
    %v8459 = vadd.f32 %v8170, %v8458
    %v8460 = vpop.f32.mrf.mxu0
    %v8461 = vpop.f32.mrf.mxu0
    %v8462 = vadd.f32 %v8173, %v8461
    %v8463 = vpop.f32.mrf.mxu0
    %8464 = vmatprep.mubr.bf16.mxu0 %v1246
    %8465 = vmatmul.mubr.bf16.gmra.mxu0 %v1245
    %v8466 = vpop.f32.mrf.mxu0
    %v8467 = vadd.f32 %v8178, %v8466
    %v8468 = vpop.f32.mrf.mxu0
    %v8469 = vpop.f32.mrf.mxu0
    %v8470 = vadd.f32 %v8181, %v8469
    %v8471 = vpop.f32.mrf.mxu0
    %8472 = vmatprep.mubr.bf16.mxu0 %v1249
    %8473 = vmatmul.mubr.bf16.gmra.mxu0 %v1248
    %v8474 = vpop.f32.mrf.mxu0
    %v8475 = vadd.f32 %v8186, %v8474
    %v8476 = vpop.f32.mrf.mxu0
    %v8477 = vpop.f32.mrf.mxu0
    %v8478 = vadd.f32 %v8189, %v8477
    %v8479 = vpop.f32.mrf.mxu0
    %8480 = vmatprep.mubr.bf16.mxu0 %v1252
    %8481 = vmatmul.mubr.bf16.gmra.mxu0 %v1251
    %v8482 = vpop.f32.mrf.mxu0
    %v8483 = vadd.f32 %v8194, %v8482
    %v8484 = vpop.f32.mrf.mxu0
    %v8485 = vpop.f32.mrf.mxu0
    %v8486 = vadd.f32 %v8197, %v8485
    %v8487 = vpop.f32.mrf.mxu0
    %8488 = vmatprep.mubr.bf16.mxu0 %v1255
    %8489 = vmatmul.mubr.bf16.gmra.mxu0 %v1254
    %v8490 = vpop.f32.mrf.mxu0
    %v8491 = vadd.f32 %v8202, %v8490
    %v8492 = vpop.f32.mrf.mxu0
    %v8493 = vpop.f32.mrf.mxu0
    %v8494 = vadd.f32 %v8205, %v8493
    %v8495 = vpop.f32.mrf.mxu0
    %8496 = vmatprep.mubr.bf16.mxu0 %v1207
    %8497 = vmatmul.mubr.bf16.gmra.mxu0 %v1206
    %v8498 = vpop.f32.mrf.mxu0
    %v8499 = vadd.f32 %v8210, %v8498
    %v8500 = vpop.f32.mrf.mxu0
    %v8501 = vpop.f32.mrf.mxu0
    %v8502 = vadd.f32 %v8213, %v8501
    %v8503 = vpop.f32.mrf.mxu0
    %8504 = vmatprep.mubr.bf16.mxu0 %v1261
    %8505 = vmatmul.mubr.bf16.gmra.mxu0 %v1260
    %v8506 = vpop.f32.mrf.mxu0
    %v8507 = vadd.f32 %v8218, %v8506
    %v8508 = vpop.f32.mrf.mxu0
    %v8509 = vpop.f32.mrf.mxu0
    %v8510 = vadd.f32 %v8221, %v8509
    %v8511 = vpop.f32.mrf.mxu0
    %8512 = vmatprep.mubr.bf16.mxu0 %v1264
    %8513 = vmatmul.mubr.bf16.gmra.mxu0 %v1263
    %v8514 = vpop.f32.mrf.mxu0
    %v8515 = vadd.f32 %v8226, %v8514
    %v8516 = vpop.f32.mrf.mxu0
    %v8517 = vpop.f32.mrf.mxu0
    %v8518 = vadd.f32 %v8229, %v8517
    %v8519 = vpop.f32.mrf.mxu0
    %8520 = vmatprep.mubr.bf16.mxu0 %v1267
    %8521 = vmatmul.mubr.bf16.gmra.mxu0 %v1266
    %v8522 = vpop.f32.mrf.mxu0
    %v8523 = vadd.f32 %v8234, %v8522
    %v8524 = vpop.f32.mrf.mxu0
    %v8525 = vpop.f32.mrf.mxu0
    %v8526 = vadd.f32 %v8237, %v8525
    %v8527 = vpop.f32.mrf.mxu0
    %8528 = vmatprep.mubr.bf16.mxu0 %v1270
    %8529 = vmatmul.mubr.bf16.gmra.mxu0 %v1269
    %v8530 = vpop.f32.mrf.mxu0
    %v8531 = vadd.f32 %v8242, %v8530
    %v8532 = vpop.f32.mrf.mxu0
    %v8533 = vpop.f32.mrf.mxu0
    %v8534 = vadd.f32 %v8245, %v8533
    %v8535 = vpop.f32.mrf.mxu0
    %8536 = vmatprep.mubr.bf16.mxu0 %v1273
    %8537 = vmatmul.mubr.bf16.gmra.mxu0 %v1272
    %v8538 = vpop.f32.mrf.mxu0
    %v8539 = vadd.f32 %v8250, %v8538
    %v8540 = vpop.f32.mrf.mxu0
    %v8541 = vpop.f32.mrf.mxu0
    %v8542 = vadd.f32 %v8253, %v8541
    %v8543 = vpop.f32.mrf.mxu0
    %8544 = vmatprep.mubr.bf16.mxu0 %v1276
    %8545 = vmatmul.mubr.bf16.gmra.mxu0 %v1275
    %v8546 = vpop.f32.mrf.mxu0
    %v8547 = vadd.f32 %v8258, %v8546
    %v8548 = vpop.f32.mrf.mxu0
    %v8549 = vpop.f32.mrf.mxu0
    %v8550 = vadd.f32 %v8261, %v8549
    %v8551 = vpop.f32.mrf.mxu0
    %8552 = vmatprep.mubr.bf16.mxu0 %v1279
    %8553 = vmatmul.mubr.bf16.gmra.mxu0 %v1278
    %v8554 = vpop.f32.mrf.mxu0
    %v8555 = vadd.f32 %v8266, %v8554
    %v8556 = vpop.f32.mrf.mxu0
    %v8557 = vpop.f32.mrf.mxu0
    %v8558 = vadd.f32 %v8269, %v8557
    %v8559 = vpop.f32.mrf.mxu0
    %8560 = vmatprep.mubr.bf16.mxu0 %v1282
    %8561 = vmatmul.mubr.bf16.gmra.mxu0 %v1281
    %v8562 = vpop.f32.mrf.mxu0
    %v8563 = vadd.f32 %v8274, %v8562
    %v8564 = vpop.f32.mrf.mxu0
    %v8565 = vpop.f32.mrf.mxu0
    %v8566 = vadd.f32 %v8277, %v8565
    %v8567 = vpop.f32.mrf.mxu0
    %8568 = vmatprep.mubr.bf16.mxu0 %v1285
    %8569 = vmatmul.mubr.bf16.gmra.mxu0 %v1284
    %v8570 = vpop.f32.mrf.mxu0
    %v8571 = vadd.f32 %v8282, %v8570
    %v8572 = vpop.f32.mrf.mxu0
    %v8573 = vpop.f32.mrf.mxu0
    %v8574 = vadd.f32 %v8285, %v8573
    %v8575 = vpop.f32.mrf.mxu0
    %8576 = vmatprep.mubr.bf16.mxu0 %v1288
    %8577 = vmatmul.mubr.bf16.gmra.mxu0 %v1287
    %v8578 = vpop.f32.mrf.mxu0
    %v8579 = vadd.f32 %v8290, %v8578
    %v8580 = vpop.f32.mrf.mxu0
    %v8581 = vpop.f32.mrf.mxu0
    %v8582 = vadd.f32 %v8293, %v8581
    %v8583 = vpop.f32.mrf.mxu0
    %8584 = vmatprep.mubr.bf16.mxu0 %v1291
    %8585 = vmatmul.mubr.bf16.gmra.mxu0 %v1290
    %v8586 = vpop.f32.mrf.mxu0
    %v8587 = vadd.f32 %v8298, %v8586
    %v8588 = vpop.f32.mrf.mxu0
    %v8589 = vpop.f32.mrf.mxu0
    %v8590 = vadd.f32 %v8301, %v8589
    %v8591 = vpop.f32.mrf.mxu0
    %8592 = vmatprep.mubr.bf16.mxu0 %v1294
    %8593 = vmatmul.mubr.bf16.gmra.mxu0 %v1293
    %v8594 = vpop.f32.mrf.mxu0
    %v8595 = vadd.f32 %v8306, %v8594
    %v8596 = vpop.f32.mrf.mxu0
    %v8597 = vpop.f32.mrf.mxu0
    %v8598 = vadd.f32 %v8309, %v8597
    %v8599 = vpop.f32.mrf.mxu0
    %8600 = vmatprep.mubr.bf16.mxu0 %v1297
    %8601 = vmatmul.mubr.bf16.gmra.mxu0 %v1296
    %v8602 = vpop.f32.mrf.mxu0
    %v8603 = vadd.f32 %v8314, %v8602
    %v8604 = vpop.f32.mrf.mxu0
    %v8605 = vpop.f32.mrf.mxu0
    %v8606 = vadd.f32 %v8317, %v8605
    %v8607 = vpop.f32.mrf.mxu0
    %8608 = vmatprep.mubr.bf16.mxu0 %v1300
    %8609 = vmatmul.mubr.bf16.gmra.mxu0 %v1299
    %v8610 = vpop.f32.mrf.mxu0
    %v8611 = vadd.f32 %v8322, %v8610
    %v8612 = vpop.f32.mrf.mxu0
    %v8613 = vpop.f32.mrf.mxu0
    %v8614 = vadd.f32 %v8325, %v8613
    %v8615 = vpop.f32.mrf.mxu0
    %8616 = vmatprep.mubr.bf16.mxu0 %v1303
    %8617 = vmatmul.mubr.bf16.gmra.mxu0 %v1302
    %v8618 = vpop.f32.mrf.mxu0
    %v8619 = vadd.f32 %v8330, %v8618
    %v8620 = vpop.f32.mrf.mxu0
    %v8621 = vpop.f32.mrf.mxu0
    %v8622 = vadd.f32 %v8333, %v8621
    %v8623 = vpop.f32.mrf.mxu0
    %8624 = vmatprep.mubr.bf16.mxu0 %v1207
    %8625 = vmatmul.mubr.bf16.gmra.mxu0 %v1206
    %v8626 = vpop.f32.mrf.mxu0
    %v8627 = vadd.f32 %v8338, %v8626
    %v8628 = vpop.f32.mrf.mxu0
    %v8629 = vpop.f32.mrf.mxu0
    %v8630 = vadd.f32 %v8341, %v8629
    %v8631 = vpop.f32.mrf.mxu0
    %8632 = vdwg.mxu0
    %8633 = vmatprep.subr.bf16.mxu0 0
    %8634 = vmatpush1.bf16.msra.mxu0 %v7404
    %8635 = vmatprep.subr.bf16.mxu0 0
    %8636 = vmatpush1.bf16.msra.mxu0 %v7403
    %8637 = vmatprep.subr.bf16.mxu0 0
    %8638 = vmatpush1.bf16.msra.mxu0 %v7402
    %8639 = vmatprep.subr.bf16.mxu0 0
    %8640 = vmatpush1.bf16.msra.mxu0 %v7401
    %8641 = vmatprep.subr.bf16.mxu0 0
    %8642 = vmatpush1.bf16.msra.mxu0 %v7400
    %8643 = vmatprep.subr.bf16.mxu0 0
    %8644 = vmatpush1.bf16.msra.mxu0 %v7399
    %8645 = vmatprep.subr.bf16.mxu0 0
    %8646 = vmatpush1.bf16.msra.mxu0 %v7398
    %8647 = vmatprep.subr.bf16.mxu0 0
    %8648 = vmatpush1.bf16.msra.mxu0 %v7397
    %8649 = vmatprep.subr.bf16.mxu0 0
    %8650 = vmatpush2.bf16.msra.mxu0 0
    %8651 = vmatprep.subr.bf16.mxu0 0
    %8652 = vmatpush2.bf16.msra.mxu0 0
    %8653 = vmatprep.subr.bf16.mxu0 0
    %8654 = vmatpush2.bf16.msra.mxu0 0
    %8655 = vmatprep.subr.bf16.mxu0 0
    %8656 = vmatpush2.bf16.msra.mxu0 0
    %8657 = vmatprep.subr.bf16.mxu0 0
    %8658 = vmatpush2.bf16.msra.mxu0 0
    %8659 = vmatprep.subr.bf16.mxu0 0
    %8660 = vmatpush2.bf16.msra.mxu0 0
    %8661 = vmatprep.subr.bf16.mxu0 0
    %8662 = vmatpush2.bf16.msra.mxu0 0
    %8663 = vmatprep.subr.bf16.mxu0 0
    %8664 = vmatpush2.bf16.msra.mxu0 0
    %8665 = vmatprep.mubr.bf16.mxu0 0
    %8666 = vmatmul.mubr.bf16.gmra.mxu0 %v1214
    %v8667 = vpop.f32.mrf.mxu0
    %v8668 = vadd.f32 %v8379, %v8667
    %v8669 = vpop.f32.mrf.mxu0
    %v8670 = vpop.f32.mrf.mxu0
    %v8671 = vadd.f32 %v8382, %v8670
    %v8672 = vpop.f32.mrf.mxu0
    %8673 = vmatprep.mubr.bf16.mxu0 0
    %8674 = vmatmul.mubr.bf16.gmra.mxu0 %v1217
    %v8675 = vpop.f32.mrf.mxu0
    %v8676 = vadd.f32 %v8387, %v8675
    %v8677 = vpop.f32.mrf.mxu0
    %v8678 = vpop.f32.mrf.mxu0
    %v8679 = vadd.f32 %v8390, %v8678
    %v8680 = vpop.f32.mrf.mxu0
    %8681 = vmatprep.mubr.bf16.mxu0 0
    %8682 = vmatmul.mubr.bf16.gmra.mxu0 %v1220
    %v8683 = vpop.f32.mrf.mxu0
    %v8684 = vadd.f32 %v8395, %v8683
    %v8685 = vpop.f32.mrf.mxu0
    %v8686 = vpop.f32.mrf.mxu0
    %v8687 = vadd.f32 %v8398, %v8686
    %v8688 = vpop.f32.mrf.mxu0
    %8689 = vmatprep.mubr.bf16.mxu0 0
    %8690 = vmatmul.mubr.bf16.gmra.mxu0 %v1223
    %v8691 = vpop.f32.mrf.mxu0
    %v8692 = vadd.f32 %v8403, %v8691
    %v8693 = vpop.f32.mrf.mxu0
    %v8694 = vpop.f32.mrf.mxu0
    %v8695 = vadd.f32 %v8406, %v8694
    %v8696 = vpop.f32.mrf.mxu0
    %8697 = vmatprep.mubr.bf16.mxu0 0
    %8698 = vmatmul.mubr.bf16.gmra.mxu0 %v1226
    %v8699 = vpop.f32.mrf.mxu0
    %v8700 = vadd.f32 %v8411, %v8699
    %v8701 = vpop.f32.mrf.mxu0
    %v8702 = vpop.f32.mrf.mxu0
    %v8703 = vadd.f32 %v8414, %v8702
    %v8704 = vpop.f32.mrf.mxu0
    %8705 = vmatprep.mubr.bf16.mxu0 0
    %8706 = vmatmul.mubr.bf16.gmra.mxu0 %v1229
    %v8707 = vpop.f32.mrf.mxu0
    %v8708 = vadd.f32 %v8419, %v8707
    %v8709 = vpop.f32.mrf.mxu0
    %v8710 = vpop.f32.mrf.mxu0
    %v8711 = vadd.f32 %v8422, %v8710
    %v8712 = vpop.f32.mrf.mxu0
    %8713 = vmatprep.mubr.bf16.mxu0 0
    %8714 = vmatmul.mubr.bf16.gmra.mxu0 %v1232
    %v8715 = vpop.f32.mrf.mxu0
    %v8716 = vadd.f32 %v8427, %v8715
    %v8717 = vpop.f32.mrf.mxu0
    %v8718 = vpop.f32.mrf.mxu0
    %v8719 = vadd.f32 %v8430, %v8718
    %v8720 = vpop.f32.mrf.mxu0
    %8721 = vmatprep.mubr.bf16.mxu0 0
    %8722 = vmatmul.mubr.bf16.gmra.mxu0 %v1235
    %v8723 = vpop.f32.mrf.mxu0
    %v8724 = vadd.f32 %v8435, %v8723
    %v8725 = vpop.f32.mrf.mxu0
    %v8726 = vpop.f32.mrf.mxu0
    %v8727 = vadd.f32 %v8438, %v8726
    %v8728 = vpop.f32.mrf.mxu0
    %8729 = vmatprep.mubr.bf16.mxu0 0
    %8730 = vmatmul.mubr.bf16.gmra.mxu0 %v1238
    %v8731 = vpop.f32.mrf.mxu0
    %v8732 = vadd.f32 %v8443, %v8731
    %v8733 = vpop.f32.mrf.mxu0
    %v8734 = vpop.f32.mrf.mxu0
    %v8735 = vadd.f32 %v8446, %v8734
    %v8736 = vpop.f32.mrf.mxu0
    %8737 = vmatprep.mubr.bf16.mxu0 0
    %8738 = vmatmul.mubr.bf16.gmra.mxu0 %v1241
    %v8739 = vpop.f32.mrf.mxu0
    %v8740 = vadd.f32 %v8451, %v8739
    %v8741 = vpop.f32.mrf.mxu0
    %v8742 = vpop.f32.mrf.mxu0
    %v8743 = vadd.f32 %v8454, %v8742
    %v8744 = vpop.f32.mrf.mxu0
    %8745 = vmatprep.mubr.bf16.mxu0 0
    %8746 = vmatmul.mubr.bf16.gmra.mxu0 %v1244
    %v8747 = vpop.f32.mrf.mxu0
    %v8748 = vadd.f32 %v8459, %v8747
    %v8749 = vpop.f32.mrf.mxu0
    %v8750 = vpop.f32.mrf.mxu0
    %v8751 = vadd.f32 %v8462, %v8750
    %v8752 = vpop.f32.mrf.mxu0
    %8753 = vmatprep.mubr.bf16.mxu0 0
    %8754 = vmatmul.mubr.bf16.gmra.mxu0 %v1247
    %v8755 = vpop.f32.mrf.mxu0
    %v8756 = vadd.f32 %v8467, %v8755
    %v8757 = vpop.f32.mrf.mxu0
    %v8758 = vpop.f32.mrf.mxu0
    %v8759 = vadd.f32 %v8470, %v8758
    %v8760 = vpop.f32.mrf.mxu0
    %8761 = vmatprep.mubr.bf16.mxu0 0
    %8762 = vmatmul.mubr.bf16.gmra.mxu0 %v1250
    %v8763 = vpop.f32.mrf.mxu0
    %v8764 = vadd.f32 %v8475, %v8763
    %v8765 = vpop.f32.mrf.mxu0
    %v8766 = vpop.f32.mrf.mxu0
    %v8767 = vadd.f32 %v8478, %v8766
    %v8768 = vpop.f32.mrf.mxu0
    %8769 = vmatprep.mubr.bf16.mxu0 0
    %8770 = vmatmul.mubr.bf16.gmra.mxu0 %v1253
    %v8771 = vpop.f32.mrf.mxu0
    %v8772 = vadd.f32 %v8483, %v8771
    %v8773 = vpop.f32.mrf.mxu0
    %v8774 = vpop.f32.mrf.mxu0
    %v8775 = vadd.f32 %v8486, %v8774
    %v8776 = vpop.f32.mrf.mxu0
    %8777 = vmatprep.mubr.bf16.mxu0 0
    %8778 = vmatmul.mubr.bf16.gmra.mxu0 %v1256
    %v8779 = vpop.f32.mrf.mxu0
    %v8780 = vadd.f32 %v8491, %v8779
    %v8781 = vpop.f32.mrf.mxu0
    %v8782 = vpop.f32.mrf.mxu0
    %v8783 = vadd.f32 %v8494, %v8782
    %v8784 = vpop.f32.mrf.mxu0
    %8785 = vmatprep.mubr.bf16.mxu0 0
    %8786 = vmatmul.mubr.bf16.gmra.mxu0 %v1208
    %v8787 = vpop.f32.mrf.mxu0
    %v8788 = vadd.f32 %v8499, %v8787
    %v8789 = vpop.f32.mrf.mxu0
    %v8790 = vpop.f32.mrf.mxu0
    %v8791 = vadd.f32 %v8502, %v8790
    %v8792 = vpop.f32.mrf.mxu0
    %8793 = vmatprep.mubr.bf16.mxu0 0
    %8794 = vmatmul.mubr.bf16.gmra.mxu0 %v1262
    %v8795 = vpop.f32.mrf.mxu0
    %v8796 = vadd.f32 %v8507, %v8795
    %v8797 = vpop.f32.mrf.mxu0
    %v8798 = vpop.f32.mrf.mxu0
    %v8799 = vadd.f32 %v8510, %v8798
    %v8800 = vpop.f32.mrf.mxu0
    %8801 = vmatprep.mubr.bf16.mxu0 0
    %8802 = vmatmul.mubr.bf16.gmra.mxu0 %v1265
    %v8803 = vpop.f32.mrf.mxu0
    %v8804 = vadd.f32 %v8515, %v8803
    %v8805 = vpop.f32.mrf.mxu0
    %v8806 = vpop.f32.mrf.mxu0
    %v8807 = vadd.f32 %v8518, %v8806
    %v8808 = vpop.f32.mrf.mxu0
    %8809 = vmatprep.mubr.bf16.mxu0 0
    %8810 = vmatmul.mubr.bf16.gmra.mxu0 %v1268
    %v8811 = vpop.f32.mrf.mxu0
    %v8812 = vadd.f32 %v8523, %v8811
    %v8813 = vpop.f32.mrf.mxu0
    %v8814 = vpop.f32.mrf.mxu0
    %v8815 = vadd.f32 %v8526, %v8814
    %v8816 = vpop.f32.mrf.mxu0
    %8817 = vmatprep.mubr.bf16.mxu0 0
    %8818 = vmatmul.mubr.bf16.gmra.mxu0 %v1271
    %v8819 = vpop.f32.mrf.mxu0
    %v8820 = vadd.f32 %v8531, %v8819
    %v8821 = vpop.f32.mrf.mxu0
    %v8822 = vpop.f32.mrf.mxu0
    %v8823 = vadd.f32 %v8534, %v8822
    %v8824 = vpop.f32.mrf.mxu0
    %8825 = vmatprep.mubr.bf16.mxu0 0
    %8826 = vmatmul.mubr.bf16.gmra.mxu0 %v1274
    %v8827 = vpop.f32.mrf.mxu0
    %v8828 = vadd.f32 %v8539, %v8827
    %v8829 = vpop.f32.mrf.mxu0
    %v8830 = vpop.f32.mrf.mxu0
    %v8831 = vadd.f32 %v8542, %v8830
    %v8832 = vpop.f32.mrf.mxu0
    %8833 = vmatprep.mubr.bf16.mxu0 0
    %8834 = vmatmul.mubr.bf16.gmra.mxu0 %v1277
    %v8835 = vpop.f32.mrf.mxu0
    %v8836 = vadd.f32 %v8547, %v8835
    %v8837 = vpop.f32.mrf.mxu0
    %v8838 = vpop.f32.mrf.mxu0
    %v8839 = vadd.f32 %v8550, %v8838
    %v8840 = vpop.f32.mrf.mxu0
    %8841 = vmatprep.mubr.bf16.mxu0 0
    %8842 = vmatmul.mubr.bf16.gmra.mxu0 %v1280
    %v8843 = vpop.f32.mrf.mxu0
    %v8844 = vadd.f32 %v8555, %v8843
    %v8845 = vpop.f32.mrf.mxu0
    %v8846 = vpop.f32.mrf.mxu0
    %v8847 = vadd.f32 %v8558, %v8846
    %v8848 = vpop.f32.mrf.mxu0
    %8849 = vmatprep.mubr.bf16.mxu0 0
    %8850 = vmatmul.mubr.bf16.gmra.mxu0 %v1283
    %v8851 = vpop.f32.mrf.mxu0
    %v8852 = vadd.f32 %v8563, %v8851
    %v8853 = vpop.f32.mrf.mxu0
    %v8854 = vpop.f32.mrf.mxu0
    %v8855 = vadd.f32 %v8566, %v8854
    %v8856 = vpop.f32.mrf.mxu0
    %8857 = vmatprep.mubr.bf16.mxu0 0
    %8858 = vmatmul.mubr.bf16.gmra.mxu0 %v1286
    %v8859 = vpop.f32.mrf.mxu0
    %v8860 = vadd.f32 %v8571, %v8859
    %v8861 = vpop.f32.mrf.mxu0
    %v8862 = vpop.f32.mrf.mxu0
    %v8863 = vadd.f32 %v8574, %v8862
    %v8864 = vpop.f32.mrf.mxu0
    %8865 = vmatprep.mubr.bf16.mxu0 0
    %8866 = vmatmul.mubr.bf16.gmra.mxu0 %v1289
    %v8867 = vpop.f32.mrf.mxu0
    %v8868 = vadd.f32 %v8579, %v8867
    %v8869 = vpop.f32.mrf.mxu0
    %v8870 = vpop.f32.mrf.mxu0
    %v8871 = vadd.f32 %v8582, %v8870
    %v8872 = vpop.f32.mrf.mxu0
    %8873 = vmatprep.mubr.bf16.mxu0 0
    %8874 = vmatmul.mubr.bf16.gmra.mxu0 %v1292
    %v8875 = vpop.f32.mrf.mxu0
    %v8876 = vadd.f32 %v8587, %v8875
    %v8877 = vpop.f32.mrf.mxu0
    %v8878 = vpop.f32.mrf.mxu0
    %v8879 = vadd.f32 %v8590, %v8878
    %v8880 = vpop.f32.mrf.mxu0
    %8881 = vmatprep.mubr.bf16.mxu0 0
    %8882 = vmatmul.mubr.bf16.gmra.mxu0 %v1295
    %v8883 = vpop.f32.mrf.mxu0
    %v8884 = vadd.f32 %v8595, %v8883
    %v8885 = vpop.f32.mrf.mxu0
    %v8886 = vpop.f32.mrf.mxu0
    %v8887 = vadd.f32 %v8598, %v8886
    %v8888 = vpop.f32.mrf.mxu0
    %8889 = vmatprep.mubr.bf16.mxu0 0
    %8890 = vmatmul.mubr.bf16.gmra.mxu0 %v1298
    %v8891 = vpop.f32.mrf.mxu0
    %v8892 = vadd.f32 %v8603, %v8891
    %v8893 = vpop.f32.mrf.mxu0
    %v8894 = vpop.f32.mrf.mxu0
    %v8895 = vadd.f32 %v8606, %v8894
    %v8896 = vpop.f32.mrf.mxu0
    %8897 = vmatprep.mubr.bf16.mxu0 0
    %8898 = vmatmul.mubr.bf16.gmra.mxu0 %v1301
    %v8899 = vpop.f32.mrf.mxu0
    %v8900 = vadd.f32 %v8611, %v8899
    %v8901 = vpop.f32.mrf.mxu0
    %v8902 = vpop.f32.mrf.mxu0
    %v8903 = vadd.f32 %v8614, %v8902
    %v8904 = vpop.f32.mrf.mxu0
    %8905 = vmatprep.mubr.bf16.mxu0 0
    %8906 = vmatmul.mubr.bf16.gmra.mxu0 %v1304
    %v8907 = vpop.f32.mrf.mxu0
    %v8908 = vadd.f32 %v8619, %v8907
    %v8909 = vpop.f32.mrf.mxu0
    %v8910 = vpop.f32.mrf.mxu0
    %v8911 = vadd.f32 %v8622, %v8910
    %v8912 = vpop.f32.mrf.mxu0
    %8913 = vmatprep.mubr.bf16.mxu0 0
    %8914 = vmatmul.mubr.bf16.gmra.mxu0 %v1208
    %v8915 = vpop.f32.mrf.mxu0
    %v8916 = vadd.f32 %v8627, %v8915
    %v8917 = vpop.f32.mrf.mxu0
    %v8918 = vpop.f32.mrf.mxu0
    %v8919 = vadd.f32 %v8630, %v8918
    %v8920 = vpop.f32.mrf.mxu0
    %8921 = vdwg.mxu0
    %v8922 = vld [vmem:[%s8] sm:$0x1]
    %v8923 = vld [vmem:[%s9] sm:$0x1]
    %v8924 = vadd.f32 %v8668, %v8671
    %v8925 = vadd.f32 %v8924, %v8676
    %v8926 = vadd.f32 %v8925, %v8679
    %v8927 = vadd.f32 %v8926, %v8684
    %v8928 = vadd.f32 %v8927, %v8687
    %v8929 = vadd.f32 %v8928, %v8692
    %v8930 = vadd.f32 %v8929, %v8695
    %v8931 = vadd.f32 %v8930, %v8700
    %v8932 = vadd.f32 %v8931, %v8703
    %v8933 = vadd.f32 %v8932, %v8708
    %v8934 = vadd.f32 %v8933, %v8711
    %v8935 = vadd.f32 %v8934, %v8716
    %v8936 = vadd.f32 %v8935, %v8719
    %v8937 = vadd.f32 %v8936, %v8724
    %v8938 = vadd.f32 %v8937, %v8727
    %v8939 = vadd.f32 %v8938, %v8732
    %v8940 = vadd.f32 %v8939, %v8735
    %v8941 = vadd.f32 %v8940, %v8740
    %v8942 = vadd.f32 %v8941, %v8743
    %v8943 = vadd.f32 %v8942, %v8748
    %v8944 = vadd.f32 %v8943, %v8751
    %v8945 = vadd.f32 %v8944, %v8756
    %v8946 = vadd.f32 %v8945, %v8759
    %v8947 = vadd.f32 %v8946, %v8764
    %v8948 = vadd.f32 %v8947, %v8767
    %v8949 = vadd.f32 %v8948, %v8772
    %v8950 = vadd.f32 %v8949, %v8775
    %v8951 = vadd.f32 %v8950, %v8780
    %v8952 = vadd.f32 %v8951, %v8783
    %v8953 = vadd.f32 %v8952, %v8788
    %v8954 = vadd.f32 %v8953, %v8791
    %v8955 = vadd.f32 %v8954, %v8796
    %v8956 = vadd.f32 %v8955, %v8799
    %v8957 = vadd.f32 %v8956, %v8804
    %v8958 = vadd.f32 %v8957, %v8807
    %v8959 = vadd.f32 %v8958, %v8812
    %v8960 = vadd.f32 %v8959, %v8815
    %v8961 = vadd.f32 %v8960, %v8820
    %v8962 = vadd.f32 %v8961, %v8823
    %v8963 = vadd.f32 %v8962, %v8828
    %v8964 = vadd.f32 %v8963, %v8831
    %v8965 = vadd.f32 %v8964, %v8836
    %v8966 = vadd.f32 %v8965, %v8839
    %v8967 = vadd.f32 %v8966, %v8844
    %v8968 = vadd.f32 %v8967, %v8847
    %v8969 = vadd.f32 %v8968, %v8852
    %v8970 = vadd.f32 %v8969, %v8855
    %v8971 = vadd.f32 %v8970, %v8860
    %v8972 = vadd.f32 %v8971, %v8863
    %v8973 = vadd.f32 %v8972, %v8868
    %v8974 = vadd.f32 %v8973, %v8871
    %v8975 = vadd.f32 %v8974, %v8876
    %v8976 = vadd.f32 %v8975, %v8879
    %v8977 = vadd.f32 %v8976, %v8884
    %v8978 = vadd.f32 %v8977, %v8887
    %v8979 = vadd.f32 %v8978, %v8892
    %v8980 = vadd.f32 %v8979, %v8895
    %v8981 = vadd.f32 %v8980, %v8900
    %v8982 = vadd.f32 %v8981, %v8903
    %v8983 = vadd.f32 %v8982, %v8908
    %v8984 = vadd.f32 %v8983, %v8911
    %v8985 = vadd.f32 %v8984, %v8916
    %v8986 = vadd.f32 %v8985, %v8919
    %v8987 = vrot.slane %v8986, 4
    %v8988 = vadd.f32 %v8986, %v8987
    %v8989 = vrot.slane %v8988, 2
    %v8990 = vadd.f32 %v8988, %v8989
    %v8991 = vrot.slane %v8990, 1
    %v8992 = vadd.f32 %v8990, %v8991
    %v8993 = vmul.f32 %v8992, 0.001953125
    %v8994 = vmul.f32 %v8668, %v8668
    %v8995 = vmul.f32 %v8671, %v8671
    %v8996 = vmul.f32 %v8676, %v8676
    %v8997 = vmul.f32 %v8679, %v8679
    %v8998 = vmul.f32 %v8684, %v8684
    %v8999 = vmul.f32 %v8687, %v8687
    %v9000 = vmul.f32 %v8692, %v8692
    %v9001 = vmul.f32 %v8695, %v8695
    %v9002 = vmul.f32 %v8700, %v8700
    %v9003 = vmul.f32 %v8703, %v8703
    %v9004 = vmul.f32 %v8708, %v8708
    %v9005 = vmul.f32 %v8711, %v8711
    %v9006 = vmul.f32 %v8716, %v8716
    %v9007 = vmul.f32 %v8719, %v8719
    %v9008 = vmul.f32 %v8724, %v8724
    %v9009 = vmul.f32 %v8727, %v8727
    %v9010 = vmul.f32 %v8732, %v8732
    %v9011 = vmul.f32 %v8735, %v8735
    %v9012 = vmul.f32 %v8740, %v8740
    %v9013 = vmul.f32 %v8743, %v8743
    %v9014 = vmul.f32 %v8748, %v8748
    %v9015 = vmul.f32 %v8751, %v8751
    %v9016 = vmul.f32 %v8756, %v8756
    %v9017 = vmul.f32 %v8759, %v8759
    %v9018 = vmul.f32 %v8764, %v8764
    %v9019 = vmul.f32 %v8767, %v8767
    %v9020 = vmul.f32 %v8772, %v8772
    %v9021 = vmul.f32 %v8775, %v8775
    %v9022 = vmul.f32 %v8780, %v8780
    %v9023 = vmul.f32 %v8783, %v8783
    %v9024 = vmul.f32 %v8788, %v8788
    %v9025 = vmul.f32 %v8791, %v8791
    %v9026 = vmul.f32 %v8796, %v8796
    %v9027 = vmul.f32 %v8799, %v8799
    %v9028 = vmul.f32 %v8804, %v8804
    %v9029 = vmul.f32 %v8807, %v8807
    %v9030 = vmul.f32 %v8812, %v8812
    %v9031 = vmul.f32 %v8815, %v8815
    %v9032 = vmul.f32 %v8820, %v8820
    %v9033 = vmul.f32 %v8823, %v8823
    %v9034 = vmul.f32 %v8828, %v8828
    %v9035 = vmul.f32 %v8831, %v8831
    %v9036 = vmul.f32 %v8836, %v8836
    %v9037 = vmul.f32 %v8839, %v8839
    %v9038 = vmul.f32 %v8844, %v8844
    %v9039 = vmul.f32 %v8847, %v8847
    %v9040 = vmul.f32 %v8852, %v8852
    %v9041 = vmul.f32 %v8855, %v8855
    %v9042 = vmul.f32 %v8860, %v8860
    %v9043 = vmul.f32 %v8863, %v8863
    %v9044 = vmul.f32 %v8868, %v8868
    %v9045 = vmul.f32 %v8871, %v8871
    %v9046 = vmul.f32 %v8876, %v8876
    %v9047 = vmul.f32 %v8879, %v8879
    %v9048 = vmul.f32 %v8884, %v8884
    %v9049 = vmul.f32 %v8887, %v8887
    %v9050 = vmul.f32 %v8892, %v8892
    %v9051 = vmul.f32 %v8895, %v8895
    %v9052 = vmul.f32 %v8900, %v8900
    %v9053 = vmul.f32 %v8903, %v8903
    %v9054 = vmul.f32 %v8908, %v8908
    %v9055 = vmul.f32 %v8911, %v8911
    %v9056 = vmul.f32 %v8916, %v8916
    %v9057 = vmul.f32 %v8919, %v8919
    %v9058 = vadd.f32 %v8994, %v8995
    %v9059 = vadd.f32 %v9058, %v8996
    %v9060 = vadd.f32 %v9059, %v8997
    %v9061 = vadd.f32 %v9060, %v8998
    %v9062 = vadd.f32 %v9061, %v8999
    %v9063 = vadd.f32 %v9062, %v9000
    %v9064 = vadd.f32 %v9063, %v9001
    %v9065 = vadd.f32 %v9064, %v9002
    %v9066 = vadd.f32 %v9065, %v9003
    %v9067 = vadd.f32 %v9066, %v9004
    %v9068 = vadd.f32 %v9067, %v9005
    %v9069 = vadd.f32 %v9068, %v9006
    %v9070 = vadd.f32 %v9069, %v9007
    %v9071 = vadd.f32 %v9070, %v9008
    %v9072 = vadd.f32 %v9071, %v9009
    %v9073 = vadd.f32 %v9072, %v9010
    %v9074 = vadd.f32 %v9073, %v9011
    %v9075 = vadd.f32 %v9074, %v9012
    %v9076 = vadd.f32 %v9075, %v9013
    %v9077 = vadd.f32 %v9076, %v9014
    %v9078 = vadd.f32 %v9077, %v9015
    %v9079 = vadd.f32 %v9078, %v9016
    %v9080 = vadd.f32 %v9079, %v9017
    %v9081 = vadd.f32 %v9080, %v9018
    %v9082 = vadd.f32 %v9081, %v9019
    %v9083 = vadd.f32 %v9082, %v9020
    %v9084 = vadd.f32 %v9083, %v9021
    %v9085 = vadd.f32 %v9084, %v9022
    %v9086 = vadd.f32 %v9085, %v9023
    %v9087 = vadd.f32 %v9086, %v9024
    %v9088 = vadd.f32 %v9087, %v9025
    %v9089 = vadd.f32 %v9088, %v9026
    %v9090 = vadd.f32 %v9089, %v9027
    %v9091 = vadd.f32 %v9090, %v9028
    %v9092 = vadd.f32 %v9091, %v9029
    %v9093 = vadd.f32 %v9092, %v9030
    %v9094 = vadd.f32 %v9093, %v9031
    %v9095 = vadd.f32 %v9094, %v9032
    %v9096 = vadd.f32 %v9095, %v9033
    %v9097 = vadd.f32 %v9096, %v9034
    %v9098 = vadd.f32 %v9097, %v9035
    %v9099 = vadd.f32 %v9098, %v9036
    %v9100 = vadd.f32 %v9099, %v9037
    %v9101 = vadd.f32 %v9100, %v9038
    %v9102 = vadd.f32 %v9101, %v9039
    %v9103 = vadd.f32 %v9102, %v9040
    %v9104 = vadd.f32 %v9103, %v9041
    %v9105 = vadd.f32 %v9104, %v9042
    %v9106 = vadd.f32 %v9105, %v9043
    %v9107 = vadd.f32 %v9106, %v9044
    %v9108 = vadd.f32 %v9107, %v9045
    %v9109 = vadd.f32 %v9108, %v9046
    %v9110 = vadd.f32 %v9109, %v9047
    %v9111 = vadd.f32 %v9110, %v9048
    %v9112 = vadd.f32 %v9111, %v9049
    %v9113 = vadd.f32 %v9112, %v9050
    %v9114 = vadd.f32 %v9113, %v9051
    %v9115 = vadd.f32 %v9114, %v9052
    %v9116 = vadd.f32 %v9115, %v9053
    %v9117 = vadd.f32 %v9116, %v9054
    %v9118 = vadd.f32 %v9117, %v9055
    %v9119 = vadd.f32 %v9118, %v9056
    %v9120 = vadd.f32 %v9119, %v9057
    %v9121 = vrot.slane %v9120, 4
    %v9122 = vadd.f32 %v9120, %v9121
    %v9123 = vrot.slane %v9122, 2
    %v9124 = vadd.f32 %v9122, %v9123
    %v9125 = vrot.slane %v9124, 1
    %v9126 = vadd.f32 %v9124, %v9125
    %v9127 = vmul.f32 %v9126, 0.001953125
    %v9128 = vmul.f32 %v8993, %v8993
    %v9129 = vsub.f32 %v9127, %v9128
    %v9130 = vadd.f32 %v9129, 1e-05
    %v9131 = vrsqrt.pop %v9130
    %v9132 = vmul.f32 %v8922, %v9131
    %v9133 = vmul.f32 %v8993, %v9132
    %v9134 = vsub.f32 %v8923, %v9133
    %v9136 = vlaneseq
    %v9137 = vshrl.u32 %v9136, 7
    %v9138 = vsub.s32 0, %v9137
    %v9139 = vrot.slane %v9132, %v9138
    %v9141 = vmul.f32 %v8668, %v9139
    %v9142 = vmul.f32 %v8671, %v9139
    %v9143 = vmul.f32 %v8676, %v9139
    %v9144 = vmul.f32 %v8679, %v9139
    %v9145 = vmul.f32 %v8684, %v9139
    %v9146 = vmul.f32 %v8687, %v9139
    %v9147 = vmul.f32 %v8692, %v9139
    %v9148 = vmul.f32 %v8695, %v9139
    %v9149 = vmul.f32 %v8700, %v9139
    %v9150 = vmul.f32 %v8703, %v9139
    %v9151 = vmul.f32 %v8708, %v9139
    %v9152 = vmul.f32 %v8711, %v9139
    %v9153 = vmul.f32 %v8716, %v9139
    %v9154 = vmul.f32 %v8719, %v9139
    %v9155 = vmul.f32 %v8724, %v9139
    %v9156 = vmul.f32 %v8727, %v9139
    %v9157 = vmul.f32 %v8732, %v9139
    %v9158 = vmul.f32 %v8735, %v9139
    %v9159 = vmul.f32 %v8740, %v9139
    %v9160 = vmul.f32 %v8743, %v9139
    %v9161 = vmul.f32 %v8748, %v9139
    %v9162 = vmul.f32 %v8751, %v9139
    %v9163 = vmul.f32 %v8756, %v9139
    %v9164 = vmul.f32 %v8759, %v9139
    %v9165 = vmul.f32 %v8764, %v9139
    %v9166 = vmul.f32 %v8767, %v9139
    %v9167 = vmul.f32 %v8772, %v9139
    %v9168 = vmul.f32 %v8775, %v9139
    %v9169 = vmul.f32 %v8780, %v9139
    %v9170 = vmul.f32 %v8783, %v9139
    %v9171 = vmul.f32 %v8788, %v9139
    %v9172 = vmul.f32 %v8791, %v9139
    %v9173 = vmul.f32 %v8796, %v9139
    %v9174 = vmul.f32 %v8799, %v9139
    %v9175 = vmul.f32 %v8804, %v9139
    %v9176 = vmul.f32 %v8807, %v9139
    %v9177 = vmul.f32 %v8812, %v9139
    %v9178 = vmul.f32 %v8815, %v9139
    %v9179 = vmul.f32 %v8820, %v9139
    %v9180 = vmul.f32 %v8823, %v9139
    %v9181 = vmul.f32 %v8828, %v9139
    %v9182 = vmul.f32 %v8831, %v9139
    %v9183 = vmul.f32 %v8836, %v9139
    %v9184 = vmul.f32 %v8839, %v9139
    %v9185 = vmul.f32 %v8844, %v9139
    %v9186 = vmul.f32 %v8847, %v9139
    %v9187 = vmul.f32 %v8852, %v9139
    %v9188 = vmul.f32 %v8855, %v9139
    %v9189 = vmul.f32 %v8860, %v9139
    %v9190 = vmul.f32 %v8863, %v9139
    %v9191 = vmul.f32 %v8868, %v9139
    %v9192 = vmul.f32 %v8871, %v9139
    %v9193 = vmul.f32 %v8876, %v9139
    %v9194 = vmul.f32 %v8879, %v9139
    %v9195 = vmul.f32 %v8884, %v9139
    %v9196 = vmul.f32 %v8887, %v9139
    %v9197 = vmul.f32 %v8892, %v9139
    %v9198 = vmul.f32 %v8895, %v9139
    %v9199 = vmul.f32 %v8900, %v9139
    %v9200 = vmul.f32 %v8903, %v9139
    %v9201 = vmul.f32 %v8908, %v9139
    %v9202 = vmul.f32 %v8911, %v9139
    %v9203 = vmul.f32 %v8916, %v9139
    %v9204 = vmul.f32 %v8919, %v9139
    %v9206 = vlaneseq
    %v9207 = vshrl.u32 %v9206, 7
    %v9208 = vsub.s32 0, %v9207
    %v9209 = vrot.slane %v9134, %v9208
    %v9211 = vadd.f32 %v9141, %v9209
    %v9212 = vadd.f32 %v9142, %v9209
    %v9213 = vadd.f32 %v9143, %v9209
    %v9214 = vadd.f32 %v9144, %v9209
    %v9215 = vadd.f32 %v9145, %v9209
    %v9216 = vadd.f32 %v9146, %v9209
    %v9217 = vadd.f32 %v9147, %v9209
    %v9218 = vadd.f32 %v9148, %v9209
    %v9219 = vadd.f32 %v9149, %v9209
    %v9220 = vadd.f32 %v9150, %v9209
    %v9221 = vadd.f32 %v9151, %v9209
    %v9222 = vadd.f32 %v9152, %v9209
    %v9223 = vadd.f32 %v9153, %v9209
    %v9224 = vadd.f32 %v9154, %v9209
    %v9225 = vadd.f32 %v9155, %v9209
    %v9226 = vadd.f32 %v9156, %v9209
    %v9227 = vadd.f32 %v9157, %v9209
    %v9228 = vadd.f32 %v9158, %v9209
    %v9229 = vadd.f32 %v9159, %v9209
    %v9230 = vadd.f32 %v9160, %v9209
    %v9231 = vadd.f32 %v9161, %v9209
    %v9232 = vadd.f32 %v9162, %v9209
    %v9233 = vadd.f32 %v9163, %v9209
    %v9234 = vadd.f32 %v9164, %v9209
    %v9235 = vadd.f32 %v9165, %v9209
    %v9236 = vadd.f32 %v9166, %v9209
    %v9237 = vadd.f32 %v9167, %v9209
    %v9238 = vadd.f32 %v9168, %v9209
    %v9239 = vadd.f32 %v9169, %v9209
    %v9240 = vadd.f32 %v9170, %v9209
    %v9241 = vadd.f32 %v9171, %v9209
    %v9242 = vadd.f32 %v9172, %v9209
    %v9243 = vadd.f32 %v9173, %v9209
    %v9244 = vadd.f32 %v9174, %v9209
    %v9245 = vadd.f32 %v9175, %v9209
    %v9246 = vadd.f32 %v9176, %v9209
    %v9247 = vadd.f32 %v9177, %v9209
    %v9248 = vadd.f32 %v9178, %v9209
    %v9249 = vadd.f32 %v9179, %v9209
    %v9250 = vadd.f32 %v9180, %v9209
    %v9251 = vadd.f32 %v9181, %v9209
    %v9252 = vadd.f32 %v9182, %v9209
    %v9253 = vadd.f32 %v9183, %v9209
    %v9254 = vadd.f32 %v9184, %v9209
    %v9255 = vadd.f32 %v9185, %v9209
    %v9256 = vadd.f32 %v9186, %v9209
    %v9257 = vadd.f32 %v9187, %v9209
    %v9258 = vadd.f32 %v9188, %v9209
    %v9259 = vadd.f32 %v9189, %v9209
    %v9260 = vadd.f32 %v9190, %v9209
    %v9261 = vadd.f32 %v9191, %v9209
    %v9262 = vadd.f32 %v9192, %v9209
    %v9263 = vadd.f32 %v9193, %v9209
    %v9264 = vadd.f32 %v9194, %v9209
    %v9265 = vadd.f32 %v9195, %v9209
    %v9266 = vadd.f32 %v9196, %v9209
    %v9267 = vadd.f32 %v9197, %v9209
    %v9268 = vadd.f32 %v9198, %v9209
    %v9269 = vadd.f32 %v9199, %v9209
    %v9270 = vadd.f32 %v9200, %v9209
    %v9271 = vadd.f32 %v9201, %v9209
    %v9272 = vadd.f32 %v9202, %v9209
    %v9273 = vadd.f32 %v9203, %v9209
    %v9274 = vadd.f32 %v9204, %v9209
    %v9275 = vadd.f32 %v6837, %v9211
    %v9276 = vadd.f32 %v6838, %v9212
    %v9277 = vadd.f32 %v6839, %v9213
    %v9278 = vadd.f32 %v6840, %v9214
    %v9279 = vadd.f32 %v6841, %v9215
    %v9280 = vadd.f32 %v6842, %v9216
    %v9281 = vadd.f32 %v6843, %v9217
    %v9282 = vadd.f32 %v6844, %v9218
    %v9283 = vadd.f32 %v6845, %v9219
    %v9284 = vadd.f32 %v6846, %v9220
    %v9285 = vadd.f32 %v6847, %v9221
    %v9286 = vadd.f32 %v6848, %v9222
    %v9287 = vadd.f32 %v6849, %v9223
    %v9288 = vadd.f32 %v6850, %v9224
    %v9289 = vadd.f32 %v6851, %v9225
    %v9290 = vadd.f32 %v6852, %v9226
    %v9291 = vadd.f32 %v6853, %v9227
    %v9292 = vadd.f32 %v6854, %v9228
    %v9293 = vadd.f32 %v6855, %v9229
    %v9294 = vadd.f32 %v6856, %v9230
    %v9295 = vadd.f32 %v6857, %v9231
    %v9296 = vadd.f32 %v6858, %v9232
    %v9297 = vadd.f32 %v6859, %v9233
    %v9298 = vadd.f32 %v6860, %v9234
    %v9299 = vadd.f32 %v6861, %v9235
    %v9300 = vadd.f32 %v6862, %v9236
    %v9301 = vadd.f32 %v6863, %v9237
    %v9302 = vadd.f32 %v6864, %v9238
    %v9303 = vadd.f32 %v6865, %v9239
    %v9304 = vadd.f32 %v6866, %v9240
    %v9305 = vadd.f32 %v6867, %v9241
    %v9306 = vadd.f32 %v6868, %v9242
    %v9307 = vadd.f32 %v6869, %v9243
    %v9308 = vadd.f32 %v6870, %v9244
    %v9309 = vadd.f32 %v6871, %v9245
    %v9310 = vadd.f32 %v6872, %v9246
    %v9311 = vadd.f32 %v6873, %v9247
    %v9312 = vadd.f32 %v6874, %v9248
    %v9313 = vadd.f32 %v6875, %v9249
    %v9314 = vadd.f32 %v6876, %v9250
    %v9315 = vadd.f32 %v6877, %v9251
    %v9316 = vadd.f32 %v6878, %v9252
    %v9317 = vadd.f32 %v6879, %v9253
    %v9318 = vadd.f32 %v6880, %v9254
    %v9319 = vadd.f32 %v6881, %v9255
    %v9320 = vadd.f32 %v6882, %v9256
    %v9321 = vadd.f32 %v6883, %v9257
    %v9322 = vadd.f32 %v6884, %v9258
    %v9323 = vadd.f32 %v6885, %v9259
    %v9324 = vadd.f32 %v6886, %v9260
    %v9325 = vadd.f32 %v6887, %v9261
    %v9326 = vadd.f32 %v6888, %v9262
    %v9327 = vadd.f32 %v6889, %v9263
    %v9328 = vadd.f32 %v6890, %v9264
    %v9329 = vadd.f32 %v6891, %v9265
    %v9330 = vadd.f32 %v6892, %v9266
    %v9331 = vadd.f32 %v6893, %v9267
    %v9332 = vadd.f32 %v6894, %v9268
    %v9333 = vadd.f32 %v6895, %v9269
    %v9334 = vadd.f32 %v6896, %v9270
    %v9335 = vadd.f32 %v6897, %v9271
    %v9336 = vadd.f32 %v6898, %v9272
    %v9337 = vadd.f32 %v6899, %v9273
    %v9338 = vadd.f32 %v6900, %v9274
    %v9339 = vmax.f32 %v9275, 0.0
    %v9340 = vmax.f32 %v9276, 0.0
    %v9341 = vmax.f32 %v9277, 0.0
    %v9342 = vmax.f32 %v9278, 0.0
    %v9343 = vmax.f32 %v9279, 0.0
    %v9344 = vmax.f32 %v9280, 0.0
    %v9345 = vmax.f32 %v9281, 0.0
    %v9346 = vmax.f32 %v9282, 0.0
    %v9347 = vmax.f32 %v9283, 0.0
    %v9348 = vmax.f32 %v9284, 0.0
    %v9349 = vmax.f32 %v9285, 0.0
    %v9350 = vmax.f32 %v9286, 0.0
    %v9351 = vmax.f32 %v9287, 0.0
    %v9352 = vmax.f32 %v9288, 0.0
    %v9353 = vmax.f32 %v9289, 0.0
    %v9354 = vmax.f32 %v9290, 0.0
    %v9355 = vmax.f32 %v9291, 0.0
    %v9356 = vmax.f32 %v9292, 0.0
    %v9357 = vmax.f32 %v9293, 0.0
    %v9358 = vmax.f32 %v9294, 0.0
    %v9359 = vmax.f32 %v9295, 0.0
    %v9360 = vmax.f32 %v9296, 0.0
    %v9361 = vmax.f32 %v9297, 0.0
    %v9362 = vmax.f32 %v9298, 0.0
    %v9363 = vmax.f32 %v9299, 0.0
    %v9364 = vmax.f32 %v9300, 0.0
    %v9365 = vmax.f32 %v9301, 0.0
    %v9366 = vmax.f32 %v9302, 0.0
    %v9367 = vmax.f32 %v9303, 0.0
    %v9368 = vmax.f32 %v9304, 0.0
    %v9369 = vmax.f32 %v9305, 0.0
    %v9370 = vmax.f32 %v9306, 0.0
    %v9371 = vmax.f32 %v9307, 0.0
    %v9372 = vmax.f32 %v9308, 0.0
    %v9373 = vmax.f32 %v9309, 0.0
    %v9374 = vmax.f32 %v9310, 0.0
    %v9375 = vmax.f32 %v9311, 0.0
    %v9376 = vmax.f32 %v9312, 0.0
    %v9377 = vmax.f32 %v9313, 0.0
    %v9378 = vmax.f32 %v9314, 0.0
    %v9379 = vmax.f32 %v9315, 0.0
    %v9380 = vmax.f32 %v9316, 0.0
    %v9381 = vmax.f32 %v9317, 0.0
    %v9382 = vmax.f32 %v9318, 0.0
    %v9383 = vmax.f32 %v9319, 0.0
    %v9384 = vmax.f32 %v9320, 0.0
    %v9385 = vmax.f32 %v9321, 0.0
    %v9386 = vmax.f32 %v9322, 0.0
    %v9387 = vmax.f32 %v9323, 0.0
    %v9388 = vmax.f32 %v9324, 0.0
    %v9389 = vmax.f32 %v9325, 0.0
    %v9390 = vmax.f32 %v9326, 0.0
    %v9391 = vmax.f32 %v9327, 0.0
    %v9392 = vmax.f32 %v9328, 0.0
    %v9393 = vmax.f32 %v9329, 0.0
    %v9394 = vmax.f32 %v9330, 0.0
    %v9395 = vmax.f32 %v9331, 0.0
    %v9396 = vmax.f32 %v9332, 0.0
    %v9397 = vmax.f32 %v9333, 0.0
    %v9398 = vmax.f32 %v9334, 0.0
    %v9399 = vmax.f32 %v9335, 0.0
    %v9400 = vmax.f32 %v9336, 0.0
    %v9401 = vmax.f32 %v9337, 0.0
    %v9402 = vmax.f32 %v9338, 0.0
    %9403 = vst [vmem:[#allocation10] sm:$0xff] %v9339
    %9404 = vst [vmem:[#allocation10 + $0x8] sm:$0xff] %v9340
    %9405 = vst [vmem:[#allocation10 + $0x10] sm:$0xff] %v9341
    %9406 = vst [vmem:[#allocation10 + $0x18] sm:$0xff] %v9342
    %9407 = vst [vmem:[#allocation10 + $0x20] sm:$0xff] %v9343
    %9408 = vst [vmem:[#allocation10 + $0x28] sm:$0xff] %v9344
    %9409 = vst [vmem:[#allocation10 + $0x30] sm:$0xff] %v9345
    %9410 = vst [vmem:[#allocation10 + $0x38] sm:$0xff] %v9346
    %9411 = vst [vmem:[#allocation10 + $0x40] sm:$0xff] %v9347
    %9412 = vst [vmem:[#allocation10 + $0x48] sm:$0xff] %v9348
    %9413 = vst [vmem:[#allocation10 + $0x50] sm:$0xff] %v9349
    %9414 = vst [vmem:[#allocation10 + $0x58] sm:$0xff] %v9350
    %9415 = vst [vmem:[#allocation10 + $0x60] sm:$0xff] %v9351
    %9416 = vst [vmem:[#allocation10 + $0x68] sm:$0xff] %v9352
    %9417 = vst [vmem:[#allocation10 + $0x70] sm:$0xff] %v9353
    %9418 = vst [vmem:[#allocation10 + $0x78] sm:$0xff] %v9354
    %9419 = vst [vmem:[#allocation10 + $0x80] sm:$0xff] %v9355
    %9420 = vst [vmem:[#allocation10 + $0x88] sm:$0xff] %v9356
    %9421 = vst [vmem:[#allocation10 + $0x90] sm:$0xff] %v9357
    %9422 = vst [vmem:[#allocation10 + $0x98] sm:$0xff] %v9358
    %9423 = vst [vmem:[#allocation10 + $0xa0] sm:$0xff] %v9359
    %9424 = vst [vmem:[#allocation10 + $0xa8] sm:$0xff] %v9360
    %9425 = vst [vmem:[#allocation10 + $0xb0] sm:$0xff] %v9361
    %9426 = vst [vmem:[#allocation10 + $0xb8] sm:$0xff] %v9362
    %9427 = vst [vmem:[#allocation10 + $0xc0] sm:$0xff] %v9363
    %9428 = vst [vmem:[#allocation10 + $0xc8] sm:$0xff] %v9364
    %9429 = vst [vmem:[#allocation10 + $0xd0] sm:$0xff] %v9365
    %9430 = vst [vmem:[#allocation10 + $0xd8] sm:$0xff] %v9366
    %9431 = vst [vmem:[#allocation10 + $0xe0] sm:$0xff] %v9367
    %9432 = vst [vmem:[#allocation10 + $0xe8] sm:$0xff] %v9368
    %9433 = vst [vmem:[#allocation10 + $0xf0] sm:$0xff] %v9369
    %9434 = vst [vmem:[#allocation10 + $0xf8] sm:$0xff] %v9370
    %9435 = vst [vmem:[#allocation10 + $0x100] sm:$0xff] %v9371
    %9436 = vst [vmem:[#allocation10 + $0x108] sm:$0xff] %v9372
    %9437 = vst [vmem:[#allocation10 + $0x110] sm:$0xff] %v9373
    %9438 = vst [vmem:[#allocation10 + $0x118] sm:$0xff] %v9374
    %9439 = vst [vmem:[#allocation10 + $0x120] sm:$0xff] %v9375
    %9440 = vst [vmem:[#allocation10 + $0x128] sm:$0xff] %v9376
    %9441 = vst [vmem:[#allocation10 + $0x130] sm:$0xff] %v9377
    %9442 = vst [vmem:[#allocation10 + $0x138] sm:$0xff] %v9378
    %9443 = vst [vmem:[#allocation10 + $0x140] sm:$0xff] %v9379
    %9444 = vst [vmem:[#allocation10 + $0x148] sm:$0xff] %v9380
    %9445 = vst [vmem:[#allocation10 + $0x150] sm:$0xff] %v9381
    %9446 = vst [vmem:[#allocation10 + $0x158] sm:$0xff] %v9382
    %9447 = vst [vmem:[#allocation10 + $0x160] sm:$0xff] %v9383
    %9448 = vst [vmem:[#allocation10 + $0x168] sm:$0xff] %v9384
    %9449 = vst [vmem:[#allocation10 + $0x170] sm:$0xff] %v9385
    %9450 = vst [vmem:[#allocation10 + $0x178] sm:$0xff] %v9386
    %9451 = vst [vmem:[#allocation10 + $0x180] sm:$0xff] %v9387
    %9452 = vst [vmem:[#allocation10 + $0x188] sm:$0xff] %v9388
    %9453 = vst [vmem:[#allocation10 + $0x190] sm:$0xff] %v9389
    %9454 = vst [vmem:[#allocation10 + $0x198] sm:$0xff] %v9390
    %9455 = vst [vmem:[#allocation10 + $0x1a0] sm:$0xff] %v9391
    %9456 = vst [vmem:[#allocation10 + $0x1a8] sm:$0xff] %v9392
    %9457 = vst [vmem:[#allocation10 + $0x1b0] sm:$0xff] %v9393
    %9458 = vst [vmem:[#allocation10 + $0x1b8] sm:$0xff] %v9394
    %9459 = vst [vmem:[#allocation10 + $0x1c0] sm:$0xff] %v9395
    %9460 = vst [vmem:[#allocation10 + $0x1c8] sm:$0xff] %v9396
    %9461 = vst [vmem:[#allocation10 + $0x1d0] sm:$0xff] %v9397
    %9462 = vst [vmem:[#allocation10 + $0x1d8] sm:$0xff] %v9398
    %9463 = vst [vmem:[#allocation10 + $0x1e0] sm:$0xff] %v9399
    %9464 = vst [vmem:[#allocation10 + $0x1e8] sm:$0xff] %v9400
    %9465 = vst [vmem:[#allocation10 + $0x1f0] sm:$0xff] %v9401
    %9466 = vst [vmem:[#allocation10 + $0x1f8] sm:$0xff] %v9402
    // Predicated region
    $region58: #{tpu_custom_call.1} parent=1 // pred_check
      _
    $region59: #{tpu_custom_call.1} parent=1 // pred_check_branch
      %9468 = sbr.rel (0) target = $region61
    $region60: #{tpu_custom_call.1} parent=1 // pred_region
      %s9470 = ssub.s32 8192, 8192
      %9471 = vsyncadd [#allocation4], %s9470
      %s9472 = sshll.u32 [#allocation10], 4
      %s9473 = int_to_ptr.vmem [resolvable:$true] %s9472
      %9478 = dma.vmem_to_hbm [thread:$0]  %s9473, 8192, %s10, [#allocation4], 128, 128, 8
    $region61: #{tpu_custom_call.1} parent=1 // pred_fallthru
      _
    // Predicated region
    $region62: #{tpu_custom_call.1} parent=1 // pred_check
      _
    $region63: #{tpu_custom_call.1} parent=1 // pred_check_branch
      %9480 = sbr.rel (0) target = $region65
    $region64: #{tpu_custom_call.1} parent=1 // pred_region
      %9481 = dma.done [#allocation4], 8192
    $region65: #{tpu_custom_call.1} parent=1 // pred_fallthru
      _
    %9482 = vsyncpa [#allocation3], 1
    %9483 = vsyncpa [#allocation6], 1
    %9484 = vsyncpa [#allocation9], 1
    %9485 = vsyncpa [#allocation4], 1

</llo_original>
